<compile_context>
chip_gen: v7x
topology: tpu7x:2x2x1
jax: 0.10.0
libtpu: 0.0.40
codegen_flags: <defaults>
</compile_context>

<pallas_src>
import functools

import jax
import jax.numpy as jnp
from jax import lax
from jax.experimental import pallas as pl
from jax.experimental.pallas import tpu as pltpu


# -----------------------------------------------------------------------------
# Fused  ReLU -> Conv2d(k x k, stride=1, bias=False) -> BN(scale, bias)  stage
# -----------------------------------------------------------------------------
def _relu_conv_bn_kernel(x_ref, w_ref, scale_ref, bias_ref, o_ref,
                         *, row_offsets, compute_dtype):
    """One image per grid step.

    x_ref     : (1, N_in, Cin)    zero-padded input, spatially flattened
                                  (N_in = Hp*Wp + k - 1 extra zero rows so every
                                  tap window stays in bounds)
    w_ref     : (k*k, Cin, Cout)  conv taps, resident across the grid
    scale_ref : (1, Cout)         folded BN scale = gamma / sqrt(var + eps)
    bias_ref  : (1, Cout)         folded BN bias  = beta - mean * scale
    o_ref     : (1, Ho*Wp, Cout)  "wide" stride-1 output (junk right-edge
                                  columns are cropped by the wrapper)
    """
    n_rows = o_ref.shape[1]
    c_out = o_ref.shape[2]
    acc = jnp.zeros((n_rows, c_out), jnp.float32)
    # Conv as k*k shifted matmuls: wide-output row r of tap t reads padded
    # input row r + row_offsets[t]  (row_offsets[t] = dy*Wp + dx, static ints).
    for t, off in enumerate(row_offsets):
        xt = x_ref[0, pl.ds(off, n_rows), :]
        xt = jnp.maximum(xt, 0.0).astype(compute_dtype)     # ReLU precedes the conv
        wt = w_ref[t].astype(compute_dtype)
        acc = acc + jnp.dot(xt, wt, preferred_element_type=jnp.float32)
    y = acc * scale_ref[...] + bias_ref[...]                 # folded BatchNorm (inference)
    o_ref[0] = y.astype(o_ref.dtype)


def _relu_conv_bn_stage(x_nhwc, w_hwio, bn_scale, bn_bias, *,
                        padding, compute_dtype=jnp.bfloat16, out_dtype=None):
    """y = BN( conv2d( relu(x), stride=1, pad=padding, bias=False ) )

    x_nhwc: (B, H, W, Cin); w_hwio: (k, k, Cin, Cout);  returns (B, Ho, Wo, Cout).
    """
    b_dim, h, w, c_in = x_nhwc.shape
    k = w_hwio.shape[0]
    c_out = w_hwio.shape[3]
    if out_dtype is None:
        out_dtype = x_nhwc.dtype

    hp, wp = h + 2 * padding, w + 2 * padding
    ho, wo = hp - k + 1, wp - k + 1
    n_wide = ho * wp                  # wide (stride-1) output rows per image
    n_in = hp * wp + (k - 1)          # extra zero rows so every tap window fits

    # Zero-pad spatially; ReLU(0) == 0, so padding before the in-kernel ReLU is exact.
    xp = jnp.pad(x_nhwc, ((0, 0), (padding, padding), (padding, padding), (0, 0)))
    x2d = xp.reshape(b_dim, hp * wp, c_in)
    x2d = jnp.pad(x2d, ((0, 0), (0, k - 1), (0, 0)))
    x2d = x2d.astype(compute_dtype)                          # bf16 operands, f32 accum

    w_taps = w_hwio.reshape(k * k, c_in, c_out).astype(compute_dtype)
    scale2d = bn_scale.reshape(1, c_out).astype(jnp.float32)
    bias2d = bn_bias.reshape(1, c_out).astype(jnp.float32)

    row_offsets = tuple(dy * wp + dx for dy in range(k) for dx in range(k))

    kernel = functools.partial(_relu_conv_bn_kernel,
                               row_offsets=row_offsets,
                               compute_dtype=compute_dtype)

    flops = 2 * b_dim * n_wide * k * k * c_in * c_out
    bytes_accessed = int(x2d.size * x2d.dtype.itemsize
                         + w_taps.size * w_taps.dtype.itemsize
                         + b_dim * n_wide * c_out * jnp.dtype(out_dtype).itemsize)

    y_wide = pl.pallas_call(
        kernel,
        out_shape=jax.ShapeDtypeStruct((b_dim, n_wide, c_out), out_dtype),
        grid_spec=pltpu.PrefetchScalarGridSpec(
            num_scalar_prefetch=0,
            grid=(b_dim,),                                     # one image per grid step
            in_specs=[
                pl.BlockSpec((1, n_in, c_in), lambda b: (b, 0, 0)),
                pl.BlockSpec((k * k, c_in, c_out), lambda b: (0, 0, 0)),  # resident
                pl.BlockSpec((1, c_out), lambda b: (0, 0)),               # resident
                pl.BlockSpec((1, c_out), lambda b: (0, 0)),               # resident
            ],
            out_specs=pl.BlockSpec((1, n_wide, c_out), lambda b: (b, 0, 0)),
        ),
        compiler_params=pltpu.CompilerParams(
            dimension_semantics=("parallel",),   # images independent -> megacore + pipelining
        ),
        cost_estimate=pl.CostEstimate(flops=flops, transcendentals=0,
                                      bytes_accessed=bytes_accessed),
    )(x2d, w_taps, scale2d, bias2d)

    # Crop the wide output back to the valid conv window.
    return y_wide.reshape(b_dim, ho, wp, c_out)[:, :, :wo, :]


# -----------------------------------------------------------------------------
# Full ConvDouble forward
# -----------------------------------------------------------------------------
def _fold_bn(gamma, beta, mean, var, eps=1e-5):
    scale = gamma / jnp.sqrt(var + eps)
    return scale, beta - mean * scale


def conv_double_pallas(x_nchw, params, *, kernel_size, stride, padding,
                       compute_dtype=jnp.bfloat16):
    """ConvDouble.forward:  ReLU -> Conv(Cin->Cin, k, stride, pad) -> BN
                          -> ReLU -> Conv(Cin->Cout, k, 1,      pad) -> BN
    x_nchw: (B, Cin, H, W)  ->  (B, Cout, Ho, Wo)   (PyTorch NCHW layout).
    """
    assert params["w1"].shape[0] == kernel_size and params["w2"].shape[0] == kernel_size
    x = jnp.transpose(x_nchw, (0, 2, 3, 1))          # NCHW -> NHWC (channels on lanes)

    s1, b1 = _fold_bn(params["bn1_gamma"], params["bn1_beta"],
                      params["bn1_mean"], params["bn1_var"])
    s2, b2 = _fold_bn(params["bn2_gamma"], params["bn2_beta"],
                      params["bn2_mean"], params["bn2_var"])

    # Stage 1: ReLU -> Conv1 -> BN1.  Inter-stage activation stored in bf16.
    h = _relu_conv_bn_stage(x, params["w1"], s1, b1, padding=padding,
                            compute_dtype=compute_dtype, out_dtype=compute_dtype)
    if stride > 1:
        # Conv with stride s == stride-1 conv subsampled at stride s.
        # TODO(synk): for large strides an in-kernel strided row window would
        # avoid computing the skipped output rows.
        h = h[:, ::stride, ::stride, :]

    # Stage 2: ReLU -> Conv2 -> BN2 (stride 1), back to the input dtype.
    y = _relu_conv_bn_stage(h, params["w2"], s2, b2, padding=padding,
                            compute_dtype=compute_dtype, out_dtype=x_nchw.dtype)

    return jnp.transpose(y, (0, 3, 1, 2))            # NHWC -> NCHW


# -----------------------------------------------------------------------------
# Pure-JAX (XLA) reference in f32
# -----------------------------------------------------------------------------
def conv_double_ref(x_nchw, params, *, kernel_size, stride, padding):
    del kernel_size
    x = jnp.transpose(x_nchw, (0, 2, 3, 1)).astype(jnp.float32)
    dn = ("NHWC", "HWIO", "NHWC")
    pad = [(padding, padding), (padding, padding)]

    s1, b1 = _fold_bn(params["bn1_gamma"], params["bn1_beta"],
                      params["bn1_mean"], params["bn1_var"])
    s2, b2 = _fold_bn(params["bn2_gamma"], params["bn2_beta"],
                      params["bn2_mean"], params["bn2_var"])

    h = jnp.maximum(x, 0.0)
    h = lax.conv_general_dilated(h, params["w1"].astype(jnp.float32),
                                 window_strides=(stride, stride), padding=pad,
                                 dimension_numbers=dn)
    h = h * s1 + b1
    h = jnp.maximum(h, 0.0)
    y = lax.conv_general_dilated(h, params["w2"].astype(jnp.float32),
                                 window_strides=(1, 1), padding=pad,
                                 dimension_numbers=dn)
    y = y * s2 + b2
    return jnp.transpose(y, (0, 3, 1, 2))


if __name__ == "__main__":
    key = jax.random.PRNGKey(0)
    B, C_in, H, W = 2, 4, 16, 16
    C_out = 8
    kernel_size, stride, padding = 3, 1, 1

    ks = jax.random.split(key, 9)
    x = jax.random.normal(ks[0], (B, C_in, H, W), dtype=jnp.float32)
    params = {
        # Conv weights in HWIO layout (k, k, Cin, Cout); PyTorch OIHW would be
        # transposed the same way before calling the wrapper.
        "w1": 0.1 * jax.random.normal(ks[1], (kernel_size, kernel_size, C_in, C_in),
                                      dtype=jnp.float32),
        "w2": 0.1 * jax.random.normal(ks[2], (kernel_size, kernel_size, C_in, C_out),
                                      dtype=jnp.float32),
        "bn1_gamma": 1.0 + 0.1 * jax.random.normal(ks[3], (C_in,), dtype=jnp.float32),
        "bn1_beta": 0.1 * jax.random.normal(ks[4], (C_in,), dtype=jnp.float32),
        "bn1_mean": 0.1 * jax.random.normal(ks[5], (C_in,), dtype=jnp.float32),
        "bn1_var": 1.0 + 0.1 * jnp.abs(jax.random.normal(ks[6], (C_in,), dtype=jnp.float32)),
        "bn2_gamma": 1.0 + 0.1 * jax.random.normal(ks[7], (C_out,), dtype=jnp.float32),
        "bn2_beta": 0.1 * jax.random.normal(ks[8], (C_out,), dtype=jnp.float32),
        "bn2_mean": jnp.zeros((C_out,), jnp.float32),
        "bn2_var": jnp.ones((C_out,), jnp.float32),
    }

    fwd = jax.jit(functools.partial(conv_double_pallas, kernel_size=kernel_size,
                                    stride=stride, padding=padding))
    y = fwd(x, params)
    jax.block_until_ready(y)

    y_ref = conv_double_ref(x, params, kernel_size=kernel_size,
                            stride=stride, padding=padding)

    h1 = (H + 2 * padding - kernel_size) // stride + 1
    w1 = (W + 2 * padding - kernel_size) // stride + 1
    ho = h1 + 2 * padding - kernel_size + 1
    wo = w1 + 2 * padding - kernel_size + 1
    assert y.shape == (B, C_out, ho, wo), y.shape
    assert y_ref.shape == y.shape

    # bf16 MXU operands (f32 accumulation) -> relaxed tolerance vs the f32 reference.
    err = float(jnp.max(jnp.abs(y.astype(jnp.float32) - y_ref)))
    assert err < 3e-2, f"mismatch vs reference: max abs err = {err}"
    print("KERNEL_OK")
</pallas_src>

<mosaic_0001>
module attributes {stable_mosaic.version = 11 : i64} {
  func.func @_relu_conv_bn_kernel(%arg0: i32, %arg1: memref<1x326x4xbf16, #tpu.memory_space<vmem>>, %arg2: memref<9x4x4xbf16, #tpu.memory_space<vmem>>, %arg3: memref<1x4xf32, #tpu.memory_space<vmem>>, %arg4: memref<1x4xf32, #tpu.memory_space<vmem>>, %arg5: memref<1x288x4xbf16, #tpu.memory_space<vmem>>) attributes {dimension_semantics = [#tpu.dimension_semantics<parallel>], iteration_bounds = array<i64: 2>, scalar_prefetch = 0 : i64, scratch_operands = 0 : i64, tpu.core_type = #tpu.core_type<tc>, window_params = [{transform_indices = @transform_0, window_bounds = array<i64: 1, 326, 4>}, {pipeline_mode = #tpu.pipeline_mode<synchronous>, transform_indices = @transform_1, window_bounds = array<i64: 9, 4, 4>}, {pipeline_mode = #tpu.pipeline_mode<synchronous>, transform_indices = @transform_2, window_bounds = array<i64: 1, 4>}, {pipeline_mode = #tpu.pipeline_mode<synchronous>, transform_indices = @transform_3, window_bounds = array<i64: 1, 4>}, {transform_indices = @transform_4, window_bounds = array<i64: 1, 288, 4>}]} {
    %cst = arith.constant 0.000000e+00 : f32
    %0 = vector.broadcast %cst : f32 to vector<288x4xf32>
    %c0 = arith.constant 0 : index
    %c0_0 = arith.constant 0 : index
    %c0_1 = arith.constant 0 : index
    %1 = vector.load %arg1[%c0, %c0_0, %c0_1] : memref<1x326x4xbf16, #tpu.memory_space<vmem>>, vector<1x288x4xbf16>
    %2 = vector.shape_cast %1 : vector<1x288x4xbf16> to vector<288x4xbf16>
    %cst_2 = arith.constant 0.000000e+00 : bf16
    %3 = vector.broadcast %cst_2 : bf16 to vector<288x4xbf16>
    %4 = arith.maximumf %2, %3 : vector<288x4xbf16>
    %c0_3 = arith.constant 0 : index
    %c0_4 = arith.constant 0 : index
    %c0_5 = arith.constant 0 : index
    %5 = vector.load %arg2[%c0_3, %c0_4, %c0_5] : memref<9x4x4xbf16, #tpu.memory_space<vmem>>, vector<1x4x4xbf16>
    %6 = vector.shape_cast %5 : vector<1x4x4xbf16> to vector<4x4xbf16>
    %cst_6 = arith.constant dense<0.000000e+00> : vector<288x4xf32>
    %7 = tpu.matmul %4, %6, %cst_6 {dimension_numbers = #tpu.dot_dimension_numbers<[1], [0], [0], [1], [0, 0, 1, 1], [], []>} : vector<288x4xbf16>, vector<4x4xbf16>, vector<288x4xf32> -> vector<288x4xf32>
    %8 = arith.addf %0, %7 : vector<288x4xf32>
    %c0_7 = arith.constant 0 : index
    %c1 = arith.constant 1 : index
    %c0_8 = arith.constant 0 : index
    %9 = vector.load %arg1[%c0_7, %c1, %c0_8] : memref<1x326x4xbf16, #tpu.memory_space<vmem>>, vector<1x288x4xbf16>
    %10 = vector.shape_cast %9 : vector<1x288x4xbf16> to vector<288x4xbf16>
    %cst_9 = arith.constant 0.000000e+00 : bf16
    %11 = vector.broadcast %cst_9 : bf16 to vector<288x4xbf16>
    %12 = arith.maximumf %10, %11 : vector<288x4xbf16>
    %c1_10 = arith.constant 1 : index
    %c0_11 = arith.constant 0 : index
    %c0_12 = arith.constant 0 : index
    %13 = vector.load %arg2[%c1_10, %c0_11, %c0_12] : memref<9x4x4xbf16, #tpu.memory_space<vmem>>, vector<1x4x4xbf16>
    %14 = vector.shape_cast %13 : vector<1x4x4xbf16> to vector<4x4xbf16>
    %cst_13 = arith.constant dense<0.000000e+00> : vector<288x4xf32>
    %15 = tpu.matmul %12, %14, %cst_13 {dimension_numbers = #tpu.dot_dimension_numbers<[1], [0], [0], [1], [0, 0, 1, 1], [], []>} : vector<288x4xbf16>, vector<4x4xbf16>, vector<288x4xf32> -> vector<288x4xf32>
    %16 = arith.addf %8, %15 : vector<288x4xf32>
    %c0_14 = arith.constant 0 : index
    %c2 = arith.constant 2 : index
    %c0_15 = arith.constant 0 : index
    %17 = vector.load %arg1[%c0_14, %c2, %c0_15] : memref<1x326x4xbf16, #tpu.memory_space<vmem>>, vector<1x288x4xbf16>
    %18 = vector.shape_cast %17 : vector<1x288x4xbf16> to vector<288x4xbf16>
    %cst_16 = arith.constant 0.000000e+00 : bf16
    %19 = vector.broadcast %cst_16 : bf16 to vector<288x4xbf16>
    %20 = arith.maximumf %18, %19 : vector<288x4xbf16>
    %c2_17 = arith.constant 2 : index
    %c0_18 = arith.constant 0 : index
    %c0_19 = arith.constant 0 : index
    %21 = vector.load %arg2[%c2_17, %c0_18, %c0_19] : memref<9x4x4xbf16, #tpu.memory_space<vmem>>, vector<1x4x4xbf16>
    %22 = vector.shape_cast %21 : vector<1x4x4xbf16> to vector<4x4xbf16>
    %cst_20 = arith.constant dense<0.000000e+00> : vector<288x4xf32>
    %23 = tpu.matmul %20, %22, %cst_20 {dimension_numbers = #tpu.dot_dimension_numbers<[1], [0], [0], [1], [0, 0, 1, 1], [], []>} : vector<288x4xbf16>, vector<4x4xbf16>, vector<288x4xf32> -> vector<288x4xf32>
    %24 = arith.addf %16, %23 : vector<288x4xf32>
    %c0_21 = arith.constant 0 : index
    %c18 = arith.constant 18 : index
    %c0_22 = arith.constant 0 : index
    %25 = vector.load %arg1[%c0_21, %c18, %c0_22] : memref<1x326x4xbf16, #tpu.memory_space<vmem>>, vector<1x288x4xbf16>
    %26 = vector.shape_cast %25 : vector<1x288x4xbf16> to vector<288x4xbf16>
    %cst_23 = arith.constant 0.000000e+00 : bf16
    %27 = vector.broadcast %cst_23 : bf16 to vector<288x4xbf16>
    %28 = arith.maximumf %26, %27 : vector<288x4xbf16>
    %c3 = arith.constant 3 : index
    %c0_24 = arith.constant 0 : index
    %c0_25 = arith.constant 0 : index
    %29 = vector.load %arg2[%c3, %c0_24, %c0_25] : memref<9x4x4xbf16, #tpu.memory_space<vmem>>, vector<1x4x4xbf16>
    %30 = vector.shape_cast %29 : vector<1x4x4xbf16> to vector<4x4xbf16>
    %cst_26 = arith.constant dense<0.000000e+00> : vector<288x4xf32>
    %31 = tpu.matmul %28, %30, %cst_26 {dimension_numbers = #tpu.dot_dimension_numbers<[1], [0], [0], [1], [0, 0, 1, 1], [], []>} : vector<288x4xbf16>, vector<4x4xbf16>, vector<288x4xf32> -> vector<288x4xf32>
    %32 = arith.addf %24, %31 : vector<288x4xf32>
    %c0_27 = arith.constant 0 : index
    %c19 = arith.constant 19 : index
    %c0_28 = arith.constant 0 : index
    %33 = vector.load %arg1[%c0_27, %c19, %c0_28] : memref<1x326x4xbf16, #tpu.memory_space<vmem>>, vector<1x288x4xbf16>
    %34 = vector.shape_cast %33 : vector<1x288x4xbf16> to vector<288x4xbf16>
    %cst_29 = arith.constant 0.000000e+00 : bf16
    %35 = vector.broadcast %cst_29 : bf16 to vector<288x4xbf16>
    %36 = arith.maximumf %34, %35 : vector<288x4xbf16>
    %c4 = arith.constant 4 : index
    %c0_30 = arith.constant 0 : index
    %c0_31 = arith.constant 0 : index
    %37 = vector.load %arg2[%c4, %c0_30, %c0_31] : memref<9x4x4xbf16, #tpu.memory_space<vmem>>, vector<1x4x4xbf16>
    %38 = vector.shape_cast %37 : vector<1x4x4xbf16> to vector<4x4xbf16>
    %cst_32 = arith.constant dense<0.000000e+00> : vector<288x4xf32>
    %39 = tpu.matmul %36, %38, %cst_32 {dimension_numbers = #tpu.dot_dimension_numbers<[1], [0], [0], [1], [0, 0, 1, 1], [], []>} : vector<288x4xbf16>, vector<4x4xbf16>, vector<288x4xf32> -> vector<288x4xf32>
    %40 = arith.addf %32, %39 : vector<288x4xf32>
    %c0_33 = arith.constant 0 : index
    %c20 = arith.constant 20 : index
    %c0_34 = arith.constant 0 : index
    %41 = vector.load %arg1[%c0_33, %c20, %c0_34] : memref<1x326x4xbf16, #tpu.memory_space<vmem>>, vector<1x288x4xbf16>
    %42 = vector.shape_cast %41 : vector<1x288x4xbf16> to vector<288x4xbf16>
    %cst_35 = arith.constant 0.000000e+00 : bf16
    %43 = vector.broadcast %cst_35 : bf16 to vector<288x4xbf16>
    %44 = arith.maximumf %42, %43 : vector<288x4xbf16>
    %c5 = arith.constant 5 : index
    %c0_36 = arith.constant 0 : index
    %c0_37 = arith.constant 0 : index
    %45 = vector.load %arg2[%c5, %c0_36, %c0_37] : memref<9x4x4xbf16, #tpu.memory_space<vmem>>, vector<1x4x4xbf16>
    %46 = vector.shape_cast %45 : vector<1x4x4xbf16> to vector<4x4xbf16>
    %cst_38 = arith.constant dense<0.000000e+00> : vector<288x4xf32>
    %47 = tpu.matmul %44, %46, %cst_38 {dimension_numbers = #tpu.dot_dimension_numbers<[1], [0], [0], [1], [0, 0, 1, 1], [], []>} : vector<288x4xbf16>, vector<4x4xbf16>, vector<288x4xf32> -> vector<288x4xf32>
    %48 = arith.addf %40, %47 : vector<288x4xf32>
    %c0_39 = arith.constant 0 : index
    %c36 = arith.constant 36 : index
    %c0_40 = arith.constant 0 : index
    %49 = vector.load %arg1[%c0_39, %c36, %c0_40] : memref<1x326x4xbf16, #tpu.memory_space<vmem>>, vector<1x288x4xbf16>
    %50 = vector.shape_cast %49 : vector<1x288x4xbf16> to vector<288x4xbf16>
    %cst_41 = arith.constant 0.000000e+00 : bf16
    %51 = vector.broadcast %cst_41 : bf16 to vector<288x4xbf16>
    %52 = arith.maximumf %50, %51 : vector<288x4xbf16>
    %c6 = arith.constant 6 : index
    %c0_42 = arith.constant 0 : index
    %c0_43 = arith.constant 0 : index
    %53 = vector.load %arg2[%c6, %c0_42, %c0_43] : memref<9x4x4xbf16, #tpu.memory_space<vmem>>, vector<1x4x4xbf16>
    %54 = vector.shape_cast %53 : vector<1x4x4xbf16> to vector<4x4xbf16>
    %cst_44 = arith.constant dense<0.000000e+00> : vector<288x4xf32>
    %55 = tpu.matmul %52, %54, %cst_44 {dimension_numbers = #tpu.dot_dimension_numbers<[1], [0], [0], [1], [0, 0, 1, 1], [], []>} : vector<288x4xbf16>, vector<4x4xbf16>, vector<288x4xf32> -> vector<288x4xf32>
    %56 = arith.addf %48, %55 : vector<288x4xf32>
    %c0_45 = arith.constant 0 : index
    %c37 = arith.constant 37 : index
    %c0_46 = arith.constant 0 : index
    %57 = vector.load %arg1[%c0_45, %c37, %c0_46] : memref<1x326x4xbf16, #tpu.memory_space<vmem>>, vector<1x288x4xbf16>
    %58 = vector.shape_cast %57 : vector<1x288x4xbf16> to vector<288x4xbf16>
    %cst_47 = arith.constant 0.000000e+00 : bf16
    %59 = vector.broadcast %cst_47 : bf16 to vector<288x4xbf16>
    %60 = arith.maximumf %58, %59 : vector<288x4xbf16>
    %c7 = arith.constant 7 : index
    %c0_48 = arith.constant 0 : index
    %c0_49 = arith.constant 0 : index
    %61 = vector.load %arg2[%c7, %c0_48, %c0_49] : memref<9x4x4xbf16, #tpu.memory_space<vmem>>, vector<1x4x4xbf16>
    %62 = vector.shape_cast %61 : vector<1x4x4xbf16> to vector<4x4xbf16>
    %cst_50 = arith.constant dense<0.000000e+00> : vector<288x4xf32>
    %63 = tpu.matmul %60, %62, %cst_50 {dimension_numbers = #tpu.dot_dimension_numbers<[1], [0], [0], [1], [0, 0, 1, 1], [], []>} : vector<288x4xbf16>, vector<4x4xbf16>, vector<288x4xf32> -> vector<288x4xf32>
    %64 = arith.addf %56, %63 : vector<288x4xf32>
    %c0_51 = arith.constant 0 : index
    %c38 = arith.constant 38 : index
    %c0_52 = arith.constant 0 : index
    %65 = vector.load %arg1[%c0_51, %c38, %c0_52] : memref<1x326x4xbf16, #tpu.memory_space<vmem>>, vector<1x288x4xbf16>
    %66 = vector.shape_cast %65 : vector<1x288x4xbf16> to vector<288x4xbf16>
    %cst_53 = arith.constant 0.000000e+00 : bf16
    %67 = vector.broadcast %cst_53 : bf16 to vector<288x4xbf16>
    %68 = arith.maximumf %66, %67 : vector<288x4xbf16>
    %c8 = arith.constant 8 : index
    %c0_54 = arith.constant 0 : index
    %c0_55 = arith.constant 0 : index
    %69 = vector.load %arg2[%c8, %c0_54, %c0_55] : memref<9x4x4xbf16, #tpu.memory_space<vmem>>, vector<1x4x4xbf16>
    %70 = vector.shape_cast %69 : vector<1x4x4xbf16> to vector<4x4xbf16>
    %cst_56 = arith.constant dense<0.000000e+00> : vector<288x4xf32>
    %71 = tpu.matmul %68, %70, %cst_56 {dimension_numbers = #tpu.dot_dimension_numbers<[1], [0], [0], [1], [0, 0, 1, 1], [], []>} : vector<288x4xbf16>, vector<4x4xbf16>, vector<288x4xf32> -> vector<288x4xf32>
    %72 = arith.addf %64, %71 : vector<288x4xf32>
    %c0_57 = arith.constant 0 : index
    %c0_58 = arith.constant 0 : index
    %73 = vector.load %arg3[%c0_57, %c0_58] : memref<1x4xf32, #tpu.memory_space<vmem>>, vector<1x4xf32>
    %74 = vector.broadcast %73 : vector<1x4xf32> to vector<288x4xf32>
    %75 = arith.mulf %72, %74 : vector<288x4xf32>
    %c0_59 = arith.constant 0 : index
    %c0_60 = arith.constant 0 : index
    %76 = vector.load %arg4[%c0_59, %c0_60] : memref<1x4xf32, #tpu.memory_space<vmem>>, vector<1x4xf32>
    %77 = vector.broadcast %76 : vector<1x4xf32> to vector<288x4xf32>
    %78 = arith.addf %75, %77 : vector<288x4xf32>
    %79 = arith.truncf %78 : vector<288x4xf32> to vector<288x4xbf16>
    %c0_61 = arith.constant 0 : index
    %c0_62 = arith.constant 0 : index
    %c0_63 = arith.constant 0 : index
    %80 = vector.load %arg5[%c0_61, %c0_62, %c0_63] : memref<1x288x4xbf16, #tpu.memory_space<vmem>>, vector<1x288x4xbf16>
    %81 = vector.shape_cast %80 : vector<1x288x4xbf16> to vector<288x4xbf16>
    %82 = vector.shape_cast %79 : vector<288x4xbf16> to vector<1x288x4xbf16>
    tpu.vector_store %arg5[%c0_61, %c0_62, %c0_63], %82 {strides = array<i32>} : memref<1x288x4xbf16, #tpu.memory_space<vmem>>, vector<1x288x4xbf16>,
    return
  }
  func.func @transform_0(%arg0: i32) -> (i32, i32, i32) {
    %c0_i32 = arith.constant 0 : i32
    %c0_i32_0 = arith.constant 0 : i32
    %c0_i32_1 = arith.constant 0 : i32
    return %arg0, %c0_i32, %c0_i32_0 : i32, i32, i32
  }
  func.func @transform_1(%arg0: i32) -> (i32, i32, i32) {
    %c0_i32 = arith.constant 0 : i32
    %c0_i32_0 = arith.constant 0 : i32
    %c0_i32_1 = arith.constant 0 : i32
    %c0_i32_2 = arith.constant 0 : i32
    return %c0_i32, %c0_i32_0, %c0_i32_1 : i32, i32, i32
  }
  func.func @transform_2(%arg0: i32) -> (i32, i32) {
    %c0_i32 = arith.constant 0 : i32
    %c0_i32_0 = arith.constant 0 : i32
    %c0_i32_1 = arith.constant 0 : i32
    return %c0_i32, %c0_i32_0 : i32, i32
  }
  func.func @transform_3(%arg0: i32) -> (i32, i32) {
    %c0_i32 = arith.constant 0 : i32
    %c0_i32_0 = arith.constant 0 : i32
    %c0_i32_1 = arith.constant 0 : i32
    return %c0_i32, %c0_i32_0 : i32, i32
  }
  func.func @transform_4(%arg0: i32) -> (i32, i32, i32) {
    %c0_i32 = arith.constant 0 : i32
    %c0_i32_0 = arith.constant 0 : i32
    %c0_i32_1 = arith.constant 0 : i32
    return %arg0, %c0_i32, %c0_i32_0 : i32, i32, i32
  }
}

module attributes {stable_mosaic.version = 11 : i64} {
  func.func @_relu_conv_bn_kernel(%arg0: i32, %arg1: memref<1x326x4xbf16, #tpu.memory_space<vmem>>, %arg2: memref<9x4x8xbf16, #tpu.memory_space<vmem>>, %arg3: memref<1x8xf32, #tpu.memory_space<vmem>>, %arg4: memref<1x8xf32, #tpu.memory_space<vmem>>, %arg5: memref<1x288x8xf32, #tpu.memory_space<vmem>>) attributes {dimension_semantics = [#tpu.dimension_semantics<parallel>], iteration_bounds = array<i64: 2>, scalar_prefetch = 0 : i64, scratch_operands = 0 : i64, tpu.core_type = #tpu.core_type<tc>, window_params = [{transform_indices = @transform_0, window_bounds = array<i64: 1, 326, 4>}, {pipeline_mode = #tpu.pipeline_mode<synchronous>, transform_indices = @transform_1, window_bounds = array<i64: 9, 4, 8>}, {pipeline_mode = #tpu.pipeline_mode<synchronous>, transform_indices = @transform_2, window_bounds = array<i64: 1, 8>}, {pipeline_mode = #tpu.pipeline_mode<synchronous>, transform_indices = @transform_3, window_bounds = array<i64: 1, 8>}, {transform_indices = @transform_4, window_bounds = array<i64: 1, 288, 8>}]} {
    %cst = arith.constant 0.000000e+00 : f32
    %0 = vector.broadcast %cst : f32 to vector<288x8xf32>
    %c0 = arith.constant 0 : index
    %c0_0 = arith.constant 0 : index
    %c0_1 = arith.constant 0 : index
    %1 = vector.load %arg1[%c0, %c0_0, %c0_1] : memref<1x326x4xbf16, #tpu.memory_space<vmem>>, vector<1x288x4xbf16>
    %2 = vector.shape_cast %1 : vector<1x288x4xbf16> to vector<288x4xbf16>
    %cst_2 = arith.constant 0.000000e+00 : bf16
    %3 = vector.broadcast %cst_2 : bf16 to vector<288x4xbf16>
    %4 = arith.maximumf %2, %3 : vector<288x4xbf16>
    %c0_3 = arith.constant 0 : index
    %c0_4 = arith.constant 0 : index
    %c0_5 = arith.constant 0 : index
    %5 = vector.load %arg2[%c0_3, %c0_4, %c0_5] : memref<9x4x8xbf16, #tpu.memory_space<vmem>>, vector<1x4x8xbf16>
    %6 = vector.shape_cast %5 : vector<1x4x8xbf16> to vector<4x8xbf16>
    %cst_6 = arith.constant dense<0.000000e+00> : vector<288x8xf32>
    %7 = tpu.matmul %4, %6, %cst_6 {dimension_numbers = #tpu.dot_dimension_numbers<[1], [0], [0], [1], [0, 0, 1, 1], [], []>} : vector<288x4xbf16>, vector<4x8xbf16>, vector<288x8xf32> -> vector<288x8xf32>
    %8 = arith.addf %0, %7 : vector<288x8xf32>
    %c0_7 = arith.constant 0 : index
    %c1 = arith.constant 1 : index
    %c0_8 = arith.constant 0 : index
    %9 = vector.load %arg1[%c0_7, %c1, %c0_8] : memref<1x326x4xbf16, #tpu.memory_space<vmem>>, vector<1x288x4xbf16>
    %10 = vector.shape_cast %9 : vector<1x288x4xbf16> to vector<288x4xbf16>
    %cst_9 = arith.constant 0.000000e+00 : bf16
    %11 = vector.broadcast %cst_9 : bf16 to vector<288x4xbf16>
    %12 = arith.maximumf %10, %11 : vector<288x4xbf16>
    %c1_10 = arith.constant 1 : index
    %c0_11 = arith.constant 0 : index
    %c0_12 = arith.constant 0 : index
    %13 = vector.load %arg2[%c1_10, %c0_11, %c0_12] : memref<9x4x8xbf16, #tpu.memory_space<vmem>>, vector<1x4x8xbf16>
    %14 = vector.shape_cast %13 : vector<1x4x8xbf16> to vector<4x8xbf16>
    %cst_13 = arith.constant dense<0.000000e+00> : vector<288x8xf32>
    %15 = tpu.matmul %12, %14, %cst_13 {dimension_numbers = #tpu.dot_dimension_numbers<[1], [0], [0], [1], [0, 0, 1, 1], [], []>} : vector<288x4xbf16>, vector<4x8xbf16>, vector<288x8xf32> -> vector<288x8xf32>
    %16 = arith.addf %8, %15 : vector<288x8xf32>
    %c0_14 = arith.constant 0 : index
    %c2 = arith.constant 2 : index
    %c0_15 = arith.constant 0 : index
    %17 = vector.load %arg1[%c0_14, %c2, %c0_15] : memref<1x326x4xbf16, #tpu.memory_space<vmem>>, vector<1x288x4xbf16>
    %18 = vector.shape_cast %17 : vector<1x288x4xbf16> to vector<288x4xbf16>
    %cst_16 = arith.constant 0.000000e+00 : bf16
    %19 = vector.broadcast %cst_16 : bf16 to vector<288x4xbf16>
    %20 = arith.maximumf %18, %19 : vector<288x4xbf16>
    %c2_17 = arith.constant 2 : index
    %c0_18 = arith.constant 0 : index
    %c0_19 = arith.constant 0 : index
    %21 = vector.load %arg2[%c2_17, %c0_18, %c0_19] : memref<9x4x8xbf16, #tpu.memory_space<vmem>>, vector<1x4x8xbf16>
    %22 = vector.shape_cast %21 : vector<1x4x8xbf16> to vector<4x8xbf16>
    %cst_20 = arith.constant dense<0.000000e+00> : vector<288x8xf32>
    %23 = tpu.matmul %20, %22, %cst_20 {dimension_numbers = #tpu.dot_dimension_numbers<[1], [0], [0], [1], [0, 0, 1, 1], [], []>} : vector<288x4xbf16>, vector<4x8xbf16>, vector<288x8xf32> -> vector<288x8xf32>
    %24 = arith.addf %16, %23 : vector<288x8xf32>
    %c0_21 = arith.constant 0 : index
    %c18 = arith.constant 18 : index
    %c0_22 = arith.constant 0 : index
    %25 = vector.load %arg1[%c0_21, %c18, %c0_22] : memref<1x326x4xbf16, #tpu.memory_space<vmem>>, vector<1x288x4xbf16>
    %26 = vector.shape_cast %25 : vector<1x288x4xbf16> to vector<288x4xbf16>
    %cst_23 = arith.constant 0.000000e+00 : bf16
    %27 = vector.broadcast %cst_23 : bf16 to vector<288x4xbf16>
    %28 = arith.maximumf %26, %27 : vector<288x4xbf16>
    %c3 = arith.constant 3 : index
    %c0_24 = arith.constant 0 : index
    %c0_25 = arith.constant 0 : index
    %29 = vector.load %arg2[%c3, %c0_24, %c0_25] : memref<9x4x8xbf16, #tpu.memory_space<vmem>>, vector<1x4x8xbf16>
    %30 = vector.shape_cast %29 : vector<1x4x8xbf16> to vector<4x8xbf16>
    %cst_26 = arith.constant dense<0.000000e+00> : vector<288x8xf32>
    %31 = tpu.matmul %28, %30, %cst_26 {dimension_numbers = #tpu.dot_dimension_numbers<[1], [0], [0], [1], [0, 0, 1, 1], [], []>} : vector<288x4xbf16>, vector<4x8xbf16>, vector<288x8xf32> -> vector<288x8xf32>
    %32 = arith.addf %24, %31 : vector<288x8xf32>
    %c0_27 = arith.constant 0 : index
    %c19 = arith.constant 19 : index
    %c0_28 = arith.constant 0 : index
    %33 = vector.load %arg1[%c0_27, %c19, %c0_28] : memref<1x326x4xbf16, #tpu.memory_space<vmem>>, vector<1x288x4xbf16>
    %34 = vector.shape_cast %33 : vector<1x288x4xbf16> to vector<288x4xbf16>
    %cst_29 = arith.constant 0.000000e+00 : bf16
    %35 = vector.broadcast %cst_29 : bf16 to vector<288x4xbf16>
    %36 = arith.maximumf %34, %35 : vector<288x4xbf16>
    %c4 = arith.constant 4 : index
    %c0_30 = arith.constant 0 : index
    %c0_31 = arith.constant 0 : index
    %37 = vector.load %arg2[%c4, %c0_30, %c0_31] : memref<9x4x8xbf16, #tpu.memory_space<vmem>>, vector<1x4x8xbf16>
    %38 = vector.shape_cast %37 : vector<1x4x8xbf16> to vector<4x8xbf16>
    %cst_32 = arith.constant dense<0.000000e+00> : vector<288x8xf32>
    %39 = tpu.matmul %36, %38, %cst_32 {dimension_numbers = #tpu.dot_dimension_numbers<[1], [0], [0], [1], [0, 0, 1, 1], [], []>} : vector<288x4xbf16>, vector<4x8xbf16>, vector<288x8xf32> -> vector<288x8xf32>
    %40 = arith.addf %32, %39 : vector<288x8xf32>
    %c0_33 = arith.constant 0 : index
    %c20 = arith.constant 20 : index
    %c0_34 = arith.constant 0 : index
    %41 = vector.load %arg1[%c0_33, %c20, %c0_34] : memref<1x326x4xbf16, #tpu.memory_space<vmem>>, vector<1x288x4xbf16>
    %42 = vector.shape_cast %41 : vector<1x288x4xbf16> to vector<288x4xbf16>
    %cst_35 = arith.constant 0.000000e+00 : bf16
    %43 = vector.broadcast %cst_35 : bf16 to vector<288x4xbf16>
    %44 = arith.maximumf %42, %43 : vector<288x4xbf16>
    %c5 = arith.constant 5 : index
    %c0_36 = arith.constant 0 : index
    %c0_37 = arith.constant 0 : index
    %45 = vector.load %arg2[%c5, %c0_36, %c0_37] : memref<9x4x8xbf16, #tpu.memory_space<vmem>>, vector<1x4x8xbf16>
    %46 = vector.shape_cast %45 : vector<1x4x8xbf16> to vector<4x8xbf16>
    %cst_38 = arith.constant dense<0.000000e+00> : vector<288x8xf32>
    %47 = tpu.matmul %44, %46, %cst_38 {dimension_numbers = #tpu.dot_dimension_numbers<[1], [0], [0], [1], [0, 0, 1, 1], [], []>} : vector<288x4xbf16>, vector<4x8xbf16>, vector<288x8xf32> -> vector<288x8xf32>
    %48 = arith.addf %40, %47 : vector<288x8xf32>
    %c0_39 = arith.constant 0 : index
    %c36 = arith.constant 36 : index
    %c0_40 = arith.constant 0 : index
    %49 = vector.load %arg1[%c0_39, %c36, %c0_40] : memref<1x326x4xbf16, #tpu.memory_space<vmem>>, vector<1x288x4xbf16>
    %50 = vector.shape_cast %49 : vector<1x288x4xbf16> to vector<288x4xbf16>
    %cst_41 = arith.constant 0.000000e+00 : bf16
    %51 = vector.broadcast %cst_41 : bf16 to vector<288x4xbf16>
    %52 = arith.maximumf %50, %51 : vector<288x4xbf16>
    %c6 = arith.constant 6 : index
    %c0_42 = arith.constant 0 : index
    %c0_43 = arith.constant 0 : index
    %53 = vector.load %arg2[%c6, %c0_42, %c0_43] : memref<9x4x8xbf16, #tpu.memory_space<vmem>>, vector<1x4x8xbf16>
    %54 = vector.shape_cast %53 : vector<1x4x8xbf16> to vector<4x8xbf16>
    %cst_44 = arith.constant dense<0.000000e+00> : vector<288x8xf32>
    %55 = tpu.matmul %52, %54, %cst_44 {dimension_numbers = #tpu.dot_dimension_numbers<[1], [0], [0], [1], [0, 0, 1, 1], [], []>} : vector<288x4xbf16>, vector<4x8xbf16>, vector<288x8xf32> -> vector<288x8xf32>
    %56 = arith.addf %48, %55 : vector<288x8xf32>
    %c0_45 = arith.constant 0 : index
    %c37 = arith.constant 37 : index
    %c0_46 = arith.constant 0 : index
    %57 = vector.load %arg1[%c0_45, %c37, %c0_46] : memref<1x326x4xbf16, #tpu.memory_space<vmem>>, vector<1x288x4xbf16>
    %58 = vector.shape_cast %57 : vector<1x288x4xbf16> to vector<288x4xbf16>
    %cst_47 = arith.constant 0.000000e+00 : bf16
    %59 = vector.broadcast %cst_47 : bf16 to vector<288x4xbf16>
    %60 = arith.maximumf %58, %59 : vector<288x4xbf16>
    %c7 = arith.constant 7 : index
    %c0_48 = arith.constant 0 : index
    %c0_49 = arith.constant 0 : index
    %61 = vector.load %arg2[%c7, %c0_48, %c0_49] : memref<9x4x8xbf16, #tpu.memory_space<vmem>>, vector<1x4x8xbf16>
    %62 = vector.shape_cast %61 : vector<1x4x8xbf16> to vector<4x8xbf16>
    %cst_50 = arith.constant dense<0.000000e+00> : vector<288x8xf32>
    %63 = tpu.matmul %60, %62, %cst_50 {dimension_numbers = #tpu.dot_dimension_numbers<[1], [0], [0], [1], [0, 0, 1, 1], [], []>} : vector<288x4xbf16>, vector<4x8xbf16>, vector<288x8xf32> -> vector<288x8xf32>
    %64 = arith.addf %56, %63 : vector<288x8xf32>
    %c0_51 = arith.constant 0 : index
    %c38 = arith.constant 38 : index
    %c0_52 = arith.constant 0 : index
    %65 = vector.load %arg1[%c0_51, %c38, %c0_52] : memref<1x326x4xbf16, #tpu.memory_space<vmem>>, vector<1x288x4xbf16>
    %66 = vector.shape_cast %65 : vector<1x288x4xbf16> to vector<288x4xbf16>
    %cst_53 = arith.constant 0.000000e+00 : bf16
    %67 = vector.broadcast %cst_53 : bf16 to vector<288x4xbf16>
    %68 = arith.maximumf %66, %67 : vector<288x4xbf16>
    %c8 = arith.constant 8 : index
    %c0_54 = arith.constant 0 : index
    %c0_55 = arith.constant 0 : index
    %69 = vector.load %arg2[%c8, %c0_54, %c0_55] : memref<9x4x8xbf16, #tpu.memory_space<vmem>>, vector<1x4x8xbf16>
    %70 = vector.shape_cast %69 : vector<1x4x8xbf16> to vector<4x8xbf16>
    %cst_56 = arith.constant dense<0.000000e+00> : vector<288x8xf32>
    %71 = tpu.matmul %68, %70, %cst_56 {dimension_numbers = #tpu.dot_dimension_numbers<[1], [0], [0], [1], [0, 0, 1, 1], [], []>} : vector<288x4xbf16>, vector<4x8xbf16>, vector<288x8xf32> -> vector<288x8xf32>
    %72 = arith.addf %64, %71 : vector<288x8xf32>
    %c0_57 = arith.constant 0 : index
    %c0_58 = arith.constant 0 : index
    %73 = vector.load %arg3[%c0_57, %c0_58] : memref<1x8xf32, #tpu.memory_space<vmem>>, vector<1x8xf32>
    %74 = vector.broadcast %73 : vector<1x8xf32> to vector<288x8xf32>
    %75 = arith.mulf %72, %74 : vector<288x8xf32>
    %c0_59 = arith.constant 0 : index
    %c0_60 = arith.constant 0 : index
    %76 = vector.load %arg4[%c0_59, %c0_60] : memref<1x8xf32, #tpu.memory_space<vmem>>, vector<1x8xf32>
    %77 = vector.broadcast %76 : vector<1x8xf32> to vector<288x8xf32>
    %78 = arith.addf %75, %77 : vector<288x8xf32>
    %c0_61 = arith.constant 0 : index
    %c0_62 = arith.constant 0 : index
    %c0_63 = arith.constant 0 : index
    %79 = vector.load %arg5[%c0_61, %c0_62, %c0_63] : memref<1x288x8xf32, #tpu.memory_space<vmem>>, vector<1x288x8xf32>
    %80 = vector.shape_cast %79 : vector<1x288x8xf32> to vector<288x8xf32>
    %81 = vector.shape_cast %78 : vector<288x8xf32> to vector<1x288x8xf32>
    tpu.vector_store %arg5[%c0_61, %c0_62, %c0_63], %81 {strides = array<i32>} : memref<1x288x8xf32, #tpu.memory_space<vmem>>, vector<1x288x8xf32>,
    return
  }
  func.func @transform_0(%arg0: i32) -> (i32, i32, i32) {
    %c0_i32 = arith.constant 0 : i32
    %c0_i32_0 = arith.constant 0 : i32
    %c0_i32_1 = arith.constant 0 : i32
    return %arg0, %c0_i32, %c0_i32_0 : i32, i32, i32
  }
  func.func @transform_1(%arg0: i32) -> (i32, i32, i32) {
    %c0_i32 = arith.constant 0 : i32
    %c0_i32_0 = arith.constant 0 : i32
    %c0_i32_1 = arith.constant 0 : i32
    %c0_i32_2 = arith.constant 0 : i32
    return %c0_i32, %c0_i32_0, %c0_i32_1 : i32, i32, i32
  }
  func.func @transform_2(%arg0: i32) -> (i32, i32) {
    %c0_i32 = arith.constant 0 : i32
    %c0_i32_0 = arith.constant 0 : i32
    %c0_i32_1 = arith.constant 0 : i32
    return %c0_i32, %c0_i32_0 : i32, i32
  }
  func.func @transform_3(%arg0: i32) -> (i32, i32) {
    %c0_i32 = arith.constant 0 : i32
    %c0_i32_0 = arith.constant 0 : i32
    %c0_i32_1 = arith.constant 0 : i32
    return %c0_i32, %c0_i32_0 : i32, i32
  }
  func.func @transform_4(%arg0: i32) -> (i32, i32, i32) {
    %c0_i32 = arith.constant 0 : i32
    %c0_i32_0 = arith.constant 0 : i32
    %c0_i32_1 = arith.constant 0 : i32
    return %arg0, %c0_i32, %c0_i32_0 : i32, i32, i32
  }
}

</mosaic_0001>

<llo_original>
// kernel: conv_double_pallas.2
$region0: #{conv_double_pallas.2}
  #allocation0 [shape = 'u32[]', space=smem, size = 0x4, offset = 0x4, fixed_abs, tag = 'smem constant byte address 0x4 - core index']
  #allocation1 [shape = 'u32[144,128]{1,0:T(1,128)}', space=vmem, size = 0x12000, scoped, tag = 'internal scratch']
  %s0 = inlined_call_operand.vmem [shape: bf16[2,326,4], index: 0, kind: input, shape index: {}]
  %s1 = inlined_call_operand.vmem [shape: bf16[9,4,4], index: 1, kind: input, shape index: {}]
  %s2 = inlined_call_operand.vmem [shape: f32[1,4], index: 2, kind: input, shape index: {}]
  %s3 = inlined_call_operand.vmem [shape: f32[1,4], index: 3, kind: input, shape index: {}]
  %s4 = inlined_call_operand.vmem [shape: bf16[2,288,4], index: 4, kind: output, shape index: {}]
  %s5 = sld [smem:[#allocation0]]
  $region49: #{conv_double_pallas.2} parent=0
    _
  %s7 = ssub.s32 1, %s5
  %s8 = scalar_select 0, %s7, %s5
  loop: start=0, step=1, limit=4
  $region2: #{conv_double_pallas.2} parent=0 // loop_pre_header
    _
  $region3: #{conv_double_pallas.2} parent=0 // loop_header
    %s10 = sphi 0, %s14
    %p11 = scmp.ge.s32.totalorder %s10, 4
    %s20 = sphi 0, %s22
    %s23 = sphi 0, %s20
    %s24 = sphi 0, %s23
    %s40 = sphi 0, %s24
    %s44 = sphi 0, %s44
    %s46 = sphi 0, %s44
    %s47 = sphi 0, %s46
    %s61 = sphi 0, %s47
    %s65 = sphi 0, %s65
    %s67 = sphi 0, %s65
    %s68 = sphi 0, %s67
    %s82 = sphi 0, %s68
    %s86 = sphi 0, %s86
    %s88 = sphi 0, %s86
    %s89 = sphi 0, %s88
    %s103 = sphi 0, %s89
    %s109 = sphi 0, %s111
    %s112 = sphi 0, %s109
    %s113 = sphi 0, %s112
    %s129 = sphi 0, %s113
  $region4: #{conv_double_pallas.2} parent=0 // loop_header_branch
    %13 = sbr.rel (%p11) target = $region8
  $region5: #{conv_double_pallas.2} parent=0 // loop_body
    %s15 = ssub.s32 %s10, 1
    %s16 = ssub.s32 %s10, 2
    %s17 = sadd.s32 %s10, 1
    %s18 = ssub.s32 %s10, %s17
    %p19 = scmp.eq.s32.totalorder %s18, 0
    %s21 = sadd.s32 %s20, 1
    %s22 = scalar_select %p19, %s20, %s21
    %p25 = pneg %p19
    %p26 = scmp.eq.s32.totalorder %s10, 1
    %p27 = por %p25, %p26
    %p28 = scmp.ne.s32.totalorder %s20, %s23
    %p29 = scmp.eq.s32.totalorder %s10, 0
    %p30 = por %p28, %p29
    %p31 = scmp.ne.s32.totalorder %s20, %s23
    %p32 = scmp.eq.s32.totalorder %s15, 1
    %p33 = por %p31, %p32
    %p34 = scmp.ne.s32.totalorder %s23, %s24
    %p35 = scmp.eq.s32.totalorder %s15, 0
    %p36 = por %p34, %p35
    %p37 = scmp.ne.s32.totalorder %s23, %s24
    %p38 = scmp.eq.s32.totalorder %s16, 1
    %p39 = por %p37, %p38
    %p41 = scmp.ne.s32.totalorder %s24, %s40
    %p42 = scmp.eq.s32.totalorder %s16, 0
    %p43 = por %p41, %p42
    %s45 = sadd.s32 %s44, 1
    %p48 = scmp.eq.s32.totalorder %s10, 1
    %p49 = scmp.ne.s32.totalorder %s44, %s46
    %p50 = scmp.eq.s32.totalorder %s10, 0
    %p51 = por %p49, %p50
    %p52 = scmp.ne.s32.totalorder %s44, %s46
    %p53 = scmp.eq.s32.totalorder %s15, 1
    %p54 = por %p52, %p53
    %p55 = scmp.ne.s32.totalorder %s46, %s47
    %p56 = scmp.eq.s32.totalorder %s15, 0
    %p57 = por %p55, %p56
    %p58 = scmp.ne.s32.totalorder %s46, %s47
    %p59 = scmp.eq.s32.totalorder %s16, 1
    %p60 = por %p58, %p59
    %p62 = scmp.ne.s32.totalorder %s47, %s61
    %p63 = scmp.eq.s32.totalorder %s16, 0
    %p64 = por %p62, %p63
    %s66 = sadd.s32 %s65, 1
    %p69 = scmp.eq.s32.totalorder %s10, 1
    %p70 = scmp.ne.s32.totalorder %s65, %s67
    %p71 = scmp.eq.s32.totalorder %s10, 0
    %p72 = por %p70, %p71
    %p73 = scmp.ne.s32.totalorder %s65, %s67
    %p74 = scmp.eq.s32.totalorder %s15, 1
    %p75 = por %p73, %p74
    %p76 = scmp.ne.s32.totalorder %s67, %s68
    %p77 = scmp.eq.s32.totalorder %s15, 0
    %p78 = por %p76, %p77
    %p79 = scmp.ne.s32.totalorder %s67, %s68
    %p80 = scmp.eq.s32.totalorder %s16, 1
    %p81 = por %p79, %p80
    %p83 = scmp.ne.s32.totalorder %s68, %s82
    %p84 = scmp.eq.s32.totalorder %s16, 0
    %p85 = por %p83, %p84
    %s87 = sadd.s32 %s86, 1
    %p90 = scmp.eq.s32.totalorder %s10, 1
    %p91 = scmp.ne.s32.totalorder %s86, %s88
    %p92 = scmp.eq.s32.totalorder %s10, 0
    %p93 = por %p91, %p92
    %p94 = scmp.ne.s32.totalorder %s86, %s88
    %p95 = scmp.eq.s32.totalorder %s15, 1
    %p96 = por %p94, %p95
    %p97 = scmp.ne.s32.totalorder %s88, %s89
    %p98 = scmp.eq.s32.totalorder %s15, 0
    %p99 = por %p97, %p98
    %p100 = scmp.ne.s32.totalorder %s88, %s89
    %p101 = scmp.eq.s32.totalorder %s16, 1
    %p102 = por %p100, %p101
    %p104 = scmp.ne.s32.totalorder %s89, %s103
    %p105 = scmp.eq.s32.totalorder %s16, 0
    %p106 = por %p104, %p105
    %s107 = ssub.s32 %s10, %s17
    %p108 = scmp.eq.s32.totalorder %s107, 0
    %s110 = sadd.s32 %s109, 1
    %s111 = scalar_select %p108, %s109, %s110
    %p114 = pneg %p108
    %p115 = scmp.eq.s32.totalorder %s10, 1
    %p116 = por %p114, %p115
    %p117 = scmp.ne.s32.totalorder %s109, %s112
    %p118 = scmp.eq.s32.totalorder %s10, 0
    %p119 = por %p117, %p118
    %p120 = scmp.ne.s32.totalorder %s109, %s112
    %p121 = scmp.eq.s32.totalorder %s15, 1
    %p122 = por %p120, %p121
    %p123 = scmp.ne.s32.totalorder %s112, %s113
    %p124 = scmp.eq.s32.totalorder %s15, 0
    %p125 = por %p123, %p124
    %p126 = scmp.ne.s32.totalorder %s112, %s113
    %p127 = scmp.eq.s32.totalorder %s16, 1
    %p128 = por %p126, %p127
    %p130 = scmp.ne.s32.totalorder %s113, %s129
    %p131 = scmp.eq.s32.totalorder %s16, 0
    %p132 = por %p130, %p131
    %p133 = scmp.le.s32.totalorder 1, %s10
    %p134 = scmp.lt.s32.totalorder %s10, 3
    %p135 = pnand %p133, %p134
    %p136 = pneg %p135
    // Predicated region
    $region9: #{conv_double_pallas.2} parent=5 // pred_check
      _
    $region10: #{conv_double_pallas.2} parent=5 // pred_check_branch
      %138 = sbr.rel (%p135) target = $region12
    $region11: #{conv_double_pallas.2} parent=5 // pred_region
      %s139 = ssub.s32 %s10, 1
      // Predicated region
      $region13: #{conv_double_pallas.2} parent=11 // pred_check
        %p140 = pneg %p57
      $region14: #{conv_double_pallas.2} parent=11 // pred_check_branch
        %142 = sbr.rel (%p140) target = $region16
      $region15: #{conv_double_pallas.2} parent=11 // pred_region
        _
      $region16: #{conv_double_pallas.2} parent=11 // pred_fallthru
        _
      // Predicated region
      $region17: #{conv_double_pallas.2} parent=11 // pred_check
        %p143 = pneg %p78
      $region18: #{conv_double_pallas.2} parent=11 // pred_check_branch
        %145 = sbr.rel (%p143) target = $region20
      $region19: #{conv_double_pallas.2} parent=11 // pred_region
        _
      $region20: #{conv_double_pallas.2} parent=11 // pred_fallthru
        _
      // Predicated region
      $region21: #{conv_double_pallas.2} parent=11 // pred_check
        %p146 = pneg %p99
      $region22: #{conv_double_pallas.2} parent=11 // pred_check_branch
        %148 = sbr.rel (%p146) target = $region24
      $region23: #{conv_double_pallas.2} parent=11 // pred_region
        _
      $region24: #{conv_double_pallas.2} parent=11 // pred_fallthru
        _
    $region12: #{conv_double_pallas.2} parent=5 // pred_fallthru
      _
    %p149 = scmp.lt.s32.totalorder %s10, 2
    // Predicated region
    $region25: #{conv_double_pallas.2} parent=5 // pred_check
      %p150 = pneg %p149
    $region26: #{conv_double_pallas.2} parent=5 // pred_check_branch
      %152 = sbr.rel (%p150) target = $region28
    $region27: #{conv_double_pallas.2} parent=5 // pred_region
      // Predicated region
      $region29: #{conv_double_pallas.2} parent=27 // pred_check
        %p153 = pneg %p30
      $region30: #{conv_double_pallas.2} parent=27 // pred_check_branch
        %155 = sbr.rel (%p153) target = $region32
      $region31: #{conv_double_pallas.2} parent=27 // pred_region
        %p156 = scmp.lt.s32.totalorder %s10, 1
        %s157 = scalar_select %p156, %s10, 1
        %s158 = smul.addr %s157, 41
        %s159 = smul.addr %s158, 4
        %s160 = scalar_lea.vmem %s0, %s159
      $region32: #{conv_double_pallas.2} parent=27 // pred_fallthru
        _
    $region28: #{conv_double_pallas.2} parent=5 // pred_fallthru
      _
    %p161 = scmp.le.s32.totalorder 1, %s10
    %p162 = scmp.lt.s32.totalorder %s10, 3
    %p163 = pnand %p161, %p162
    %p164 = pneg %p163
    // Predicated region
    $region33: #{conv_double_pallas.2} parent=5 // pred_check
      _
    $region34: #{conv_double_pallas.2} parent=5 // pred_check_branch
      %166 = sbr.rel (%p163) target = $region36
    $region35: #{conv_double_pallas.2} parent=5 // pred_region
      %s167 = ssub.s32 %s10, 1
      %p168 = scmp.lt.s32.totalorder %s15, 1
      %s169 = scalar_select %p168, %s15, 1
      %s170 = smul.addr %s169, 41
      %s171 = smul.addr %s170, 4
      %s172 = scalar_lea.vmem %s0, %s171
      %p173 = pneg %p36
      %p174 = pneg %p33
      %p175 = pneg %p57
      %p176 = pneg %p54
      %p177 = pneg %p78
      %p178 = pneg %p75
      %p179 = pneg %p99
      %p180 = pneg %p96
      %p181 = pneg %p125
      %p182 = pneg %p122
      %p183 = scmp.lt.s32.totalorder %s15, 1
      %s184 = scalar_select %p183, %s15, 1
      %s185 = smul.addr %s184, 36
      %s186 = smul.addr %s185, 4
      %s187 = scalar_lea.vmem %s4, %s186
      %p188 = scmp.lt.s32.totalorder %s15, 1
      %s189 = scalar_select %p188, %s15, 1
      %s190 = smul.addr %s189, 41
      %s191 = smul.addr %s190, 4
      %s192 = scalar_lea.vmem %s0, %s191
      %p193 = scmp.lt.s32.totalorder %s15, 1
      %s194 = scalar_select %p193, %s15, 1
      %s195 = smul.addr %s194, 36
      %s196 = smul.addr %s195, 4
      %s197 = scalar_lea.vmem %s4, %s196
      %v199 = vld [vmem:[%s192] sm:$0xf]
      %v200 = vld [vmem:[%s192 + $0x4] sm:$0xf]
      %v201 = vld [vmem:[%s192 + $0x8] sm:$0xf]
      %v202 = vld [vmem:[%s192 + $0xc] sm:$0xf]
      %v203 = vld [vmem:[%s192 + $0x10] sm:$0xf]
      %v204 = vld [vmem:[%s192 + $0x14] sm:$0xf]
      %v205 = vld [vmem:[%s192 + $0x18] sm:$0xf]
      %v206 = vld [vmem:[%s192 + $0x1c] sm:$0xf]
      %v207 = vld [vmem:[%s192 + $0x20] sm:$0xf]
      %v208 = vld [vmem:[%s192 + $0x24] sm:$0xf]
      %v209 = vld [vmem:[%s192 + $0x28] sm:$0xf]
      %v210 = vld [vmem:[%s192 + $0x2c] sm:$0xf]
      %v211 = vld [vmem:[%s192 + $0x30] sm:$0xf]
      %v212 = vld [vmem:[%s192 + $0x34] sm:$0xf]
      %v213 = vld [vmem:[%s192 + $0x38] sm:$0xf]
      %v214 = vld [vmem:[%s192 + $0x3c] sm:$0xf]
      %v215 = vld [vmem:[%s192 + $0x40] sm:$0xf]
      %v216 = vld [vmem:[%s192 + $0x44] sm:$0xf]
      %v217 = vld [vmem:[%s192 + $0x48] sm:$0xf]
      %v218 = vld [vmem:[%s192 + $0x4c] sm:$0xf]
      %v219 = vld [vmem:[%s192 + $0x50] sm:$0xf]
      %v220 = vld [vmem:[%s192 + $0x54] sm:$0xf]
      %v221 = vld [vmem:[%s192 + $0x58] sm:$0xf]
      %v222 = vld [vmem:[%s192 + $0x5c] sm:$0xf]
      %v223 = vld [vmem:[%s192 + $0x60] sm:$0xf]
      %v224 = vld [vmem:[%s192 + $0x64] sm:$0xf]
      %v225 = vld [vmem:[%s192 + $0x68] sm:$0xf]
      %v226 = vld [vmem:[%s192 + $0x6c] sm:$0xf]
      %v227 = vld [vmem:[%s192 + $0x70] sm:$0xf]
      %v228 = vld [vmem:[%s192 + $0x74] sm:$0xf]
      %v229 = vld [vmem:[%s192 + $0x78] sm:$0xf]
      %v230 = vld [vmem:[%s192 + $0x7c] sm:$0xf]
      %v231 = vld [vmem:[%s192 + $0x80] sm:$0xf]
      %v232 = vld [vmem:[%s192 + $0x84] sm:$0xf]
      %v233 = vld [vmem:[%s192 + $0x88] sm:$0xf]
      %v234 = vld [vmem:[%s192 + $0x8c] sm:$0xf]
      %v235 = vmax.bf16 %v199, 0
      %v236 = vmax.bf16 %v200, 0
      %v237 = vmax.bf16 %v201, 0
      %v238 = vmax.bf16 %v202, 0
      %v239 = vmax.bf16 %v203, 0
      %v240 = vmax.bf16 %v204, 0
      %v241 = vmax.bf16 %v205, 0
      %v242 = vmax.bf16 %v206, 0
      %v243 = vmax.bf16 %v207, 0
      %v244 = vmax.bf16 %v208, 0
      %v245 = vmax.bf16 %v209, 0
      %v246 = vmax.bf16 %v210, 0
      %v247 = vmax.bf16 %v211, 0
      %v248 = vmax.bf16 %v212, 0
      %v249 = vmax.bf16 %v213, 0
      %v250 = vmax.bf16 %v214, 0
      %v251 = vmax.bf16 %v215, 0
      %v252 = vmax.bf16 %v216, 0
      %v253 = vmax.bf16 %v217, 0
      %v254 = vmax.bf16 %v218, 0
      %v255 = vmax.bf16 %v219, 0
      %v256 = vmax.bf16 %v220, 0
      %v257 = vmax.bf16 %v221, 0
      %v258 = vmax.bf16 %v222, 0
      %v259 = vmax.bf16 %v223, 0
      %v260 = vmax.bf16 %v224, 0
      %v261 = vmax.bf16 %v225, 0
      %v262 = vmax.bf16 %v226, 0
      %v263 = vmax.bf16 %v227, 0
      %v264 = vmax.bf16 %v228, 0
      %v265 = vmax.bf16 %v229, 0
      %v266 = vmax.bf16 %v230, 0
      %v267 = vmax.bf16 %v231, 0
      %v268 = vmax.bf16 %v232, 0
      %v269 = vmax.bf16 %v233, 0
      %v270 = vmax.bf16 %v234, 0
      %v271 = vld [vmem:[%s1] sm:$0x3]
      %v272 = vld [vmem:[%s192 + $0x90] sm:$0x1]
      %v273 = vmax.bf16 %v272, 0
      %s274 = scalar_lea.vmem %s1, 2
      %v275 = vld [vmem:[%s274] sm:$0x3]
      %v313 = vunpack.c.l.b16 %v235
      %v314 = vunpack.c.l.b16 %v236
      %v315 = vunpack.c.l.b16 %v237
      %v316 = vunpack.c.l.b16 %v238
      %v317 = vunpack.c.l.b16 %v239
      %v318 = vunpack.c.l.b16 %v240
      %v319 = vunpack.c.l.b16 %v241
      %v320 = vunpack.c.l.b16 %v242
      %v321 = vunpack.c.l.b16 %v243
      %v322 = vunpack.c.l.b16 %v244
      %v323 = vunpack.c.l.b16 %v245
      %v324 = vunpack.c.l.b16 %v246
      %v325 = vunpack.c.l.b16 %v247
      %v326 = vunpack.c.l.b16 %v248
      %v327 = vunpack.c.l.b16 %v249
      %v328 = vunpack.c.l.b16 %v250
      %v329 = vunpack.c.l.b16 %v251
      %v330 = vunpack.c.l.b16 %v252
      %v331 = vunpack.c.l.b16 %v253
      %v332 = vunpack.c.l.b16 %v254
      %v333 = vunpack.c.l.b16 %v255
      %v334 = vunpack.c.l.b16 %v256
      %v335 = vunpack.c.l.b16 %v257
      %v336 = vunpack.c.l.b16 %v258
      %v337 = vunpack.c.l.b16 %v259
      %v338 = vunpack.c.l.b16 %v260
      %v339 = vunpack.c.l.b16 %v261
      %v340 = vunpack.c.l.b16 %v262
      %v341 = vunpack.c.l.b16 %v263
      %v342 = vunpack.c.l.b16 %v264
      %v343 = vunpack.c.l.b16 %v265
      %v344 = vunpack.c.l.b16 %v266
      %v345 = vunpack.c.l.b16 %v267
      %v346 = vunpack.c.l.b16 %v268
      %v347 = vunpack.c.l.b16 %v269
      %v348 = vunpack.c.l.b16 %v270
      %v349 = vunpack.c.l.b16 %v273
      %v350 = vpack.c.b16 %v314, %v313
      %v351 = vpack.c.b16 %v316, %v315
      %v352 = vpack.c.b16 %v318, %v317
      %v353 = vpack.c.b16 %v320, %v319
      %v354 = vpack.c.b16 %v322, %v321
      %v355 = vpack.c.b16 %v324, %v323
      %v356 = vpack.c.b16 %v326, %v325
      %v357 = vpack.c.b16 %v328, %v327
      %v358 = vpack.c.b16 %v330, %v329
      %v359 = vpack.c.b16 %v332, %v331
      %v360 = vpack.c.b16 %v334, %v333
      %v361 = vpack.c.b16 %v336, %v335
      %v362 = vpack.c.b16 %v338, %v337
      %v363 = vpack.c.b16 %v340, %v339
      %v364 = vpack.c.b16 %v342, %v341
      %v365 = vpack.c.b16 %v344, %v343
      %v366 = vpack.c.b16 %v346, %v345
      %v367 = vpack.c.b16 %v348, %v347
      %v368 = vpack.c.b16 %v349, %v349
      %vm369 = vsmask.f32 7424
      %v371 = vshrl.u32 %v350, 16
      %v373 = vshll.u32 %v350, 16
      %v375 = vrot.slane %v373, 1
      %v376 = vor.u32 %v371, %v375
      %v378 = vshll.u32 %v351, 16
      %v380 = vrot.slane %v378, 1
      %v381 = vsel %vm369, %v376, %v380
      %v382 = vshrl.u32 %v351, 16
      %v384 = vor.u32 %v382, %v380
      %v386 = vshll.u32 %v352, 16
      %v388 = vrot.slane %v386, 1
      %v389 = vsel %vm369, %v384, %v388
      %v390 = vshrl.u32 %v352, 16
      %v392 = vor.u32 %v390, %v388
      %v394 = vshll.u32 %v353, 16
      %v396 = vrot.slane %v394, 1
      %v397 = vsel %vm369, %v392, %v396
      %v398 = vshrl.u32 %v353, 16
      %v400 = vor.u32 %v398, %v396
      %v402 = vshll.u32 %v354, 16
      %v404 = vrot.slane %v402, 1
      %v405 = vsel %vm369, %v400, %v404
      %v406 = vshrl.u32 %v354, 16
      %v408 = vor.u32 %v406, %v404
      %v410 = vshll.u32 %v355, 16
      %v412 = vrot.slane %v410, 1
      %v413 = vsel %vm369, %v408, %v412
      %v414 = vshrl.u32 %v355, 16
      %v416 = vor.u32 %v414, %v412
      %v418 = vshll.u32 %v356, 16
      %v420 = vrot.slane %v418, 1
      %v421 = vsel %vm369, %v416, %v420
      %v422 = vshrl.u32 %v356, 16
      %v424 = vor.u32 %v422, %v420
      %v426 = vshll.u32 %v357, 16
      %v428 = vrot.slane %v426, 1
      %v429 = vsel %vm369, %v424, %v428
      %v430 = vshrl.u32 %v357, 16
      %v432 = vor.u32 %v430, %v428
      %v434 = vshll.u32 %v358, 16
      %v436 = vrot.slane %v434, 1
      %v437 = vsel %vm369, %v432, %v436
      %v438 = vshrl.u32 %v358, 16
      %v440 = vor.u32 %v438, %v436
      %v442 = vshll.u32 %v359, 16
      %v444 = vrot.slane %v442, 1
      %v445 = vsel %vm369, %v440, %v444
      %v446 = vshrl.u32 %v359, 16
      %v448 = vor.u32 %v446, %v444
      %v450 = vshll.u32 %v360, 16
      %v452 = vrot.slane %v450, 1
      %v453 = vsel %vm369, %v448, %v452
      %v454 = vshrl.u32 %v360, 16
      %v456 = vor.u32 %v454, %v452
      %v458 = vshll.u32 %v361, 16
      %v460 = vrot.slane %v458, 1
      %v461 = vsel %vm369, %v456, %v460
      %v462 = vshrl.u32 %v361, 16
      %v464 = vor.u32 %v462, %v460
      %v466 = vshll.u32 %v362, 16
      %v468 = vrot.slane %v466, 1
      %v469 = vsel %vm369, %v464, %v468
      %v470 = vshrl.u32 %v362, 16
      %v472 = vor.u32 %v470, %v468
      %v474 = vshll.u32 %v363, 16
      %v476 = vrot.slane %v474, 1
      %v477 = vsel %vm369, %v472, %v476
      %v478 = vshrl.u32 %v363, 16
      %v480 = vor.u32 %v478, %v476
      %v482 = vshll.u32 %v364, 16
      %v484 = vrot.slane %v482, 1
      %v485 = vsel %vm369, %v480, %v484
      %v486 = vshrl.u32 %v364, 16
      %v488 = vor.u32 %v486, %v484
      %v490 = vshll.u32 %v365, 16
      %v492 = vrot.slane %v490, 1
      %v493 = vsel %vm369, %v488, %v492
      %v494 = vshrl.u32 %v365, 16
      %v496 = vor.u32 %v494, %v492
      %v498 = vshll.u32 %v366, 16
      %v500 = vrot.slane %v498, 1
      %v501 = vsel %vm369, %v496, %v500
      %v502 = vshrl.u32 %v366, 16
      %v504 = vor.u32 %v502, %v500
      %v506 = vshll.u32 %v367, 16
      %v508 = vrot.slane %v506, 1
      %v509 = vsel %vm369, %v504, %v508
      %v510 = vshrl.u32 %v367, 16
      %v512 = vor.u32 %v510, %v508
      %v514 = vshll.u32 %v368, 16
      %v516 = vrot.slane %v514, 1
      %v517 = vsel %vm369, %v512, %v516
      %vm518 = vcmask 31744
      %v520 = vsel %vm518, %v381, 0
      %v523 = vsel %vm518, %v389, 0
      %v526 = vsel %vm518, %v397, 0
      %v529 = vsel %vm518, %v405, 0
      %v532 = vsel %vm518, %v413, 0
      %v535 = vsel %vm518, %v421, 0
      %v538 = vsel %vm518, %v429, 0
      %v541 = vsel %vm518, %v437, 0
      %v544 = vsel %vm518, %v445, 0
      %v547 = vsel %vm518, %v453, 0
      %v550 = vsel %vm518, %v461, 0
      %v553 = vsel %vm518, %v469, 0
      %v556 = vsel %vm518, %v477, 0
      %v559 = vsel %vm518, %v485, 0
      %v562 = vsel %vm518, %v493, 0
      %v565 = vsel %vm518, %v501, 0
      %v568 = vsel %vm518, %v509, 0
      %v571 = vsel %vm518, %v517, 0
      %vm573 = vcmask 1041408
      %v575 = vsel %vm573, %v275, 0
      %577 = vmatprep.subr.bf16.mxu0 0
      %578 = vmatpush1.bf16.msra.mxu0 %v575
      %579 = vmatprep.subr.bf16.mxu0 0
      %580 = vmatpush1.bf16.msra.mxu0 0
      %581 = vmatprep.subr.bf16.mxu0 0
      %582 = vmatpush1.bf16.msra.mxu0 0
      %583 = vmatprep.subr.bf16.mxu0 0
      %584 = vmatpush1.bf16.msra.mxu0 0
      %585 = vmatprep.subr.bf16.mxu0 0
      %586 = vmatpush1.bf16.msra.mxu0 0
      %587 = vmatprep.subr.bf16.mxu0 0
      %588 = vmatpush1.bf16.msra.mxu0 0
      %589 = vmatprep.subr.bf16.mxu0 0
      %590 = vmatpush1.bf16.msra.mxu0 0
      %591 = vmatprep.subr.bf16.mxu0 0
      %592 = vmatpush1.bf16.msra.mxu0 0
      %593 = vmatprep.subr.bf16.mxu0 0
      %594 = vmatpush1.bf16.msra.mxu0 0
      %595 = vmatprep.subr.bf16.mxu0 0
      %596 = vmatpush1.bf16.msra.mxu0 0
      %597 = vmatprep.subr.bf16.mxu0 0
      %598 = vmatpush1.bf16.msra.mxu0 0
      %599 = vmatprep.subr.bf16.mxu0 0
      %600 = vmatpush1.bf16.msra.mxu0 0
      %601 = vmatprep.subr.bf16.mxu0 0
      %602 = vmatpush1.bf16.msra.mxu0 0
      %603 = vmatprep.subr.bf16.mxu0 0
      %604 = vmatpush1.bf16.msra.mxu0 0
      %605 = vmatprep.subr.bf16.mxu0 0
      %606 = vmatpush1.bf16.msra.mxu0 0
      %607 = vmatprep.subr.bf16.mxu0 0
      %608 = vmatpush1.bf16.msra.mxu0 0
      %609 = vmatprep.mubr.bf16.mxu0 0
      %610 = vmatmul.mubr.bf16.gmra.mrb[0].mxu0 %v520
      %v611 = vpop.f32.mrb[0].mxu0
      %v612 = vadd.f32 0.0, %v611
      %v613 = vpop.f32.mrb[0].mxu0
      %v614 = vpop.f32.mrb[0].mxu0
      %v615 = vadd.f32 0.0, %v614
      %v616 = vpop.f32.mrb[0].mxu0
      %617 = vmatprep.mubr.bf16.mxu0 0
      %618 = vmatmul.mubr.bf16.gmra.mrb[0].mxu0 %v523
      %v619 = vpop.f32.mrb[0].mxu0
      %v620 = vadd.f32 0.0, %v619
      %v621 = vpop.f32.mrb[0].mxu0
      %v622 = vpop.f32.mrb[0].mxu0
      %v623 = vadd.f32 0.0, %v622
      %v624 = vpop.f32.mrb[0].mxu0
      %625 = vmatprep.mubr.bf16.mxu0 0
      %626 = vmatmul.mubr.bf16.gmra.mrb[0].mxu0 %v526
      %v627 = vpop.f32.mrb[0].mxu0
      %v628 = vadd.f32 0.0, %v627
      %v629 = vpop.f32.mrb[0].mxu0
      %v630 = vpop.f32.mrb[0].mxu0
      %v631 = vadd.f32 0.0, %v630
      %v632 = vpop.f32.mrb[0].mxu0
      %633 = vmatprep.mubr.bf16.mxu0 0
      %634 = vmatmul.mubr.bf16.gmra.mrb[0].mxu0 %v529
      %v635 = vpop.f32.mrb[0].mxu0
      %v636 = vadd.f32 0.0, %v635
      %v637 = vpop.f32.mrb[0].mxu0
      %v638 = vpop.f32.mrb[0].mxu0
      %v639 = vadd.f32 0.0, %v638
      %v640 = vpop.f32.mrb[0].mxu0
      %641 = vmatprep.mubr.bf16.mxu0 0
      %642 = vmatmul.mubr.bf16.gmra.mrb[0].mxu0 %v532
      %v643 = vpop.f32.mrb[0].mxu0
      %v644 = vadd.f32 0.0, %v643
      %v645 = vpop.f32.mrb[0].mxu0
      %v646 = vpop.f32.mrb[0].mxu0
      %v647 = vadd.f32 0.0, %v646
      %v648 = vpop.f32.mrb[0].mxu0
      %649 = vmatprep.mubr.bf16.mxu0 0
      %650 = vmatmul.mubr.bf16.gmra.mrb[0].mxu0 %v535
      %v651 = vpop.f32.mrb[0].mxu0
      %v652 = vadd.f32 0.0, %v651
      %v653 = vpop.f32.mrb[0].mxu0
      %v654 = vpop.f32.mrb[0].mxu0
      %v655 = vadd.f32 0.0, %v654
      %v656 = vpop.f32.mrb[0].mxu0
      %657 = vmatprep.mubr.bf16.mxu0 0
      %658 = vmatmul.mubr.bf16.gmra.mrb[0].mxu0 %v538
      %v659 = vpop.f32.mrb[0].mxu0
      %v660 = vadd.f32 0.0, %v659
      %v661 = vpop.f32.mrb[0].mxu0
      %v662 = vpop.f32.mrb[0].mxu0
      %v663 = vadd.f32 0.0, %v662
      %v664 = vpop.f32.mrb[0].mxu0
      %665 = vmatprep.mubr.bf16.mxu0 0
      %666 = vmatmul.mubr.bf16.gmra.mrb[0].mxu0 %v541
      %v667 = vpop.f32.mrb[0].mxu0
      %v668 = vadd.f32 0.0, %v667
      %v669 = vpop.f32.mrb[0].mxu0
      %v670 = vpop.f32.mrb[0].mxu0
      %v671 = vadd.f32 0.0, %v670
      %v672 = vpop.f32.mrb[0].mxu0
      %673 = vmatprep.mubr.bf16.mxu0 0
      %674 = vmatmul.mubr.bf16.gmra.mrb[0].mxu0 %v544
      %v675 = vpop.f32.mrb[0].mxu0
      %v676 = vadd.f32 0.0, %v675
      %v677 = vpop.f32.mrb[0].mxu0
      %v678 = vpop.f32.mrb[0].mxu0
      %v679 = vadd.f32 0.0, %v678
      %v680 = vpop.f32.mrb[0].mxu0
      %681 = vmatprep.mubr.bf16.mxu0 0
      %682 = vmatmul.mubr.bf16.gmra.mrb[0].mxu0 %v547
      %v683 = vpop.f32.mrb[0].mxu0
      %v684 = vadd.f32 0.0, %v683
      %v685 = vpop.f32.mrb[0].mxu0
      %v686 = vpop.f32.mrb[0].mxu0
      %v687 = vadd.f32 0.0, %v686
      %v688 = vpop.f32.mrb[0].mxu0
      %689 = vmatprep.mubr.bf16.mxu0 0
      %690 = vmatmul.mubr.bf16.gmra.mrb[0].mxu0 %v550
      %v691 = vpop.f32.mrb[0].mxu0
      %v692 = vadd.f32 0.0, %v691
      %v693 = vpop.f32.mrb[0].mxu0
      %v694 = vpop.f32.mrb[0].mxu0
      %v695 = vadd.f32 0.0, %v694
      %v696 = vpop.f32.mrb[0].mxu0
      %697 = vmatprep.mubr.bf16.mxu0 0
      %698 = vmatmul.mubr.bf16.gmra.mrb[0].mxu0 %v553
      %v699 = vpop.f32.mrb[0].mxu0
      %v700 = vadd.f32 0.0, %v699
      %v701 = vpop.f32.mrb[0].mxu0
      %v702 = vpop.f32.mrb[0].mxu0
      %v703 = vadd.f32 0.0, %v702
      %v704 = vpop.f32.mrb[0].mxu0
      %705 = vmatprep.mubr.bf16.mxu0 0
      %706 = vmatmul.mubr.bf16.gmra.mrb[0].mxu0 %v556
      %v707 = vpop.f32.mrb[0].mxu0
      %v708 = vadd.f32 0.0, %v707
      %v709 = vpop.f32.mrb[0].mxu0
      %v710 = vpop.f32.mrb[0].mxu0
      %v711 = vadd.f32 0.0, %v710
      %v712 = vpop.f32.mrb[0].mxu0
      %713 = vmatprep.mubr.bf16.mxu0 0
      %714 = vmatmul.mubr.bf16.gmra.mrb[0].mxu0 %v559
      %v715 = vpop.f32.mrb[0].mxu0
      %v716 = vadd.f32 0.0, %v715
      %v717 = vpop.f32.mrb[0].mxu0
      %v718 = vpop.f32.mrb[0].mxu0
      %v719 = vadd.f32 0.0, %v718
      %v720 = vpop.f32.mrb[0].mxu0
      %721 = vmatprep.mubr.bf16.mxu0 0
      %722 = vmatmul.mubr.bf16.gmra.mrb[0].mxu0 %v562
      %v723 = vpop.f32.mrb[0].mxu0
      %v724 = vadd.f32 0.0, %v723
      %v725 = vpop.f32.mrb[0].mxu0
      %v726 = vpop.f32.mrb[0].mxu0
      %v727 = vadd.f32 0.0, %v726
      %v728 = vpop.f32.mrb[0].mxu0
      %729 = vmatprep.mubr.bf16.mxu0 0
      %730 = vmatmul.mubr.bf16.gmra.mrb[0].mxu0 %v565
      %v731 = vpop.f32.mrb[0].mxu0
      %v732 = vadd.f32 0.0, %v731
      %v733 = vpop.f32.mrb[0].mxu0
      %v734 = vpop.f32.mrb[0].mxu0
      %v735 = vadd.f32 0.0, %v734
      %v736 = vpop.f32.mrb[0].mxu0
      %737 = vmatprep.mubr.bf16.mxu0 0
      %738 = vmatmul.mubr.bf16.gmra.mrb[0].mxu0 %v568
      %v739 = vpop.f32.mrb[0].mxu0
      %v740 = vadd.f32 0.0, %v739
      %v741 = vpop.f32.mrb[0].mxu0
      %v742 = vpop.f32.mrb[0].mxu0
      %v743 = vadd.f32 0.0, %v742
      %v744 = vpop.f32.mrb[0].mxu0
      %745 = vmatprep.mubr.bf16.mxu0 0
      %746 = vmatmul.mubr.bf16.gmra.mrb[0].mxu0 %v571
      %v747 = vpop.f32.mrb[0].mxu0
      %v748 = vadd.f32 0.0, %v747
      %v749 = vpop.f32.mrb[0].mxu0
      %v750 = vpop.f32.mrb[0].mxu0
      %v751 = vadd.f32 0.0, %v750
      %v752 = vpop.f32.mrb[0].mxu0
      %753 = vdwg.mxu0
      %v754 = vsel %vm518, %v350, 0
      %v756 = vsel %vm518, %v351, 0
      %v758 = vsel %vm518, %v352, 0
      %v760 = vsel %vm518, %v353, 0
      %v762 = vsel %vm518, %v354, 0
      %v764 = vsel %vm518, %v355, 0
      %v766 = vsel %vm518, %v356, 0
      %v768 = vsel %vm518, %v357, 0
      %v770 = vsel %vm518, %v358, 0
      %v772 = vsel %vm518, %v359, 0
      %v774 = vsel %vm518, %v360, 0
      %v776 = vsel %vm518, %v361, 0
      %v778 = vsel %vm518, %v362, 0
      %v780 = vsel %vm518, %v363, 0
      %v782 = vsel %vm518, %v364, 0
      %v784 = vsel %vm518, %v365, 0
      %v786 = vsel %vm518, %v366, 0
      %v788 = vsel %vm518, %v367, 0
      %v791 = vsel %vm573, %v271, 0
      %793 = vmatprep.subr.bf16.mxu0 0
      %794 = vmatpush1.bf16.msra.mxu0 %v791
      %795 = vmatprep.subr.bf16.mxu0 0
      %796 = vmatpush1.bf16.msra.mxu0 0
      %797 = vmatprep.subr.bf16.mxu0 0
      %798 = vmatpush1.bf16.msra.mxu0 0
      %799 = vmatprep.subr.bf16.mxu0 0
      %800 = vmatpush1.bf16.msra.mxu0 0
      %801 = vmatprep.subr.bf16.mxu0 0
      %802 = vmatpush1.bf16.msra.mxu0 0
      %803 = vmatprep.subr.bf16.mxu0 0
      %804 = vmatpush1.bf16.msra.mxu0 0
      %805 = vmatprep.subr.bf16.mxu0 0
      %806 = vmatpush1.bf16.msra.mxu0 0
      %807 = vmatprep.subr.bf16.mxu0 0
      %808 = vmatpush1.bf16.msra.mxu0 0
      %809 = vmatprep.subr.bf16.mxu0 0
      %810 = vmatpush1.bf16.msra.mxu0 0
      %811 = vmatprep.subr.bf16.mxu0 0
      %812 = vmatpush1.bf16.msra.mxu0 0
      %813 = vmatprep.subr.bf16.mxu0 0
      %814 = vmatpush1.bf16.msra.mxu0 0
      %815 = vmatprep.subr.bf16.mxu0 0
      %816 = vmatpush1.bf16.msra.mxu0 0
      %817 = vmatprep.subr.bf16.mxu0 0
      %818 = vmatpush1.bf16.msra.mxu0 0
      %819 = vmatprep.subr.bf16.mxu0 0
      %820 = vmatpush1.bf16.msra.mxu0 0
      %821 = vmatprep.subr.bf16.mxu0 0
      %822 = vmatpush1.bf16.msra.mxu0 0
      %823 = vmatprep.subr.bf16.mxu0 0
      %824 = vmatpush1.bf16.msra.mxu0 0
      %825 = vmatprep.mubr.bf16.mxu0 0
      %826 = vmatmul.mubr.bf16.gmra.mrb[0].mxu0 %v754
      %v827 = vpop.f32.mrb[0].mxu0
      %v828 = vadd.f32 %v612, %v827
      %v829 = vpop.f32.mrb[0].mxu0
      %v830 = vpop.f32.mrb[0].mxu0
      %v831 = vadd.f32 %v615, %v830
      %v832 = vpop.f32.mrb[0].mxu0
      %833 = vmatprep.mubr.bf16.mxu0 0
      %834 = vmatmul.mubr.bf16.gmra.mrb[0].mxu0 %v756
      %v835 = vpop.f32.mrb[0].mxu0
      %v836 = vadd.f32 %v620, %v835
      %v837 = vpop.f32.mrb[0].mxu0
      %v838 = vpop.f32.mrb[0].mxu0
      %v839 = vadd.f32 %v623, %v838
      %v840 = vpop.f32.mrb[0].mxu0
      %841 = vmatprep.mubr.bf16.mxu0 0
      %842 = vmatmul.mubr.bf16.gmra.mrb[0].mxu0 %v758
      %v843 = vpop.f32.mrb[0].mxu0
      %v844 = vadd.f32 %v628, %v843
      %v845 = vpop.f32.mrb[0].mxu0
      %v846 = vpop.f32.mrb[0].mxu0
      %v847 = vadd.f32 %v631, %v846
      %v848 = vpop.f32.mrb[0].mxu0
      %849 = vmatprep.mubr.bf16.mxu0 0
      %850 = vmatmul.mubr.bf16.gmra.mrb[0].mxu0 %v760
      %v851 = vpop.f32.mrb[0].mxu0
      %v852 = vadd.f32 %v636, %v851
      %v853 = vpop.f32.mrb[0].mxu0
      %v854 = vpop.f32.mrb[0].mxu0
      %v855 = vadd.f32 %v639, %v854
      %v856 = vpop.f32.mrb[0].mxu0
      %857 = vmatprep.mubr.bf16.mxu0 0
      %858 = vmatmul.mubr.bf16.gmra.mrb[0].mxu0 %v762
      %v859 = vpop.f32.mrb[0].mxu0
      %v860 = vadd.f32 %v644, %v859
      %v861 = vpop.f32.mrb[0].mxu0
      %v862 = vpop.f32.mrb[0].mxu0
      %v863 = vadd.f32 %v647, %v862
      %v864 = vpop.f32.mrb[0].mxu0
      %865 = vmatprep.mubr.bf16.mxu0 0
      %866 = vmatmul.mubr.bf16.gmra.mrb[0].mxu0 %v764
      %v867 = vpop.f32.mrb[0].mxu0
      %v868 = vadd.f32 %v652, %v867
      %v869 = vpop.f32.mrb[0].mxu0
      %v870 = vpop.f32.mrb[0].mxu0
      %v871 = vadd.f32 %v655, %v870
      %v872 = vpop.f32.mrb[0].mxu0
      %873 = vmatprep.mubr.bf16.mxu0 0
      %874 = vmatmul.mubr.bf16.gmra.mrb[0].mxu0 %v766
      %v875 = vpop.f32.mrb[0].mxu0
      %v876 = vadd.f32 %v660, %v875
      %v877 = vpop.f32.mrb[0].mxu0
      %v878 = vpop.f32.mrb[0].mxu0
      %v879 = vadd.f32 %v663, %v878
      %v880 = vpop.f32.mrb[0].mxu0
      %881 = vmatprep.mubr.bf16.mxu0 0
      %882 = vmatmul.mubr.bf16.gmra.mrb[0].mxu0 %v768
      %v883 = vpop.f32.mrb[0].mxu0
      %v884 = vadd.f32 %v668, %v883
      %v885 = vpop.f32.mrb[0].mxu0
      %v886 = vpop.f32.mrb[0].mxu0
      %v887 = vadd.f32 %v671, %v886
      %v888 = vpop.f32.mrb[0].mxu0
      %889 = vmatprep.mubr.bf16.mxu0 0
      %890 = vmatmul.mubr.bf16.gmra.mrb[0].mxu0 %v770
      %v891 = vpop.f32.mrb[0].mxu0
      %v892 = vadd.f32 %v676, %v891
      %v893 = vpop.f32.mrb[0].mxu0
      %v894 = vpop.f32.mrb[0].mxu0
      %v895 = vadd.f32 %v679, %v894
      %v896 = vpop.f32.mrb[0].mxu0
      %897 = vmatprep.mubr.bf16.mxu0 0
      %898 = vmatmul.mubr.bf16.gmra.mrb[0].mxu0 %v772
      %v899 = vpop.f32.mrb[0].mxu0
      %v900 = vadd.f32 %v684, %v899
      %v901 = vpop.f32.mrb[0].mxu0
      %v902 = vpop.f32.mrb[0].mxu0
      %v903 = vadd.f32 %v687, %v902
      %v904 = vpop.f32.mrb[0].mxu0
      %905 = vmatprep.mubr.bf16.mxu0 0
      %906 = vmatmul.mubr.bf16.gmra.mrb[0].mxu0 %v774
      %v907 = vpop.f32.mrb[0].mxu0
      %v908 = vadd.f32 %v692, %v907
      %v909 = vpop.f32.mrb[0].mxu0
      %v910 = vpop.f32.mrb[0].mxu0
      %v911 = vadd.f32 %v695, %v910
      %v912 = vpop.f32.mrb[0].mxu0
      %913 = vmatprep.mubr.bf16.mxu0 0
      %914 = vmatmul.mubr.bf16.gmra.mrb[0].mxu0 %v776
      %v915 = vpop.f32.mrb[0].mxu0
      %v916 = vadd.f32 %v700, %v915
      %v917 = vpop.f32.mrb[0].mxu0
      %v918 = vpop.f32.mrb[0].mxu0
      %v919 = vadd.f32 %v703, %v918
      %v920 = vpop.f32.mrb[0].mxu0
      %921 = vmatprep.mubr.bf16.mxu0 0
      %922 = vmatmul.mubr.bf16.gmra.mrb[0].mxu0 %v778
      %v923 = vpop.f32.mrb[0].mxu0
      %v924 = vadd.f32 %v708, %v923
      %v925 = vpop.f32.mrb[0].mxu0
      %v926 = vpop.f32.mrb[0].mxu0
      %v927 = vadd.f32 %v711, %v926
      %v928 = vpop.f32.mrb[0].mxu0
      %929 = vmatprep.mubr.bf16.mxu0 0
      %930 = vmatmul.mubr.bf16.gmra.mrb[0].mxu0 %v780
      %v931 = vpop.f32.mrb[0].mxu0
      %v932 = vadd.f32 %v716, %v931
      %v933 = vpop.f32.mrb[0].mxu0
      %v934 = vpop.f32.mrb[0].mxu0
      %v935 = vadd.f32 %v719, %v934
      %v936 = vpop.f32.mrb[0].mxu0
      %937 = vmatprep.mubr.bf16.mxu0 0
      %938 = vmatmul.mubr.bf16.gmra.mrb[0].mxu0 %v782
      %v939 = vpop.f32.mrb[0].mxu0
      %v940 = vadd.f32 %v724, %v939
      %v941 = vpop.f32.mrb[0].mxu0
      %v942 = vpop.f32.mrb[0].mxu0
      %v943 = vadd.f32 %v727, %v942
      %v944 = vpop.f32.mrb[0].mxu0
      %945 = vmatprep.mubr.bf16.mxu0 0
      %946 = vmatmul.mubr.bf16.gmra.mrb[0].mxu0 %v784
      %v947 = vpop.f32.mrb[0].mxu0
      %v948 = vadd.f32 %v732, %v947
      %v949 = vpop.f32.mrb[0].mxu0
      %v950 = vpop.f32.mrb[0].mxu0
      %v951 = vadd.f32 %v735, %v950
      %v952 = vpop.f32.mrb[0].mxu0
      %953 = vmatprep.mubr.bf16.mxu0 0
      %954 = vmatmul.mubr.bf16.gmra.mrb[0].mxu0 %v786
      %v955 = vpop.f32.mrb[0].mxu0
      %v956 = vadd.f32 %v740, %v955
      %v957 = vpop.f32.mrb[0].mxu0
      %v958 = vpop.f32.mrb[0].mxu0
      %v959 = vadd.f32 %v743, %v958
      %v960 = vpop.f32.mrb[0].mxu0
      %961 = vmatprep.mubr.bf16.mxu0 0
      %962 = vmatmul.mubr.bf16.gmra.mrb[0].mxu0 %v788
      %v963 = vpop.f32.mrb[0].mxu0
      %v964 = vadd.f32 %v748, %v963
      %v965 = vpop.f32.mrb[0].mxu0
      %v966 = vpop.f32.mrb[0].mxu0
      %v967 = vadd.f32 %v751, %v966
      %v968 = vpop.f32.mrb[0].mxu0
      %969 = vdwg.mxu0
      %v970 = vld [vmem:[%s192] sm:$0xe]
      %v971 = vmax.bf16 %v970, 0
      %s972 = scalar_lea.vmem %s1, 4
      %v973 = vld [vmem:[%s972] sm:$0x3]
      %v975 = vunpack.c.l.b16 %v971
      %v976 = vpack.c.b16 %v314, %v975
      %vm977 = vcmask 1046528
      %v978 = vrot.slane %v976, 1
      %v979 = vrot.slane %v351, 1
      %v980 = vsel %vm977, %v978, %v979
      %v981 = vrot.slane %v352, 1
      %v982 = vsel %vm977, %v979, %v981
      %v983 = vrot.slane %v353, 1
      %v984 = vsel %vm977, %v981, %v983
      %v985 = vrot.slane %v354, 1
      %v986 = vsel %vm977, %v983, %v985
      %v987 = vrot.slane %v355, 1
      %v988 = vsel %vm977, %v985, %v987
      %v989 = vrot.slane %v356, 1
      %v990 = vsel %vm977, %v987, %v989
      %v991 = vrot.slane %v357, 1
      %v992 = vsel %vm977, %v989, %v991
      %v993 = vrot.slane %v358, 1
      %v994 = vsel %vm977, %v991, %v993
      %v995 = vrot.slane %v359, 1
      %v996 = vsel %vm977, %v993, %v995
      %v997 = vrot.slane %v360, 1
      %v998 = vsel %vm977, %v995, %v997
      %v999 = vrot.slane %v361, 1
      %v1000 = vsel %vm977, %v997, %v999
      %v1001 = vrot.slane %v362, 1
      %v1002 = vsel %vm977, %v999, %v1001
      %v1003 = vrot.slane %v363, 1
      %v1004 = vsel %vm977, %v1001, %v1003
      %v1005 = vrot.slane %v364, 1
      %v1006 = vsel %vm977, %v1003, %v1005
      %v1007 = vrot.slane %v365, 1
      %v1008 = vsel %vm977, %v1005, %v1007
      %v1009 = vrot.slane %v366, 1
      %v1010 = vsel %vm977, %v1007, %v1009
      %v1011 = vrot.slane %v367, 1
      %v1012 = vsel %vm977, %v1009, %v1011
      %v1013 = vrot.slane %v368, 1
      %v1014 = vsel %vm977, %v1011, %v1013
      %v1016 = vsel %vm518, %v980, 0
      %v1019 = vsel %vm518, %v982, 0
      %v1022 = vsel %vm518, %v984, 0
      %v1025 = vsel %vm518, %v986, 0
      %v1028 = vsel %vm518, %v988, 0
      %v1031 = vsel %vm518, %v990, 0
      %v1034 = vsel %vm518, %v992, 0
      %v1037 = vsel %vm518, %v994, 0
      %v1040 = vsel %vm518, %v996, 0
      %v1043 = vsel %vm518, %v998, 0
      %v1046 = vsel %vm518, %v1000, 0
      %v1049 = vsel %vm518, %v1002, 0
      %v1052 = vsel %vm518, %v1004, 0
      %v1055 = vsel %vm518, %v1006, 0
      %v1058 = vsel %vm518, %v1008, 0
      %v1061 = vsel %vm518, %v1010, 0
      %v1064 = vsel %vm518, %v1012, 0
      %v1067 = vsel %vm518, %v1014, 0
      %v1070 = vsel %vm573, %v973, 0
      %1072 = vmatprep.subr.bf16.mxu0 0
      %1073 = vmatpush1.bf16.msra.mxu0 %v1070
      %1074 = vmatprep.subr.bf16.mxu0 0
      %1075 = vmatpush1.bf16.msra.mxu0 0
      %1076 = vmatprep.subr.bf16.mxu0 0
      %1077 = vmatpush1.bf16.msra.mxu0 0
      %1078 = vmatprep.subr.bf16.mxu0 0
      %1079 = vmatpush1.bf16.msra.mxu0 0
      %1080 = vmatprep.subr.bf16.mxu0 0
      %1081 = vmatpush1.bf16.msra.mxu0 0
      %1082 = vmatprep.subr.bf16.mxu0 0
      %1083 = vmatpush1.bf16.msra.mxu0 0
      %1084 = vmatprep.subr.bf16.mxu0 0
      %1085 = vmatpush1.bf16.msra.mxu0 0
      %1086 = vmatprep.subr.bf16.mxu0 0
      %1087 = vmatpush1.bf16.msra.mxu0 0
      %1088 = vmatprep.subr.bf16.mxu0 0
      %1089 = vmatpush1.bf16.msra.mxu0 0
      %1090 = vmatprep.subr.bf16.mxu0 0
      %1091 = vmatpush1.bf16.msra.mxu0 0
      %1092 = vmatprep.subr.bf16.mxu0 0
      %1093 = vmatpush1.bf16.msra.mxu0 0
      %1094 = vmatprep.subr.bf16.mxu0 0
      %1095 = vmatpush1.bf16.msra.mxu0 0
      %1096 = vmatprep.subr.bf16.mxu0 0
      %1097 = vmatpush1.bf16.msra.mxu0 0
      %1098 = vmatprep.subr.bf16.mxu0 0
      %1099 = vmatpush1.bf16.msra.mxu0 0
      %1100 = vmatprep.subr.bf16.mxu0 0
      %1101 = vmatpush1.bf16.msra.mxu0 0
      %1102 = vmatprep.subr.bf16.mxu0 0
      %1103 = vmatpush1.bf16.msra.mxu0 0
      %1104 = vmatprep.mubr.bf16.mxu0 0
      %1105 = vmatmul.mubr.bf16.gmra.mrb[0].mxu0 %v1016
      %v1106 = vpop.f32.mrb[0].mxu0
      %v1107 = vadd.f32 0.0, %v1106
      %v1108 = vpop.f32.mrb[0].mxu0
      %v1109 = vpop.f32.mrb[0].mxu0
      %v1110 = vadd.f32 0.0, %v1109
      %v1111 = vpop.f32.mrb[0].mxu0
      %1112 = vmatprep.mubr.bf16.mxu0 0
      %1113 = vmatmul.mubr.bf16.gmra.mrb[0].mxu0 %v1019
      %v1114 = vpop.f32.mrb[0].mxu0
      %v1115 = vadd.f32 0.0, %v1114
      %v1116 = vpop.f32.mrb[0].mxu0
      %v1117 = vpop.f32.mrb[0].mxu0
      %v1118 = vadd.f32 0.0, %v1117
      %v1119 = vpop.f32.mrb[0].mxu0
      %1120 = vmatprep.mubr.bf16.mxu0 0
      %1121 = vmatmul.mubr.bf16.gmra.mrb[0].mxu0 %v1022
      %v1122 = vpop.f32.mrb[0].mxu0
      %v1123 = vadd.f32 0.0, %v1122
      %v1124 = vpop.f32.mrb[0].mxu0
      %v1125 = vpop.f32.mrb[0].mxu0
      %v1126 = vadd.f32 0.0, %v1125
      %v1127 = vpop.f32.mrb[0].mxu0
      %1128 = vmatprep.mubr.bf16.mxu0 0
      %1129 = vmatmul.mubr.bf16.gmra.mrb[0].mxu0 %v1025
      %v1130 = vpop.f32.mrb[0].mxu0
      %v1131 = vadd.f32 0.0, %v1130
      %v1132 = vpop.f32.mrb[0].mxu0
      %v1133 = vpop.f32.mrb[0].mxu0
      %v1134 = vadd.f32 0.0, %v1133
      %v1135 = vpop.f32.mrb[0].mxu0
      %1136 = vmatprep.mubr.bf16.mxu0 0
      %1137 = vmatmul.mubr.bf16.gmra.mrb[0].mxu0 %v1028
      %v1138 = vpop.f32.mrb[0].mxu0
      %v1139 = vadd.f32 0.0, %v1138
      %v1140 = vpop.f32.mrb[0].mxu0
      %v1141 = vpop.f32.mrb[0].mxu0
      %v1142 = vadd.f32 0.0, %v1141
      %v1143 = vpop.f32.mrb[0].mxu0
      %1144 = vmatprep.mubr.bf16.mxu0 0
      %1145 = vmatmul.mubr.bf16.gmra.mrb[0].mxu0 %v1031
      %v1146 = vpop.f32.mrb[0].mxu0
      %v1147 = vadd.f32 0.0, %v1146
      %v1148 = vpop.f32.mrb[0].mxu0
      %v1149 = vpop.f32.mrb[0].mxu0
      %v1150 = vadd.f32 0.0, %v1149
      %v1151 = vpop.f32.mrb[0].mxu0
      %1152 = vmatprep.mubr.bf16.mxu0 0
      %1153 = vmatmul.mubr.bf16.gmra.mrb[0].mxu0 %v1034
      %v1154 = vpop.f32.mrb[0].mxu0
      %v1155 = vadd.f32 0.0, %v1154
      %v1156 = vpop.f32.mrb[0].mxu0
      %v1157 = vpop.f32.mrb[0].mxu0
      %v1158 = vadd.f32 0.0, %v1157
      %v1159 = vpop.f32.mrb[0].mxu0
      %1160 = vmatprep.mubr.bf16.mxu0 0
      %1161 = vmatmul.mubr.bf16.gmra.mrb[0].mxu0 %v1037
      %v1162 = vpop.f32.mrb[0].mxu0
      %v1163 = vadd.f32 0.0, %v1162
      %v1164 = vpop.f32.mrb[0].mxu0
      %v1165 = vpop.f32.mrb[0].mxu0
      %v1166 = vadd.f32 0.0, %v1165
      %v1167 = vpop.f32.mrb[0].mxu0
      %1168 = vmatprep.mubr.bf16.mxu0 0
      %1169 = vmatmul.mubr.bf16.gmra.mrb[0].mxu0 %v1040
      %v1170 = vpop.f32.mrb[0].mxu0
      %v1171 = vadd.f32 0.0, %v1170
      %v1172 = vpop.f32.mrb[0].mxu0
      %v1173 = vpop.f32.mrb[0].mxu0
      %v1174 = vadd.f32 0.0, %v1173
      %v1175 = vpop.f32.mrb[0].mxu0
      %1176 = vmatprep.mubr.bf16.mxu0 0
      %1177 = vmatmul.mubr.bf16.gmra.mrb[0].mxu0 %v1043
      %v1178 = vpop.f32.mrb[0].mxu0
      %v1179 = vadd.f32 0.0, %v1178
      %v1180 = vpop.f32.mrb[0].mxu0
      %v1181 = vpop.f32.mrb[0].mxu0
      %v1182 = vadd.f32 0.0, %v1181
      %v1183 = vpop.f32.mrb[0].mxu0
      %1184 = vmatprep.mubr.bf16.mxu0 0
      %1185 = vmatmul.mubr.bf16.gmra.mrb[0].mxu0 %v1046
      %v1186 = vpop.f32.mrb[0].mxu0
      %v1187 = vadd.f32 0.0, %v1186
      %v1188 = vpop.f32.mrb[0].mxu0
      %v1189 = vpop.f32.mrb[0].mxu0
      %v1190 = vadd.f32 0.0, %v1189
      %v1191 = vpop.f32.mrb[0].mxu0
      %1192 = vmatprep.mubr.bf16.mxu0 0
      %1193 = vmatmul.mubr.bf16.gmra.mrb[0].mxu0 %v1049
      %v1194 = vpop.f32.mrb[0].mxu0
      %v1195 = vadd.f32 0.0, %v1194
      %v1196 = vpop.f32.mrb[0].mxu0
      %v1197 = vpop.f32.mrb[0].mxu0
      %v1198 = vadd.f32 0.0, %v1197
      %v1199 = vpop.f32.mrb[0].mxu0
      %1200 = vmatprep.mubr.bf16.mxu0 0
      %1201 = vmatmul.mubr.bf16.gmra.mrb[0].mxu0 %v1052
      %v1202 = vpop.f32.mrb[0].mxu0
      %v1203 = vadd.f32 0.0, %v1202
      %v1204 = vpop.f32.mrb[0].mxu0
      %v1205 = vpop.f32.mrb[0].mxu0
      %v1206 = vadd.f32 0.0, %v1205
      %v1207 = vpop.f32.mrb[0].mxu0
      %1208 = vmatprep.mubr.bf16.mxu0 0
      %1209 = vmatmul.mubr.bf16.gmra.mrb[0].mxu0 %v1055
      %v1210 = vpop.f32.mrb[0].mxu0
      %v1211 = vadd.f32 0.0, %v1210
      %v1212 = vpop.f32.mrb[0].mxu0
      %v1213 = vpop.f32.mrb[0].mxu0
      %v1214 = vadd.f32 0.0, %v1213
      %v1215 = vpop.f32.mrb[0].mxu0
      %1216 = vmatprep.mubr.bf16.mxu0 0
      %1217 = vmatmul.mubr.bf16.gmra.mrb[0].mxu0 %v1058
      %v1218 = vpop.f32.mrb[0].mxu0
      %v1219 = vadd.f32 0.0, %v1218
      %v1220 = vpop.f32.mrb[0].mxu0
      %v1221 = vpop.f32.mrb[0].mxu0
      %v1222 = vadd.f32 0.0, %v1221
      %v1223 = vpop.f32.mrb[0].mxu0
      %1224 = vmatprep.mubr.bf16.mxu0 0
      %1225 = vmatmul.mubr.bf16.gmra.mrb[0].mxu0 %v1061
      %v1226 = vpop.f32.mrb[0].mxu0
      %v1227 = vadd.f32 0.0, %v1226
      %v1228 = vpop.f32.mrb[0].mxu0
      %v1229 = vpop.f32.mrb[0].mxu0
      %v1230 = vadd.f32 0.0, %v1229
      %v1231 = vpop.f32.mrb[0].mxu0
      %1232 = vmatprep.mubr.bf16.mxu0 0
      %1233 = vmatmul.mubr.bf16.gmra.mrb[0].mxu0 %v1064
      %v1234 = vpop.f32.mrb[0].mxu0
      %v1235 = vadd.f32 0.0, %v1234
      %v1236 = vpop.f32.mrb[0].mxu0
      %v1237 = vpop.f32.mrb[0].mxu0
      %v1238 = vadd.f32 0.0, %v1237
      %v1239 = vpop.f32.mrb[0].mxu0
      %1240 = vmatprep.mubr.bf16.mxu0 0
      %1241 = vmatmul.mubr.bf16.gmra.mrb[0].mxu0 %v1067
      %v1242 = vpop.f32.mrb[0].mxu0
      %v1243 = vadd.f32 0.0, %v1242
      %v1244 = vpop.f32.mrb[0].mxu0
      %v1245 = vpop.f32.mrb[0].mxu0
      %v1246 = vadd.f32 0.0, %v1245
      %v1247 = vpop.f32.mrb[0].mxu0
      %1248 = vdwg.mxu0
      %v1249 = vadd.f32 %v828, %v1107
      %v1250 = vadd.f32 %v831, %v1110
      %v1251 = vadd.f32 %v836, %v1115
      %v1252 = vadd.f32 %v839, %v1118
      %v1253 = vadd.f32 %v844, %v1123
      %v1254 = vadd.f32 %v847, %v1126
      %v1255 = vadd.f32 %v852, %v1131
      %v1256 = vadd.f32 %v855, %v1134
      %v1257 = vadd.f32 %v860, %v1139
      %v1258 = vadd.f32 %v863, %v1142
      %v1259 = vadd.f32 %v868, %v1147
      %v1260 = vadd.f32 %v871, %v1150
      %v1261 = vadd.f32 %v876, %v1155
      %v1262 = vadd.f32 %v879, %v1158
      %v1263 = vadd.f32 %v884, %v1163
      %v1264 = vadd.f32 %v887, %v1166
      %v1265 = vadd.f32 %v892, %v1171
      %v1266 = vadd.f32 %v895, %v1174
      %v1267 = vadd.f32 %v900, %v1179
      %v1268 = vadd.f32 %v903, %v1182
      %v1269 = vadd.f32 %v908, %v1187
      %v1270 = vadd.f32 %v911, %v1190
      %v1271 = vadd.f32 %v916, %v1195
      %v1272 = vadd.f32 %v919, %v1198
      %v1273 = vadd.f32 %v924, %v1203
      %v1274 = vadd.f32 %v927, %v1206
      %v1275 = vadd.f32 %v932, %v1211
      %v1276 = vadd.f32 %v935, %v1214
      %v1277 = vadd.f32 %v940, %v1219
      %v1278 = vadd.f32 %v943, %v1222
      %v1279 = vadd.f32 %v948, %v1227
      %v1280 = vadd.f32 %v951, %v1230
      %v1281 = vadd.f32 %v956, %v1235
      %v1282 = vadd.f32 %v959, %v1238
      %v1283 = vadd.f32 %v964, %v1243
      %v1284 = vadd.f32 %v967, %v1246
      %v1285 = vld [vmem:[%s192 + $0x8] sm:$0xe]
      %v1286 = vld [vmem:[%s192 + $0xc] sm:$0xf]
      %v1287 = vld [vmem:[%s192 + $0x10] sm:$0xf]
      %v1288 = vld [vmem:[%s192 + $0x14] sm:$0xf]
      %v1289 = vld [vmem:[%s192 + $0x18] sm:$0xf]
      %v1290 = vld [vmem:[%s192 + $0x1c] sm:$0xf]
      %v1291 = vld [vmem:[%s192 + $0x20] sm:$0xf]
      %v1292 = vld [vmem:[%s192 + $0x24] sm:$0xf]
      %v1293 = vld [vmem:[%s192 + $0x28] sm:$0xf]
      %v1294 = vld [vmem:[%s192 + $0x2c] sm:$0xf]
      %v1295 = vld [vmem:[%s192 + $0x30] sm:$0xf]
      %v1296 = vld [vmem:[%s192 + $0x34] sm:$0xf]
      %v1297 = vld [vmem:[%s192 + $0x38] sm:$0xf]
      %v1298 = vld [vmem:[%s192 + $0x3c] sm:$0xf]
      %v1299 = vld [vmem:[%s192 + $0x40] sm:$0xf]
      %v1300 = vld [vmem:[%s192 + $0x44] sm:$0xf]
      %v1301 = vld [vmem:[%s192 + $0x48] sm:$0xf]
      %v1302 = vld [vmem:[%s192 + $0x4c] sm:$0xf]
      %v1303 = vld [vmem:[%s192 + $0x50] sm:$0xf]
      %v1304 = vld [vmem:[%s192 + $0x54] sm:$0xf]
      %v1305 = vld [vmem:[%s192 + $0x58] sm:$0xf]
      %v1306 = vld [vmem:[%s192 + $0x5c] sm:$0xf]
      %v1307 = vld [vmem:[%s192 + $0x60] sm:$0xf]
      %v1308 = vld [vmem:[%s192 + $0x64] sm:$0xf]
      %v1309 = vld [vmem:[%s192 + $0x68] sm:$0xf]
      %v1310 = vld [vmem:[%s192 + $0x6c] sm:$0xf]
      %v1311 = vld [vmem:[%s192 + $0x70] sm:$0xf]
      %v1312 = vld [vmem:[%s192 + $0x74] sm:$0xf]
      %v1313 = vld [vmem:[%s192 + $0x78] sm:$0xf]
      %v1314 = vld [vmem:[%s192 + $0x7c] sm:$0xf]
      %v1315 = vld [vmem:[%s192 + $0x80] sm:$0xf]
      %v1316 = vld [vmem:[%s192 + $0x84] sm:$0xf]
      %v1317 = vld [vmem:[%s192 + $0x88] sm:$0xf]
      %v1318 = vld [vmem:[%s192 + $0x8c] sm:$0xf]
      %v1319 = vld [vmem:[%s192 + $0x90] sm:$0xf]
      %v1320 = vld [vmem:[%s192 + $0x94] sm:$0xf]
      %v1321 = vld [vmem:[%s192 + $0x98] sm:$0x1]
      %v1322 = vmax.bf16 %v1285, 0
      %v1323 = vmax.bf16 %v1286, 0
      %v1324 = vmax.bf16 %v1287, 0
      %v1325 = vmax.bf16 %v1288, 0
      %v1326 = vmax.bf16 %v1289, 0
      %v1327 = vmax.bf16 %v1290, 0
      %v1328 = vmax.bf16 %v1291, 0
      %v1329 = vmax.bf16 %v1292, 0
      %v1330 = vmax.bf16 %v1293, 0
      %v1331 = vmax.bf16 %v1294, 0
      %v1332 = vmax.bf16 %v1295, 0
      %v1333 = vmax.bf16 %v1296, 0
      %v1334 = vmax.bf16 %v1297, 0
      %v1335 = vmax.bf16 %v1298, 0
      %v1336 = vmax.bf16 %v1299, 0
      %v1337 = vmax.bf16 %v1300, 0
      %v1338 = vmax.bf16 %v1301, 0
      %v1339 = vmax.bf16 %v1302, 0
      %v1340 = vmax.bf16 %v1303, 0
      %v1341 = vmax.bf16 %v1304, 0
      %v1342 = vmax.bf16 %v1305, 0
      %v1343 = vmax.bf16 %v1306, 0
      %v1344 = vmax.bf16 %v1307, 0
      %v1345 = vmax.bf16 %v1308, 0
      %v1346 = vmax.bf16 %v1309, 0
      %v1347 = vmax.bf16 %v1310, 0
      %v1348 = vmax.bf16 %v1311, 0
      %v1349 = vmax.bf16 %v1312, 0
      %v1350 = vmax.bf16 %v1313, 0
      %v1351 = vmax.bf16 %v1314, 0
      %v1352 = vmax.bf16 %v1315, 0
      %v1353 = vmax.bf16 %v1316, 0
      %v1354 = vmax.bf16 %v1317, 0
      %v1355 = vmax.bf16 %v1318, 0
      %v1356 = vmax.bf16 %v1319, 0
      %v1357 = vmax.bf16 %v1320, 0
      %v1358 = vmax.bf16 %v1321, 0
      %s1359 = scalar_lea.vmem %s1, 6
      %v1360 = vld [vmem:[%s1359] sm:$0x3]
      %v1398 = vunpack.c.l.b16 %v1322
      %v1399 = vunpack.c.l.b16 %v1323
      %v1400 = vunpack.c.l.b16 %v1324
      %v1401 = vunpack.c.l.b16 %v1325
      %v1402 = vunpack.c.l.b16 %v1326
      %v1403 = vunpack.c.l.b16 %v1327
      %v1404 = vunpack.c.l.b16 %v1328
      %v1405 = vunpack.c.l.b16 %v1329
      %v1406 = vunpack.c.l.b16 %v1330
      %v1407 = vunpack.c.l.b16 %v1331
      %v1408 = vunpack.c.l.b16 %v1332
      %v1409 = vunpack.c.l.b16 %v1333
      %v1410 = vunpack.c.l.b16 %v1334
      %v1411 = vunpack.c.l.b16 %v1335
      %v1412 = vunpack.c.l.b16 %v1336
      %v1413 = vunpack.c.l.b16 %v1337
      %v1414 = vunpack.c.l.b16 %v1338
      %v1415 = vunpack.c.l.b16 %v1339
      %v1416 = vunpack.c.l.b16 %v1340
      %v1417 = vunpack.c.l.b16 %v1341
      %v1418 = vunpack.c.l.b16 %v1342
      %v1419 = vunpack.c.l.b16 %v1343
      %v1420 = vunpack.c.l.b16 %v1344
      %v1421 = vunpack.c.l.b16 %v1345
      %v1422 = vunpack.c.l.b16 %v1346
      %v1423 = vunpack.c.l.b16 %v1347
      %v1424 = vunpack.c.l.b16 %v1348
      %v1425 = vunpack.c.l.b16 %v1349
      %v1426 = vunpack.c.l.b16 %v1350
      %v1427 = vunpack.c.l.b16 %v1351
      %v1428 = vunpack.c.l.b16 %v1352
      %v1429 = vunpack.c.l.b16 %v1353
      %v1430 = vunpack.c.l.b16 %v1354
      %v1431 = vunpack.c.l.b16 %v1355
      %v1432 = vunpack.c.l.b16 %v1356
      %v1433 = vunpack.c.l.b16 %v1357
      %v1434 = vunpack.c.l.b16 %v1358
      %v1435 = vpack.c.b16 %v1399, %v1398
      %v1436 = vpack.c.b16 %v1401, %v1400
      %v1437 = vpack.c.b16 %v1403, %v1402
      %v1438 = vpack.c.b16 %v1405, %v1404
      %v1439 = vpack.c.b16 %v1407, %v1406
      %v1440 = vpack.c.b16 %v1409, %v1408
      %v1441 = vpack.c.b16 %v1411, %v1410
      %v1442 = vpack.c.b16 %v1413, %v1412
      %v1443 = vpack.c.b16 %v1415, %v1414
      %v1444 = vpack.c.b16 %v1417, %v1416
      %v1445 = vpack.c.b16 %v1419, %v1418
      %v1446 = vpack.c.b16 %v1421, %v1420
      %v1447 = vpack.c.b16 %v1423, %v1422
      %v1448 = vpack.c.b16 %v1425, %v1424
      %v1449 = vpack.c.b16 %v1427, %v1426
      %v1450 = vpack.c.b16 %v1429, %v1428
      %v1451 = vpack.c.b16 %v1431, %v1430
      %v1452 = vpack.c.b16 %v1433, %v1432
      %v1453 = vpack.c.b16 %v1434, %v1434
      %v1454 = vrot.slane %v1435, 1
      %v1455 = vrot.slane %v1436, 1
      %v1456 = vsel %vm977, %v1454, %v1455
      %v1457 = vrot.slane %v1437, 1
      %v1458 = vsel %vm977, %v1455, %v1457
      %v1459 = vrot.slane %v1438, 1
      %v1460 = vsel %vm977, %v1457, %v1459
      %v1461 = vrot.slane %v1439, 1
      %v1462 = vsel %vm977, %v1459, %v1461
      %v1463 = vrot.slane %v1440, 1
      %v1464 = vsel %vm977, %v1461, %v1463
      %v1465 = vrot.slane %v1441, 1
      %v1466 = vsel %vm977, %v1463, %v1465
      %v1467 = vrot.slane %v1442, 1
      %v1468 = vsel %vm977, %v1465, %v1467
      %v1469 = vrot.slane %v1443, 1
      %v1470 = vsel %vm977, %v1467, %v1469
      %v1471 = vrot.slane %v1444, 1
      %v1472 = vsel %vm977, %v1469, %v1471
      %v1473 = vrot.slane %v1445, 1
      %v1474 = vsel %vm977, %v1471, %v1473
      %v1475 = vrot.slane %v1446, 1
      %v1476 = vsel %vm977, %v1473, %v1475
      %v1477 = vrot.slane %v1447, 1
      %v1478 = vsel %vm977, %v1475, %v1477
      %v1479 = vrot.slane %v1448, 1
      %v1480 = vsel %vm977, %v1477, %v1479
      %v1481 = vrot.slane %v1449, 1
      %v1482 = vsel %vm977, %v1479, %v1481
      %v1483 = vrot.slane %v1450, 1
      %v1484 = vsel %vm977, %v1481, %v1483
      %v1485 = vrot.slane %v1451, 1
      %v1486 = vsel %vm977, %v1483, %v1485
      %v1487 = vrot.slane %v1452, 1
      %v1488 = vsel %vm977, %v1485, %v1487
      %v1489 = vrot.slane %v1453, 1
      %v1490 = vsel %vm977, %v1487, %v1489
      %v1492 = vsel %vm518, %v1456, 0
      %v1495 = vsel %vm518, %v1458, 0
      %v1498 = vsel %vm518, %v1460, 0
      %v1501 = vsel %vm518, %v1462, 0
      %v1504 = vsel %vm518, %v1464, 0
      %v1507 = vsel %vm518, %v1466, 0
      %v1510 = vsel %vm518, %v1468, 0
      %v1513 = vsel %vm518, %v1470, 0
      %v1516 = vsel %vm518, %v1472, 0
      %v1519 = vsel %vm518, %v1474, 0
      %v1522 = vsel %vm518, %v1476, 0
      %v1525 = vsel %vm518, %v1478, 0
      %v1528 = vsel %vm518, %v1480, 0
      %v1531 = vsel %vm518, %v1482, 0
      %v1534 = vsel %vm518, %v1484, 0
      %v1537 = vsel %vm518, %v1486, 0
      %v1540 = vsel %vm518, %v1488, 0
      %v1543 = vsel %vm518, %v1490, 0
      %v1546 = vsel %vm573, %v1360, 0
      %1548 = vmatprep.subr.bf16.mxu0 0
      %1549 = vmatpush1.bf16.msra.mxu0 %v1546
      %1550 = vmatprep.subr.bf16.mxu0 0
      %1551 = vmatpush1.bf16.msra.mxu0 0
      %1552 = vmatprep.subr.bf16.mxu0 0
      %1553 = vmatpush1.bf16.msra.mxu0 0
      %1554 = vmatprep.subr.bf16.mxu0 0
      %1555 = vmatpush1.bf16.msra.mxu0 0
      %1556 = vmatprep.subr.bf16.mxu0 0
      %1557 = vmatpush1.bf16.msra.mxu0 0
      %1558 = vmatprep.subr.bf16.mxu0 0
      %1559 = vmatpush1.bf16.msra.mxu0 0
      %1560 = vmatprep.subr.bf16.mxu0 0
      %1561 = vmatpush1.bf16.msra.mxu0 0
      %1562 = vmatprep.subr.bf16.mxu0 0
      %1563 = vmatpush1.bf16.msra.mxu0 0
      %1564 = vmatprep.subr.bf16.mxu0 0
      %1565 = vmatpush1.bf16.msra.mxu0 0
      %1566 = vmatprep.subr.bf16.mxu0 0
      %1567 = vmatpush1.bf16.msra.mxu0 0
      %1568 = vmatprep.subr.bf16.mxu0 0
      %1569 = vmatpush1.bf16.msra.mxu0 0
      %1570 = vmatprep.subr.bf16.mxu0 0
      %1571 = vmatpush1.bf16.msra.mxu0 0
      %1572 = vmatprep.subr.bf16.mxu0 0
      %1573 = vmatpush1.bf16.msra.mxu0 0
      %1574 = vmatprep.subr.bf16.mxu0 0
      %1575 = vmatpush1.bf16.msra.mxu0 0
      %1576 = vmatprep.subr.bf16.mxu0 0
      %1577 = vmatpush1.bf16.msra.mxu0 0
      %1578 = vmatprep.subr.bf16.mxu0 0
      %1579 = vmatpush1.bf16.msra.mxu0 0
      %1580 = vmatprep.mubr.bf16.mxu0 0
      %1581 = vmatmul.mubr.bf16.gmra.mrb[0].mxu0 %v1492
      %v1582 = vpop.f32.mrb[0].mxu0
      %v1583 = vadd.f32 0.0, %v1582
      %v1584 = vpop.f32.mrb[0].mxu0
      %v1585 = vpop.f32.mrb[0].mxu0
      %v1586 = vadd.f32 0.0, %v1585
      %v1587 = vpop.f32.mrb[0].mxu0
      %1588 = vmatprep.mubr.bf16.mxu0 0
      %1589 = vmatmul.mubr.bf16.gmra.mrb[0].mxu0 %v1495
      %v1590 = vpop.f32.mrb[0].mxu0
      %v1591 = vadd.f32 0.0, %v1590
      %v1592 = vpop.f32.mrb[0].mxu0
      %v1593 = vpop.f32.mrb[0].mxu0
      %v1594 = vadd.f32 0.0, %v1593
      %v1595 = vpop.f32.mrb[0].mxu0
      %1596 = vmatprep.mubr.bf16.mxu0 0
      %1597 = vmatmul.mubr.bf16.gmra.mrb[0].mxu0 %v1498
      %v1598 = vpop.f32.mrb[0].mxu0
      %v1599 = vadd.f32 0.0, %v1598
      %v1600 = vpop.f32.mrb[0].mxu0
      %v1601 = vpop.f32.mrb[0].mxu0
      %v1602 = vadd.f32 0.0, %v1601
      %v1603 = vpop.f32.mrb[0].mxu0
      %1604 = vmatprep.mubr.bf16.mxu0 0
      %1605 = vmatmul.mubr.bf16.gmra.mrb[0].mxu0 %v1501
      %v1606 = vpop.f32.mrb[0].mxu0
      %v1607 = vadd.f32 0.0, %v1606
      %v1608 = vpop.f32.mrb[0].mxu0
      %v1609 = vpop.f32.mrb[0].mxu0
      %v1610 = vadd.f32 0.0, %v1609
      %v1611 = vpop.f32.mrb[0].mxu0
      %1612 = vmatprep.mubr.bf16.mxu0 0
      %1613 = vmatmul.mubr.bf16.gmra.mrb[0].mxu0 %v1504
      %v1614 = vpop.f32.mrb[0].mxu0
      %v1615 = vadd.f32 0.0, %v1614
      %v1616 = vpop.f32.mrb[0].mxu0
      %v1617 = vpop.f32.mrb[0].mxu0
      %v1618 = vadd.f32 0.0, %v1617
      %v1619 = vpop.f32.mrb[0].mxu0
      %1620 = vmatprep.mubr.bf16.mxu0 0
      %1621 = vmatmul.mubr.bf16.gmra.mrb[0].mxu0 %v1507
      %v1622 = vpop.f32.mrb[0].mxu0
      %v1623 = vadd.f32 0.0, %v1622
      %v1624 = vpop.f32.mrb[0].mxu0
      %v1625 = vpop.f32.mrb[0].mxu0
      %v1626 = vadd.f32 0.0, %v1625
      %v1627 = vpop.f32.mrb[0].mxu0
      %1628 = vmatprep.mubr.bf16.mxu0 0
      %1629 = vmatmul.mubr.bf16.gmra.mrb[0].mxu0 %v1510
      %v1630 = vpop.f32.mrb[0].mxu0
      %v1631 = vadd.f32 0.0, %v1630
      %v1632 = vpop.f32.mrb[0].mxu0
      %v1633 = vpop.f32.mrb[0].mxu0
      %v1634 = vadd.f32 0.0, %v1633
      %v1635 = vpop.f32.mrb[0].mxu0
      %1636 = vmatprep.mubr.bf16.mxu0 0
      %1637 = vmatmul.mubr.bf16.gmra.mrb[0].mxu0 %v1513
      %v1638 = vpop.f32.mrb[0].mxu0
      %v1639 = vadd.f32 0.0, %v1638
      %v1640 = vpop.f32.mrb[0].mxu0
      %v1641 = vpop.f32.mrb[0].mxu0
      %v1642 = vadd.f32 0.0, %v1641
      %v1643 = vpop.f32.mrb[0].mxu0
      %1644 = vmatprep.mubr.bf16.mxu0 0
      %1645 = vmatmul.mubr.bf16.gmra.mrb[0].mxu0 %v1516
      %v1646 = vpop.f32.mrb[0].mxu0
      %v1647 = vadd.f32 0.0, %v1646
      %v1648 = vpop.f32.mrb[0].mxu0
      %v1649 = vpop.f32.mrb[0].mxu0
      %v1650 = vadd.f32 0.0, %v1649
      %v1651 = vpop.f32.mrb[0].mxu0
      %1652 = vmatprep.mubr.bf16.mxu0 0
      %1653 = vmatmul.mubr.bf16.gmra.mrb[0].mxu0 %v1519
      %v1654 = vpop.f32.mrb[0].mxu0
      %v1655 = vadd.f32 0.0, %v1654
      %v1656 = vpop.f32.mrb[0].mxu0
      %v1657 = vpop.f32.mrb[0].mxu0
      %v1658 = vadd.f32 0.0, %v1657
      %v1659 = vpop.f32.mrb[0].mxu0
      %1660 = vmatprep.mubr.bf16.mxu0 0
      %1661 = vmatmul.mubr.bf16.gmra.mrb[0].mxu0 %v1522
      %v1662 = vpop.f32.mrb[0].mxu0
      %v1663 = vadd.f32 0.0, %v1662
      %v1664 = vpop.f32.mrb[0].mxu0
      %v1665 = vpop.f32.mrb[0].mxu0
      %v1666 = vadd.f32 0.0, %v1665
      %v1667 = vpop.f32.mrb[0].mxu0
      %1668 = vmatprep.mubr.bf16.mxu0 0
      %1669 = vmatmul.mubr.bf16.gmra.mrb[0].mxu0 %v1525
      %v1670 = vpop.f32.mrb[0].mxu0
      %v1671 = vadd.f32 0.0, %v1670
      %v1672 = vpop.f32.mrb[0].mxu0
      %v1673 = vpop.f32.mrb[0].mxu0
      %v1674 = vadd.f32 0.0, %v1673
      %v1675 = vpop.f32.mrb[0].mxu0
      %1676 = vmatprep.mubr.bf16.mxu0 0
      %1677 = vmatmul.mubr.bf16.gmra.mrb[0].mxu0 %v1528
      %v1678 = vpop.f32.mrb[0].mxu0
      %v1679 = vadd.f32 0.0, %v1678
      %v1680 = vpop.f32.mrb[0].mxu0
      %v1681 = vpop.f32.mrb[0].mxu0
      %v1682 = vadd.f32 0.0, %v1681
      %v1683 = vpop.f32.mrb[0].mxu0
      %1684 = vmatprep.mubr.bf16.mxu0 0
      %1685 = vmatmul.mubr.bf16.gmra.mrb[0].mxu0 %v1531
      %v1686 = vpop.f32.mrb[0].mxu0
      %v1687 = vadd.f32 0.0, %v1686
      %v1688 = vpop.f32.mrb[0].mxu0
      %v1689 = vpop.f32.mrb[0].mxu0
      %v1690 = vadd.f32 0.0, %v1689
      %v1691 = vpop.f32.mrb[0].mxu0
      %1692 = vmatprep.mubr.bf16.mxu0 0
      %1693 = vmatmul.mubr.bf16.gmra.mrb[0].mxu0 %v1534
      %v1694 = vpop.f32.mrb[0].mxu0
      %v1695 = vadd.f32 0.0, %v1694
      %v1696 = vpop.f32.mrb[0].mxu0
      %v1697 = vpop.f32.mrb[0].mxu0
      %v1698 = vadd.f32 0.0, %v1697
      %v1699 = vpop.f32.mrb[0].mxu0
      %1700 = vmatprep.mubr.bf16.mxu0 0
      %1701 = vmatmul.mubr.bf16.gmra.mrb[0].mxu0 %v1537
      %v1702 = vpop.f32.mrb[0].mxu0
      %v1703 = vadd.f32 0.0, %v1702
      %v1704 = vpop.f32.mrb[0].mxu0
      %v1705 = vpop.f32.mrb[0].mxu0
      %v1706 = vadd.f32 0.0, %v1705
      %v1707 = vpop.f32.mrb[0].mxu0
      %1708 = vmatprep.mubr.bf16.mxu0 0
      %1709 = vmatmul.mubr.bf16.gmra.mrb[0].mxu0 %v1540
      %v1710 = vpop.f32.mrb[0].mxu0
      %v1711 = vadd.f32 0.0, %v1710
      %v1712 = vpop.f32.mrb[0].mxu0
      %v1713 = vpop.f32.mrb[0].mxu0
      %v1714 = vadd.f32 0.0, %v1713
      %v1715 = vpop.f32.mrb[0].mxu0
      %1716 = vmatprep.mubr.bf16.mxu0 0
      %1717 = vmatmul.mubr.bf16.gmra.mrb[0].mxu0 %v1543
      %v1718 = vpop.f32.mrb[0].mxu0
      %v1719 = vadd.f32 0.0, %v1718
      %v1720 = vpop.f32.mrb[0].mxu0
      %v1721 = vpop.f32.mrb[0].mxu0
      %v1722 = vadd.f32 0.0, %v1721
      %v1723 = vpop.f32.mrb[0].mxu0
      %1724 = vdwg.mxu0
      %v1725 = vadd.f32 %v1249, %v1583
      %v1726 = vadd.f32 %v1250, %v1586
      %v1727 = vadd.f32 %v1251, %v1591
      %v1728 = vadd.f32 %v1252, %v1594
      %v1729 = vadd.f32 %v1253, %v1599
      %v1730 = vadd.f32 %v1254, %v1602
      %v1731 = vadd.f32 %v1255, %v1607
      %v1732 = vadd.f32 %v1256, %v1610
      %v1733 = vadd.f32 %v1257, %v1615
      %v1734 = vadd.f32 %v1258, %v1618
      %v1735 = vadd.f32 %v1259, %v1623
      %v1736 = vadd.f32 %v1260, %v1626
      %v1737 = vadd.f32 %v1261, %v1631
      %v1738 = vadd.f32 %v1262, %v1634
      %v1739 = vadd.f32 %v1263, %v1639
      %v1740 = vadd.f32 %v1264, %v1642
      %v1741 = vadd.f32 %v1265, %v1647
      %v1742 = vadd.f32 %v1266, %v1650
      %v1743 = vadd.f32 %v1267, %v1655
      %v1744 = vadd.f32 %v1268, %v1658
      %v1745 = vadd.f32 %v1269, %v1663
      %v1746 = vadd.f32 %v1270, %v1666
      %v1747 = vadd.f32 %v1271, %v1671
      %v1748 = vadd.f32 %v1272, %v1674
      %v1749 = vadd.f32 %v1273, %v1679
      %v1750 = vadd.f32 %v1274, %v1682
      %v1751 = vadd.f32 %v1275, %v1687
      %v1752 = vadd.f32 %v1276, %v1690
      %v1753 = vadd.f32 %v1277, %v1695
      %v1754 = vadd.f32 %v1278, %v1698
      %v1755 = vadd.f32 %v1279, %v1703
      %v1756 = vadd.f32 %v1280, %v1706
      %v1757 = vadd.f32 %v1281, %v1711
      %v1758 = vadd.f32 %v1282, %v1714
      %v1759 = vadd.f32 %v1283, %v1719
      %v1760 = vadd.f32 %v1284, %v1722
      %v1761 = vld [vmem:[%s192 + $0x98] sm:$0x3]
      %v1762 = vmax.bf16 %v1761, 0
      %s1763 = scalar_lea.vmem %s1, 8
      %v1764 = vld [vmem:[%s1763] sm:$0x3]
      %v1766 = vunpack.c.l.b16 %v1762
      %v1767 = vpack.c.b16 %v1766, %v1766
      %vm1768 = vsmask.f32 6400
      %v1770 = vshrl.u32 %v1435, 16
      %v1772 = vrot.slane %v1770, 1
      %v1773 = vshll.u32 %v1435, 16
      %v1775 = vrot.slane %v1773, 2
      %v1776 = vor.u32 %v1772, %v1775
      %v1778 = vshrl.u32 %v1436, 16
      %v1780 = vrot.slane %v1778, 1
      %v1781 = vshll.u32 %v1436, 16
      %v1783 = vrot.slane %v1781, 2
      %v1784 = vor.u32 %v1780, %v1783
      %v1785 = vsel %vm1768, %v1776, %v1784
      %v1787 = vshrl.u32 %v1437, 16
      %v1789 = vrot.slane %v1787, 1
      %v1790 = vshll.u32 %v1437, 16
      %v1792 = vrot.slane %v1790, 2
      %v1793 = vor.u32 %v1789, %v1792
      %v1794 = vsel %vm1768, %v1784, %v1793
      %v1796 = vshrl.u32 %v1438, 16
      %v1798 = vrot.slane %v1796, 1
      %v1799 = vshll.u32 %v1438, 16
      %v1801 = vrot.slane %v1799, 2
      %v1802 = vor.u32 %v1798, %v1801
      %v1803 = vsel %vm1768, %v1793, %v1802
      %v1805 = vshrl.u32 %v1439, 16
      %v1807 = vrot.slane %v1805, 1
      %v1808 = vshll.u32 %v1439, 16
      %v1810 = vrot.slane %v1808, 2
      %v1811 = vor.u32 %v1807, %v1810
      %v1812 = vsel %vm1768, %v1802, %v1811
      %v1814 = vshrl.u32 %v1440, 16
      %v1816 = vrot.slane %v1814, 1
      %v1817 = vshll.u32 %v1440, 16
      %v1819 = vrot.slane %v1817, 2
      %v1820 = vor.u32 %v1816, %v1819
      %v1821 = vsel %vm1768, %v1811, %v1820
      %v1823 = vshrl.u32 %v1441, 16
      %v1825 = vrot.slane %v1823, 1
      %v1826 = vshll.u32 %v1441, 16
      %v1828 = vrot.slane %v1826, 2
      %v1829 = vor.u32 %v1825, %v1828
      %v1830 = vsel %vm1768, %v1820, %v1829
      %v1832 = vshrl.u32 %v1442, 16
      %v1834 = vrot.slane %v1832, 1
      %v1835 = vshll.u32 %v1442, 16
      %v1837 = vrot.slane %v1835, 2
      %v1838 = vor.u32 %v1834, %v1837
      %v1839 = vsel %vm1768, %v1829, %v1838
      %v1841 = vshrl.u32 %v1443, 16
      %v1843 = vrot.slane %v1841, 1
      %v1844 = vshll.u32 %v1443, 16
      %v1846 = vrot.slane %v1844, 2
      %v1847 = vor.u32 %v1843, %v1846
      %v1848 = vsel %vm1768, %v1838, %v1847
      %v1850 = vshrl.u32 %v1444, 16
      %v1852 = vrot.slane %v1850, 1
      %v1853 = vshll.u32 %v1444, 16
      %v1855 = vrot.slane %v1853, 2
      %v1856 = vor.u32 %v1852, %v1855
      %v1857 = vsel %vm1768, %v1847, %v1856
      %v1859 = vshrl.u32 %v1445, 16
      %v1861 = vrot.slane %v1859, 1
      %v1862 = vshll.u32 %v1445, 16
      %v1864 = vrot.slane %v1862, 2
      %v1865 = vor.u32 %v1861, %v1864
      %v1866 = vsel %vm1768, %v1856, %v1865
      %v1868 = vshrl.u32 %v1446, 16
      %v1870 = vrot.slane %v1868, 1
      %v1871 = vshll.u32 %v1446, 16
      %v1873 = vrot.slane %v1871, 2
      %v1874 = vor.u32 %v1870, %v1873
      %v1875 = vsel %vm1768, %v1865, %v1874
      %v1877 = vshrl.u32 %v1447, 16
      %v1879 = vrot.slane %v1877, 1
      %v1880 = vshll.u32 %v1447, 16
      %v1882 = vrot.slane %v1880, 2
      %v1883 = vor.u32 %v1879, %v1882
      %v1884 = vsel %vm1768, %v1874, %v1883
      %v1886 = vshrl.u32 %v1448, 16
      %v1888 = vrot.slane %v1886, 1
      %v1889 = vshll.u32 %v1448, 16
      %v1891 = vrot.slane %v1889, 2
      %v1892 = vor.u32 %v1888, %v1891
      %v1893 = vsel %vm1768, %v1883, %v1892
      %v1895 = vshrl.u32 %v1449, 16
      %v1897 = vrot.slane %v1895, 1
      %v1898 = vshll.u32 %v1449, 16
      %v1900 = vrot.slane %v1898, 2
      %v1901 = vor.u32 %v1897, %v1900
      %v1902 = vsel %vm1768, %v1892, %v1901
      %v1904 = vshrl.u32 %v1450, 16
      %v1906 = vrot.slane %v1904, 1
      %v1907 = vshll.u32 %v1450, 16
      %v1909 = vrot.slane %v1907, 2
      %v1910 = vor.u32 %v1906, %v1909
      %v1911 = vsel %vm1768, %v1901, %v1910
      %v1913 = vshrl.u32 %v1451, 16
      %v1915 = vrot.slane %v1913, 1
      %v1916 = vshll.u32 %v1451, 16
      %v1918 = vrot.slane %v1916, 2
      %v1919 = vor.u32 %v1915, %v1918
      %v1920 = vsel %vm1768, %v1910, %v1919
      %v1922 = vshrl.u32 %v1452, 16
      %v1924 = vrot.slane %v1922, 1
      %v1925 = vshll.u32 %v1452, 16
      %v1927 = vrot.slane %v1925, 2
      %v1928 = vor.u32 %v1924, %v1927
      %v1929 = vsel %vm1768, %v1919, %v1928
      %v1931 = vshrl.u32 %v1767, 16
      %v1933 = vrot.slane %v1931, 1
      %v1934 = vshll.u32 %v1767, 16
      %v1936 = vrot.slane %v1934, 2
      %v1937 = vor.u32 %v1933, %v1936
      %v1938 = vsel %vm1768, %v1928, %v1937
      %v1940 = vsel %vm518, %v1785, 0
      %v1943 = vsel %vm518, %v1794, 0
      %v1946 = vsel %vm518, %v1803, 0
      %v1949 = vsel %vm518, %v1812, 0
      %v1952 = vsel %vm518, %v1821, 0
      %v1955 = vsel %vm518, %v1830, 0
      %v1958 = vsel %vm518, %v1839, 0
      %v1961 = vsel %vm518, %v1848, 0
      %v1964 = vsel %vm518, %v1857, 0
      %v1967 = vsel %vm518, %v1866, 0
      %v1970 = vsel %vm518, %v1875, 0
      %v1973 = vsel %vm518, %v1884, 0
      %v1976 = vsel %vm518, %v1893, 0
      %v1979 = vsel %vm518, %v1902, 0
      %v1982 = vsel %vm518, %v1911, 0
      %v1985 = vsel %vm518, %v1920, 0
      %v1988 = vsel %vm518, %v1929, 0
      %v1991 = vsel %vm518, %v1938, 0
      %v1994 = vsel %vm573, %v1764, 0
      %1996 = vmatprep.subr.bf16.mxu0 0
      %1997 = vmatpush1.bf16.msra.mxu0 %v1994
      %1998 = vmatprep.subr.bf16.mxu0 0
      %1999 = vmatpush1.bf16.msra.mxu0 0
      %2000 = vmatprep.subr.bf16.mxu0 0
      %2001 = vmatpush1.bf16.msra.mxu0 0
      %2002 = vmatprep.subr.bf16.mxu0 0
      %2003 = vmatpush1.bf16.msra.mxu0 0
      %2004 = vmatprep.subr.bf16.mxu0 0
      %2005 = vmatpush1.bf16.msra.mxu0 0
      %2006 = vmatprep.subr.bf16.mxu0 0
      %2007 = vmatpush1.bf16.msra.mxu0 0
      %2008 = vmatprep.subr.bf16.mxu0 0
      %2009 = vmatpush1.bf16.msra.mxu0 0
      %2010 = vmatprep.subr.bf16.mxu0 0
      %2011 = vmatpush1.bf16.msra.mxu0 0
      %2012 = vmatprep.subr.bf16.mxu0 0
      %2013 = vmatpush1.bf16.msra.mxu0 0
      %2014 = vmatprep.subr.bf16.mxu0 0
      %2015 = vmatpush1.bf16.msra.mxu0 0
      %2016 = vmatprep.subr.bf16.mxu0 0
      %2017 = vmatpush1.bf16.msra.mxu0 0
      %2018 = vmatprep.subr.bf16.mxu0 0
      %2019 = vmatpush1.bf16.msra.mxu0 0
      %2020 = vmatprep.subr.bf16.mxu0 0
      %2021 = vmatpush1.bf16.msra.mxu0 0
      %2022 = vmatprep.subr.bf16.mxu0 0
      %2023 = vmatpush1.bf16.msra.mxu0 0
      %2024 = vmatprep.subr.bf16.mxu0 0
      %2025 = vmatpush1.bf16.msra.mxu0 0
      %2026 = vmatprep.subr.bf16.mxu0 0
      %2027 = vmatpush1.bf16.msra.mxu0 0
      %2028 = vmatprep.mubr.bf16.mxu0 0
      %2029 = vmatmul.mubr.bf16.gmra.mrb[0].mxu0 %v1940
      %v2030 = vpop.f32.mrb[0].mxu0
      %v2031 = vadd.f32 0.0, %v2030
      %v2032 = vpop.f32.mrb[0].mxu0
      %v2033 = vpop.f32.mrb[0].mxu0
      %v2034 = vadd.f32 0.0, %v2033
      %v2035 = vpop.f32.mrb[0].mxu0
      %2036 = vmatprep.mubr.bf16.mxu0 0
      %2037 = vmatmul.mubr.bf16.gmra.mrb[0].mxu0 %v1943
      %v2038 = vpop.f32.mrb[0].mxu0
      %v2039 = vadd.f32 0.0, %v2038
      %v2040 = vpop.f32.mrb[0].mxu0
      %v2041 = vpop.f32.mrb[0].mxu0
      %v2042 = vadd.f32 0.0, %v2041
      %v2043 = vpop.f32.mrb[0].mxu0
      %2044 = vmatprep.mubr.bf16.mxu0 0
      %2045 = vmatmul.mubr.bf16.gmra.mrb[0].mxu0 %v1946
      %v2046 = vpop.f32.mrb[0].mxu0
      %v2047 = vadd.f32 0.0, %v2046
      %v2048 = vpop.f32.mrb[0].mxu0
      %v2049 = vpop.f32.mrb[0].mxu0
      %v2050 = vadd.f32 0.0, %v2049
      %v2051 = vpop.f32.mrb[0].mxu0
      %2052 = vmatprep.mubr.bf16.mxu0 0
      %2053 = vmatmul.mubr.bf16.gmra.mrb[0].mxu0 %v1949
      %v2054 = vpop.f32.mrb[0].mxu0
      %v2055 = vadd.f32 0.0, %v2054
      %v2056 = vpop.f32.mrb[0].mxu0
      %v2057 = vpop.f32.mrb[0].mxu0
      %v2058 = vadd.f32 0.0, %v2057
      %v2059 = vpop.f32.mrb[0].mxu0
      %2060 = vmatprep.mubr.bf16.mxu0 0
      %2061 = vmatmul.mubr.bf16.gmra.mrb[0].mxu0 %v1952
      %v2062 = vpop.f32.mrb[0].mxu0
      %v2063 = vadd.f32 0.0, %v2062
      %v2064 = vpop.f32.mrb[0].mxu0
      %v2065 = vpop.f32.mrb[0].mxu0
      %v2066 = vadd.f32 0.0, %v2065
      %v2067 = vpop.f32.mrb[0].mxu0
      %2068 = vmatprep.mubr.bf16.mxu0 0
      %2069 = vmatmul.mubr.bf16.gmra.mrb[0].mxu0 %v1955
      %v2070 = vpop.f32.mrb[0].mxu0
      %v2071 = vadd.f32 0.0, %v2070
      %v2072 = vpop.f32.mrb[0].mxu0
      %v2073 = vpop.f32.mrb[0].mxu0
      %v2074 = vadd.f32 0.0, %v2073
      %v2075 = vpop.f32.mrb[0].mxu0
      %2076 = vmatprep.mubr.bf16.mxu0 0
      %2077 = vmatmul.mubr.bf16.gmra.mrb[0].mxu0 %v1958
      %v2078 = vpop.f32.mrb[0].mxu0
      %v2079 = vadd.f32 0.0, %v2078
      %v2080 = vpop.f32.mrb[0].mxu0
      %v2081 = vpop.f32.mrb[0].mxu0
      %v2082 = vadd.f32 0.0, %v2081
      %v2083 = vpop.f32.mrb[0].mxu0
      %2084 = vmatprep.mubr.bf16.mxu0 0
      %2085 = vmatmul.mubr.bf16.gmra.mrb[0].mxu0 %v1961
      %v2086 = vpop.f32.mrb[0].mxu0
      %v2087 = vadd.f32 0.0, %v2086
      %v2088 = vpop.f32.mrb[0].mxu0
      %v2089 = vpop.f32.mrb[0].mxu0
      %v2090 = vadd.f32 0.0, %v2089
      %v2091 = vpop.f32.mrb[0].mxu0
      %2092 = vmatprep.mubr.bf16.mxu0 0
      %2093 = vmatmul.mubr.bf16.gmra.mrb[0].mxu0 %v1964
      %v2094 = vpop.f32.mrb[0].mxu0
      %v2095 = vadd.f32 0.0, %v2094
      %v2096 = vpop.f32.mrb[0].mxu0
      %v2097 = vpop.f32.mrb[0].mxu0
      %v2098 = vadd.f32 0.0, %v2097
      %v2099 = vpop.f32.mrb[0].mxu0
      %2100 = vmatprep.mubr.bf16.mxu0 0
      %2101 = vmatmul.mubr.bf16.gmra.mrb[0].mxu0 %v1967
      %v2102 = vpop.f32.mrb[0].mxu0
      %v2103 = vadd.f32 0.0, %v2102
      %v2104 = vpop.f32.mrb[0].mxu0
      %v2105 = vpop.f32.mrb[0].mxu0
      %v2106 = vadd.f32 0.0, %v2105
      %v2107 = vpop.f32.mrb[0].mxu0
      %2108 = vmatprep.mubr.bf16.mxu0 0
      %2109 = vmatmul.mubr.bf16.gmra.mrb[0].mxu0 %v1970
      %v2110 = vpop.f32.mrb[0].mxu0
      %v2111 = vadd.f32 0.0, %v2110
      %v2112 = vpop.f32.mrb[0].mxu0
      %v2113 = vpop.f32.mrb[0].mxu0
      %v2114 = vadd.f32 0.0, %v2113
      %v2115 = vpop.f32.mrb[0].mxu0
      %2116 = vmatprep.mubr.bf16.mxu0 0
      %2117 = vmatmul.mubr.bf16.gmra.mrb[0].mxu0 %v1973
      %v2118 = vpop.f32.mrb[0].mxu0
      %v2119 = vadd.f32 0.0, %v2118
      %v2120 = vpop.f32.mrb[0].mxu0
      %v2121 = vpop.f32.mrb[0].mxu0
      %v2122 = vadd.f32 0.0, %v2121
      %v2123 = vpop.f32.mrb[0].mxu0
      %2124 = vmatprep.mubr.bf16.mxu0 0
      %2125 = vmatmul.mubr.bf16.gmra.mrb[0].mxu0 %v1976
      %v2126 = vpop.f32.mrb[0].mxu0
      %v2127 = vadd.f32 0.0, %v2126
      %v2128 = vpop.f32.mrb[0].mxu0
      %v2129 = vpop.f32.mrb[0].mxu0
      %v2130 = vadd.f32 0.0, %v2129
      %v2131 = vpop.f32.mrb[0].mxu0
      %2132 = vmatprep.mubr.bf16.mxu0 0
      %2133 = vmatmul.mubr.bf16.gmra.mrb[0].mxu0 %v1979
      %v2134 = vpop.f32.mrb[0].mxu0
      %v2135 = vadd.f32 0.0, %v2134
      %v2136 = vpop.f32.mrb[0].mxu0
      %v2137 = vpop.f32.mrb[0].mxu0
      %v2138 = vadd.f32 0.0, %v2137
      %v2139 = vpop.f32.mrb[0].mxu0
      %2140 = vmatprep.mubr.bf16.mxu0 0
      %2141 = vmatmul.mubr.bf16.gmra.mrb[0].mxu0 %v1982
      %v2142 = vpop.f32.mrb[0].mxu0
      %v2143 = vadd.f32 0.0, %v2142
      %v2144 = vpop.f32.mrb[0].mxu0
      %v2145 = vpop.f32.mrb[0].mxu0
      %v2146 = vadd.f32 0.0, %v2145
      %v2147 = vpop.f32.mrb[0].mxu0
      %2148 = vmatprep.mubr.bf16.mxu0 0
      %2149 = vmatmul.mubr.bf16.gmra.mrb[0].mxu0 %v1985
      %v2150 = vpop.f32.mrb[0].mxu0
      %v2151 = vadd.f32 0.0, %v2150
      %v2152 = vpop.f32.mrb[0].mxu0
      %v2153 = vpop.f32.mrb[0].mxu0
      %v2154 = vadd.f32 0.0, %v2153
      %v2155 = vpop.f32.mrb[0].mxu0
      %2156 = vmatprep.mubr.bf16.mxu0 0
      %2157 = vmatmul.mubr.bf16.gmra.mrb[0].mxu0 %v1988
      %v2158 = vpop.f32.mrb[0].mxu0
      %v2159 = vadd.f32 0.0, %v2158
      %v2160 = vpop.f32.mrb[0].mxu0
      %v2161 = vpop.f32.mrb[0].mxu0
      %v2162 = vadd.f32 0.0, %v2161
      %v2163 = vpop.f32.mrb[0].mxu0
      %2164 = vmatprep.mubr.bf16.mxu0 0
      %2165 = vmatmul.mubr.bf16.gmra.mrb[0].mxu0 %v1991
      %v2166 = vpop.f32.mrb[0].mxu0
      %v2167 = vadd.f32 0.0, %v2166
      %v2168 = vpop.f32.mrb[0].mxu0
      %v2169 = vpop.f32.mrb[0].mxu0
      %v2170 = vadd.f32 0.0, %v2169
      %v2171 = vpop.f32.mrb[0].mxu0
      %2172 = vdwg.mxu0
      %v2173 = vadd.f32 %v1725, %v2031
      %v2174 = vadd.f32 %v1726, %v2034
      %v2175 = vadd.f32 %v1727, %v2039
      %v2176 = vadd.f32 %v1728, %v2042
      %v2177 = vadd.f32 %v1729, %v2047
      %v2178 = vadd.f32 %v1730, %v2050
      %v2179 = vadd.f32 %v1731, %v2055
      %v2180 = vadd.f32 %v1732, %v2058
      %v2181 = vadd.f32 %v1733, %v2063
      %v2182 = vadd.f32 %v1734, %v2066
      %v2183 = vadd.f32 %v1735, %v2071
      %v2184 = vadd.f32 %v1736, %v2074
      %v2185 = vadd.f32 %v1737, %v2079
      %v2186 = vadd.f32 %v1738, %v2082
      %v2187 = vadd.f32 %v1739, %v2087
      %v2188 = vadd.f32 %v1740, %v2090
      %v2189 = vadd.f32 %v1741, %v2095
      %v2190 = vadd.f32 %v1742, %v2098
      %v2191 = vadd.f32 %v1743, %v2103
      %v2192 = vadd.f32 %v1744, %v2106
      %v2193 = vadd.f32 %v1745, %v2111
      %v2194 = vadd.f32 %v1746, %v2114
      %v2195 = vadd.f32 %v1747, %v2119
      %v2196 = vadd.f32 %v1748, %v2122
      %v2197 = vadd.f32 %v1749, %v2127
      %v2198 = vadd.f32 %v1750, %v2130
      %v2199 = vadd.f32 %v1751, %v2135
      %v2200 = vadd.f32 %v1752, %v2138
      %v2201 = vadd.f32 %v1753, %v2143
      %v2202 = vadd.f32 %v1754, %v2146
      %v2203 = vadd.f32 %v1755, %v2151
      %v2204 = vadd.f32 %v1756, %v2154
      %v2205 = vadd.f32 %v1757, %v2159
      %v2206 = vadd.f32 %v1758, %v2162
      %v2207 = vadd.f32 %v1759, %v2167
      %v2208 = vadd.f32 %v1760, %v2170
      %v2209 = vld [vmem:[%s192 + $0x8] sm:$0xc]
      %v2210 = vmax.bf16 %v2209, 0
      %s2211 = scalar_lea.vmem %s1, 10
      %v2212 = vld [vmem:[%s2211] sm:$0x3]
      %v2214 = vunpack.c.l.b16 %v2210
      %v2215 = vpack.c.b16 %v1399, %v2214
      %vm2216 = vcmask 1045504
      %v2217 = vrot.slane %v2215, 2
      %v2218 = vrot.slane %v1436, 2
      %v2219 = vsel %vm2216, %v2217, %v2218
      %v2220 = vrot.slane %v1437, 2
      %v2221 = vsel %vm2216, %v2218, %v2220
      %v2222 = vrot.slane %v1438, 2
      %v2223 = vsel %vm2216, %v2220, %v2222
      %v2224 = vrot.slane %v1439, 2
      %v2225 = vsel %vm2216, %v2222, %v2224
      %v2226 = vrot.slane %v1440, 2
      %v2227 = vsel %vm2216, %v2224, %v2226
      %v2228 = vrot.slane %v1441, 2
      %v2229 = vsel %vm2216, %v2226, %v2228
      %v2230 = vrot.slane %v1442, 2
      %v2231 = vsel %vm2216, %v2228, %v2230
      %v2232 = vrot.slane %v1443, 2
      %v2233 = vsel %vm2216, %v2230, %v2232
      %v2234 = vrot.slane %v1444, 2
      %v2235 = vsel %vm2216, %v2232, %v2234
      %v2236 = vrot.slane %v1445, 2
      %v2237 = vsel %vm2216, %v2234, %v2236
      %v2238 = vrot.slane %v1446, 2
      %v2239 = vsel %vm2216, %v2236, %v2238
      %v2240 = vrot.slane %v1447, 2
      %v2241 = vsel %vm2216, %v2238, %v2240
      %v2242 = vrot.slane %v1448, 2
      %v2243 = vsel %vm2216, %v2240, %v2242
      %v2244 = vrot.slane %v1449, 2
      %v2245 = vsel %vm2216, %v2242, %v2244
      %v2246 = vrot.slane %v1450, 2
      %v2247 = vsel %vm2216, %v2244, %v2246
      %v2248 = vrot.slane %v1451, 2
      %v2249 = vsel %vm2216, %v2246, %v2248
      %v2250 = vrot.slane %v1452, 2
      %v2251 = vsel %vm2216, %v2248, %v2250
      %v2252 = vrot.slane %v1767, 2
      %v2253 = vsel %vm2216, %v2250, %v2252
      %v2255 = vsel %vm518, %v2219, 0
      %v2258 = vsel %vm518, %v2221, 0
      %v2261 = vsel %vm518, %v2223, 0
      %v2264 = vsel %vm518, %v2225, 0
      %v2267 = vsel %vm518, %v2227, 0
      %v2270 = vsel %vm518, %v2229, 0
      %v2273 = vsel %vm518, %v2231, 0
      %v2276 = vsel %vm518, %v2233, 0
      %v2279 = vsel %vm518, %v2235, 0
      %v2282 = vsel %vm518, %v2237, 0
      %v2285 = vsel %vm518, %v2239, 0
      %v2288 = vsel %vm518, %v2241, 0
      %v2291 = vsel %vm518, %v2243, 0
      %v2294 = vsel %vm518, %v2245, 0
      %v2297 = vsel %vm518, %v2247, 0
      %v2300 = vsel %vm518, %v2249, 0
      %v2303 = vsel %vm518, %v2251, 0
      %v2306 = vsel %vm518, %v2253, 0
      %v2309 = vsel %vm573, %v2212, 0
      %2311 = vmatprep.subr.bf16.mxu0 0
      %2312 = vmatpush1.bf16.msra.mxu0 %v2309
      %2313 = vmatprep.subr.bf16.mxu0 0
      %2314 = vmatpush1.bf16.msra.mxu0 0
      %2315 = vmatprep.subr.bf16.mxu0 0
      %2316 = vmatpush1.bf16.msra.mxu0 0
      %2317 = vmatprep.subr.bf16.mxu0 0
      %2318 = vmatpush1.bf16.msra.mxu0 0
      %2319 = vmatprep.subr.bf16.mxu0 0
      %2320 = vmatpush1.bf16.msra.mxu0 0
      %2321 = vmatprep.subr.bf16.mxu0 0
      %2322 = vmatpush1.bf16.msra.mxu0 0
      %2323 = vmatprep.subr.bf16.mxu0 0
      %2324 = vmatpush1.bf16.msra.mxu0 0
      %2325 = vmatprep.subr.bf16.mxu0 0
      %2326 = vmatpush1.bf16.msra.mxu0 0
      %2327 = vmatprep.subr.bf16.mxu0 0
      %2328 = vmatpush1.bf16.msra.mxu0 0
      %2329 = vmatprep.subr.bf16.mxu0 0
      %2330 = vmatpush1.bf16.msra.mxu0 0
      %2331 = vmatprep.subr.bf16.mxu0 0
      %2332 = vmatpush1.bf16.msra.mxu0 0
      %2333 = vmatprep.subr.bf16.mxu0 0
      %2334 = vmatpush1.bf16.msra.mxu0 0
      %2335 = vmatprep.subr.bf16.mxu0 0
      %2336 = vmatpush1.bf16.msra.mxu0 0
      %2337 = vmatprep.subr.bf16.mxu0 0
      %2338 = vmatpush1.bf16.msra.mxu0 0
      %2339 = vmatprep.subr.bf16.mxu0 0
      %2340 = vmatpush1.bf16.msra.mxu0 0
      %2341 = vmatprep.subr.bf16.mxu0 0
      %2342 = vmatpush1.bf16.msra.mxu0 0
      %2343 = vmatprep.mubr.bf16.mxu0 0
      %2344 = vmatmul.mubr.bf16.gmra.mrb[0].mxu0 %v2255
      %v2345 = vpop.f32.mrb[0].mxu0
      %v2346 = vadd.f32 0.0, %v2345
      %v2347 = vpop.f32.mrb[0].mxu0
      %v2348 = vpop.f32.mrb[0].mxu0
      %v2349 = vadd.f32 0.0, %v2348
      %v2350 = vpop.f32.mrb[0].mxu0
      %2351 = vmatprep.mubr.bf16.mxu0 0
      %2352 = vmatmul.mubr.bf16.gmra.mrb[0].mxu0 %v2258
      %v2353 = vpop.f32.mrb[0].mxu0
      %v2354 = vadd.f32 0.0, %v2353
      %v2355 = vpop.f32.mrb[0].mxu0
      %v2356 = vpop.f32.mrb[0].mxu0
      %v2357 = vadd.f32 0.0, %v2356
      %v2358 = vpop.f32.mrb[0].mxu0
      %2359 = vmatprep.mubr.bf16.mxu0 0
      %2360 = vmatmul.mubr.bf16.gmra.mrb[0].mxu0 %v2261
      %v2361 = vpop.f32.mrb[0].mxu0
      %v2362 = vadd.f32 0.0, %v2361
      %v2363 = vpop.f32.mrb[0].mxu0
      %v2364 = vpop.f32.mrb[0].mxu0
      %v2365 = vadd.f32 0.0, %v2364
      %v2366 = vpop.f32.mrb[0].mxu0
      %2367 = vmatprep.mubr.bf16.mxu0 0
      %2368 = vmatmul.mubr.bf16.gmra.mrb[0].mxu0 %v2264
      %v2369 = vpop.f32.mrb[0].mxu0
      %v2370 = vadd.f32 0.0, %v2369
      %v2371 = vpop.f32.mrb[0].mxu0
      %v2372 = vpop.f32.mrb[0].mxu0
      %v2373 = vadd.f32 0.0, %v2372
      %v2374 = vpop.f32.mrb[0].mxu0
      %2375 = vmatprep.mubr.bf16.mxu0 0
      %2376 = vmatmul.mubr.bf16.gmra.mrb[0].mxu0 %v2267
      %v2377 = vpop.f32.mrb[0].mxu0
      %v2378 = vadd.f32 0.0, %v2377
      %v2379 = vpop.f32.mrb[0].mxu0
      %v2380 = vpop.f32.mrb[0].mxu0
      %v2381 = vadd.f32 0.0, %v2380
      %v2382 = vpop.f32.mrb[0].mxu0
      %2383 = vmatprep.mubr.bf16.mxu0 0
      %2384 = vmatmul.mubr.bf16.gmra.mrb[0].mxu0 %v2270
      %v2385 = vpop.f32.mrb[0].mxu0
      %v2386 = vadd.f32 0.0, %v2385
      %v2387 = vpop.f32.mrb[0].mxu0
      %v2388 = vpop.f32.mrb[0].mxu0
      %v2389 = vadd.f32 0.0, %v2388
      %v2390 = vpop.f32.mrb[0].mxu0
      %2391 = vmatprep.mubr.bf16.mxu0 0
      %2392 = vmatmul.mubr.bf16.gmra.mrb[0].mxu0 %v2273
      %v2393 = vpop.f32.mrb[0].mxu0
      %v2394 = vadd.f32 0.0, %v2393
      %v2395 = vpop.f32.mrb[0].mxu0
      %v2396 = vpop.f32.mrb[0].mxu0
      %v2397 = vadd.f32 0.0, %v2396
      %v2398 = vpop.f32.mrb[0].mxu0
      %2399 = vmatprep.mubr.bf16.mxu0 0
      %2400 = vmatmul.mubr.bf16.gmra.mrb[0].mxu0 %v2276
      %v2401 = vpop.f32.mrb[0].mxu0
      %v2402 = vadd.f32 0.0, %v2401
      %v2403 = vpop.f32.mrb[0].mxu0
      %v2404 = vpop.f32.mrb[0].mxu0
      %v2405 = vadd.f32 0.0, %v2404
      %v2406 = vpop.f32.mrb[0].mxu0
      %2407 = vmatprep.mubr.bf16.mxu0 0
      %2408 = vmatmul.mubr.bf16.gmra.mrb[0].mxu0 %v2279
      %v2409 = vpop.f32.mrb[0].mxu0
      %v2410 = vadd.f32 0.0, %v2409
      %v2411 = vpop.f32.mrb[0].mxu0
      %v2412 = vpop.f32.mrb[0].mxu0
      %v2413 = vadd.f32 0.0, %v2412
      %v2414 = vpop.f32.mrb[0].mxu0
      %2415 = vmatprep.mubr.bf16.mxu0 0
      %2416 = vmatmul.mubr.bf16.gmra.mrb[0].mxu0 %v2282
      %v2417 = vpop.f32.mrb[0].mxu0
      %v2418 = vadd.f32 0.0, %v2417
      %v2419 = vpop.f32.mrb[0].mxu0
      %v2420 = vpop.f32.mrb[0].mxu0
      %v2421 = vadd.f32 0.0, %v2420
      %v2422 = vpop.f32.mrb[0].mxu0
      %2423 = vmatprep.mubr.bf16.mxu0 0
      %2424 = vmatmul.mubr.bf16.gmra.mrb[0].mxu0 %v2285
      %v2425 = vpop.f32.mrb[0].mxu0
      %v2426 = vadd.f32 0.0, %v2425
      %v2427 = vpop.f32.mrb[0].mxu0
      %v2428 = vpop.f32.mrb[0].mxu0
      %v2429 = vadd.f32 0.0, %v2428
      %v2430 = vpop.f32.mrb[0].mxu0
      %2431 = vmatprep.mubr.bf16.mxu0 0
      %2432 = vmatmul.mubr.bf16.gmra.mrb[0].mxu0 %v2288
      %v2433 = vpop.f32.mrb[0].mxu0
      %v2434 = vadd.f32 0.0, %v2433
      %v2435 = vpop.f32.mrb[0].mxu0
      %v2436 = vpop.f32.mrb[0].mxu0
      %v2437 = vadd.f32 0.0, %v2436
      %v2438 = vpop.f32.mrb[0].mxu0
      %2439 = vmatprep.mubr.bf16.mxu0 0
      %2440 = vmatmul.mubr.bf16.gmra.mrb[0].mxu0 %v2291
      %v2441 = vpop.f32.mrb[0].mxu0
      %v2442 = vadd.f32 0.0, %v2441
      %v2443 = vpop.f32.mrb[0].mxu0
      %v2444 = vpop.f32.mrb[0].mxu0
      %v2445 = vadd.f32 0.0, %v2444
      %v2446 = vpop.f32.mrb[0].mxu0
      %2447 = vmatprep.mubr.bf16.mxu0 0
      %2448 = vmatmul.mubr.bf16.gmra.mrb[0].mxu0 %v2294
      %v2449 = vpop.f32.mrb[0].mxu0
      %v2450 = vadd.f32 0.0, %v2449
      %v2451 = vpop.f32.mrb[0].mxu0
      %v2452 = vpop.f32.mrb[0].mxu0
      %v2453 = vadd.f32 0.0, %v2452
      %v2454 = vpop.f32.mrb[0].mxu0
      %2455 = vmatprep.mubr.bf16.mxu0 0
      %2456 = vmatmul.mubr.bf16.gmra.mrb[0].mxu0 %v2297
      %v2457 = vpop.f32.mrb[0].mxu0
      %v2458 = vadd.f32 0.0, %v2457
      %v2459 = vpop.f32.mrb[0].mxu0
      %v2460 = vpop.f32.mrb[0].mxu0
      %v2461 = vadd.f32 0.0, %v2460
      %v2462 = vpop.f32.mrb[0].mxu0
      %2463 = vmatprep.mubr.bf16.mxu0 0
      %2464 = vmatmul.mubr.bf16.gmra.mrb[0].mxu0 %v2300
      %v2465 = vpop.f32.mrb[0].mxu0
      %v2466 = vadd.f32 0.0, %v2465
      %v2467 = vpop.f32.mrb[0].mxu0
      %v2468 = vpop.f32.mrb[0].mxu0
      %v2469 = vadd.f32 0.0, %v2468
      %v2470 = vpop.f32.mrb[0].mxu0
      %2471 = vmatprep.mubr.bf16.mxu0 0
      %2472 = vmatmul.mubr.bf16.gmra.mrb[0].mxu0 %v2303
      %v2473 = vpop.f32.mrb[0].mxu0
      %v2474 = vadd.f32 0.0, %v2473
      %v2475 = vpop.f32.mrb[0].mxu0
      %v2476 = vpop.f32.mrb[0].mxu0
      %v2477 = vadd.f32 0.0, %v2476
      %v2478 = vpop.f32.mrb[0].mxu0
      %2479 = vmatprep.mubr.bf16.mxu0 0
      %2480 = vmatmul.mubr.bf16.gmra.mrb[0].mxu0 %v2306
      %v2481 = vpop.f32.mrb[0].mxu0
      %v2482 = vadd.f32 0.0, %v2481
      %v2483 = vpop.f32.mrb[0].mxu0
      %v2484 = vpop.f32.mrb[0].mxu0
      %v2485 = vadd.f32 0.0, %v2484
      %v2486 = vpop.f32.mrb[0].mxu0
      %2487 = vdwg.mxu0
      %v2488 = vadd.f32 %v2173, %v2346
      %v2489 = vadd.f32 %v2174, %v2349
      %v2490 = vadd.f32 %v2175, %v2354
      %v2491 = vadd.f32 %v2176, %v2357
      %v2492 = vadd.f32 %v2177, %v2362
      %v2493 = vadd.f32 %v2178, %v2365
      %v2494 = vadd.f32 %v2179, %v2370
      %v2495 = vadd.f32 %v2180, %v2373
      %v2496 = vadd.f32 %v2181, %v2378
      %v2497 = vadd.f32 %v2182, %v2381
      %v2498 = vadd.f32 %v2183, %v2386
      %v2499 = vadd.f32 %v2184, %v2389
      %v2500 = vadd.f32 %v2185, %v2394
      %v2501 = vadd.f32 %v2186, %v2397
      %v2502 = vadd.f32 %v2187, %v2402
      %v2503 = vadd.f32 %v2188, %v2405
      %v2504 = vadd.f32 %v2189, %v2410
      %v2505 = vadd.f32 %v2190, %v2413
      %v2506 = vadd.f32 %v2191, %v2418
      %v2507 = vadd.f32 %v2192, %v2421
      %v2508 = vadd.f32 %v2193, %v2426
      %v2509 = vadd.f32 %v2194, %v2429
      %v2510 = vadd.f32 %v2195, %v2434
      %v2511 = vadd.f32 %v2196, %v2437
      %v2512 = vadd.f32 %v2197, %v2442
      %v2513 = vadd.f32 %v2198, %v2445
      %v2514 = vadd.f32 %v2199, %v2450
      %v2515 = vadd.f32 %v2200, %v2453
      %v2516 = vadd.f32 %v2201, %v2458
      %v2517 = vadd.f32 %v2202, %v2461
      %v2518 = vadd.f32 %v2203, %v2466
      %v2519 = vadd.f32 %v2204, %v2469
      %v2520 = vadd.f32 %v2205, %v2474
      %v2521 = vadd.f32 %v2206, %v2477
      %v2522 = vadd.f32 %v2207, %v2482
      %v2523 = vadd.f32 %v2208, %v2485
      %v2524 = vld [vmem:[%s192 + $0x10] sm:$0xc]
      %v2525 = vld [vmem:[%s192 + $0x14] sm:$0xf]
      %v2526 = vld [vmem:[%s192 + $0x18] sm:$0xf]
      %v2527 = vld [vmem:[%s192 + $0x1c] sm:$0xf]
      %v2528 = vld [vmem:[%s192 + $0x20] sm:$0xf]
      %v2529 = vld [vmem:[%s192 + $0x24] sm:$0xf]
      %v2530 = vld [vmem:[%s192 + $0x28] sm:$0xf]
      %v2531 = vld [vmem:[%s192 + $0x2c] sm:$0xf]
      %v2532 = vld [vmem:[%s192 + $0x30] sm:$0xf]
      %v2533 = vld [vmem:[%s192 + $0x34] sm:$0xf]
      %v2534 = vld [vmem:[%s192 + $0x38] sm:$0xf]
      %v2535 = vld [vmem:[%s192 + $0x3c] sm:$0xf]
      %v2536 = vld [vmem:[%s192 + $0x40] sm:$0xf]
      %v2537 = vld [vmem:[%s192 + $0x44] sm:$0xf]
      %v2538 = vld [vmem:[%s192 + $0x48] sm:$0xf]
      %v2539 = vld [vmem:[%s192 + $0x4c] sm:$0xf]
      %v2540 = vld [vmem:[%s192 + $0x50] sm:$0xf]
      %v2541 = vld [vmem:[%s192 + $0x54] sm:$0xf]
      %v2542 = vld [vmem:[%s192 + $0x58] sm:$0xf]
      %v2543 = vld [vmem:[%s192 + $0x5c] sm:$0xf]
      %v2544 = vld [vmem:[%s192 + $0x60] sm:$0xf]
      %v2545 = vld [vmem:[%s192 + $0x64] sm:$0xf]
      %v2546 = vld [vmem:[%s192 + $0x68] sm:$0xf]
      %v2547 = vld [vmem:[%s192 + $0x6c] sm:$0xf]
      %v2548 = vld [vmem:[%s192 + $0x70] sm:$0xf]
      %v2549 = vld [vmem:[%s192 + $0x74] sm:$0xf]
      %v2550 = vld [vmem:[%s192 + $0x78] sm:$0xf]
      %v2551 = vld [vmem:[%s192 + $0x7c] sm:$0xf]
      %v2552 = vld [vmem:[%s192 + $0x80] sm:$0xf]
      %v2553 = vld [vmem:[%s192 + $0x84] sm:$0xf]
      %v2554 = vld [vmem:[%s192 + $0x88] sm:$0xf]
      %v2555 = vld [vmem:[%s192 + $0x8c] sm:$0xf]
      %v2556 = vld [vmem:[%s192 + $0x90] sm:$0xf]
      %v2557 = vld [vmem:[%s192 + $0x94] sm:$0xf]
      %v2558 = vld [vmem:[%s192 + $0x98] sm:$0xf]
      %v2559 = vld [vmem:[%s192 + $0x9c] sm:$0xf]
      %v2560 = vld [vmem:[%s192 + $0xa0] sm:$0x3]
      %v2561 = vmax.bf16 %v2524, 0
      %v2562 = vmax.bf16 %v2525, 0
      %v2563 = vmax.bf16 %v2526, 0
      %v2564 = vmax.bf16 %v2527, 0
      %v2565 = vmax.bf16 %v2528, 0
      %v2566 = vmax.bf16 %v2529, 0
      %v2567 = vmax.bf16 %v2530, 0
      %v2568 = vmax.bf16 %v2531, 0
      %v2569 = vmax.bf16 %v2532, 0
      %v2570 = vmax.bf16 %v2533, 0
      %v2571 = vmax.bf16 %v2534, 0
      %v2572 = vmax.bf16 %v2535, 0
      %v2573 = vmax.bf16 %v2536, 0
      %v2574 = vmax.bf16 %v2537, 0
      %v2575 = vmax.bf16 %v2538, 0
      %v2576 = vmax.bf16 %v2539, 0
      %v2577 = vmax.bf16 %v2540, 0
      %v2578 = vmax.bf16 %v2541, 0
      %v2579 = vmax.bf16 %v2542, 0
      %v2580 = vmax.bf16 %v2543, 0
      %v2581 = vmax.bf16 %v2544, 0
      %v2582 = vmax.bf16 %v2545, 0
      %v2583 = vmax.bf16 %v2546, 0
      %v2584 = vmax.bf16 %v2547, 0
      %v2585 = vmax.bf16 %v2548, 0
      %v2586 = vmax.bf16 %v2549, 0
      %v2587 = vmax.bf16 %v2550, 0
      %v2588 = vmax.bf16 %v2551, 0
      %v2589 = vmax.bf16 %v2552, 0
      %v2590 = vmax.bf16 %v2553, 0
      %v2591 = vmax.bf16 %v2554, 0
      %v2592 = vmax.bf16 %v2555, 0
      %v2593 = vmax.bf16 %v2556, 0
      %v2594 = vmax.bf16 %v2557, 0
      %v2595 = vmax.bf16 %v2558, 0
      %v2596 = vmax.bf16 %v2559, 0
      %v2597 = vmax.bf16 %v2560, 0
      %s2598 = scalar_lea.vmem %s1, 12
      %v2599 = vld [vmem:[%s2598] sm:$0x3]
      %v2637 = vunpack.c.l.b16 %v2561
      %v2638 = vunpack.c.l.b16 %v2562
      %v2639 = vunpack.c.l.b16 %v2563
      %v2640 = vunpack.c.l.b16 %v2564
      %v2641 = vunpack.c.l.b16 %v2565
      %v2642 = vunpack.c.l.b16 %v2566
      %v2643 = vunpack.c.l.b16 %v2567
      %v2644 = vunpack.c.l.b16 %v2568
      %v2645 = vunpack.c.l.b16 %v2569
      %v2646 = vunpack.c.l.b16 %v2570
      %v2647 = vunpack.c.l.b16 %v2571
      %v2648 = vunpack.c.l.b16 %v2572
      %v2649 = vunpack.c.l.b16 %v2573
      %v2650 = vunpack.c.l.b16 %v2574
      %v2651 = vunpack.c.l.b16 %v2575
      %v2652 = vunpack.c.l.b16 %v2576
      %v2653 = vunpack.c.l.b16 %v2577
      %v2654 = vunpack.c.l.b16 %v2578
      %v2655 = vunpack.c.l.b16 %v2579
      %v2656 = vunpack.c.l.b16 %v2580
      %v2657 = vunpack.c.l.b16 %v2581
      %v2658 = vunpack.c.l.b16 %v2582
      %v2659 = vunpack.c.l.b16 %v2583
      %v2660 = vunpack.c.l.b16 %v2584
      %v2661 = vunpack.c.l.b16 %v2585
      %v2662 = vunpack.c.l.b16 %v2586
      %v2663 = vunpack.c.l.b16 %v2587
      %v2664 = vunpack.c.l.b16 %v2588
      %v2665 = vunpack.c.l.b16 %v2589
      %v2666 = vunpack.c.l.b16 %v2590
      %v2667 = vunpack.c.l.b16 %v2591
      %v2668 = vunpack.c.l.b16 %v2592
      %v2669 = vunpack.c.l.b16 %v2593
      %v2670 = vunpack.c.l.b16 %v2594
      %v2671 = vunpack.c.l.b16 %v2595
      %v2672 = vunpack.c.l.b16 %v2596
      %v2673 = vunpack.c.l.b16 %v2597
      %v2674 = vpack.c.b16 %v2638, %v2637
      %v2675 = vpack.c.b16 %v2640, %v2639
      %v2676 = vpack.c.b16 %v2642, %v2641
      %v2677 = vpack.c.b16 %v2644, %v2643
      %v2678 = vpack.c.b16 %v2646, %v2645
      %v2679 = vpack.c.b16 %v2648, %v2647
      %v2680 = vpack.c.b16 %v2650, %v2649
      %v2681 = vpack.c.b16 %v2652, %v2651
      %v2682 = vpack.c.b16 %v2654, %v2653
      %v2683 = vpack.c.b16 %v2656, %v2655
      %v2684 = vpack.c.b16 %v2658, %v2657
      %v2685 = vpack.c.b16 %v2660, %v2659
      %v2686 = vpack.c.b16 %v2662, %v2661
      %v2687 = vpack.c.b16 %v2664, %v2663
      %v2688 = vpack.c.b16 %v2666, %v2665
      %v2689 = vpack.c.b16 %v2668, %v2667
      %v2690 = vpack.c.b16 %v2670, %v2669
      %v2691 = vpack.c.b16 %v2672, %v2671
      %v2692 = vpack.c.b16 %v2673, %v2673
      %v2693 = vrot.slane %v2674, 2
      %v2694 = vrot.slane %v2675, 2
      %v2695 = vsel %vm2216, %v2693, %v2694
      %v2696 = vrot.slane %v2676, 2
      %v2697 = vsel %vm2216, %v2694, %v2696
      %v2698 = vrot.slane %v2677, 2
      %v2699 = vsel %vm2216, %v2696, %v2698
      %v2700 = vrot.slane %v2678, 2
      %v2701 = vsel %vm2216, %v2698, %v2700
      %v2702 = vrot.slane %v2679, 2
      %v2703 = vsel %vm2216, %v2700, %v2702
      %v2704 = vrot.slane %v2680, 2
      %v2705 = vsel %vm2216, %v2702, %v2704
      %v2706 = vrot.slane %v2681, 2
      %v2707 = vsel %vm2216, %v2704, %v2706
      %v2708 = vrot.slane %v2682, 2
      %v2709 = vsel %vm2216, %v2706, %v2708
      %v2710 = vrot.slane %v2683, 2
      %v2711 = vsel %vm2216, %v2708, %v2710
      %v2712 = vrot.slane %v2684, 2
      %v2713 = vsel %vm2216, %v2710, %v2712
      %v2714 = vrot.slane %v2685, 2
      %v2715 = vsel %vm2216, %v2712, %v2714
      %v2716 = vrot.slane %v2686, 2
      %v2717 = vsel %vm2216, %v2714, %v2716
      %v2718 = vrot.slane %v2687, 2
      %v2719 = vsel %vm2216, %v2716, %v2718
      %v2720 = vrot.slane %v2688, 2
      %v2721 = vsel %vm2216, %v2718, %v2720
      %v2722 = vrot.slane %v2689, 2
      %v2723 = vsel %vm2216, %v2720, %v2722
      %v2724 = vrot.slane %v2690, 2
      %v2725 = vsel %vm2216, %v2722, %v2724
      %v2726 = vrot.slane %v2691, 2
      %v2727 = vsel %vm2216, %v2724, %v2726
      %v2728 = vrot.slane %v2692, 2
      %v2729 = vsel %vm2216, %v2726, %v2728
      %v2731 = vsel %vm518, %v2695, 0
      %v2734 = vsel %vm518, %v2697, 0
      %v2737 = vsel %vm518, %v2699, 0
      %v2740 = vsel %vm518, %v2701, 0
      %v2743 = vsel %vm518, %v2703, 0
      %v2746 = vsel %vm518, %v2705, 0
      %v2749 = vsel %vm518, %v2707, 0
      %v2752 = vsel %vm518, %v2709, 0
      %v2755 = vsel %vm518, %v2711, 0
      %v2758 = vsel %vm518, %v2713, 0
      %v2761 = vsel %vm518, %v2715, 0
      %v2764 = vsel %vm518, %v2717, 0
      %v2767 = vsel %vm518, %v2719, 0
      %v2770 = vsel %vm518, %v2721, 0
      %v2773 = vsel %vm518, %v2723, 0
      %v2776 = vsel %vm518, %v2725, 0
      %v2779 = vsel %vm518, %v2727, 0
      %v2782 = vsel %vm518, %v2729, 0
      %v2785 = vsel %vm573, %v2599, 0
      %2787 = vmatprep.subr.bf16.mxu0 0
      %2788 = vmatpush1.bf16.msra.mxu0 %v2785
      %2789 = vmatprep.subr.bf16.mxu0 0
      %2790 = vmatpush1.bf16.msra.mxu0 0
      %2791 = vmatprep.subr.bf16.mxu0 0
      %2792 = vmatpush1.bf16.msra.mxu0 0
      %2793 = vmatprep.subr.bf16.mxu0 0
      %2794 = vmatpush1.bf16.msra.mxu0 0
      %2795 = vmatprep.subr.bf16.mxu0 0
      %2796 = vmatpush1.bf16.msra.mxu0 0
      %2797 = vmatprep.subr.bf16.mxu0 0
      %2798 = vmatpush1.bf16.msra.mxu0 0
      %2799 = vmatprep.subr.bf16.mxu0 0
      %2800 = vmatpush1.bf16.msra.mxu0 0
      %2801 = vmatprep.subr.bf16.mxu0 0
      %2802 = vmatpush1.bf16.msra.mxu0 0
      %2803 = vmatprep.subr.bf16.mxu0 0
      %2804 = vmatpush1.bf16.msra.mxu0 0
      %2805 = vmatprep.subr.bf16.mxu0 0
      %2806 = vmatpush1.bf16.msra.mxu0 0
      %2807 = vmatprep.subr.bf16.mxu0 0
      %2808 = vmatpush1.bf16.msra.mxu0 0
      %2809 = vmatprep.subr.bf16.mxu0 0
      %2810 = vmatpush1.bf16.msra.mxu0 0
      %2811 = vmatprep.subr.bf16.mxu0 0
      %2812 = vmatpush1.bf16.msra.mxu0 0
      %2813 = vmatprep.subr.bf16.mxu0 0
      %2814 = vmatpush1.bf16.msra.mxu0 0
      %2815 = vmatprep.subr.bf16.mxu0 0
      %2816 = vmatpush1.bf16.msra.mxu0 0
      %2817 = vmatprep.subr.bf16.mxu0 0
      %2818 = vmatpush1.bf16.msra.mxu0 0
      %2819 = vmatprep.mubr.bf16.mxu0 0
      %2820 = vmatmul.mubr.bf16.gmra.mrb[0].mxu0 %v2731
      %v2821 = vpop.f32.mrb[0].mxu0
      %v2822 = vadd.f32 0.0, %v2821
      %v2823 = vpop.f32.mrb[0].mxu0
      %v2824 = vpop.f32.mrb[0].mxu0
      %v2825 = vadd.f32 0.0, %v2824
      %v2826 = vpop.f32.mrb[0].mxu0
      %2827 = vmatprep.mubr.bf16.mxu0 0
      %2828 = vmatmul.mubr.bf16.gmra.mrb[0].mxu0 %v2734
      %v2829 = vpop.f32.mrb[0].mxu0
      %v2830 = vadd.f32 0.0, %v2829
      %v2831 = vpop.f32.mrb[0].mxu0
      %v2832 = vpop.f32.mrb[0].mxu0
      %v2833 = vadd.f32 0.0, %v2832
      %v2834 = vpop.f32.mrb[0].mxu0
      %2835 = vmatprep.mubr.bf16.mxu0 0
      %2836 = vmatmul.mubr.bf16.gmra.mrb[0].mxu0 %v2737
      %v2837 = vpop.f32.mrb[0].mxu0
      %v2838 = vadd.f32 0.0, %v2837
      %v2839 = vpop.f32.mrb[0].mxu0
      %v2840 = vpop.f32.mrb[0].mxu0
      %v2841 = vadd.f32 0.0, %v2840
      %v2842 = vpop.f32.mrb[0].mxu0
      %2843 = vmatprep.mubr.bf16.mxu0 0
      %2844 = vmatmul.mubr.bf16.gmra.mrb[0].mxu0 %v2740
      %v2845 = vpop.f32.mrb[0].mxu0
      %v2846 = vadd.f32 0.0, %v2845
      %v2847 = vpop.f32.mrb[0].mxu0
      %v2848 = vpop.f32.mrb[0].mxu0
      %v2849 = vadd.f32 0.0, %v2848
      %v2850 = vpop.f32.mrb[0].mxu0
      %2851 = vmatprep.mubr.bf16.mxu0 0
      %2852 = vmatmul.mubr.bf16.gmra.mrb[0].mxu0 %v2743
      %v2853 = vpop.f32.mrb[0].mxu0
      %v2854 = vadd.f32 0.0, %v2853
      %v2855 = vpop.f32.mrb[0].mxu0
      %v2856 = vpop.f32.mrb[0].mxu0
      %v2857 = vadd.f32 0.0, %v2856
      %v2858 = vpop.f32.mrb[0].mxu0
      %2859 = vmatprep.mubr.bf16.mxu0 0
      %2860 = vmatmul.mubr.bf16.gmra.mrb[0].mxu0 %v2746
      %v2861 = vpop.f32.mrb[0].mxu0
      %v2862 = vadd.f32 0.0, %v2861
      %v2863 = vpop.f32.mrb[0].mxu0
      %v2864 = vpop.f32.mrb[0].mxu0
      %v2865 = vadd.f32 0.0, %v2864
      %v2866 = vpop.f32.mrb[0].mxu0
      %2867 = vmatprep.mubr.bf16.mxu0 0
      %2868 = vmatmul.mubr.bf16.gmra.mrb[0].mxu0 %v2749
      %v2869 = vpop.f32.mrb[0].mxu0
      %v2870 = vadd.f32 0.0, %v2869
      %v2871 = vpop.f32.mrb[0].mxu0
      %v2872 = vpop.f32.mrb[0].mxu0
      %v2873 = vadd.f32 0.0, %v2872
      %v2874 = vpop.f32.mrb[0].mxu0
      %2875 = vmatprep.mubr.bf16.mxu0 0
      %2876 = vmatmul.mubr.bf16.gmra.mrb[0].mxu0 %v2752
      %v2877 = vpop.f32.mrb[0].mxu0
      %v2878 = vadd.f32 0.0, %v2877
      %v2879 = vpop.f32.mrb[0].mxu0
      %v2880 = vpop.f32.mrb[0].mxu0
      %v2881 = vadd.f32 0.0, %v2880
      %v2882 = vpop.f32.mrb[0].mxu0
      %2883 = vmatprep.mubr.bf16.mxu0 0
      %2884 = vmatmul.mubr.bf16.gmra.mrb[0].mxu0 %v2755
      %v2885 = vpop.f32.mrb[0].mxu0
      %v2886 = vadd.f32 0.0, %v2885
      %v2887 = vpop.f32.mrb[0].mxu0
      %v2888 = vpop.f32.mrb[0].mxu0
      %v2889 = vadd.f32 0.0, %v2888
      %v2890 = vpop.f32.mrb[0].mxu0
      %2891 = vmatprep.mubr.bf16.mxu0 0
      %2892 = vmatmul.mubr.bf16.gmra.mrb[0].mxu0 %v2758
      %v2893 = vpop.f32.mrb[0].mxu0
      %v2894 = vadd.f32 0.0, %v2893
      %v2895 = vpop.f32.mrb[0].mxu0
      %v2896 = vpop.f32.mrb[0].mxu0
      %v2897 = vadd.f32 0.0, %v2896
      %v2898 = vpop.f32.mrb[0].mxu0
      %2899 = vmatprep.mubr.bf16.mxu0 0
      %2900 = vmatmul.mubr.bf16.gmra.mrb[0].mxu0 %v2761
      %v2901 = vpop.f32.mrb[0].mxu0
      %v2902 = vadd.f32 0.0, %v2901
      %v2903 = vpop.f32.mrb[0].mxu0
      %v2904 = vpop.f32.mrb[0].mxu0
      %v2905 = vadd.f32 0.0, %v2904
      %v2906 = vpop.f32.mrb[0].mxu0
      %2907 = vmatprep.mubr.bf16.mxu0 0
      %2908 = vmatmul.mubr.bf16.gmra.mrb[0].mxu0 %v2764
      %v2909 = vpop.f32.mrb[0].mxu0
      %v2910 = vadd.f32 0.0, %v2909
      %v2911 = vpop.f32.mrb[0].mxu0
      %v2912 = vpop.f32.mrb[0].mxu0
      %v2913 = vadd.f32 0.0, %v2912
      %v2914 = vpop.f32.mrb[0].mxu0
      %2915 = vmatprep.mubr.bf16.mxu0 0
      %2916 = vmatmul.mubr.bf16.gmra.mrb[0].mxu0 %v2767
      %v2917 = vpop.f32.mrb[0].mxu0
      %v2918 = vadd.f32 0.0, %v2917
      %v2919 = vpop.f32.mrb[0].mxu0
      %v2920 = vpop.f32.mrb[0].mxu0
      %v2921 = vadd.f32 0.0, %v2920
      %v2922 = vpop.f32.mrb[0].mxu0
      %2923 = vmatprep.mubr.bf16.mxu0 0
      %2924 = vmatmul.mubr.bf16.gmra.mrb[0].mxu0 %v2770
      %v2925 = vpop.f32.mrb[0].mxu0
      %v2926 = vadd.f32 0.0, %v2925
      %v2927 = vpop.f32.mrb[0].mxu0
      %v2928 = vpop.f32.mrb[0].mxu0
      %v2929 = vadd.f32 0.0, %v2928
      %v2930 = vpop.f32.mrb[0].mxu0
      %2931 = vmatprep.mubr.bf16.mxu0 0
      %2932 = vmatmul.mubr.bf16.gmra.mrb[0].mxu0 %v2773
      %v2933 = vpop.f32.mrb[0].mxu0
      %v2934 = vadd.f32 0.0, %v2933
      %v2935 = vpop.f32.mrb[0].mxu0
      %v2936 = vpop.f32.mrb[0].mxu0
      %v2937 = vadd.f32 0.0, %v2936
      %v2938 = vpop.f32.mrb[0].mxu0
      %2939 = vmatprep.mubr.bf16.mxu0 0
      %2940 = vmatmul.mubr.bf16.gmra.mrb[0].mxu0 %v2776
      %v2941 = vpop.f32.mrb[0].mxu0
      %v2942 = vadd.f32 0.0, %v2941
      %v2943 = vpop.f32.mrb[0].mxu0
      %v2944 = vpop.f32.mrb[0].mxu0
      %v2945 = vadd.f32 0.0, %v2944
      %v2946 = vpop.f32.mrb[0].mxu0
      %2947 = vmatprep.mubr.bf16.mxu0 0
      %2948 = vmatmul.mubr.bf16.gmra.mrb[0].mxu0 %v2779
      %v2949 = vpop.f32.mrb[0].mxu0
      %v2950 = vadd.f32 0.0, %v2949
      %v2951 = vpop.f32.mrb[0].mxu0
      %v2952 = vpop.f32.mrb[0].mxu0
      %v2953 = vadd.f32 0.0, %v2952
      %v2954 = vpop.f32.mrb[0].mxu0
      %2955 = vmatprep.mubr.bf16.mxu0 0
      %2956 = vmatmul.mubr.bf16.gmra.mrb[0].mxu0 %v2782
      %v2957 = vpop.f32.mrb[0].mxu0
      %v2958 = vadd.f32 0.0, %v2957
      %v2959 = vpop.f32.mrb[0].mxu0
      %v2960 = vpop.f32.mrb[0].mxu0
      %v2961 = vadd.f32 0.0, %v2960
      %v2962 = vpop.f32.mrb[0].mxu0
      %2963 = vdwg.mxu0
      %v2964 = vadd.f32 %v2488, %v2822
      %v2965 = vadd.f32 %v2489, %v2825
      %v2966 = vadd.f32 %v2490, %v2830
      %v2967 = vadd.f32 %v2491, %v2833
      %v2968 = vadd.f32 %v2492, %v2838
      %v2969 = vadd.f32 %v2493, %v2841
      %v2970 = vadd.f32 %v2494, %v2846
      %v2971 = vadd.f32 %v2495, %v2849
      %v2972 = vadd.f32 %v2496, %v2854
      %v2973 = vadd.f32 %v2497, %v2857
      %v2974 = vadd.f32 %v2498, %v2862
      %v2975 = vadd.f32 %v2499, %v2865
      %v2976 = vadd.f32 %v2500, %v2870
      %v2977 = vadd.f32 %v2501, %v2873
      %v2978 = vadd.f32 %v2502, %v2878
      %v2979 = vadd.f32 %v2503, %v2881
      %v2980 = vadd.f32 %v2504, %v2886
      %v2981 = vadd.f32 %v2505, %v2889
      %v2982 = vadd.f32 %v2506, %v2894
      %v2983 = vadd.f32 %v2507, %v2897
      %v2984 = vadd.f32 %v2508, %v2902
      %v2985 = vadd.f32 %v2509, %v2905
      %v2986 = vadd.f32 %v2510, %v2910
      %v2987 = vadd.f32 %v2511, %v2913
      %v2988 = vadd.f32 %v2512, %v2918
      %v2989 = vadd.f32 %v2513, %v2921
      %v2990 = vadd.f32 %v2514, %v2926
      %v2991 = vadd.f32 %v2515, %v2929
      %v2992 = vadd.f32 %v2516, %v2934
      %v2993 = vadd.f32 %v2517, %v2937
      %v2994 = vadd.f32 %v2518, %v2942
      %v2995 = vadd.f32 %v2519, %v2945
      %v2996 = vadd.f32 %v2520, %v2950
      %v2997 = vadd.f32 %v2521, %v2953
      %v2998 = vadd.f32 %v2522, %v2958
      %v2999 = vadd.f32 %v2523, %v2961
      %v3000 = vld [vmem:[%s192 + $0xa0] sm:$0x7]
      %v3001 = vmax.bf16 %v3000, 0
      %s3002 = scalar_lea.vmem %s1, 14
      %v3003 = vld [vmem:[%s3002] sm:$0x3]
      %v3005 = vunpack.c.l.b16 %v3001
      %v3006 = vpack.c.b16 %v3005, %v3005
      %vm3007 = vsmask.f32 5376
      %v3009 = vshrl.u32 %v2674, 16
      %v3011 = vrot.slane %v3009, 2
      %v3012 = vshll.u32 %v2674, 16
      %v3014 = vrot.slane %v3012, 3
      %v3015 = vor.u32 %v3011, %v3014
      %v3017 = vshrl.u32 %v2675, 16
      %v3019 = vrot.slane %v3017, 2
      %v3020 = vshll.u32 %v2675, 16
      %v3022 = vrot.slane %v3020, 3
      %v3023 = vor.u32 %v3019, %v3022
      %v3024 = vsel %vm3007, %v3015, %v3023
      %v3026 = vshrl.u32 %v2676, 16
      %v3028 = vrot.slane %v3026, 2
      %v3029 = vshll.u32 %v2676, 16
      %v3031 = vrot.slane %v3029, 3
      %v3032 = vor.u32 %v3028, %v3031
      %v3033 = vsel %vm3007, %v3023, %v3032
      %v3035 = vshrl.u32 %v2677, 16
      %v3037 = vrot.slane %v3035, 2
      %v3038 = vshll.u32 %v2677, 16
      %v3040 = vrot.slane %v3038, 3
      %v3041 = vor.u32 %v3037, %v3040
      %v3042 = vsel %vm3007, %v3032, %v3041
      %v3044 = vshrl.u32 %v2678, 16
      %v3046 = vrot.slane %v3044, 2
      %v3047 = vshll.u32 %v2678, 16
      %v3049 = vrot.slane %v3047, 3
      %v3050 = vor.u32 %v3046, %v3049
      %v3051 = vsel %vm3007, %v3041, %v3050
      %v3053 = vshrl.u32 %v2679, 16
      %v3055 = vrot.slane %v3053, 2
      %v3056 = vshll.u32 %v2679, 16
      %v3058 = vrot.slane %v3056, 3
      %v3059 = vor.u32 %v3055, %v3058
      %v3060 = vsel %vm3007, %v3050, %v3059
      %v3062 = vshrl.u32 %v2680, 16
      %v3064 = vrot.slane %v3062, 2
      %v3065 = vshll.u32 %v2680, 16
      %v3067 = vrot.slane %v3065, 3
      %v3068 = vor.u32 %v3064, %v3067
      %v3069 = vsel %vm3007, %v3059, %v3068
      %v3071 = vshrl.u32 %v2681, 16
      %v3073 = vrot.slane %v3071, 2
      %v3074 = vshll.u32 %v2681, 16
      %v3076 = vrot.slane %v3074, 3
      %v3077 = vor.u32 %v3073, %v3076
      %v3078 = vsel %vm3007, %v3068, %v3077
      %v3080 = vshrl.u32 %v2682, 16
      %v3082 = vrot.slane %v3080, 2
      %v3083 = vshll.u32 %v2682, 16
      %v3085 = vrot.slane %v3083, 3
      %v3086 = vor.u32 %v3082, %v3085
      %v3087 = vsel %vm3007, %v3077, %v3086
      %v3089 = vshrl.u32 %v2683, 16
      %v3091 = vrot.slane %v3089, 2
      %v3092 = vshll.u32 %v2683, 16
      %v3094 = vrot.slane %v3092, 3
      %v3095 = vor.u32 %v3091, %v3094
      %v3096 = vsel %vm3007, %v3086, %v3095
      %v3098 = vshrl.u32 %v2684, 16
      %v3100 = vrot.slane %v3098, 2
      %v3101 = vshll.u32 %v2684, 16
      %v3103 = vrot.slane %v3101, 3
      %v3104 = vor.u32 %v3100, %v3103
      %v3105 = vsel %vm3007, %v3095, %v3104
      %v3107 = vshrl.u32 %v2685, 16
      %v3109 = vrot.slane %v3107, 2
      %v3110 = vshll.u32 %v2685, 16
      %v3112 = vrot.slane %v3110, 3
      %v3113 = vor.u32 %v3109, %v3112
      %v3114 = vsel %vm3007, %v3104, %v3113
      %v3116 = vshrl.u32 %v2686, 16
      %v3118 = vrot.slane %v3116, 2
      %v3119 = vshll.u32 %v2686, 16
      %v3121 = vrot.slane %v3119, 3
      %v3122 = vor.u32 %v3118, %v3121
      %v3123 = vsel %vm3007, %v3113, %v3122
      %v3125 = vshrl.u32 %v2687, 16
      %v3127 = vrot.slane %v3125, 2
      %v3128 = vshll.u32 %v2687, 16
      %v3130 = vrot.slane %v3128, 3
      %v3131 = vor.u32 %v3127, %v3130
      %v3132 = vsel %vm3007, %v3122, %v3131
      %v3134 = vshrl.u32 %v2688, 16
      %v3136 = vrot.slane %v3134, 2
      %v3137 = vshll.u32 %v2688, 16
      %v3139 = vrot.slane %v3137, 3
      %v3140 = vor.u32 %v3136, %v3139
      %v3141 = vsel %vm3007, %v3131, %v3140
      %v3143 = vshrl.u32 %v2689, 16
      %v3145 = vrot.slane %v3143, 2
      %v3146 = vshll.u32 %v2689, 16
      %v3148 = vrot.slane %v3146, 3
      %v3149 = vor.u32 %v3145, %v3148
      %v3150 = vsel %vm3007, %v3140, %v3149
      %v3152 = vshrl.u32 %v2690, 16
      %v3154 = vrot.slane %v3152, 2
      %v3155 = vshll.u32 %v2690, 16
      %v3157 = vrot.slane %v3155, 3
      %v3158 = vor.u32 %v3154, %v3157
      %v3159 = vsel %vm3007, %v3149, %v3158
      %v3161 = vshrl.u32 %v2691, 16
      %v3163 = vrot.slane %v3161, 2
      %v3164 = vshll.u32 %v2691, 16
      %v3166 = vrot.slane %v3164, 3
      %v3167 = vor.u32 %v3163, %v3166
      %v3168 = vsel %vm3007, %v3158, %v3167
      %v3170 = vshrl.u32 %v3006, 16
      %v3172 = vrot.slane %v3170, 2
      %v3173 = vshll.u32 %v3006, 16
      %v3175 = vrot.slane %v3173, 3
      %v3176 = vor.u32 %v3172, %v3175
      %v3177 = vsel %vm3007, %v3167, %v3176
      %v3179 = vsel %vm518, %v3024, 0
      %v3182 = vsel %vm518, %v3033, 0
      %v3185 = vsel %vm518, %v3042, 0
      %v3188 = vsel %vm518, %v3051, 0
      %v3191 = vsel %vm518, %v3060, 0
      %v3194 = vsel %vm518, %v3069, 0
      %v3197 = vsel %vm518, %v3078, 0
      %v3200 = vsel %vm518, %v3087, 0
      %v3203 = vsel %vm518, %v3096, 0
      %v3206 = vsel %vm518, %v3105, 0
      %v3209 = vsel %vm518, %v3114, 0
      %v3212 = vsel %vm518, %v3123, 0
      %v3215 = vsel %vm518, %v3132, 0
      %v3218 = vsel %vm518, %v3141, 0
      %v3221 = vsel %vm518, %v3150, 0
      %v3224 = vsel %vm518, %v3159, 0
      %v3227 = vsel %vm518, %v3168, 0
      %v3230 = vsel %vm518, %v3177, 0
      %v3233 = vsel %vm573, %v3003, 0
      %3235 = vmatprep.subr.bf16.mxu0 0
      %3236 = vmatpush1.bf16.msra.mxu0 %v3233
      %3237 = vmatprep.subr.bf16.mxu0 0
      %3238 = vmatpush1.bf16.msra.mxu0 0
      %3239 = vmatprep.subr.bf16.mxu0 0
      %3240 = vmatpush1.bf16.msra.mxu0 0
      %3241 = vmatprep.subr.bf16.mxu0 0
      %3242 = vmatpush1.bf16.msra.mxu0 0
      %3243 = vmatprep.subr.bf16.mxu0 0
      %3244 = vmatpush1.bf16.msra.mxu0 0
      %3245 = vmatprep.subr.bf16.mxu0 0
      %3246 = vmatpush1.bf16.msra.mxu0 0
      %3247 = vmatprep.subr.bf16.mxu0 0
      %3248 = vmatpush1.bf16.msra.mxu0 0
      %3249 = vmatprep.subr.bf16.mxu0 0
      %3250 = vmatpush1.bf16.msra.mxu0 0
      %3251 = vmatprep.subr.bf16.mxu0 0
      %3252 = vmatpush1.bf16.msra.mxu0 0
      %3253 = vmatprep.subr.bf16.mxu0 0
      %3254 = vmatpush1.bf16.msra.mxu0 0
      %3255 = vmatprep.subr.bf16.mxu0 0
      %3256 = vmatpush1.bf16.msra.mxu0 0
      %3257 = vmatprep.subr.bf16.mxu0 0
      %3258 = vmatpush1.bf16.msra.mxu0 0
      %3259 = vmatprep.subr.bf16.mxu0 0
      %3260 = vmatpush1.bf16.msra.mxu0 0
      %3261 = vmatprep.subr.bf16.mxu0 0
      %3262 = vmatpush1.bf16.msra.mxu0 0
      %3263 = vmatprep.subr.bf16.mxu0 0
      %3264 = vmatpush1.bf16.msra.mxu0 0
      %3265 = vmatprep.subr.bf16.mxu0 0
      %3266 = vmatpush1.bf16.msra.mxu0 0
      %3267 = vmatprep.mubr.bf16.mxu0 0
      %3268 = vmatmul.mubr.bf16.gmra.mrb[0].mxu0 %v3179
      %v3269 = vpop.f32.mrb[0].mxu0
      %v3270 = vadd.f32 0.0, %v3269
      %v3271 = vpop.f32.mrb[0].mxu0
      %v3272 = vpop.f32.mrb[0].mxu0
      %v3273 = vadd.f32 0.0, %v3272
      %v3274 = vpop.f32.mrb[0].mxu0
      %3275 = vmatprep.mubr.bf16.mxu0 0
      %3276 = vmatmul.mubr.bf16.gmra.mrb[0].mxu0 %v3182
      %v3277 = vpop.f32.mrb[0].mxu0
      %v3278 = vadd.f32 0.0, %v3277
      %v3279 = vpop.f32.mrb[0].mxu0
      %v3280 = vpop.f32.mrb[0].mxu0
      %v3281 = vadd.f32 0.0, %v3280
      %v3282 = vpop.f32.mrb[0].mxu0
      %3283 = vmatprep.mubr.bf16.mxu0 0
      %3284 = vmatmul.mubr.bf16.gmra.mrb[0].mxu0 %v3185
      %v3285 = vpop.f32.mrb[0].mxu0
      %v3286 = vadd.f32 0.0, %v3285
      %v3287 = vpop.f32.mrb[0].mxu0
      %v3288 = vpop.f32.mrb[0].mxu0
      %v3289 = vadd.f32 0.0, %v3288
      %v3290 = vpop.f32.mrb[0].mxu0
      %3291 = vmatprep.mubr.bf16.mxu0 0
      %3292 = vmatmul.mubr.bf16.gmra.mrb[0].mxu0 %v3188
      %v3293 = vpop.f32.mrb[0].mxu0
      %v3294 = vadd.f32 0.0, %v3293
      %v3295 = vpop.f32.mrb[0].mxu0
      %v3296 = vpop.f32.mrb[0].mxu0
      %v3297 = vadd.f32 0.0, %v3296
      %v3298 = vpop.f32.mrb[0].mxu0
      %3299 = vmatprep.mubr.bf16.mxu0 0
      %3300 = vmatmul.mubr.bf16.gmra.mrb[0].mxu0 %v3191
      %v3301 = vpop.f32.mrb[0].mxu0
      %v3302 = vadd.f32 0.0, %v3301
      %v3303 = vpop.f32.mrb[0].mxu0
      %v3304 = vpop.f32.mrb[0].mxu0
      %v3305 = vadd.f32 0.0, %v3304
      %v3306 = vpop.f32.mrb[0].mxu0
      %3307 = vmatprep.mubr.bf16.mxu0 0
      %3308 = vmatmul.mubr.bf16.gmra.mrb[0].mxu0 %v3194
      %v3309 = vpop.f32.mrb[0].mxu0
      %v3310 = vadd.f32 0.0, %v3309
      %v3311 = vpop.f32.mrb[0].mxu0
      %v3312 = vpop.f32.mrb[0].mxu0
      %v3313 = vadd.f32 0.0, %v3312
      %v3314 = vpop.f32.mrb[0].mxu0
      %3315 = vmatprep.mubr.bf16.mxu0 0
      %3316 = vmatmul.mubr.bf16.gmra.mrb[0].mxu0 %v3197
      %v3317 = vpop.f32.mrb[0].mxu0
      %v3318 = vadd.f32 0.0, %v3317
      %v3319 = vpop.f32.mrb[0].mxu0
      %v3320 = vpop.f32.mrb[0].mxu0
      %v3321 = vadd.f32 0.0, %v3320
      %v3322 = vpop.f32.mrb[0].mxu0
      %3323 = vmatprep.mubr.bf16.mxu0 0
      %3324 = vmatmul.mubr.bf16.gmra.mrb[0].mxu0 %v3200
      %v3325 = vpop.f32.mrb[0].mxu0
      %v3326 = vadd.f32 0.0, %v3325
      %v3327 = vpop.f32.mrb[0].mxu0
      %v3328 = vpop.f32.mrb[0].mxu0
      %v3329 = vadd.f32 0.0, %v3328
      %v3330 = vpop.f32.mrb[0].mxu0
      %3331 = vmatprep.mubr.bf16.mxu0 0
      %3332 = vmatmul.mubr.bf16.gmra.mrb[0].mxu0 %v3203
      %v3333 = vpop.f32.mrb[0].mxu0
      %v3334 = vadd.f32 0.0, %v3333
      %v3335 = vpop.f32.mrb[0].mxu0
      %v3336 = vpop.f32.mrb[0].mxu0
      %v3337 = vadd.f32 0.0, %v3336
      %v3338 = vpop.f32.mrb[0].mxu0
      %3339 = vmatprep.mubr.bf16.mxu0 0
      %3340 = vmatmul.mubr.bf16.gmra.mrb[0].mxu0 %v3206
      %v3341 = vpop.f32.mrb[0].mxu0
      %v3342 = vadd.f32 0.0, %v3341
      %v3343 = vpop.f32.mrb[0].mxu0
      %v3344 = vpop.f32.mrb[0].mxu0
      %v3345 = vadd.f32 0.0, %v3344
      %v3346 = vpop.f32.mrb[0].mxu0
      %3347 = vmatprep.mubr.bf16.mxu0 0
      %3348 = vmatmul.mubr.bf16.gmra.mrb[0].mxu0 %v3209
      %v3349 = vpop.f32.mrb[0].mxu0
      %v3350 = vadd.f32 0.0, %v3349
      %v3351 = vpop.f32.mrb[0].mxu0
      %v3352 = vpop.f32.mrb[0].mxu0
      %v3353 = vadd.f32 0.0, %v3352
      %v3354 = vpop.f32.mrb[0].mxu0
      %3355 = vmatprep.mubr.bf16.mxu0 0
      %3356 = vmatmul.mubr.bf16.gmra.mrb[0].mxu0 %v3212
      %v3357 = vpop.f32.mrb[0].mxu0
      %v3358 = vadd.f32 0.0, %v3357
      %v3359 = vpop.f32.mrb[0].mxu0
      %v3360 = vpop.f32.mrb[0].mxu0
      %v3361 = vadd.f32 0.0, %v3360
      %v3362 = vpop.f32.mrb[0].mxu0
      %3363 = vmatprep.mubr.bf16.mxu0 0
      %3364 = vmatmul.mubr.bf16.gmra.mrb[0].mxu0 %v3215
      %v3365 = vpop.f32.mrb[0].mxu0
      %v3366 = vadd.f32 0.0, %v3365
      %v3367 = vpop.f32.mrb[0].mxu0
      %v3368 = vpop.f32.mrb[0].mxu0
      %v3369 = vadd.f32 0.0, %v3368
      %v3370 = vpop.f32.mrb[0].mxu0
      %3371 = vmatprep.mubr.bf16.mxu0 0
      %3372 = vmatmul.mubr.bf16.gmra.mrb[0].mxu0 %v3218
      %v3373 = vpop.f32.mrb[0].mxu0
      %v3374 = vadd.f32 0.0, %v3373
      %v3375 = vpop.f32.mrb[0].mxu0
      %v3376 = vpop.f32.mrb[0].mxu0
      %v3377 = vadd.f32 0.0, %v3376
      %v3378 = vpop.f32.mrb[0].mxu0
      %3379 = vmatprep.mubr.bf16.mxu0 0
      %3380 = vmatmul.mubr.bf16.gmra.mrb[0].mxu0 %v3221
      %v3381 = vpop.f32.mrb[0].mxu0
      %v3382 = vadd.f32 0.0, %v3381
      %v3383 = vpop.f32.mrb[0].mxu0
      %v3384 = vpop.f32.mrb[0].mxu0
      %v3385 = vadd.f32 0.0, %v3384
      %v3386 = vpop.f32.mrb[0].mxu0
      %3387 = vmatprep.mubr.bf16.mxu0 0
      %3388 = vmatmul.mubr.bf16.gmra.mrb[0].mxu0 %v3224
      %v3389 = vpop.f32.mrb[0].mxu0
      %v3390 = vadd.f32 0.0, %v3389
      %v3391 = vpop.f32.mrb[0].mxu0
      %v3392 = vpop.f32.mrb[0].mxu0
      %v3393 = vadd.f32 0.0, %v3392
      %v3394 = vpop.f32.mrb[0].mxu0
      %3395 = vmatprep.mubr.bf16.mxu0 0
      %3396 = vmatmul.mubr.bf16.gmra.mrb[0].mxu0 %v3227
      %v3397 = vpop.f32.mrb[0].mxu0
      %v3398 = vadd.f32 0.0, %v3397
      %v3399 = vpop.f32.mrb[0].mxu0
      %v3400 = vpop.f32.mrb[0].mxu0
      %v3401 = vadd.f32 0.0, %v3400
      %v3402 = vpop.f32.mrb[0].mxu0
      %3403 = vmatprep.mubr.bf16.mxu0 0
      %3404 = vmatmul.mubr.bf16.gmra.mrb[0].mxu0 %v3230
      %v3405 = vpop.f32.mrb[0].mxu0
      %v3406 = vadd.f32 0.0, %v3405
      %v3407 = vpop.f32.mrb[0].mxu0
      %v3408 = vpop.f32.mrb[0].mxu0
      %v3409 = vadd.f32 0.0, %v3408
      %v3410 = vpop.f32.mrb[0].mxu0
      %3411 = vdwg.mxu0
      %v3412 = vadd.f32 %v2964, %v3270
      %v3413 = vadd.f32 %v2965, %v3273
      %v3414 = vadd.f32 %v2966, %v3278
      %v3415 = vadd.f32 %v2967, %v3281
      %v3416 = vadd.f32 %v2968, %v3286
      %v3417 = vadd.f32 %v2969, %v3289
      %v3418 = vadd.f32 %v2970, %v3294
      %v3419 = vadd.f32 %v2971, %v3297
      %v3420 = vadd.f32 %v2972, %v3302
      %v3421 = vadd.f32 %v2973, %v3305
      %v3422 = vadd.f32 %v2974, %v3310
      %v3423 = vadd.f32 %v2975, %v3313
      %v3424 = vadd.f32 %v2976, %v3318
      %v3425 = vadd.f32 %v2977, %v3321
      %v3426 = vadd.f32 %v2978, %v3326
      %v3427 = vadd.f32 %v2979, %v3329
      %v3428 = vadd.f32 %v2980, %v3334
      %v3429 = vadd.f32 %v2981, %v3337
      %v3430 = vadd.f32 %v2982, %v3342
      %v3431 = vadd.f32 %v2983, %v3345
      %v3432 = vadd.f32 %v2984, %v3350
      %v3433 = vadd.f32 %v2985, %v3353
      %v3434 = vadd.f32 %v2986, %v3358
      %v3435 = vadd.f32 %v2987, %v3361
      %v3436 = vadd.f32 %v2988, %v3366
      %v3437 = vadd.f32 %v2989, %v3369
      %v3438 = vadd.f32 %v2990, %v3374
      %v3439 = vadd.f32 %v2991, %v3377
      %v3440 = vadd.f32 %v2992, %v3382
      %v3441 = vadd.f32 %v2993, %v3385
      %v3442 = vadd.f32 %v2994, %v3390
      %v3443 = vadd.f32 %v2995, %v3393
      %v3444 = vadd.f32 %v2996, %v3398
      %v3445 = vadd.f32 %v2997, %v3401
      %v3446 = vadd.f32 %v2998, %v3406
      %v3447 = vadd.f32 %v2999, %v3409
      %v3448 = vld [vmem:[%s192 + $0x10] sm:$0x8]
      %v3449 = vmax.bf16 %v3448, 0
      %s3450 = scalar_lea.vmem %s1, 16
      %v3451 = vld [vmem:[%s3450] sm:$0x3]
      %v3453 = vunpack.c.l.b16 %v3449
      %v3454 = vpack.c.b16 %v2638, %v3453
      %vm3455 = vcmask 1044480
      %v3456 = vrot.slane %v3454, 3
      %v3457 = vrot.slane %v2675, 3
      %v3458 = vsel %vm3455, %v3456, %v3457
      %v3459 = vrot.slane %v2676, 3
      %v3460 = vsel %vm3455, %v3457, %v3459
      %v3461 = vrot.slane %v2677, 3
      %v3462 = vsel %vm3455, %v3459, %v3461
      %v3463 = vrot.slane %v2678, 3
      %v3464 = vsel %vm3455, %v3461, %v3463
      %v3465 = vrot.slane %v2679, 3
      %v3466 = vsel %vm3455, %v3463, %v3465
      %v3467 = vrot.slane %v2680, 3
      %v3468 = vsel %vm3455, %v3465, %v3467
      %v3469 = vrot.slane %v2681, 3
      %v3470 = vsel %vm3455, %v3467, %v3469
      %v3471 = vrot.slane %v2682, 3
      %v3472 = vsel %vm3455, %v3469, %v3471
      %v3473 = vrot.slane %v2683, 3
      %v3474 = vsel %vm3455, %v3471, %v3473
      %v3475 = vrot.slane %v2684, 3
      %v3476 = vsel %vm3455, %v3473, %v3475
      %v3477 = vrot.slane %v2685, 3
      %v3478 = vsel %vm3455, %v3475, %v3477
      %v3479 = vrot.slane %v2686, 3
      %v3480 = vsel %vm3455, %v3477, %v3479
      %v3481 = vrot.slane %v2687, 3
      %v3482 = vsel %vm3455, %v3479, %v3481
      %v3483 = vrot.slane %v2688, 3
      %v3484 = vsel %vm3455, %v3481, %v3483
      %v3485 = vrot.slane %v2689, 3
      %v3486 = vsel %vm3455, %v3483, %v3485
      %v3487 = vrot.slane %v2690, 3
      %v3488 = vsel %vm3455, %v3485, %v3487
      %v3489 = vrot.slane %v2691, 3
      %v3490 = vsel %vm3455, %v3487, %v3489
      %v3491 = vrot.slane %v3006, 3
      %v3492 = vsel %vm3455, %v3489, %v3491
      %v3494 = vsel %vm518, %v3458, 0
      %v3497 = vsel %vm518, %v3460, 0
      %v3500 = vsel %vm518, %v3462, 0
      %v3503 = vsel %vm518, %v3464, 0
      %v3506 = vsel %vm518, %v3466, 0
      %v3509 = vsel %vm518, %v3468, 0
      %v3512 = vsel %vm518, %v3470, 0
      %v3515 = vsel %vm518, %v3472, 0
      %v3518 = vsel %vm518, %v3474, 0
      %v3521 = vsel %vm518, %v3476, 0
      %v3524 = vsel %vm518, %v3478, 0
      %v3527 = vsel %vm518, %v3480, 0
      %v3530 = vsel %vm518, %v3482, 0
      %v3533 = vsel %vm518, %v3484, 0
      %v3536 = vsel %vm518, %v3486, 0
      %v3539 = vsel %vm518, %v3488, 0
      %v3542 = vsel %vm518, %v3490, 0
      %v3545 = vsel %vm518, %v3492, 0
      %v3548 = vsel %vm573, %v3451, 0
      %3550 = vmatprep.subr.bf16.mxu0 0
      %3551 = vmatpush1.bf16.msra.mxu0 %v3548
      %3552 = vmatprep.subr.bf16.mxu0 0
      %3553 = vmatpush1.bf16.msra.mxu0 0
      %3554 = vmatprep.subr.bf16.mxu0 0
      %3555 = vmatpush1.bf16.msra.mxu0 0
      %3556 = vmatprep.subr.bf16.mxu0 0
      %3557 = vmatpush1.bf16.msra.mxu0 0
      %3558 = vmatprep.subr.bf16.mxu0 0
      %3559 = vmatpush1.bf16.msra.mxu0 0
      %3560 = vmatprep.subr.bf16.mxu0 0
      %3561 = vmatpush1.bf16.msra.mxu0 0
      %3562 = vmatprep.subr.bf16.mxu0 0
      %3563 = vmatpush1.bf16.msra.mxu0 0
      %3564 = vmatprep.subr.bf16.mxu0 0
      %3565 = vmatpush1.bf16.msra.mxu0 0
      %3566 = vmatprep.subr.bf16.mxu0 0
      %3567 = vmatpush1.bf16.msra.mxu0 0
      %3568 = vmatprep.subr.bf16.mxu0 0
      %3569 = vmatpush1.bf16.msra.mxu0 0
      %3570 = vmatprep.subr.bf16.mxu0 0
      %3571 = vmatpush1.bf16.msra.mxu0 0
      %3572 = vmatprep.subr.bf16.mxu0 0
      %3573 = vmatpush1.bf16.msra.mxu0 0
      %3574 = vmatprep.subr.bf16.mxu0 0
      %3575 = vmatpush1.bf16.msra.mxu0 0
      %3576 = vmatprep.subr.bf16.mxu0 0
      %3577 = vmatpush1.bf16.msra.mxu0 0
      %3578 = vmatprep.subr.bf16.mxu0 0
      %3579 = vmatpush1.bf16.msra.mxu0 0
      %3580 = vmatprep.subr.bf16.mxu0 0
      %3581 = vmatpush1.bf16.msra.mxu0 0
      %3582 = vmatprep.mubr.bf16.mxu0 0
      %3583 = vmatmul.mubr.bf16.gmra.mrb[0].mxu0 %v3494
      %v3584 = vpop.f32.mrb[0].mxu0
      %v3585 = vadd.f32 0.0, %v3584
      %v3586 = vpop.f32.mrb[0].mxu0
      %v3587 = vpop.f32.mrb[0].mxu0
      %v3588 = vadd.f32 0.0, %v3587
      %v3589 = vpop.f32.mrb[0].mxu0
      %3590 = vmatprep.mubr.bf16.mxu0 0
      %3591 = vmatmul.mubr.bf16.gmra.mrb[0].mxu0 %v3497
      %v3592 = vpop.f32.mrb[0].mxu0
      %v3593 = vadd.f32 0.0, %v3592
      %v3594 = vpop.f32.mrb[0].mxu0
      %v3595 = vpop.f32.mrb[0].mxu0
      %v3596 = vadd.f32 0.0, %v3595
      %v3597 = vpop.f32.mrb[0].mxu0
      %3598 = vmatprep.mubr.bf16.mxu0 0
      %3599 = vmatmul.mubr.bf16.gmra.mrb[0].mxu0 %v3500
      %v3600 = vpop.f32.mrb[0].mxu0
      %v3601 = vadd.f32 0.0, %v3600
      %v3602 = vpop.f32.mrb[0].mxu0
      %v3603 = vpop.f32.mrb[0].mxu0
      %v3604 = vadd.f32 0.0, %v3603
      %v3605 = vpop.f32.mrb[0].mxu0
      %3606 = vmatprep.mubr.bf16.mxu0 0
      %3607 = vmatmul.mubr.bf16.gmra.mrb[0].mxu0 %v3503
      %v3608 = vpop.f32.mrb[0].mxu0
      %v3609 = vadd.f32 0.0, %v3608
      %v3610 = vpop.f32.mrb[0].mxu0
      %v3611 = vpop.f32.mrb[0].mxu0
      %v3612 = vadd.f32 0.0, %v3611
      %v3613 = vpop.f32.mrb[0].mxu0
      %3614 = vmatprep.mubr.bf16.mxu0 0
      %3615 = vmatmul.mubr.bf16.gmra.mrb[0].mxu0 %v3506
      %v3616 = vpop.f32.mrb[0].mxu0
      %v3617 = vadd.f32 0.0, %v3616
      %v3618 = vpop.f32.mrb[0].mxu0
      %v3619 = vpop.f32.mrb[0].mxu0
      %v3620 = vadd.f32 0.0, %v3619
      %v3621 = vpop.f32.mrb[0].mxu0
      %3622 = vmatprep.mubr.bf16.mxu0 0
      %3623 = vmatmul.mubr.bf16.gmra.mrb[0].mxu0 %v3509
      %v3624 = vpop.f32.mrb[0].mxu0
      %v3625 = vadd.f32 0.0, %v3624
      %v3626 = vpop.f32.mrb[0].mxu0
      %v3627 = vpop.f32.mrb[0].mxu0
      %v3628 = vadd.f32 0.0, %v3627
      %v3629 = vpop.f32.mrb[0].mxu0
      %3630 = vmatprep.mubr.bf16.mxu0 0
      %3631 = vmatmul.mubr.bf16.gmra.mrb[0].mxu0 %v3512
      %v3632 = vpop.f32.mrb[0].mxu0
      %v3633 = vadd.f32 0.0, %v3632
      %v3634 = vpop.f32.mrb[0].mxu0
      %v3635 = vpop.f32.mrb[0].mxu0
      %v3636 = vadd.f32 0.0, %v3635
      %v3637 = vpop.f32.mrb[0].mxu0
      %3638 = vmatprep.mubr.bf16.mxu0 0
      %3639 = vmatmul.mubr.bf16.gmra.mrb[0].mxu0 %v3515
      %v3640 = vpop.f32.mrb[0].mxu0
      %v3641 = vadd.f32 0.0, %v3640
      %v3642 = vpop.f32.mrb[0].mxu0
      %v3643 = vpop.f32.mrb[0].mxu0
      %v3644 = vadd.f32 0.0, %v3643
      %v3645 = vpop.f32.mrb[0].mxu0
      %3646 = vmatprep.mubr.bf16.mxu0 0
      %3647 = vmatmul.mubr.bf16.gmra.mrb[0].mxu0 %v3518
      %v3648 = vpop.f32.mrb[0].mxu0
      %v3649 = vadd.f32 0.0, %v3648
      %v3650 = vpop.f32.mrb[0].mxu0
      %v3651 = vpop.f32.mrb[0].mxu0
      %v3652 = vadd.f32 0.0, %v3651
      %v3653 = vpop.f32.mrb[0].mxu0
      %3654 = vmatprep.mubr.bf16.mxu0 0
      %3655 = vmatmul.mubr.bf16.gmra.mrb[0].mxu0 %v3521
      %v3656 = vpop.f32.mrb[0].mxu0
      %v3657 = vadd.f32 0.0, %v3656
      %v3658 = vpop.f32.mrb[0].mxu0
      %v3659 = vpop.f32.mrb[0].mxu0
      %v3660 = vadd.f32 0.0, %v3659
      %v3661 = vpop.f32.mrb[0].mxu0
      %3662 = vmatprep.mubr.bf16.mxu0 0
      %3663 = vmatmul.mubr.bf16.gmra.mrb[0].mxu0 %v3524
      %v3664 = vpop.f32.mrb[0].mxu0
      %v3665 = vadd.f32 0.0, %v3664
      %v3666 = vpop.f32.mrb[0].mxu0
      %v3667 = vpop.f32.mrb[0].mxu0
      %v3668 = vadd.f32 0.0, %v3667
      %v3669 = vpop.f32.mrb[0].mxu0
      %3670 = vmatprep.mubr.bf16.mxu0 0
      %3671 = vmatmul.mubr.bf16.gmra.mrb[0].mxu0 %v3527
      %v3672 = vpop.f32.mrb[0].mxu0
      %v3673 = vadd.f32 0.0, %v3672
      %v3674 = vpop.f32.mrb[0].mxu0
      %v3675 = vpop.f32.mrb[0].mxu0
      %v3676 = vadd.f32 0.0, %v3675
      %v3677 = vpop.f32.mrb[0].mxu0
      %3678 = vmatprep.mubr.bf16.mxu0 0
      %3679 = vmatmul.mubr.bf16.gmra.mrb[0].mxu0 %v3530
      %v3680 = vpop.f32.mrb[0].mxu0
      %v3681 = vadd.f32 0.0, %v3680
      %v3682 = vpop.f32.mrb[0].mxu0
      %v3683 = vpop.f32.mrb[0].mxu0
      %v3684 = vadd.f32 0.0, %v3683
      %v3685 = vpop.f32.mrb[0].mxu0
      %3686 = vmatprep.mubr.bf16.mxu0 0
      %3687 = vmatmul.mubr.bf16.gmra.mrb[0].mxu0 %v3533
      %v3688 = vpop.f32.mrb[0].mxu0
      %v3689 = vadd.f32 0.0, %v3688
      %v3690 = vpop.f32.mrb[0].mxu0
      %v3691 = vpop.f32.mrb[0].mxu0
      %v3692 = vadd.f32 0.0, %v3691
      %v3693 = vpop.f32.mrb[0].mxu0
      %3694 = vmatprep.mubr.bf16.mxu0 0
      %3695 = vmatmul.mubr.bf16.gmra.mrb[0].mxu0 %v3536
      %v3696 = vpop.f32.mrb[0].mxu0
      %v3697 = vadd.f32 0.0, %v3696
      %v3698 = vpop.f32.mrb[0].mxu0
      %v3699 = vpop.f32.mrb[0].mxu0
      %v3700 = vadd.f32 0.0, %v3699
      %v3701 = vpop.f32.mrb[0].mxu0
      %3702 = vmatprep.mubr.bf16.mxu0 0
      %3703 = vmatmul.mubr.bf16.gmra.mrb[0].mxu0 %v3539
      %v3704 = vpop.f32.mrb[0].mxu0
      %v3705 = vadd.f32 0.0, %v3704
      %v3706 = vpop.f32.mrb[0].mxu0
      %v3707 = vpop.f32.mrb[0].mxu0
      %v3708 = vadd.f32 0.0, %v3707
      %v3709 = vpop.f32.mrb[0].mxu0
      %3710 = vmatprep.mubr.bf16.mxu0 0
      %3711 = vmatmul.mubr.bf16.gmra.mrb[0].mxu0 %v3542
      %v3712 = vpop.f32.mrb[0].mxu0
      %v3713 = vadd.f32 0.0, %v3712
      %v3714 = vpop.f32.mrb[0].mxu0
      %v3715 = vpop.f32.mrb[0].mxu0
      %v3716 = vadd.f32 0.0, %v3715
      %v3717 = vpop.f32.mrb[0].mxu0
      %3718 = vmatprep.mubr.bf16.mxu0 0
      %3719 = vmatmul.mubr.bf16.gmra.mrb[0].mxu0 %v3545
      %v3720 = vpop.f32.mrb[0].mxu0
      %v3721 = vadd.f32 0.0, %v3720
      %v3722 = vpop.f32.mrb[0].mxu0
      %v3723 = vpop.f32.mrb[0].mxu0
      %v3724 = vadd.f32 0.0, %v3723
      %v3725 = vpop.f32.mrb[0].mxu0
      %3726 = vdwg.mxu0
      %v3727 = vadd.f32 %v3412, %v3585
      %v3728 = vadd.f32 %v3413, %v3588
      %v3729 = vadd.f32 %v3414, %v3593
      %v3730 = vadd.f32 %v3415, %v3596
      %v3731 = vadd.f32 %v3416, %v3601
      %v3732 = vadd.f32 %v3417, %v3604
      %v3733 = vadd.f32 %v3418, %v3609
      %v3734 = vadd.f32 %v3419, %v3612
      %v3735 = vadd.f32 %v3420, %v3617
      %v3736 = vadd.f32 %v3421, %v3620
      %v3737 = vadd.f32 %v3422, %v3625
      %v3738 = vadd.f32 %v3423, %v3628
      %v3739 = vadd.f32 %v3424, %v3633
      %v3740 = vadd.f32 %v3425, %v3636
      %v3741 = vadd.f32 %v3426, %v3641
      %v3742 = vadd.f32 %v3427, %v3644
      %v3743 = vadd.f32 %v3428, %v3649
      %v3744 = vadd.f32 %v3429, %v3652
      %v3745 = vadd.f32 %v3430, %v3657
      %v3746 = vadd.f32 %v3431, %v3660
      %v3747 = vadd.f32 %v3432, %v3665
      %v3748 = vadd.f32 %v3433, %v3668
      %v3749 = vadd.f32 %v3434, %v3673
      %v3750 = vadd.f32 %v3435, %v3676
      %v3751 = vadd.f32 %v3436, %v3681
      %v3752 = vadd.f32 %v3437, %v3684
      %v3753 = vadd.f32 %v3438, %v3689
      %v3754 = vadd.f32 %v3439, %v3692
      %v3755 = vadd.f32 %v3440, %v3697
      %v3756 = vadd.f32 %v3441, %v3700
      %v3757 = vadd.f32 %v3442, %v3705
      %v3758 = vadd.f32 %v3443, %v3708
      %v3759 = vadd.f32 %v3444, %v3713
      %v3760 = vadd.f32 %v3445, %v3716
      %v3761 = vadd.f32 %v3446, %v3721
      %v3762 = vadd.f32 %v3447, %v3724
      %v3763 = vld [vmem:[%s2] sm:$0x1]
      %v3765 = vlaneseq
      %v3766 = vshrl.u32 %v3765, 7
      %v3767 = vsub.s32 0, %v3766
      %v3768 = vrot.slane %v3763, %v3767
      %v3770 = vmul.f32 %v3727, %v3768
      %v3771 = vmul.f32 %v3728, %v3768
      %v3772 = vmul.f32 %v3729, %v3768
      %v3773 = vmul.f32 %v3730, %v3768
      %v3774 = vmul.f32 %v3731, %v3768
      %v3775 = vmul.f32 %v3732, %v3768
      %v3776 = vmul.f32 %v3733, %v3768
      %v3777 = vmul.f32 %v3734, %v3768
      %v3778 = vmul.f32 %v3735, %v3768
      %v3779 = vmul.f32 %v3736, %v3768
      %v3780 = vmul.f32 %v3737, %v3768
      %v3781 = vmul.f32 %v3738, %v3768
      %v3782 = vmul.f32 %v3739, %v3768
      %v3783 = vmul.f32 %v3740, %v3768
      %v3784 = vmul.f32 %v3741, %v3768
      %v3785 = vmul.f32 %v3742, %v3768
      %v3786 = vmul.f32 %v3743, %v3768
      %v3787 = vmul.f32 %v3744, %v3768
      %v3788 = vmul.f32 %v3745, %v3768
      %v3789 = vmul.f32 %v3746, %v3768
      %v3790 = vmul.f32 %v3747, %v3768
      %v3791 = vmul.f32 %v3748, %v3768
      %v3792 = vmul.f32 %v3749, %v3768
      %v3793 = vmul.f32 %v3750, %v3768
      %v3794 = vmul.f32 %v3751, %v3768
      %v3795 = vmul.f32 %v3752, %v3768
      %v3796 = vmul.f32 %v3753, %v3768
      %v3797 = vmul.f32 %v3754, %v3768
      %v3798 = vmul.f32 %v3755, %v3768
      %v3799 = vmul.f32 %v3756, %v3768
      %v3800 = vmul.f32 %v3757, %v3768
      %v3801 = vmul.f32 %v3758, %v3768
      %v3802 = vmul.f32 %v3759, %v3768
      %v3803 = vmul.f32 %v3760, %v3768
      %v3804 = vmul.f32 %v3761, %v3768
      %v3805 = vmul.f32 %v3762, %v3768
      %v3806 = vld [vmem:[%s3] sm:$0x1]
      %v3808 = vlaneseq
      %v3809 = vshrl.u32 %v3808, 7
      %v3810 = vsub.s32 0, %v3809
      %v3811 = vrot.slane %v3806, %v3810
      %v3813 = vadd.f32 %v3770, %v3811
      %v3814 = vadd.f32 %v3771, %v3811
      %v3815 = vadd.f32 %v3772, %v3811
      %v3816 = vadd.f32 %v3773, %v3811
      %v3817 = vadd.f32 %v3774, %v3811
      %v3818 = vadd.f32 %v3775, %v3811
      %v3819 = vadd.f32 %v3776, %v3811
      %v3820 = vadd.f32 %v3777, %v3811
      %v3821 = vadd.f32 %v3778, %v3811
      %v3822 = vadd.f32 %v3779, %v3811
      %v3823 = vadd.f32 %v3780, %v3811
      %v3824 = vadd.f32 %v3781, %v3811
      %v3825 = vadd.f32 %v3782, %v3811
      %v3826 = vadd.f32 %v3783, %v3811
      %v3827 = vadd.f32 %v3784, %v3811
      %v3828 = vadd.f32 %v3785, %v3811
      %v3829 = vadd.f32 %v3786, %v3811
      %v3830 = vadd.f32 %v3787, %v3811
      %v3831 = vadd.f32 %v3788, %v3811
      %v3832 = vadd.f32 %v3789, %v3811
      %v3833 = vadd.f32 %v3790, %v3811
      %v3834 = vadd.f32 %v3791, %v3811
      %v3835 = vadd.f32 %v3792, %v3811
      %v3836 = vadd.f32 %v3793, %v3811
      %v3837 = vadd.f32 %v3794, %v3811
      %v3838 = vadd.f32 %v3795, %v3811
      %v3839 = vadd.f32 %v3796, %v3811
      %v3840 = vadd.f32 %v3797, %v3811
      %v3841 = vadd.f32 %v3798, %v3811
      %v3842 = vadd.f32 %v3799, %v3811
      %v3843 = vadd.f32 %v3800, %v3811
      %v3844 = vadd.f32 %v3801, %v3811
      %v3845 = vadd.f32 %v3802, %v3811
      %v3846 = vadd.f32 %v3803, %v3811
      %v3847 = vadd.f32 %v3804, %v3811
      %v3848 = vadd.f32 %v3805, %v3811
      %v3849 = vpack.c.bf16 %v3814, %v3813
      %v3850 = vpack.c.bf16 %v3816, %v3815
      %v3851 = vpack.c.bf16 %v3818, %v3817
      %v3852 = vpack.c.bf16 %v3820, %v3819
      %v3853 = vpack.c.bf16 %v3822, %v3821
      %v3854 = vpack.c.bf16 %v3824, %v3823
      %v3855 = vpack.c.bf16 %v3826, %v3825
      %v3856 = vpack.c.bf16 %v3828, %v3827
      %v3857 = vpack.c.bf16 %v3830, %v3829
      %v3858 = vpack.c.bf16 %v3832, %v3831
      %v3859 = vpack.c.bf16 %v3834, %v3833
      %v3860 = vpack.c.bf16 %v3836, %v3835
      %v3861 = vpack.c.bf16 %v3838, %v3837
      %v3862 = vpack.c.bf16 %v3840, %v3839
      %v3863 = vpack.c.bf16 %v3842, %v3841
      %v3864 = vpack.c.bf16 %v3844, %v3843
      %v3865 = vpack.c.bf16 %v3846, %v3845
      %v3866 = vpack.c.bf16 %v3848, %v3847
      %v3885 = vunpack.c.l.b16 %v3849
      %v3886 = vunpack.c.h.b16 %v3849
      %v3887 = vunpack.c.l.b16 %v3850
      %v3888 = vunpack.c.h.b16 %v3850
      %v3889 = vunpack.c.l.b16 %v3851
      %v3890 = vunpack.c.h.b16 %v3851
      %v3891 = vunpack.c.l.b16 %v3852
      %v3892 = vunpack.c.h.b16 %v3852
      %v3893 = vunpack.c.l.b16 %v3853
      %v3894 = vunpack.c.h.b16 %v3853
      %v3895 = vunpack.c.l.b16 %v3854
      %v3896 = vunpack.c.h.b16 %v3854
      %v3897 = vunpack.c.l.b16 %v3855
      %v3898 = vunpack.c.h.b16 %v3855
      %v3899 = vunpack.c.l.b16 %v3856
      %v3900 = vunpack.c.h.b16 %v3856
      %v3901 = vunpack.c.l.b16 %v3857
      %v3902 = vunpack.c.h.b16 %v3857
      %v3903 = vunpack.c.l.b16 %v3858
      %v3904 = vunpack.c.h.b16 %v3858
      %v3905 = vunpack.c.l.b16 %v3859
      %v3906 = vunpack.c.h.b16 %v3859
      %v3907 = vunpack.c.l.b16 %v3860
      %v3908 = vunpack.c.h.b16 %v3860
      %v3909 = vunpack.c.l.b16 %v3861
      %v3910 = vunpack.c.h.b16 %v3861
      %v3911 = vunpack.c.l.b16 %v3862
      %v3912 = vunpack.c.h.b16 %v3862
      %v3913 = vunpack.c.l.b16 %v3863
      %v3914 = vunpack.c.h.b16 %v3863
      %v3915 = vunpack.c.l.b16 %v3864
      %v3916 = vunpack.c.h.b16 %v3864
      %v3917 = vunpack.c.l.b16 %v3865
      %v3918 = vunpack.c.h.b16 %v3865
      %v3919 = vunpack.c.l.b16 %v3866
      %v3920 = vunpack.c.h.b16 %v3866
      %v3921 = vpack.c.b16 %v3885, %v3885
      %v3922 = vpack.c.b16 %v3886, %v3886
      %v3923 = vpack.c.b16 %v3887, %v3887
      %v3924 = vpack.c.b16 %v3888, %v3888
      %v3925 = vpack.c.b16 %v3889, %v3889
      %v3926 = vpack.c.b16 %v3890, %v3890
      %v3927 = vpack.c.b16 %v3891, %v3891
      %v3928 = vpack.c.b16 %v3892, %v3892
      %v3929 = vpack.c.b16 %v3893, %v3893
      %v3930 = vpack.c.b16 %v3894, %v3894
      %v3931 = vpack.c.b16 %v3895, %v3895
      %v3932 = vpack.c.b16 %v3896, %v3896
      %v3933 = vpack.c.b16 %v3897, %v3897
      %v3934 = vpack.c.b16 %v3898, %v3898
      %v3935 = vpack.c.b16 %v3899, %v3899
      %v3936 = vpack.c.b16 %v3900, %v3900
      %v3937 = vpack.c.b16 %v3901, %v3901
      %v3938 = vpack.c.b16 %v3902, %v3902
      %v3939 = vpack.c.b16 %v3903, %v3903
      %v3940 = vpack.c.b16 %v3904, %v3904
      %v3941 = vpack.c.b16 %v3905, %v3905
      %v3942 = vpack.c.b16 %v3906, %v3906
      %v3943 = vpack.c.b16 %v3907, %v3907
      %v3944 = vpack.c.b16 %v3908, %v3908
      %v3945 = vpack.c.b16 %v3909, %v3909
      %v3946 = vpack.c.b16 %v3910, %v3910
      %v3947 = vpack.c.b16 %v3911, %v3911
      %v3948 = vpack.c.b16 %v3912, %v3912
      %v3949 = vpack.c.b16 %v3913, %v3913
      %v3950 = vpack.c.b16 %v3914, %v3914
      %v3951 = vpack.c.b16 %v3915, %v3915
      %v3952 = vpack.c.b16 %v3916, %v3916
      %v3953 = vpack.c.b16 %v3917, %v3917
      %v3954 = vpack.c.b16 %v3918, %v3918
      %v3955 = vpack.c.b16 %v3919, %v3919
      %v3956 = vpack.c.b16 %v3920, %v3920
      %vm3993 = vcmask 27648
      %3994 = vst.msk [vmem:[%s197] sm:$0xf] %vm3993, %v3921
      %3995 = vst.msk [vmem:[%s197 + $0x4] sm:$0xf] %vm3993, %v3922
      %3996 = vst.msk [vmem:[%s197 + $0x8] sm:$0xf] %vm3993, %v3923
      %3997 = vst.msk [vmem:[%s197 + $0xc] sm:$0xf] %vm3993, %v3924
      %3998 = vst.msk [vmem:[%s197 + $0x10] sm:$0xf] %vm3993, %v3925
      %3999 = vst.msk [vmem:[%s197 + $0x14] sm:$0xf] %vm3993, %v3926
      %4000 = vst.msk [vmem:[%s197 + $0x18] sm:$0xf] %vm3993, %v3927
      %4001 = vst.msk [vmem:[%s197 + $0x1c] sm:$0xf] %vm3993, %v3928
      %4002 = vst.msk [vmem:[%s197 + $0x20] sm:$0xf] %vm3993, %v3929
      %4003 = vst.msk [vmem:[%s197 + $0x24] sm:$0xf] %vm3993, %v3930
      %4004 = vst.msk [vmem:[%s197 + $0x28] sm:$0xf] %vm3993, %v3931
      %4005 = vst.msk [vmem:[%s197 + $0x2c] sm:$0xf] %vm3993, %v3932
      %4006 = vst.msk [vmem:[%s197 + $0x30] sm:$0xf] %vm3993, %v3933
      %4007 = vst.msk [vmem:[%s197 + $0x34] sm:$0xf] %vm3993, %v3934
      %4008 = vst.msk [vmem:[%s197 + $0x38] sm:$0xf] %vm3993, %v3935
      %4009 = vst.msk [vmem:[%s197 + $0x3c] sm:$0xf] %vm3993, %v3936
      %4010 = vst.msk [vmem:[%s197 + $0x40] sm:$0xf] %vm3993, %v3937
      %4011 = vst.msk [vmem:[%s197 + $0x44] sm:$0xf] %vm3993, %v3938
      %4012 = vst.msk [vmem:[%s197 + $0x48] sm:$0xf] %vm3993, %v3939
      %4013 = vst.msk [vmem:[%s197 + $0x4c] sm:$0xf] %vm3993, %v3940
      %4014 = vst.msk [vmem:[%s197 + $0x50] sm:$0xf] %vm3993, %v3941
      %4015 = vst.msk [vmem:[%s197 + $0x54] sm:$0xf] %vm3993, %v3942
      %4016 = vst.msk [vmem:[%s197 + $0x58] sm:$0xf] %vm3993, %v3943
      %4017 = vst.msk [vmem:[%s197 + $0x5c] sm:$0xf] %vm3993, %v3944
      %4018 = vst.msk [vmem:[%s197 + $0x60] sm:$0xf] %vm3993, %v3945
      %4019 = vst.msk [vmem:[%s197 + $0x64] sm:$0xf] %vm3993, %v3946
      %4020 = vst.msk [vmem:[%s197 + $0x68] sm:$0xf] %vm3993, %v3947
      %4021 = vst.msk [vmem:[%s197 + $0x6c] sm:$0xf] %vm3993, %v3948
      %4022 = vst.msk [vmem:[%s197 + $0x70] sm:$0xf] %vm3993, %v3949
      %4023 = vst.msk [vmem:[%s197 + $0x74] sm:$0xf] %vm3993, %v3950
      %4024 = vst.msk [vmem:[%s197 + $0x78] sm:$0xf] %vm3993, %v3951
      %4025 = vst.msk [vmem:[%s197 + $0x7c] sm:$0xf] %vm3993, %v3952
      %4026 = vst.msk [vmem:[%s197 + $0x80] sm:$0xf] %vm3993, %v3953
      %4027 = vst.msk [vmem:[%s197 + $0x84] sm:$0xf] %vm3993, %v3954
      %4028 = vst.msk [vmem:[%s197 + $0x88] sm:$0xf] %vm3993, %v3955
      %4029 = vst.msk [vmem:[%s197 + $0x8c] sm:$0xf] %vm3993, %v3956
      %p4030 = scmp.lt.s32.totalorder %s15, 1
      %s4031 = scalar_select %p4030, %s15, 1
      %s4032 = smul.addr %s4031, 36
      %s4033 = smul.addr %s4032, 4
      %s4034 = scalar_lea.vmem %s4, %s4033
      // Predicated region
      $region37: #{conv_double_pallas.2} parent=35 // pred_check
        %p4035 = pneg %p122
      $region38: #{conv_double_pallas.2} parent=35 // pred_check_branch
        %4037 = sbr.rel (%p4035) target = $region40
      $region39: #{conv_double_pallas.2} parent=35 // pred_region
        _
      $region40: #{conv_double_pallas.2} parent=35 // pred_fallthru
        _
    $region36: #{conv_double_pallas.2} parent=5 // pred_fallthru
      _
    %p4038 = scmp.le.s32.totalorder 2, %s10
    // Predicated region
    $region41: #{conv_double_pallas.2} parent=5 // pred_check
      %p4039 = pneg %p4038
    $region42: #{conv_double_pallas.2} parent=5 // pred_check_branch
      %4041 = sbr.rel (%p4039) target = $region44
    $region43: #{conv_double_pallas.2} parent=5 // pred_region
      %s4042 = ssub.s32 %s10, 2
      // Predicated region
      $region45: #{conv_double_pallas.2} parent=43 // pred_check
        %p4043 = pneg %p128
      $region46: #{conv_double_pallas.2} parent=43 // pred_check_branch
        %4045 = sbr.rel (%p4043) target = $region48
      $region47: #{conv_double_pallas.2} parent=43 // pred_region
        %p4046 = scmp.lt.s32.totalorder %s16, 1
        %s4047 = scalar_select %p4046, %s16, 1
        %s4048 = smul.addr %s4047, 36
        %s4049 = smul.addr %s4048, 4
        %s4050 = scalar_lea.vmem %s4, %s4049
      $region48: #{conv_double_pallas.2} parent=43 // pred_fallthru
        _
    $region44: #{conv_double_pallas.2} parent=5 // pred_fallthru
      _
  $region6: #{conv_double_pallas.2} parent=0 // loop_footer
    %s14 = sadd.s32 1, %s10
  $region7: #{conv_double_pallas.2} parent=0 // loop_footer_branch
    %9 = sbr.rel target = $region3
  $region8: #{conv_double_pallas.2} parent=0 // loop_exit
    _

// kernel: conv_double_pallas.3
$region0: #{conv_double_pallas.3}
  #allocation0 [shape = 'u32[]', space=smem, size = 0x4, offset = 0x4, fixed_abs, tag = 'smem constant byte address 0x4 - core index']
  #allocation1 [shape = 'u32[144,128]{1,0:T(1,128)}', space=vmem, size = 0x12000, scoped, tag = 'internal scratch']
  %s0 = inlined_call_operand.vmem [shape: bf16[2,326,4], index: 0, kind: input, shape index: {}]
  %s1 = inlined_call_operand.vmem [shape: bf16[9,4,8], index: 1, kind: input, shape index: {}]
  %s2 = inlined_call_operand.vmem [shape: f32[1,8], index: 2, kind: input, shape index: {}]
  %s3 = inlined_call_operand.vmem [shape: f32[1,8], index: 3, kind: input, shape index: {}]
  %s4 = inlined_call_operand.vmem [shape: f32[2,288,8], index: 4, kind: output, shape index: {}]
  %s5 = sld [smem:[#allocation0]]
  $region49: #{conv_double_pallas.3} parent=0
    _
  %s7 = ssub.s32 1, %s5
  %s8 = scalar_select 0, %s7, %s5
  loop: start=0, step=1, limit=4
  $region2: #{conv_double_pallas.3} parent=0 // loop_pre_header
    _
  $region3: #{conv_double_pallas.3} parent=0 // loop_header
    %s10 = sphi 0, %s14
    %p11 = scmp.ge.s32.totalorder %s10, 4
    %s20 = sphi 0, %s22
    %s23 = sphi 0, %s20
    %s24 = sphi 0, %s23
    %s40 = sphi 0, %s24
    %s44 = sphi 0, %s44
    %s46 = sphi 0, %s44
    %s47 = sphi 0, %s46
    %s61 = sphi 0, %s47
    %s65 = sphi 0, %s65
    %s67 = sphi 0, %s65
    %s68 = sphi 0, %s67
    %s82 = sphi 0, %s68
    %s86 = sphi 0, %s86
    %s88 = sphi 0, %s86
    %s89 = sphi 0, %s88
    %s103 = sphi 0, %s89
    %s109 = sphi 0, %s111
    %s112 = sphi 0, %s109
    %s113 = sphi 0, %s112
    %s129 = sphi 0, %s113
  $region4: #{conv_double_pallas.3} parent=0 // loop_header_branch
    %13 = sbr.rel (%p11) target = $region8
  $region5: #{conv_double_pallas.3} parent=0 // loop_body
    %s15 = ssub.s32 %s10, 1
    %s16 = ssub.s32 %s10, 2
    %s17 = sadd.s32 %s10, 1
    %s18 = ssub.s32 %s10, %s17
    %p19 = scmp.eq.s32.totalorder %s18, 0
    %s21 = sadd.s32 %s20, 1
    %s22 = scalar_select %p19, %s20, %s21
    %p25 = pneg %p19
    %p26 = scmp.eq.s32.totalorder %s10, 1
    %p27 = por %p25, %p26
    %p28 = scmp.ne.s32.totalorder %s20, %s23
    %p29 = scmp.eq.s32.totalorder %s10, 0
    %p30 = por %p28, %p29
    %p31 = scmp.ne.s32.totalorder %s20, %s23
    %p32 = scmp.eq.s32.totalorder %s15, 1
    %p33 = por %p31, %p32
    %p34 = scmp.ne.s32.totalorder %s23, %s24
    %p35 = scmp.eq.s32.totalorder %s15, 0
    %p36 = por %p34, %p35
    %p37 = scmp.ne.s32.totalorder %s23, %s24
    %p38 = scmp.eq.s32.totalorder %s16, 1
    %p39 = por %p37, %p38
    %p41 = scmp.ne.s32.totalorder %s24, %s40
    %p42 = scmp.eq.s32.totalorder %s16, 0
    %p43 = por %p41, %p42
    %s45 = sadd.s32 %s44, 1
    %p48 = scmp.eq.s32.totalorder %s10, 1
    %p49 = scmp.ne.s32.totalorder %s44, %s46
    %p50 = scmp.eq.s32.totalorder %s10, 0
    %p51 = por %p49, %p50
    %p52 = scmp.ne.s32.totalorder %s44, %s46
    %p53 = scmp.eq.s32.totalorder %s15, 1
    %p54 = por %p52, %p53
    %p55 = scmp.ne.s32.totalorder %s46, %s47
    %p56 = scmp.eq.s32.totalorder %s15, 0
    %p57 = por %p55, %p56
    %p58 = scmp.ne.s32.totalorder %s46, %s47
    %p59 = scmp.eq.s32.totalorder %s16, 1
    %p60 = por %p58, %p59
    %p62 = scmp.ne.s32.totalorder %s47, %s61
    %p63 = scmp.eq.s32.totalorder %s16, 0
    %p64 = por %p62, %p63
    %s66 = sadd.s32 %s65, 1
    %p69 = scmp.eq.s32.totalorder %s10, 1
    %p70 = scmp.ne.s32.totalorder %s65, %s67
    %p71 = scmp.eq.s32.totalorder %s10, 0
    %p72 = por %p70, %p71
    %p73 = scmp.ne.s32.totalorder %s65, %s67
    %p74 = scmp.eq.s32.totalorder %s15, 1
    %p75 = por %p73, %p74
    %p76 = scmp.ne.s32.totalorder %s67, %s68
    %p77 = scmp.eq.s32.totalorder %s15, 0
    %p78 = por %p76, %p77
    %p79 = scmp.ne.s32.totalorder %s67, %s68
    %p80 = scmp.eq.s32.totalorder %s16, 1
    %p81 = por %p79, %p80
    %p83 = scmp.ne.s32.totalorder %s68, %s82
    %p84 = scmp.eq.s32.totalorder %s16, 0
    %p85 = por %p83, %p84
    %s87 = sadd.s32 %s86, 1
    %p90 = scmp.eq.s32.totalorder %s10, 1
    %p91 = scmp.ne.s32.totalorder %s86, %s88
    %p92 = scmp.eq.s32.totalorder %s10, 0
    %p93 = por %p91, %p92
    %p94 = scmp.ne.s32.totalorder %s86, %s88
    %p95 = scmp.eq.s32.totalorder %s15, 1
    %p96 = por %p94, %p95
    %p97 = scmp.ne.s32.totalorder %s88, %s89
    %p98 = scmp.eq.s32.totalorder %s15, 0
    %p99 = por %p97, %p98
    %p100 = scmp.ne.s32.totalorder %s88, %s89
    %p101 = scmp.eq.s32.totalorder %s16, 1
    %p102 = por %p100, %p101
    %p104 = scmp.ne.s32.totalorder %s89, %s103
    %p105 = scmp.eq.s32.totalorder %s16, 0
    %p106 = por %p104, %p105
    %s107 = ssub.s32 %s10, %s17
    %p108 = scmp.eq.s32.totalorder %s107, 0
    %s110 = sadd.s32 %s109, 1
    %s111 = scalar_select %p108, %s109, %s110
    %p114 = pneg %p108
    %p115 = scmp.eq.s32.totalorder %s10, 1
    %p116 = por %p114, %p115
    %p117 = scmp.ne.s32.totalorder %s109, %s112
    %p118 = scmp.eq.s32.totalorder %s10, 0
    %p119 = por %p117, %p118
    %p120 = scmp.ne.s32.totalorder %s109, %s112
    %p121 = scmp.eq.s32.totalorder %s15, 1
    %p122 = por %p120, %p121
    %p123 = scmp.ne.s32.totalorder %s112, %s113
    %p124 = scmp.eq.s32.totalorder %s15, 0
    %p125 = por %p123, %p124
    %p126 = scmp.ne.s32.totalorder %s112, %s113
    %p127 = scmp.eq.s32.totalorder %s16, 1
    %p128 = por %p126, %p127
    %p130 = scmp.ne.s32.totalorder %s113, %s129
    %p131 = scmp.eq.s32.totalorder %s16, 0
    %p132 = por %p130, %p131
    %p133 = scmp.le.s32.totalorder 1, %s10
    %p134 = scmp.lt.s32.totalorder %s10, 3
    %p135 = pnand %p133, %p134
    %p136 = pneg %p135
    // Predicated region
    $region9: #{conv_double_pallas.3} parent=5 // pred_check
      _
    $region10: #{conv_double_pallas.3} parent=5 // pred_check_branch
      %138 = sbr.rel (%p135) target = $region12
    $region11: #{conv_double_pallas.3} parent=5 // pred_region
      %s139 = ssub.s32 %s10, 1
      // Predicated region
      $region13: #{conv_double_pallas.3} parent=11 // pred_check
        %p140 = pneg %p57
      $region14: #{conv_double_pallas.3} parent=11 // pred_check_branch
        %142 = sbr.rel (%p140) target = $region16
      $region15: #{conv_double_pallas.3} parent=11 // pred_region
        _
      $region16: #{conv_double_pallas.3} parent=11 // pred_fallthru
        _
      // Predicated region
      $region17: #{conv_double_pallas.3} parent=11 // pred_check
        %p143 = pneg %p78
      $region18: #{conv_double_pallas.3} parent=11 // pred_check_branch
        %145 = sbr.rel (%p143) target = $region20
      $region19: #{conv_double_pallas.3} parent=11 // pred_region
        _
      $region20: #{conv_double_pallas.3} parent=11 // pred_fallthru
        _
      // Predicated region
      $region21: #{conv_double_pallas.3} parent=11 // pred_check
        %p146 = pneg %p99
      $region22: #{conv_double_pallas.3} parent=11 // pred_check_branch
        %148 = sbr.rel (%p146) target = $region24
      $region23: #{conv_double_pallas.3} parent=11 // pred_region
        _
      $region24: #{conv_double_pallas.3} parent=11 // pred_fallthru
        _
    $region12: #{conv_double_pallas.3} parent=5 // pred_fallthru
      _
    %p149 = scmp.lt.s32.totalorder %s10, 2
    // Predicated region
    $region25: #{conv_double_pallas.3} parent=5 // pred_check
      %p150 = pneg %p149
    $region26: #{conv_double_pallas.3} parent=5 // pred_check_branch
      %152 = sbr.rel (%p150) target = $region28
    $region27: #{conv_double_pallas.3} parent=5 // pred_region
      // Predicated region
      $region29: #{conv_double_pallas.3} parent=27 // pred_check
        %p153 = pneg %p30
      $region30: #{conv_double_pallas.3} parent=27 // pred_check_branch
        %155 = sbr.rel (%p153) target = $region32
      $region31: #{conv_double_pallas.3} parent=27 // pred_region
        %p156 = scmp.lt.s32.totalorder %s10, 1
        %s157 = scalar_select %p156, %s10, 1
        %s158 = smul.addr %s157, 41
        %s159 = smul.addr %s158, 4
        %s160 = scalar_lea.vmem %s0, %s159
      $region32: #{conv_double_pallas.3} parent=27 // pred_fallthru
        _
    $region28: #{conv_double_pallas.3} parent=5 // pred_fallthru
      _
    %p161 = scmp.le.s32.totalorder 1, %s10
    %p162 = scmp.lt.s32.totalorder %s10, 3
    %p163 = pnand %p161, %p162
    %p164 = pneg %p163
    // Predicated region
    $region33: #{conv_double_pallas.3} parent=5 // pred_check
      _
    $region34: #{conv_double_pallas.3} parent=5 // pred_check_branch
      %166 = sbr.rel (%p163) target = $region36
    $region35: #{conv_double_pallas.3} parent=5 // pred_region
      %s167 = ssub.s32 %s10, 1
      %p168 = scmp.lt.s32.totalorder %s15, 1
      %s169 = scalar_select %p168, %s15, 1
      %s170 = smul.addr %s169, 41
      %s171 = smul.addr %s170, 4
      %s172 = scalar_lea.vmem %s0, %s171
      %p173 = pneg %p36
      %p174 = pneg %p33
      %p175 = pneg %p57
      %p176 = pneg %p54
      %p177 = pneg %p78
      %p178 = pneg %p75
      %p179 = pneg %p99
      %p180 = pneg %p96
      %p181 = pneg %p125
      %p182 = pneg %p122
      %p183 = scmp.lt.s32.totalorder %s15, 1
      %s184 = scalar_select %p183, %s15, 1
      %s185 = smul.addr %s184, 36
      %s186 = smul.addr %s185, 8
      %s187 = scalar_lea.vmem %s4, %s186
      %p188 = scmp.lt.s32.totalorder %s15, 1
      %s189 = scalar_select %p188, %s15, 1
      %s190 = smul.addr %s189, 41
      %s191 = smul.addr %s190, 4
      %s192 = scalar_lea.vmem %s0, %s191
      %p193 = scmp.lt.s32.totalorder %s15, 1
      %s194 = scalar_select %p193, %s15, 1
      %s195 = smul.addr %s194, 36
      %s196 = smul.addr %s195, 8
      %s197 = scalar_lea.vmem %s4, %s196
      %v199 = vld [vmem:[%s192] sm:$0xf]
      %v200 = vld [vmem:[%s192 + $0x4] sm:$0xf]
      %v201 = vld [vmem:[%s192 + $0x8] sm:$0xf]
      %v202 = vld [vmem:[%s192 + $0xc] sm:$0xf]
      %v203 = vld [vmem:[%s192 + $0x10] sm:$0xf]
      %v204 = vld [vmem:[%s192 + $0x14] sm:$0xf]
      %v205 = vld [vmem:[%s192 + $0x18] sm:$0xf]
      %v206 = vld [vmem:[%s192 + $0x1c] sm:$0xf]
      %v207 = vld [vmem:[%s192 + $0x20] sm:$0xf]
      %v208 = vld [vmem:[%s192 + $0x24] sm:$0xf]
      %v209 = vld [vmem:[%s192 + $0x28] sm:$0xf]
      %v210 = vld [vmem:[%s192 + $0x2c] sm:$0xf]
      %v211 = vld [vmem:[%s192 + $0x30] sm:$0xf]
      %v212 = vld [vmem:[%s192 + $0x34] sm:$0xf]
      %v213 = vld [vmem:[%s192 + $0x38] sm:$0xf]
      %v214 = vld [vmem:[%s192 + $0x3c] sm:$0xf]
      %v215 = vld [vmem:[%s192 + $0x40] sm:$0xf]
      %v216 = vld [vmem:[%s192 + $0x44] sm:$0xf]
      %v217 = vld [vmem:[%s192 + $0x48] sm:$0xf]
      %v218 = vld [vmem:[%s192 + $0x4c] sm:$0xf]
      %v219 = vld [vmem:[%s192 + $0x50] sm:$0xf]
      %v220 = vld [vmem:[%s192 + $0x54] sm:$0xf]
      %v221 = vld [vmem:[%s192 + $0x58] sm:$0xf]
      %v222 = vld [vmem:[%s192 + $0x5c] sm:$0xf]
      %v223 = vld [vmem:[%s192 + $0x60] sm:$0xf]
      %v224 = vld [vmem:[%s192 + $0x64] sm:$0xf]
      %v225 = vld [vmem:[%s192 + $0x68] sm:$0xf]
      %v226 = vld [vmem:[%s192 + $0x6c] sm:$0xf]
      %v227 = vld [vmem:[%s192 + $0x70] sm:$0xf]
      %v228 = vld [vmem:[%s192 + $0x74] sm:$0xf]
      %v229 = vld [vmem:[%s192 + $0x78] sm:$0xf]
      %v230 = vld [vmem:[%s192 + $0x7c] sm:$0xf]
      %v231 = vld [vmem:[%s192 + $0x80] sm:$0xf]
      %v232 = vld [vmem:[%s192 + $0x84] sm:$0xf]
      %v233 = vld [vmem:[%s192 + $0x88] sm:$0xf]
      %v234 = vld [vmem:[%s192 + $0x8c] sm:$0xf]
      %v235 = vmax.bf16 %v199, 0
      %v236 = vmax.bf16 %v200, 0
      %v237 = vmax.bf16 %v201, 0
      %v238 = vmax.bf16 %v202, 0
      %v239 = vmax.bf16 %v203, 0
      %v240 = vmax.bf16 %v204, 0
      %v241 = vmax.bf16 %v205, 0
      %v242 = vmax.bf16 %v206, 0
      %v243 = vmax.bf16 %v207, 0
      %v244 = vmax.bf16 %v208, 0
      %v245 = vmax.bf16 %v209, 0
      %v246 = vmax.bf16 %v210, 0
      %v247 = vmax.bf16 %v211, 0
      %v248 = vmax.bf16 %v212, 0
      %v249 = vmax.bf16 %v213, 0
      %v250 = vmax.bf16 %v214, 0
      %v251 = vmax.bf16 %v215, 0
      %v252 = vmax.bf16 %v216, 0
      %v253 = vmax.bf16 %v217, 0
      %v254 = vmax.bf16 %v218, 0
      %v255 = vmax.bf16 %v219, 0
      %v256 = vmax.bf16 %v220, 0
      %v257 = vmax.bf16 %v221, 0
      %v258 = vmax.bf16 %v222, 0
      %v259 = vmax.bf16 %v223, 0
      %v260 = vmax.bf16 %v224, 0
      %v261 = vmax.bf16 %v225, 0
      %v262 = vmax.bf16 %v226, 0
      %v263 = vmax.bf16 %v227, 0
      %v264 = vmax.bf16 %v228, 0
      %v265 = vmax.bf16 %v229, 0
      %v266 = vmax.bf16 %v230, 0
      %v267 = vmax.bf16 %v231, 0
      %v268 = vmax.bf16 %v232, 0
      %v269 = vmax.bf16 %v233, 0
      %v270 = vmax.bf16 %v234, 0
      %v271 = vld [vmem:[%s1] sm:$0x3]
      %v272 = vld [vmem:[%s192 + $0x90] sm:$0x1]
      %v273 = vmax.bf16 %v272, 0
      %s274 = scalar_lea.vmem %s1, 2
      %v275 = vld [vmem:[%s274] sm:$0x3]
      %v313 = vunpack.c.l.b16 %v235
      %v314 = vunpack.c.l.b16 %v236
      %v315 = vunpack.c.l.b16 %v237
      %v316 = vunpack.c.l.b16 %v238
      %v317 = vunpack.c.l.b16 %v239
      %v318 = vunpack.c.l.b16 %v240
      %v319 = vunpack.c.l.b16 %v241
      %v320 = vunpack.c.l.b16 %v242
      %v321 = vunpack.c.l.b16 %v243
      %v322 = vunpack.c.l.b16 %v244
      %v323 = vunpack.c.l.b16 %v245
      %v324 = vunpack.c.l.b16 %v246
      %v325 = vunpack.c.l.b16 %v247
      %v326 = vunpack.c.l.b16 %v248
      %v327 = vunpack.c.l.b16 %v249
      %v328 = vunpack.c.l.b16 %v250
      %v329 = vunpack.c.l.b16 %v251
      %v330 = vunpack.c.l.b16 %v252
      %v331 = vunpack.c.l.b16 %v253
      %v332 = vunpack.c.l.b16 %v254
      %v333 = vunpack.c.l.b16 %v255
      %v334 = vunpack.c.l.b16 %v256
      %v335 = vunpack.c.l.b16 %v257
      %v336 = vunpack.c.l.b16 %v258
      %v337 = vunpack.c.l.b16 %v259
      %v338 = vunpack.c.l.b16 %v260
      %v339 = vunpack.c.l.b16 %v261
      %v340 = vunpack.c.l.b16 %v262
      %v341 = vunpack.c.l.b16 %v263
      %v342 = vunpack.c.l.b16 %v264
      %v343 = vunpack.c.l.b16 %v265
      %v344 = vunpack.c.l.b16 %v266
      %v345 = vunpack.c.l.b16 %v267
      %v346 = vunpack.c.l.b16 %v268
      %v347 = vunpack.c.l.b16 %v269
      %v348 = vunpack.c.l.b16 %v270
      %v349 = vunpack.c.l.b16 %v273
      %v350 = vpack.c.b16 %v314, %v313
      %v351 = vpack.c.b16 %v316, %v315
      %v352 = vpack.c.b16 %v318, %v317
      %v353 = vpack.c.b16 %v320, %v319
      %v354 = vpack.c.b16 %v322, %v321
      %v355 = vpack.c.b16 %v324, %v323
      %v356 = vpack.c.b16 %v326, %v325
      %v357 = vpack.c.b16 %v328, %v327
      %v358 = vpack.c.b16 %v330, %v329
      %v359 = vpack.c.b16 %v332, %v331
      %v360 = vpack.c.b16 %v334, %v333
      %v361 = vpack.c.b16 %v336, %v335
      %v362 = vpack.c.b16 %v338, %v337
      %v363 = vpack.c.b16 %v340, %v339
      %v364 = vpack.c.b16 %v342, %v341
      %v365 = vpack.c.b16 %v344, %v343
      %v366 = vpack.c.b16 %v346, %v345
      %v367 = vpack.c.b16 %v348, %v347
      %v368 = vpack.c.b16 %v349, %v349
      %vm369 = vsmask.f32 7424
      %v371 = vshrl.u32 %v350, 16
      %v373 = vshll.u32 %v350, 16
      %v375 = vrot.slane %v373, 1
      %v376 = vor.u32 %v371, %v375
      %v378 = vshll.u32 %v351, 16
      %v380 = vrot.slane %v378, 1
      %v381 = vsel %vm369, %v376, %v380
      %v382 = vshrl.u32 %v351, 16
      %v384 = vor.u32 %v382, %v380
      %v386 = vshll.u32 %v352, 16
      %v388 = vrot.slane %v386, 1
      %v389 = vsel %vm369, %v384, %v388
      %v390 = vshrl.u32 %v352, 16
      %v392 = vor.u32 %v390, %v388
      %v394 = vshll.u32 %v353, 16
      %v396 = vrot.slane %v394, 1
      %v397 = vsel %vm369, %v392, %v396
      %v398 = vshrl.u32 %v353, 16
      %v400 = vor.u32 %v398, %v396
      %v402 = vshll.u32 %v354, 16
      %v404 = vrot.slane %v402, 1
      %v405 = vsel %vm369, %v400, %v404
      %v406 = vshrl.u32 %v354, 16
      %v408 = vor.u32 %v406, %v404
      %v410 = vshll.u32 %v355, 16
      %v412 = vrot.slane %v410, 1
      %v413 = vsel %vm369, %v408, %v412
      %v414 = vshrl.u32 %v355, 16
      %v416 = vor.u32 %v414, %v412
      %v418 = vshll.u32 %v356, 16
      %v420 = vrot.slane %v418, 1
      %v421 = vsel %vm369, %v416, %v420
      %v422 = vshrl.u32 %v356, 16
      %v424 = vor.u32 %v422, %v420
      %v426 = vshll.u32 %v357, 16
      %v428 = vrot.slane %v426, 1
      %v429 = vsel %vm369, %v424, %v428
      %v430 = vshrl.u32 %v357, 16
      %v432 = vor.u32 %v430, %v428
      %v434 = vshll.u32 %v358, 16
      %v436 = vrot.slane %v434, 1
      %v437 = vsel %vm369, %v432, %v436
      %v438 = vshrl.u32 %v358, 16
      %v440 = vor.u32 %v438, %v436
      %v442 = vshll.u32 %v359, 16
      %v444 = vrot.slane %v442, 1
      %v445 = vsel %vm369, %v440, %v444
      %v446 = vshrl.u32 %v359, 16
      %v448 = vor.u32 %v446, %v444
      %v450 = vshll.u32 %v360, 16
      %v452 = vrot.slane %v450, 1
      %v453 = vsel %vm369, %v448, %v452
      %v454 = vshrl.u32 %v360, 16
      %v456 = vor.u32 %v454, %v452
      %v458 = vshll.u32 %v361, 16
      %v460 = vrot.slane %v458, 1
      %v461 = vsel %vm369, %v456, %v460
      %v462 = vshrl.u32 %v361, 16
      %v464 = vor.u32 %v462, %v460
      %v466 = vshll.u32 %v362, 16
      %v468 = vrot.slane %v466, 1
      %v469 = vsel %vm369, %v464, %v468
      %v470 = vshrl.u32 %v362, 16
      %v472 = vor.u32 %v470, %v468
      %v474 = vshll.u32 %v363, 16
      %v476 = vrot.slane %v474, 1
      %v477 = vsel %vm369, %v472, %v476
      %v478 = vshrl.u32 %v363, 16
      %v480 = vor.u32 %v478, %v476
      %v482 = vshll.u32 %v364, 16
      %v484 = vrot.slane %v482, 1
      %v485 = vsel %vm369, %v480, %v484
      %v486 = vshrl.u32 %v364, 16
      %v488 = vor.u32 %v486, %v484
      %v490 = vshll.u32 %v365, 16
      %v492 = vrot.slane %v490, 1
      %v493 = vsel %vm369, %v488, %v492
      %v494 = vshrl.u32 %v365, 16
      %v496 = vor.u32 %v494, %v492
      %v498 = vshll.u32 %v366, 16
      %v500 = vrot.slane %v498, 1
      %v501 = vsel %vm369, %v496, %v500
      %v502 = vshrl.u32 %v366, 16
      %v504 = vor.u32 %v502, %v500
      %v506 = vshll.u32 %v367, 16
      %v508 = vrot.slane %v506, 1
      %v509 = vsel %vm369, %v504, %v508
      %v510 = vshrl.u32 %v367, 16
      %v512 = vor.u32 %v510, %v508
      %v514 = vshll.u32 %v368, 16
      %v516 = vrot.slane %v514, 1
      %v517 = vsel %vm369, %v512, %v516
      %vm518 = vcmask 31744
      %v520 = vsel %vm518, %v381, 0
      %v523 = vsel %vm518, %v389, 0
      %v526 = vsel %vm518, %v397, 0
      %v529 = vsel %vm518, %v405, 0
      %v532 = vsel %vm518, %v413, 0
      %v535 = vsel %vm518, %v421, 0
      %v538 = vsel %vm518, %v429, 0
      %v541 = vsel %vm518, %v437, 0
      %v544 = vsel %vm518, %v445, 0
      %v547 = vsel %vm518, %v453, 0
      %v550 = vsel %vm518, %v461, 0
      %v553 = vsel %vm518, %v469, 0
      %v556 = vsel %vm518, %v477, 0
      %v559 = vsel %vm518, %v485, 0
      %v562 = vsel %vm518, %v493, 0
      %v565 = vsel %vm518, %v501, 0
      %v568 = vsel %vm518, %v509, 0
      %v571 = vsel %vm518, %v517, 0
      %vm573 = vcmask 1041408
      %v575 = vsel %vm573, %v275, 0
      %577 = vmatprep.subr.bf16.mxu0 0
      %578 = vmatpush1.bf16.msra.mxu0 %v575
      %579 = vmatprep.subr.bf16.mxu0 0
      %580 = vmatpush1.bf16.msra.mxu0 0
      %581 = vmatprep.subr.bf16.mxu0 0
      %582 = vmatpush1.bf16.msra.mxu0 0
      %583 = vmatprep.subr.bf16.mxu0 0
      %584 = vmatpush1.bf16.msra.mxu0 0
      %585 = vmatprep.subr.bf16.mxu0 0
      %586 = vmatpush1.bf16.msra.mxu0 0
      %587 = vmatprep.subr.bf16.mxu0 0
      %588 = vmatpush1.bf16.msra.mxu0 0
      %589 = vmatprep.subr.bf16.mxu0 0
      %590 = vmatpush1.bf16.msra.mxu0 0
      %591 = vmatprep.subr.bf16.mxu0 0
      %592 = vmatpush1.bf16.msra.mxu0 0
      %593 = vmatprep.subr.bf16.mxu0 0
      %594 = vmatpush1.bf16.msra.mxu0 0
      %595 = vmatprep.subr.bf16.mxu0 0
      %596 = vmatpush1.bf16.msra.mxu0 0
      %597 = vmatprep.subr.bf16.mxu0 0
      %598 = vmatpush1.bf16.msra.mxu0 0
      %599 = vmatprep.subr.bf16.mxu0 0
      %600 = vmatpush1.bf16.msra.mxu0 0
      %601 = vmatprep.subr.bf16.mxu0 0
      %602 = vmatpush1.bf16.msra.mxu0 0
      %603 = vmatprep.subr.bf16.mxu0 0
      %604 = vmatpush1.bf16.msra.mxu0 0
      %605 = vmatprep.subr.bf16.mxu0 0
      %606 = vmatpush1.bf16.msra.mxu0 0
      %607 = vmatprep.subr.bf16.mxu0 0
      %608 = vmatpush1.bf16.msra.mxu0 0
      %609 = vmatprep.mubr.bf16.mxu0 0
      %610 = vmatmul.mubr.bf16.gmra.mrb[0].mxu0 %v520
      %v611 = vpop.f32.mrb[0].mxu0
      %v612 = vadd.f32 0.0, %v611
      %v613 = vpop.f32.mrb[0].mxu0
      %v614 = vpop.f32.mrb[0].mxu0
      %v615 = vadd.f32 0.0, %v614
      %v616 = vpop.f32.mrb[0].mxu0
      %617 = vmatprep.mubr.bf16.mxu0 0
      %618 = vmatmul.mubr.bf16.gmra.mrb[0].mxu0 %v523
      %v619 = vpop.f32.mrb[0].mxu0
      %v620 = vadd.f32 0.0, %v619
      %v621 = vpop.f32.mrb[0].mxu0
      %v622 = vpop.f32.mrb[0].mxu0
      %v623 = vadd.f32 0.0, %v622
      %v624 = vpop.f32.mrb[0].mxu0
      %625 = vmatprep.mubr.bf16.mxu0 0
      %626 = vmatmul.mubr.bf16.gmra.mrb[0].mxu0 %v526
      %v627 = vpop.f32.mrb[0].mxu0
      %v628 = vadd.f32 0.0, %v627
      %v629 = vpop.f32.mrb[0].mxu0
      %v630 = vpop.f32.mrb[0].mxu0
      %v631 = vadd.f32 0.0, %v630
      %v632 = vpop.f32.mrb[0].mxu0
      %633 = vmatprep.mubr.bf16.mxu0 0
      %634 = vmatmul.mubr.bf16.gmra.mrb[0].mxu0 %v529
      %v635 = vpop.f32.mrb[0].mxu0
      %v636 = vadd.f32 0.0, %v635
      %v637 = vpop.f32.mrb[0].mxu0
      %v638 = vpop.f32.mrb[0].mxu0
      %v639 = vadd.f32 0.0, %v638
      %v640 = vpop.f32.mrb[0].mxu0
      %641 = vmatprep.mubr.bf16.mxu0 0
      %642 = vmatmul.mubr.bf16.gmra.mrb[0].mxu0 %v532
      %v643 = vpop.f32.mrb[0].mxu0
      %v644 = vadd.f32 0.0, %v643
      %v645 = vpop.f32.mrb[0].mxu0
      %v646 = vpop.f32.mrb[0].mxu0
      %v647 = vadd.f32 0.0, %v646
      %v648 = vpop.f32.mrb[0].mxu0
      %649 = vmatprep.mubr.bf16.mxu0 0
      %650 = vmatmul.mubr.bf16.gmra.mrb[0].mxu0 %v535
      %v651 = vpop.f32.mrb[0].mxu0
      %v652 = vadd.f32 0.0, %v651
      %v653 = vpop.f32.mrb[0].mxu0
      %v654 = vpop.f32.mrb[0].mxu0
      %v655 = vadd.f32 0.0, %v654
      %v656 = vpop.f32.mrb[0].mxu0
      %657 = vmatprep.mubr.bf16.mxu0 0
      %658 = vmatmul.mubr.bf16.gmra.mrb[0].mxu0 %v538
      %v659 = vpop.f32.mrb[0].mxu0
      %v660 = vadd.f32 0.0, %v659
      %v661 = vpop.f32.mrb[0].mxu0
      %v662 = vpop.f32.mrb[0].mxu0
      %v663 = vadd.f32 0.0, %v662
      %v664 = vpop.f32.mrb[0].mxu0
      %665 = vmatprep.mubr.bf16.mxu0 0
      %666 = vmatmul.mubr.bf16.gmra.mrb[0].mxu0 %v541
      %v667 = vpop.f32.mrb[0].mxu0
      %v668 = vadd.f32 0.0, %v667
      %v669 = vpop.f32.mrb[0].mxu0
      %v670 = vpop.f32.mrb[0].mxu0
      %v671 = vadd.f32 0.0, %v670
      %v672 = vpop.f32.mrb[0].mxu0
      %673 = vmatprep.mubr.bf16.mxu0 0
      %674 = vmatmul.mubr.bf16.gmra.mrb[0].mxu0 %v544
      %v675 = vpop.f32.mrb[0].mxu0
      %v676 = vadd.f32 0.0, %v675
      %v677 = vpop.f32.mrb[0].mxu0
      %v678 = vpop.f32.mrb[0].mxu0
      %v679 = vadd.f32 0.0, %v678
      %v680 = vpop.f32.mrb[0].mxu0
      %681 = vmatprep.mubr.bf16.mxu0 0
      %682 = vmatmul.mubr.bf16.gmra.mrb[0].mxu0 %v547
      %v683 = vpop.f32.mrb[0].mxu0
      %v684 = vadd.f32 0.0, %v683
      %v685 = vpop.f32.mrb[0].mxu0
      %v686 = vpop.f32.mrb[0].mxu0
      %v687 = vadd.f32 0.0, %v686
      %v688 = vpop.f32.mrb[0].mxu0
      %689 = vmatprep.mubr.bf16.mxu0 0
      %690 = vmatmul.mubr.bf16.gmra.mrb[0].mxu0 %v550
      %v691 = vpop.f32.mrb[0].mxu0
      %v692 = vadd.f32 0.0, %v691
      %v693 = vpop.f32.mrb[0].mxu0
      %v694 = vpop.f32.mrb[0].mxu0
      %v695 = vadd.f32 0.0, %v694
      %v696 = vpop.f32.mrb[0].mxu0
      %697 = vmatprep.mubr.bf16.mxu0 0
      %698 = vmatmul.mubr.bf16.gmra.mrb[0].mxu0 %v553
      %v699 = vpop.f32.mrb[0].mxu0
      %v700 = vadd.f32 0.0, %v699
      %v701 = vpop.f32.mrb[0].mxu0
      %v702 = vpop.f32.mrb[0].mxu0
      %v703 = vadd.f32 0.0, %v702
      %v704 = vpop.f32.mrb[0].mxu0
      %705 = vmatprep.mubr.bf16.mxu0 0
      %706 = vmatmul.mubr.bf16.gmra.mrb[0].mxu0 %v556
      %v707 = vpop.f32.mrb[0].mxu0
      %v708 = vadd.f32 0.0, %v707
      %v709 = vpop.f32.mrb[0].mxu0
      %v710 = vpop.f32.mrb[0].mxu0
      %v711 = vadd.f32 0.0, %v710
      %v712 = vpop.f32.mrb[0].mxu0
      %713 = vmatprep.mubr.bf16.mxu0 0
      %714 = vmatmul.mubr.bf16.gmra.mrb[0].mxu0 %v559
      %v715 = vpop.f32.mrb[0].mxu0
      %v716 = vadd.f32 0.0, %v715
      %v717 = vpop.f32.mrb[0].mxu0
      %v718 = vpop.f32.mrb[0].mxu0
      %v719 = vadd.f32 0.0, %v718
      %v720 = vpop.f32.mrb[0].mxu0
      %721 = vmatprep.mubr.bf16.mxu0 0
      %722 = vmatmul.mubr.bf16.gmra.mrb[0].mxu0 %v562
      %v723 = vpop.f32.mrb[0].mxu0
      %v724 = vadd.f32 0.0, %v723
      %v725 = vpop.f32.mrb[0].mxu0
      %v726 = vpop.f32.mrb[0].mxu0
      %v727 = vadd.f32 0.0, %v726
      %v728 = vpop.f32.mrb[0].mxu0
      %729 = vmatprep.mubr.bf16.mxu0 0
      %730 = vmatmul.mubr.bf16.gmra.mrb[0].mxu0 %v565
      %v731 = vpop.f32.mrb[0].mxu0
      %v732 = vadd.f32 0.0, %v731
      %v733 = vpop.f32.mrb[0].mxu0
      %v734 = vpop.f32.mrb[0].mxu0
      %v735 = vadd.f32 0.0, %v734
      %v736 = vpop.f32.mrb[0].mxu0
      %737 = vmatprep.mubr.bf16.mxu0 0
      %738 = vmatmul.mubr.bf16.gmra.mrb[0].mxu0 %v568
      %v739 = vpop.f32.mrb[0].mxu0
      %v740 = vadd.f32 0.0, %v739
      %v741 = vpop.f32.mrb[0].mxu0
      %v742 = vpop.f32.mrb[0].mxu0
      %v743 = vadd.f32 0.0, %v742
      %v744 = vpop.f32.mrb[0].mxu0
      %745 = vmatprep.mubr.bf16.mxu0 0
      %746 = vmatmul.mubr.bf16.gmra.mrb[0].mxu0 %v571
      %v747 = vpop.f32.mrb[0].mxu0
      %v748 = vadd.f32 0.0, %v747
      %v749 = vpop.f32.mrb[0].mxu0
      %v750 = vpop.f32.mrb[0].mxu0
      %v751 = vadd.f32 0.0, %v750
      %v752 = vpop.f32.mrb[0].mxu0
      %753 = vdwg.mxu0
      %v754 = vsel %vm518, %v350, 0
      %v756 = vsel %vm518, %v351, 0
      %v758 = vsel %vm518, %v352, 0
      %v760 = vsel %vm518, %v353, 0
      %v762 = vsel %vm518, %v354, 0
      %v764 = vsel %vm518, %v355, 0
      %v766 = vsel %vm518, %v356, 0
      %v768 = vsel %vm518, %v357, 0
      %v770 = vsel %vm518, %v358, 0
      %v772 = vsel %vm518, %v359, 0
      %v774 = vsel %vm518, %v360, 0
      %v776 = vsel %vm518, %v361, 0
      %v778 = vsel %vm518, %v362, 0
      %v780 = vsel %vm518, %v363, 0
      %v782 = vsel %vm518, %v364, 0
      %v784 = vsel %vm518, %v365, 0
      %v786 = vsel %vm518, %v366, 0
      %v788 = vsel %vm518, %v367, 0
      %v791 = vsel %vm573, %v271, 0
      %793 = vmatprep.subr.bf16.mxu0 0
      %794 = vmatpush1.bf16.msra.mxu0 %v791
      %795 = vmatprep.subr.bf16.mxu0 0
      %796 = vmatpush1.bf16.msra.mxu0 0
      %797 = vmatprep.subr.bf16.mxu0 0
      %798 = vmatpush1.bf16.msra.mxu0 0
      %799 = vmatprep.subr.bf16.mxu0 0
      %800 = vmatpush1.bf16.msra.mxu0 0
      %801 = vmatprep.subr.bf16.mxu0 0
      %802 = vmatpush1.bf16.msra.mxu0 0
      %803 = vmatprep.subr.bf16.mxu0 0
      %804 = vmatpush1.bf16.msra.mxu0 0
      %805 = vmatprep.subr.bf16.mxu0 0
      %806 = vmatpush1.bf16.msra.mxu0 0
      %807 = vmatprep.subr.bf16.mxu0 0
      %808 = vmatpush1.bf16.msra.mxu0 0
      %809 = vmatprep.subr.bf16.mxu0 0
      %810 = vmatpush1.bf16.msra.mxu0 0
      %811 = vmatprep.subr.bf16.mxu0 0
      %812 = vmatpush1.bf16.msra.mxu0 0
      %813 = vmatprep.subr.bf16.mxu0 0
      %814 = vmatpush1.bf16.msra.mxu0 0
      %815 = vmatprep.subr.bf16.mxu0 0
      %816 = vmatpush1.bf16.msra.mxu0 0
      %817 = vmatprep.subr.bf16.mxu0 0
      %818 = vmatpush1.bf16.msra.mxu0 0
      %819 = vmatprep.subr.bf16.mxu0 0
      %820 = vmatpush1.bf16.msra.mxu0 0
      %821 = vmatprep.subr.bf16.mxu0 0
      %822 = vmatpush1.bf16.msra.mxu0 0
      %823 = vmatprep.subr.bf16.mxu0 0
      %824 = vmatpush1.bf16.msra.mxu0 0
      %825 = vmatprep.mubr.bf16.mxu0 0
      %826 = vmatmul.mubr.bf16.gmra.mrb[0].mxu0 %v754
      %v827 = vpop.f32.mrb[0].mxu0
      %v828 = vadd.f32 %v612, %v827
      %v829 = vpop.f32.mrb[0].mxu0
      %v830 = vpop.f32.mrb[0].mxu0
      %v831 = vadd.f32 %v615, %v830
      %v832 = vpop.f32.mrb[0].mxu0
      %833 = vmatprep.mubr.bf16.mxu0 0
      %834 = vmatmul.mubr.bf16.gmra.mrb[0].mxu0 %v756
      %v835 = vpop.f32.mrb[0].mxu0
      %v836 = vadd.f32 %v620, %v835
      %v837 = vpop.f32.mrb[0].mxu0
      %v838 = vpop.f32.mrb[0].mxu0
      %v839 = vadd.f32 %v623, %v838
      %v840 = vpop.f32.mrb[0].mxu0
      %841 = vmatprep.mubr.bf16.mxu0 0
      %842 = vmatmul.mubr.bf16.gmra.mrb[0].mxu0 %v758
      %v843 = vpop.f32.mrb[0].mxu0
      %v844 = vadd.f32 %v628, %v843
      %v845 = vpop.f32.mrb[0].mxu0
      %v846 = vpop.f32.mrb[0].mxu0
      %v847 = vadd.f32 %v631, %v846
      %v848 = vpop.f32.mrb[0].mxu0
      %849 = vmatprep.mubr.bf16.mxu0 0
      %850 = vmatmul.mubr.bf16.gmra.mrb[0].mxu0 %v760
      %v851 = vpop.f32.mrb[0].mxu0
      %v852 = vadd.f32 %v636, %v851
      %v853 = vpop.f32.mrb[0].mxu0
      %v854 = vpop.f32.mrb[0].mxu0
      %v855 = vadd.f32 %v639, %v854
      %v856 = vpop.f32.mrb[0].mxu0
      %857 = vmatprep.mubr.bf16.mxu0 0
      %858 = vmatmul.mubr.bf16.gmra.mrb[0].mxu0 %v762
      %v859 = vpop.f32.mrb[0].mxu0
      %v860 = vadd.f32 %v644, %v859
      %v861 = vpop.f32.mrb[0].mxu0
      %v862 = vpop.f32.mrb[0].mxu0
      %v863 = vadd.f32 %v647, %v862
      %v864 = vpop.f32.mrb[0].mxu0
      %865 = vmatprep.mubr.bf16.mxu0 0
      %866 = vmatmul.mubr.bf16.gmra.mrb[0].mxu0 %v764
      %v867 = vpop.f32.mrb[0].mxu0
      %v868 = vadd.f32 %v652, %v867
      %v869 = vpop.f32.mrb[0].mxu0
      %v870 = vpop.f32.mrb[0].mxu0
      %v871 = vadd.f32 %v655, %v870
      %v872 = vpop.f32.mrb[0].mxu0
      %873 = vmatprep.mubr.bf16.mxu0 0
      %874 = vmatmul.mubr.bf16.gmra.mrb[0].mxu0 %v766
      %v875 = vpop.f32.mrb[0].mxu0
      %v876 = vadd.f32 %v660, %v875
      %v877 = vpop.f32.mrb[0].mxu0
      %v878 = vpop.f32.mrb[0].mxu0
      %v879 = vadd.f32 %v663, %v878
      %v880 = vpop.f32.mrb[0].mxu0
      %881 = vmatprep.mubr.bf16.mxu0 0
      %882 = vmatmul.mubr.bf16.gmra.mrb[0].mxu0 %v768
      %v883 = vpop.f32.mrb[0].mxu0
      %v884 = vadd.f32 %v668, %v883
      %v885 = vpop.f32.mrb[0].mxu0
      %v886 = vpop.f32.mrb[0].mxu0
      %v887 = vadd.f32 %v671, %v886
      %v888 = vpop.f32.mrb[0].mxu0
      %889 = vmatprep.mubr.bf16.mxu0 0
      %890 = vmatmul.mubr.bf16.gmra.mrb[0].mxu0 %v770
      %v891 = vpop.f32.mrb[0].mxu0
      %v892 = vadd.f32 %v676, %v891
      %v893 = vpop.f32.mrb[0].mxu0
      %v894 = vpop.f32.mrb[0].mxu0
      %v895 = vadd.f32 %v679, %v894
      %v896 = vpop.f32.mrb[0].mxu0
      %897 = vmatprep.mubr.bf16.mxu0 0
      %898 = vmatmul.mubr.bf16.gmra.mrb[0].mxu0 %v772
      %v899 = vpop.f32.mrb[0].mxu0
      %v900 = vadd.f32 %v684, %v899
      %v901 = vpop.f32.mrb[0].mxu0
      %v902 = vpop.f32.mrb[0].mxu0
      %v903 = vadd.f32 %v687, %v902
      %v904 = vpop.f32.mrb[0].mxu0
      %905 = vmatprep.mubr.bf16.mxu0 0
      %906 = vmatmul.mubr.bf16.gmra.mrb[0].mxu0 %v774
      %v907 = vpop.f32.mrb[0].mxu0
      %v908 = vadd.f32 %v692, %v907
      %v909 = vpop.f32.mrb[0].mxu0
      %v910 = vpop.f32.mrb[0].mxu0
      %v911 = vadd.f32 %v695, %v910
      %v912 = vpop.f32.mrb[0].mxu0
      %913 = vmatprep.mubr.bf16.mxu0 0
      %914 = vmatmul.mubr.bf16.gmra.mrb[0].mxu0 %v776
      %v915 = vpop.f32.mrb[0].mxu0
      %v916 = vadd.f32 %v700, %v915
      %v917 = vpop.f32.mrb[0].mxu0
      %v918 = vpop.f32.mrb[0].mxu0
      %v919 = vadd.f32 %v703, %v918
      %v920 = vpop.f32.mrb[0].mxu0
      %921 = vmatprep.mubr.bf16.mxu0 0
      %922 = vmatmul.mubr.bf16.gmra.mrb[0].mxu0 %v778
      %v923 = vpop.f32.mrb[0].mxu0
      %v924 = vadd.f32 %v708, %v923
      %v925 = vpop.f32.mrb[0].mxu0
      %v926 = vpop.f32.mrb[0].mxu0
      %v927 = vadd.f32 %v711, %v926
      %v928 = vpop.f32.mrb[0].mxu0
      %929 = vmatprep.mubr.bf16.mxu0 0
      %930 = vmatmul.mubr.bf16.gmra.mrb[0].mxu0 %v780
      %v931 = vpop.f32.mrb[0].mxu0
      %v932 = vadd.f32 %v716, %v931
      %v933 = vpop.f32.mrb[0].mxu0
      %v934 = vpop.f32.mrb[0].mxu0
      %v935 = vadd.f32 %v719, %v934
      %v936 = vpop.f32.mrb[0].mxu0
      %937 = vmatprep.mubr.bf16.mxu0 0
      %938 = vmatmul.mubr.bf16.gmra.mrb[0].mxu0 %v782
      %v939 = vpop.f32.mrb[0].mxu0
      %v940 = vadd.f32 %v724, %v939
      %v941 = vpop.f32.mrb[0].mxu0
      %v942 = vpop.f32.mrb[0].mxu0
      %v943 = vadd.f32 %v727, %v942
      %v944 = vpop.f32.mrb[0].mxu0
      %945 = vmatprep.mubr.bf16.mxu0 0
      %946 = vmatmul.mubr.bf16.gmra.mrb[0].mxu0 %v784
      %v947 = vpop.f32.mrb[0].mxu0
      %v948 = vadd.f32 %v732, %v947
      %v949 = vpop.f32.mrb[0].mxu0
      %v950 = vpop.f32.mrb[0].mxu0
      %v951 = vadd.f32 %v735, %v950
      %v952 = vpop.f32.mrb[0].mxu0
      %953 = vmatprep.mubr.bf16.mxu0 0
      %954 = vmatmul.mubr.bf16.gmra.mrb[0].mxu0 %v786
      %v955 = vpop.f32.mrb[0].mxu0
      %v956 = vadd.f32 %v740, %v955
      %v957 = vpop.f32.mrb[0].mxu0
      %v958 = vpop.f32.mrb[0].mxu0
      %v959 = vadd.f32 %v743, %v958
      %v960 = vpop.f32.mrb[0].mxu0
      %961 = vmatprep.mubr.bf16.mxu0 0
      %962 = vmatmul.mubr.bf16.gmra.mrb[0].mxu0 %v788
      %v963 = vpop.f32.mrb[0].mxu0
      %v964 = vadd.f32 %v748, %v963
      %v965 = vpop.f32.mrb[0].mxu0
      %v966 = vpop.f32.mrb[0].mxu0
      %v967 = vadd.f32 %v751, %v966
      %v968 = vpop.f32.mrb[0].mxu0
      %969 = vdwg.mxu0
      %v970 = vld [vmem:[%s192] sm:$0xe]
      %v971 = vmax.bf16 %v970, 0
      %s972 = scalar_lea.vmem %s1, 4
      %v973 = vld [vmem:[%s972] sm:$0x3]
      %v975 = vunpack.c.l.b16 %v971
      %v976 = vpack.c.b16 %v314, %v975
      %vm977 = vcmask 1046528
      %v978 = vrot.slane %v976, 1
      %v979 = vrot.slane %v351, 1
      %v980 = vsel %vm977, %v978, %v979
      %v981 = vrot.slane %v352, 1
      %v982 = vsel %vm977, %v979, %v981
      %v983 = vrot.slane %v353, 1
      %v984 = vsel %vm977, %v981, %v983
      %v985 = vrot.slane %v354, 1
      %v986 = vsel %vm977, %v983, %v985
      %v987 = vrot.slane %v355, 1
      %v988 = vsel %vm977, %v985, %v987
      %v989 = vrot.slane %v356, 1
      %v990 = vsel %vm977, %v987, %v989
      %v991 = vrot.slane %v357, 1
      %v992 = vsel %vm977, %v989, %v991
      %v993 = vrot.slane %v358, 1
      %v994 = vsel %vm977, %v991, %v993
      %v995 = vrot.slane %v359, 1
      %v996 = vsel %vm977, %v993, %v995
      %v997 = vrot.slane %v360, 1
      %v998 = vsel %vm977, %v995, %v997
      %v999 = vrot.slane %v361, 1
      %v1000 = vsel %vm977, %v997, %v999
      %v1001 = vrot.slane %v362, 1
      %v1002 = vsel %vm977, %v999, %v1001
      %v1003 = vrot.slane %v363, 1
      %v1004 = vsel %vm977, %v1001, %v1003
      %v1005 = vrot.slane %v364, 1
      %v1006 = vsel %vm977, %v1003, %v1005
      %v1007 = vrot.slane %v365, 1
      %v1008 = vsel %vm977, %v1005, %v1007
      %v1009 = vrot.slane %v366, 1
      %v1010 = vsel %vm977, %v1007, %v1009
      %v1011 = vrot.slane %v367, 1
      %v1012 = vsel %vm977, %v1009, %v1011
      %v1013 = vrot.slane %v368, 1
      %v1014 = vsel %vm977, %v1011, %v1013
      %v1016 = vsel %vm518, %v980, 0
      %v1019 = vsel %vm518, %v982, 0
      %v1022 = vsel %vm518, %v984, 0
      %v1025 = vsel %vm518, %v986, 0
      %v1028 = vsel %vm518, %v988, 0
      %v1031 = vsel %vm518, %v990, 0
      %v1034 = vsel %vm518, %v992, 0
      %v1037 = vsel %vm518, %v994, 0
      %v1040 = vsel %vm518, %v996, 0
      %v1043 = vsel %vm518, %v998, 0
      %v1046 = vsel %vm518, %v1000, 0
      %v1049 = vsel %vm518, %v1002, 0
      %v1052 = vsel %vm518, %v1004, 0
      %v1055 = vsel %vm518, %v1006, 0
      %v1058 = vsel %vm518, %v1008, 0
      %v1061 = vsel %vm518, %v1010, 0
      %v1064 = vsel %vm518, %v1012, 0
      %v1067 = vsel %vm518, %v1014, 0
      %v1070 = vsel %vm573, %v973, 0
      %1072 = vmatprep.subr.bf16.mxu0 0
      %1073 = vmatpush1.bf16.msra.mxu0 %v1070
      %1074 = vmatprep.subr.bf16.mxu0 0
      %1075 = vmatpush1.bf16.msra.mxu0 0
      %1076 = vmatprep.subr.bf16.mxu0 0
      %1077 = vmatpush1.bf16.msra.mxu0 0
      %1078 = vmatprep.subr.bf16.mxu0 0
      %1079 = vmatpush1.bf16.msra.mxu0 0
      %1080 = vmatprep.subr.bf16.mxu0 0
      %1081 = vmatpush1.bf16.msra.mxu0 0
      %1082 = vmatprep.subr.bf16.mxu0 0
      %1083 = vmatpush1.bf16.msra.mxu0 0
      %1084 = vmatprep.subr.bf16.mxu0 0
      %1085 = vmatpush1.bf16.msra.mxu0 0
      %1086 = vmatprep.subr.bf16.mxu0 0
      %1087 = vmatpush1.bf16.msra.mxu0 0
      %1088 = vmatprep.subr.bf16.mxu0 0
      %1089 = vmatpush1.bf16.msra.mxu0 0
      %1090 = vmatprep.subr.bf16.mxu0 0
      %1091 = vmatpush1.bf16.msra.mxu0 0
      %1092 = vmatprep.subr.bf16.mxu0 0
      %1093 = vmatpush1.bf16.msra.mxu0 0
      %1094 = vmatprep.subr.bf16.mxu0 0
      %1095 = vmatpush1.bf16.msra.mxu0 0
      %1096 = vmatprep.subr.bf16.mxu0 0
      %1097 = vmatpush1.bf16.msra.mxu0 0
      %1098 = vmatprep.subr.bf16.mxu0 0
      %1099 = vmatpush1.bf16.msra.mxu0 0
      %1100 = vmatprep.subr.bf16.mxu0 0
      %1101 = vmatpush1.bf16.msra.mxu0 0
      %1102 = vmatprep.subr.bf16.mxu0 0
      %1103 = vmatpush1.bf16.msra.mxu0 0
      %1104 = vmatprep.mubr.bf16.mxu0 0
      %1105 = vmatmul.mubr.bf16.gmra.mrb[0].mxu0 %v1016
      %v1106 = vpop.f32.mrb[0].mxu0
      %v1107 = vadd.f32 0.0, %v1106
      %v1108 = vpop.f32.mrb[0].mxu0
      %v1109 = vpop.f32.mrb[0].mxu0
      %v1110 = vadd.f32 0.0, %v1109
      %v1111 = vpop.f32.mrb[0].mxu0
      %1112 = vmatprep.mubr.bf16.mxu0 0
      %1113 = vmatmul.mubr.bf16.gmra.mrb[0].mxu0 %v1019
      %v1114 = vpop.f32.mrb[0].mxu0
      %v1115 = vadd.f32 0.0, %v1114
      %v1116 = vpop.f32.mrb[0].mxu0
      %v1117 = vpop.f32.mrb[0].mxu0
      %v1118 = vadd.f32 0.0, %v1117
      %v1119 = vpop.f32.mrb[0].mxu0
      %1120 = vmatprep.mubr.bf16.mxu0 0
      %1121 = vmatmul.mubr.bf16.gmra.mrb[0].mxu0 %v1022
      %v1122 = vpop.f32.mrb[0].mxu0
      %v1123 = vadd.f32 0.0, %v1122
      %v1124 = vpop.f32.mrb[0].mxu0
      %v1125 = vpop.f32.mrb[0].mxu0
      %v1126 = vadd.f32 0.0, %v1125
      %v1127 = vpop.f32.mrb[0].mxu0
      %1128 = vmatprep.mubr.bf16.mxu0 0
      %1129 = vmatmul.mubr.bf16.gmra.mrb[0].mxu0 %v1025
      %v1130 = vpop.f32.mrb[0].mxu0
      %v1131 = vadd.f32 0.0, %v1130
      %v1132 = vpop.f32.mrb[0].mxu0
      %v1133 = vpop.f32.mrb[0].mxu0
      %v1134 = vadd.f32 0.0, %v1133
      %v1135 = vpop.f32.mrb[0].mxu0
      %1136 = vmatprep.mubr.bf16.mxu0 0
      %1137 = vmatmul.mubr.bf16.gmra.mrb[0].mxu0 %v1028
      %v1138 = vpop.f32.mrb[0].mxu0
      %v1139 = vadd.f32 0.0, %v1138
      %v1140 = vpop.f32.mrb[0].mxu0
      %v1141 = vpop.f32.mrb[0].mxu0
      %v1142 = vadd.f32 0.0, %v1141
      %v1143 = vpop.f32.mrb[0].mxu0
      %1144 = vmatprep.mubr.bf16.mxu0 0
      %1145 = vmatmul.mubr.bf16.gmra.mrb[0].mxu0 %v1031
      %v1146 = vpop.f32.mrb[0].mxu0
      %v1147 = vadd.f32 0.0, %v1146
      %v1148 = vpop.f32.mrb[0].mxu0
      %v1149 = vpop.f32.mrb[0].mxu0
      %v1150 = vadd.f32 0.0, %v1149
      %v1151 = vpop.f32.mrb[0].mxu0
      %1152 = vmatprep.mubr.bf16.mxu0 0
      %1153 = vmatmul.mubr.bf16.gmra.mrb[0].mxu0 %v1034
      %v1154 = vpop.f32.mrb[0].mxu0
      %v1155 = vadd.f32 0.0, %v1154
      %v1156 = vpop.f32.mrb[0].mxu0
      %v1157 = vpop.f32.mrb[0].mxu0
      %v1158 = vadd.f32 0.0, %v1157
      %v1159 = vpop.f32.mrb[0].mxu0
      %1160 = vmatprep.mubr.bf16.mxu0 0
      %1161 = vmatmul.mubr.bf16.gmra.mrb[0].mxu0 %v1037
      %v1162 = vpop.f32.mrb[0].mxu0
      %v1163 = vadd.f32 0.0, %v1162
      %v1164 = vpop.f32.mrb[0].mxu0
      %v1165 = vpop.f32.mrb[0].mxu0
      %v1166 = vadd.f32 0.0, %v1165
      %v1167 = vpop.f32.mrb[0].mxu0
      %1168 = vmatprep.mubr.bf16.mxu0 0
      %1169 = vmatmul.mubr.bf16.gmra.mrb[0].mxu0 %v1040
      %v1170 = vpop.f32.mrb[0].mxu0
      %v1171 = vadd.f32 0.0, %v1170
      %v1172 = vpop.f32.mrb[0].mxu0
      %v1173 = vpop.f32.mrb[0].mxu0
      %v1174 = vadd.f32 0.0, %v1173
      %v1175 = vpop.f32.mrb[0].mxu0
      %1176 = vmatprep.mubr.bf16.mxu0 0
      %1177 = vmatmul.mubr.bf16.gmra.mrb[0].mxu0 %v1043
      %v1178 = vpop.f32.mrb[0].mxu0
      %v1179 = vadd.f32 0.0, %v1178
      %v1180 = vpop.f32.mrb[0].mxu0
      %v1181 = vpop.f32.mrb[0].mxu0
      %v1182 = vadd.f32 0.0, %v1181
      %v1183 = vpop.f32.mrb[0].mxu0
      %1184 = vmatprep.mubr.bf16.mxu0 0
      %1185 = vmatmul.mubr.bf16.gmra.mrb[0].mxu0 %v1046
      %v1186 = vpop.f32.mrb[0].mxu0
      %v1187 = vadd.f32 0.0, %v1186
      %v1188 = vpop.f32.mrb[0].mxu0
      %v1189 = vpop.f32.mrb[0].mxu0
      %v1190 = vadd.f32 0.0, %v1189
      %v1191 = vpop.f32.mrb[0].mxu0
      %1192 = vmatprep.mubr.bf16.mxu0 0
      %1193 = vmatmul.mubr.bf16.gmra.mrb[0].mxu0 %v1049
      %v1194 = vpop.f32.mrb[0].mxu0
      %v1195 = vadd.f32 0.0, %v1194
      %v1196 = vpop.f32.mrb[0].mxu0
      %v1197 = vpop.f32.mrb[0].mxu0
      %v1198 = vadd.f32 0.0, %v1197
      %v1199 = vpop.f32.mrb[0].mxu0
      %1200 = vmatprep.mubr.bf16.mxu0 0
      %1201 = vmatmul.mubr.bf16.gmra.mrb[0].mxu0 %v1052
      %v1202 = vpop.f32.mrb[0].mxu0
      %v1203 = vadd.f32 0.0, %v1202
      %v1204 = vpop.f32.mrb[0].mxu0
      %v1205 = vpop.f32.mrb[0].mxu0
      %v1206 = vadd.f32 0.0, %v1205
      %v1207 = vpop.f32.mrb[0].mxu0
      %1208 = vmatprep.mubr.bf16.mxu0 0
      %1209 = vmatmul.mubr.bf16.gmra.mrb[0].mxu0 %v1055
      %v1210 = vpop.f32.mrb[0].mxu0
      %v1211 = vadd.f32 0.0, %v1210
      %v1212 = vpop.f32.mrb[0].mxu0
      %v1213 = vpop.f32.mrb[0].mxu0
      %v1214 = vadd.f32 0.0, %v1213
      %v1215 = vpop.f32.mrb[0].mxu0
      %1216 = vmatprep.mubr.bf16.mxu0 0
      %1217 = vmatmul.mubr.bf16.gmra.mrb[0].mxu0 %v1058
      %v1218 = vpop.f32.mrb[0].mxu0
      %v1219 = vadd.f32 0.0, %v1218
      %v1220 = vpop.f32.mrb[0].mxu0
      %v1221 = vpop.f32.mrb[0].mxu0
      %v1222 = vadd.f32 0.0, %v1221
      %v1223 = vpop.f32.mrb[0].mxu0
      %1224 = vmatprep.mubr.bf16.mxu0 0
      %1225 = vmatmul.mubr.bf16.gmra.mrb[0].mxu0 %v1061
      %v1226 = vpop.f32.mrb[0].mxu0
      %v1227 = vadd.f32 0.0, %v1226
      %v1228 = vpop.f32.mrb[0].mxu0
      %v1229 = vpop.f32.mrb[0].mxu0
      %v1230 = vadd.f32 0.0, %v1229
      %v1231 = vpop.f32.mrb[0].mxu0
      %1232 = vmatprep.mubr.bf16.mxu0 0
      %1233 = vmatmul.mubr.bf16.gmra.mrb[0].mxu0 %v1064
      %v1234 = vpop.f32.mrb[0].mxu0
      %v1235 = vadd.f32 0.0, %v1234
      %v1236 = vpop.f32.mrb[0].mxu0
      %v1237 = vpop.f32.mrb[0].mxu0
      %v1238 = vadd.f32 0.0, %v1237
      %v1239 = vpop.f32.mrb[0].mxu0
      %1240 = vmatprep.mubr.bf16.mxu0 0
      %1241 = vmatmul.mubr.bf16.gmra.mrb[0].mxu0 %v1067
      %v1242 = vpop.f32.mrb[0].mxu0
      %v1243 = vadd.f32 0.0, %v1242
      %v1244 = vpop.f32.mrb[0].mxu0
      %v1245 = vpop.f32.mrb[0].mxu0
      %v1246 = vadd.f32 0.0, %v1245
      %v1247 = vpop.f32.mrb[0].mxu0
      %1248 = vdwg.mxu0
      %v1249 = vadd.f32 %v828, %v1107
      %v1250 = vadd.f32 %v831, %v1110
      %v1251 = vadd.f32 %v836, %v1115
      %v1252 = vadd.f32 %v839, %v1118
      %v1253 = vadd.f32 %v844, %v1123
      %v1254 = vadd.f32 %v847, %v1126
      %v1255 = vadd.f32 %v852, %v1131
      %v1256 = vadd.f32 %v855, %v1134
      %v1257 = vadd.f32 %v860, %v1139
      %v1258 = vadd.f32 %v863, %v1142
      %v1259 = vadd.f32 %v868, %v1147
      %v1260 = vadd.f32 %v871, %v1150
      %v1261 = vadd.f32 %v876, %v1155
      %v1262 = vadd.f32 %v879, %v1158
      %v1263 = vadd.f32 %v884, %v1163
      %v1264 = vadd.f32 %v887, %v1166
      %v1265 = vadd.f32 %v892, %v1171
      %v1266 = vadd.f32 %v895, %v1174
      %v1267 = vadd.f32 %v900, %v1179
      %v1268 = vadd.f32 %v903, %v1182
      %v1269 = vadd.f32 %v908, %v1187
      %v1270 = vadd.f32 %v911, %v1190
      %v1271 = vadd.f32 %v916, %v1195
      %v1272 = vadd.f32 %v919, %v1198
      %v1273 = vadd.f32 %v924, %v1203
      %v1274 = vadd.f32 %v927, %v1206
      %v1275 = vadd.f32 %v932, %v1211
      %v1276 = vadd.f32 %v935, %v1214
      %v1277 = vadd.f32 %v940, %v1219
      %v1278 = vadd.f32 %v943, %v1222
      %v1279 = vadd.f32 %v948, %v1227
      %v1280 = vadd.f32 %v951, %v1230
      %v1281 = vadd.f32 %v956, %v1235
      %v1282 = vadd.f32 %v959, %v1238
      %v1283 = vadd.f32 %v964, %v1243
      %v1284 = vadd.f32 %v967, %v1246
      %v1285 = vld [vmem:[%s192 + $0x8] sm:$0xe]
      %v1286 = vld [vmem:[%s192 + $0xc] sm:$0xf]
      %v1287 = vld [vmem:[%s192 + $0x10] sm:$0xf]
      %v1288 = vld [vmem:[%s192 + $0x14] sm:$0xf]
      %v1289 = vld [vmem:[%s192 + $0x18] sm:$0xf]
      %v1290 = vld [vmem:[%s192 + $0x1c] sm:$0xf]
      %v1291 = vld [vmem:[%s192 + $0x20] sm:$0xf]
      %v1292 = vld [vmem:[%s192 + $0x24] sm:$0xf]
      %v1293 = vld [vmem:[%s192 + $0x28] sm:$0xf]
      %v1294 = vld [vmem:[%s192 + $0x2c] sm:$0xf]
      %v1295 = vld [vmem:[%s192 + $0x30] sm:$0xf]
      %v1296 = vld [vmem:[%s192 + $0x34] sm:$0xf]
      %v1297 = vld [vmem:[%s192 + $0x38] sm:$0xf]
      %v1298 = vld [vmem:[%s192 + $0x3c] sm:$0xf]
      %v1299 = vld [vmem:[%s192 + $0x40] sm:$0xf]
      %v1300 = vld [vmem:[%s192 + $0x44] sm:$0xf]
      %v1301 = vld [vmem:[%s192 + $0x48] sm:$0xf]
      %v1302 = vld [vmem:[%s192 + $0x4c] sm:$0xf]
      %v1303 = vld [vmem:[%s192 + $0x50] sm:$0xf]
      %v1304 = vld [vmem:[%s192 + $0x54] sm:$0xf]
      %v1305 = vld [vmem:[%s192 + $0x58] sm:$0xf]
      %v1306 = vld [vmem:[%s192 + $0x5c] sm:$0xf]
      %v1307 = vld [vmem:[%s192 + $0x60] sm:$0xf]
      %v1308 = vld [vmem:[%s192 + $0x64] sm:$0xf]
      %v1309 = vld [vmem:[%s192 + $0x68] sm:$0xf]
      %v1310 = vld [vmem:[%s192 + $0x6c] sm:$0xf]
      %v1311 = vld [vmem:[%s192 + $0x70] sm:$0xf]
      %v1312 = vld [vmem:[%s192 + $0x74] sm:$0xf]
      %v1313 = vld [vmem:[%s192 + $0x78] sm:$0xf]
      %v1314 = vld [vmem:[%s192 + $0x7c] sm:$0xf]
      %v1315 = vld [vmem:[%s192 + $0x80] sm:$0xf]
      %v1316 = vld [vmem:[%s192 + $0x84] sm:$0xf]
      %v1317 = vld [vmem:[%s192 + $0x88] sm:$0xf]
      %v1318 = vld [vmem:[%s192 + $0x8c] sm:$0xf]
      %v1319 = vld [vmem:[%s192 + $0x90] sm:$0xf]
      %v1320 = vld [vmem:[%s192 + $0x94] sm:$0xf]
      %v1321 = vld [vmem:[%s192 + $0x98] sm:$0x1]
      %v1322 = vmax.bf16 %v1285, 0
      %v1323 = vmax.bf16 %v1286, 0
      %v1324 = vmax.bf16 %v1287, 0
      %v1325 = vmax.bf16 %v1288, 0
      %v1326 = vmax.bf16 %v1289, 0
      %v1327 = vmax.bf16 %v1290, 0
      %v1328 = vmax.bf16 %v1291, 0
      %v1329 = vmax.bf16 %v1292, 0
      %v1330 = vmax.bf16 %v1293, 0
      %v1331 = vmax.bf16 %v1294, 0
      %v1332 = vmax.bf16 %v1295, 0
      %v1333 = vmax.bf16 %v1296, 0
      %v1334 = vmax.bf16 %v1297, 0
      %v1335 = vmax.bf16 %v1298, 0
      %v1336 = vmax.bf16 %v1299, 0
      %v1337 = vmax.bf16 %v1300, 0
      %v1338 = vmax.bf16 %v1301, 0
      %v1339 = vmax.bf16 %v1302, 0
      %v1340 = vmax.bf16 %v1303, 0
      %v1341 = vmax.bf16 %v1304, 0
      %v1342 = vmax.bf16 %v1305, 0
      %v1343 = vmax.bf16 %v1306, 0
      %v1344 = vmax.bf16 %v1307, 0
      %v1345 = vmax.bf16 %v1308, 0
      %v1346 = vmax.bf16 %v1309, 0
      %v1347 = vmax.bf16 %v1310, 0
      %v1348 = vmax.bf16 %v1311, 0
      %v1349 = vmax.bf16 %v1312, 0
      %v1350 = vmax.bf16 %v1313, 0
      %v1351 = vmax.bf16 %v1314, 0
      %v1352 = vmax.bf16 %v1315, 0
      %v1353 = vmax.bf16 %v1316, 0
      %v1354 = vmax.bf16 %v1317, 0
      %v1355 = vmax.bf16 %v1318, 0
      %v1356 = vmax.bf16 %v1319, 0
      %v1357 = vmax.bf16 %v1320, 0
      %v1358 = vmax.bf16 %v1321, 0
      %s1359 = scalar_lea.vmem %s1, 6
      %v1360 = vld [vmem:[%s1359] sm:$0x3]
      %v1398 = vunpack.c.l.b16 %v1322
      %v1399 = vunpack.c.l.b16 %v1323
      %v1400 = vunpack.c.l.b16 %v1324
      %v1401 = vunpack.c.l.b16 %v1325
      %v1402 = vunpack.c.l.b16 %v1326
      %v1403 = vunpack.c.l.b16 %v1327
      %v1404 = vunpack.c.l.b16 %v1328
      %v1405 = vunpack.c.l.b16 %v1329
      %v1406 = vunpack.c.l.b16 %v1330
      %v1407 = vunpack.c.l.b16 %v1331
      %v1408 = vunpack.c.l.b16 %v1332
      %v1409 = vunpack.c.l.b16 %v1333
      %v1410 = vunpack.c.l.b16 %v1334
      %v1411 = vunpack.c.l.b16 %v1335
      %v1412 = vunpack.c.l.b16 %v1336
      %v1413 = vunpack.c.l.b16 %v1337
      %v1414 = vunpack.c.l.b16 %v1338
      %v1415 = vunpack.c.l.b16 %v1339
      %v1416 = vunpack.c.l.b16 %v1340
      %v1417 = vunpack.c.l.b16 %v1341
      %v1418 = vunpack.c.l.b16 %v1342
      %v1419 = vunpack.c.l.b16 %v1343
      %v1420 = vunpack.c.l.b16 %v1344
      %v1421 = vunpack.c.l.b16 %v1345
      %v1422 = vunpack.c.l.b16 %v1346
      %v1423 = vunpack.c.l.b16 %v1347
      %v1424 = vunpack.c.l.b16 %v1348
      %v1425 = vunpack.c.l.b16 %v1349
      %v1426 = vunpack.c.l.b16 %v1350
      %v1427 = vunpack.c.l.b16 %v1351
      %v1428 = vunpack.c.l.b16 %v1352
      %v1429 = vunpack.c.l.b16 %v1353
      %v1430 = vunpack.c.l.b16 %v1354
      %v1431 = vunpack.c.l.b16 %v1355
      %v1432 = vunpack.c.l.b16 %v1356
      %v1433 = vunpack.c.l.b16 %v1357
      %v1434 = vunpack.c.l.b16 %v1358
      %v1435 = vpack.c.b16 %v1399, %v1398
      %v1436 = vpack.c.b16 %v1401, %v1400
      %v1437 = vpack.c.b16 %v1403, %v1402
      %v1438 = vpack.c.b16 %v1405, %v1404
      %v1439 = vpack.c.b16 %v1407, %v1406
      %v1440 = vpack.c.b16 %v1409, %v1408
      %v1441 = vpack.c.b16 %v1411, %v1410
      %v1442 = vpack.c.b16 %v1413, %v1412
      %v1443 = vpack.c.b16 %v1415, %v1414
      %v1444 = vpack.c.b16 %v1417, %v1416
      %v1445 = vpack.c.b16 %v1419, %v1418
      %v1446 = vpack.c.b16 %v1421, %v1420
      %v1447 = vpack.c.b16 %v1423, %v1422
      %v1448 = vpack.c.b16 %v1425, %v1424
      %v1449 = vpack.c.b16 %v1427, %v1426
      %v1450 = vpack.c.b16 %v1429, %v1428
      %v1451 = vpack.c.b16 %v1431, %v1430
      %v1452 = vpack.c.b16 %v1433, %v1432
      %v1453 = vpack.c.b16 %v1434, %v1434
      %v1454 = vrot.slane %v1435, 1
      %v1455 = vrot.slane %v1436, 1
      %v1456 = vsel %vm977, %v1454, %v1455
      %v1457 = vrot.slane %v1437, 1
      %v1458 = vsel %vm977, %v1455, %v1457
      %v1459 = vrot.slane %v1438, 1
      %v1460 = vsel %vm977, %v1457, %v1459
      %v1461 = vrot.slane %v1439, 1
      %v1462 = vsel %vm977, %v1459, %v1461
      %v1463 = vrot.slane %v1440, 1
      %v1464 = vsel %vm977, %v1461, %v1463
      %v1465 = vrot.slane %v1441, 1
      %v1466 = vsel %vm977, %v1463, %v1465
      %v1467 = vrot.slane %v1442, 1
      %v1468 = vsel %vm977, %v1465, %v1467
      %v1469 = vrot.slane %v1443, 1
      %v1470 = vsel %vm977, %v1467, %v1469
      %v1471 = vrot.slane %v1444, 1
      %v1472 = vsel %vm977, %v1469, %v1471
      %v1473 = vrot.slane %v1445, 1
      %v1474 = vsel %vm977, %v1471, %v1473
      %v1475 = vrot.slane %v1446, 1
      %v1476 = vsel %vm977, %v1473, %v1475
      %v1477 = vrot.slane %v1447, 1
      %v1478 = vsel %vm977, %v1475, %v1477
      %v1479 = vrot.slane %v1448, 1
      %v1480 = vsel %vm977, %v1477, %v1479
      %v1481 = vrot.slane %v1449, 1
      %v1482 = vsel %vm977, %v1479, %v1481
      %v1483 = vrot.slane %v1450, 1
      %v1484 = vsel %vm977, %v1481, %v1483
      %v1485 = vrot.slane %v1451, 1
      %v1486 = vsel %vm977, %v1483, %v1485
      %v1487 = vrot.slane %v1452, 1
      %v1488 = vsel %vm977, %v1485, %v1487
      %v1489 = vrot.slane %v1453, 1
      %v1490 = vsel %vm977, %v1487, %v1489
      %v1492 = vsel %vm518, %v1456, 0
      %v1495 = vsel %vm518, %v1458, 0
      %v1498 = vsel %vm518, %v1460, 0
      %v1501 = vsel %vm518, %v1462, 0
      %v1504 = vsel %vm518, %v1464, 0
      %v1507 = vsel %vm518, %v1466, 0
      %v1510 = vsel %vm518, %v1468, 0
      %v1513 = vsel %vm518, %v1470, 0
      %v1516 = vsel %vm518, %v1472, 0
      %v1519 = vsel %vm518, %v1474, 0
      %v1522 = vsel %vm518, %v1476, 0
      %v1525 = vsel %vm518, %v1478, 0
      %v1528 = vsel %vm518, %v1480, 0
      %v1531 = vsel %vm518, %v1482, 0
      %v1534 = vsel %vm518, %v1484, 0
      %v1537 = vsel %vm518, %v1486, 0
      %v1540 = vsel %vm518, %v1488, 0
      %v1543 = vsel %vm518, %v1490, 0
      %v1546 = vsel %vm573, %v1360, 0
      %1548 = vmatprep.subr.bf16.mxu0 0
      %1549 = vmatpush1.bf16.msra.mxu0 %v1546
      %1550 = vmatprep.subr.bf16.mxu0 0
      %1551 = vmatpush1.bf16.msra.mxu0 0
      %1552 = vmatprep.subr.bf16.mxu0 0
      %1553 = vmatpush1.bf16.msra.mxu0 0
      %1554 = vmatprep.subr.bf16.mxu0 0
      %1555 = vmatpush1.bf16.msra.mxu0 0
      %1556 = vmatprep.subr.bf16.mxu0 0
      %1557 = vmatpush1.bf16.msra.mxu0 0
      %1558 = vmatprep.subr.bf16.mxu0 0
      %1559 = vmatpush1.bf16.msra.mxu0 0
      %1560 = vmatprep.subr.bf16.mxu0 0
      %1561 = vmatpush1.bf16.msra.mxu0 0
      %1562 = vmatprep.subr.bf16.mxu0 0
      %1563 = vmatpush1.bf16.msra.mxu0 0
      %1564 = vmatprep.subr.bf16.mxu0 0
      %1565 = vmatpush1.bf16.msra.mxu0 0
      %1566 = vmatprep.subr.bf16.mxu0 0
      %1567 = vmatpush1.bf16.msra.mxu0 0
      %1568 = vmatprep.subr.bf16.mxu0 0
      %1569 = vmatpush1.bf16.msra.mxu0 0
      %1570 = vmatprep.subr.bf16.mxu0 0
      %1571 = vmatpush1.bf16.msra.mxu0 0
      %1572 = vmatprep.subr.bf16.mxu0 0
      %1573 = vmatpush1.bf16.msra.mxu0 0
      %1574 = vmatprep.subr.bf16.mxu0 0
      %1575 = vmatpush1.bf16.msra.mxu0 0
      %1576 = vmatprep.subr.bf16.mxu0 0
      %1577 = vmatpush1.bf16.msra.mxu0 0
      %1578 = vmatprep.subr.bf16.mxu0 0
      %1579 = vmatpush1.bf16.msra.mxu0 0
      %1580 = vmatprep.mubr.bf16.mxu0 0
      %1581 = vmatmul.mubr.bf16.gmra.mrb[0].mxu0 %v1492
      %v1582 = vpop.f32.mrb[0].mxu0
      %v1583 = vadd.f32 0.0, %v1582
      %v1584 = vpop.f32.mrb[0].mxu0
      %v1585 = vpop.f32.mrb[0].mxu0
      %v1586 = vadd.f32 0.0, %v1585
      %v1587 = vpop.f32.mrb[0].mxu0
      %1588 = vmatprep.mubr.bf16.mxu0 0
      %1589 = vmatmul.mubr.bf16.gmra.mrb[0].mxu0 %v1495
      %v1590 = vpop.f32.mrb[0].mxu0
      %v1591 = vadd.f32 0.0, %v1590
      %v1592 = vpop.f32.mrb[0].mxu0
      %v1593 = vpop.f32.mrb[0].mxu0
      %v1594 = vadd.f32 0.0, %v1593
      %v1595 = vpop.f32.mrb[0].mxu0
      %1596 = vmatprep.mubr.bf16.mxu0 0
      %1597 = vmatmul.mubr.bf16.gmra.mrb[0].mxu0 %v1498
      %v1598 = vpop.f32.mrb[0].mxu0
      %v1599 = vadd.f32 0.0, %v1598
      %v1600 = vpop.f32.mrb[0].mxu0
      %v1601 = vpop.f32.mrb[0].mxu0
      %v1602 = vadd.f32 0.0, %v1601
      %v1603 = vpop.f32.mrb[0].mxu0
      %1604 = vmatprep.mubr.bf16.mxu0 0
      %1605 = vmatmul.mubr.bf16.gmra.mrb[0].mxu0 %v1501
      %v1606 = vpop.f32.mrb[0].mxu0
      %v1607 = vadd.f32 0.0, %v1606
      %v1608 = vpop.f32.mrb[0].mxu0
      %v1609 = vpop.f32.mrb[0].mxu0
      %v1610 = vadd.f32 0.0, %v1609
      %v1611 = vpop.f32.mrb[0].mxu0
      %1612 = vmatprep.mubr.bf16.mxu0 0
      %1613 = vmatmul.mubr.bf16.gmra.mrb[0].mxu0 %v1504
      %v1614 = vpop.f32.mrb[0].mxu0
      %v1615 = vadd.f32 0.0, %v1614
      %v1616 = vpop.f32.mrb[0].mxu0
      %v1617 = vpop.f32.mrb[0].mxu0
      %v1618 = vadd.f32 0.0, %v1617
      %v1619 = vpop.f32.mrb[0].mxu0
      %1620 = vmatprep.mubr.bf16.mxu0 0
      %1621 = vmatmul.mubr.bf16.gmra.mrb[0].mxu0 %v1507
      %v1622 = vpop.f32.mrb[0].mxu0
      %v1623 = vadd.f32 0.0, %v1622
      %v1624 = vpop.f32.mrb[0].mxu0
      %v1625 = vpop.f32.mrb[0].mxu0
      %v1626 = vadd.f32 0.0, %v1625
      %v1627 = vpop.f32.mrb[0].mxu0
      %1628 = vmatprep.mubr.bf16.mxu0 0
      %1629 = vmatmul.mubr.bf16.gmra.mrb[0].mxu0 %v1510
      %v1630 = vpop.f32.mrb[0].mxu0
      %v1631 = vadd.f32 0.0, %v1630
      %v1632 = vpop.f32.mrb[0].mxu0
      %v1633 = vpop.f32.mrb[0].mxu0
      %v1634 = vadd.f32 0.0, %v1633
      %v1635 = vpop.f32.mrb[0].mxu0
      %1636 = vmatprep.mubr.bf16.mxu0 0
      %1637 = vmatmul.mubr.bf16.gmra.mrb[0].mxu0 %v1513
      %v1638 = vpop.f32.mrb[0].mxu0
      %v1639 = vadd.f32 0.0, %v1638
      %v1640 = vpop.f32.mrb[0].mxu0
      %v1641 = vpop.f32.mrb[0].mxu0
      %v1642 = vadd.f32 0.0, %v1641
      %v1643 = vpop.f32.mrb[0].mxu0
      %1644 = vmatprep.mubr.bf16.mxu0 0
      %1645 = vmatmul.mubr.bf16.gmra.mrb[0].mxu0 %v1516
      %v1646 = vpop.f32.mrb[0].mxu0
      %v1647 = vadd.f32 0.0, %v1646
      %v1648 = vpop.f32.mrb[0].mxu0
      %v1649 = vpop.f32.mrb[0].mxu0
      %v1650 = vadd.f32 0.0, %v1649
      %v1651 = vpop.f32.mrb[0].mxu0
      %1652 = vmatprep.mubr.bf16.mxu0 0
      %1653 = vmatmul.mubr.bf16.gmra.mrb[0].mxu0 %v1519
      %v1654 = vpop.f32.mrb[0].mxu0
      %v1655 = vadd.f32 0.0, %v1654
      %v1656 = vpop.f32.mrb[0].mxu0
      %v1657 = vpop.f32.mrb[0].mxu0
      %v1658 = vadd.f32 0.0, %v1657
      %v1659 = vpop.f32.mrb[0].mxu0
      %1660 = vmatprep.mubr.bf16.mxu0 0
      %1661 = vmatmul.mubr.bf16.gmra.mrb[0].mxu0 %v1522
      %v1662 = vpop.f32.mrb[0].mxu0
      %v1663 = vadd.f32 0.0, %v1662
      %v1664 = vpop.f32.mrb[0].mxu0
      %v1665 = vpop.f32.mrb[0].mxu0
      %v1666 = vadd.f32 0.0, %v1665
      %v1667 = vpop.f32.mrb[0].mxu0
      %1668 = vmatprep.mubr.bf16.mxu0 0
      %1669 = vmatmul.mubr.bf16.gmra.mrb[0].mxu0 %v1525
      %v1670 = vpop.f32.mrb[0].mxu0
      %v1671 = vadd.f32 0.0, %v1670
      %v1672 = vpop.f32.mrb[0].mxu0
      %v1673 = vpop.f32.mrb[0].mxu0
      %v1674 = vadd.f32 0.0, %v1673
      %v1675 = vpop.f32.mrb[0].mxu0
      %1676 = vmatprep.mubr.bf16.mxu0 0
      %1677 = vmatmul.mubr.bf16.gmra.mrb[0].mxu0 %v1528
      %v1678 = vpop.f32.mrb[0].mxu0
      %v1679 = vadd.f32 0.0, %v1678
      %v1680 = vpop.f32.mrb[0].mxu0
      %v1681 = vpop.f32.mrb[0].mxu0
      %v1682 = vadd.f32 0.0, %v1681
      %v1683 = vpop.f32.mrb[0].mxu0
      %1684 = vmatprep.mubr.bf16.mxu0 0
      %1685 = vmatmul.mubr.bf16.gmra.mrb[0].mxu0 %v1531
      %v1686 = vpop.f32.mrb[0].mxu0
      %v1687 = vadd.f32 0.0, %v1686
      %v1688 = vpop.f32.mrb[0].mxu0
      %v1689 = vpop.f32.mrb[0].mxu0
      %v1690 = vadd.f32 0.0, %v1689
      %v1691 = vpop.f32.mrb[0].mxu0
      %1692 = vmatprep.mubr.bf16.mxu0 0
      %1693 = vmatmul.mubr.bf16.gmra.mrb[0].mxu0 %v1534
      %v1694 = vpop.f32.mrb[0].mxu0
      %v1695 = vadd.f32 0.0, %v1694
      %v1696 = vpop.f32.mrb[0].mxu0
      %v1697 = vpop.f32.mrb[0].mxu0
      %v1698 = vadd.f32 0.0, %v1697
      %v1699 = vpop.f32.mrb[0].mxu0
      %1700 = vmatprep.mubr.bf16.mxu0 0
      %1701 = vmatmul.mubr.bf16.gmra.mrb[0].mxu0 %v1537
      %v1702 = vpop.f32.mrb[0].mxu0
      %v1703 = vadd.f32 0.0, %v1702
      %v1704 = vpop.f32.mrb[0].mxu0
      %v1705 = vpop.f32.mrb[0].mxu0
      %v1706 = vadd.f32 0.0, %v1705
      %v1707 = vpop.f32.mrb[0].mxu0
      %1708 = vmatprep.mubr.bf16.mxu0 0
      %1709 = vmatmul.mubr.bf16.gmra.mrb[0].mxu0 %v1540
      %v1710 = vpop.f32.mrb[0].mxu0
      %v1711 = vadd.f32 0.0, %v1710
      %v1712 = vpop.f32.mrb[0].mxu0
      %v1713 = vpop.f32.mrb[0].mxu0
      %v1714 = vadd.f32 0.0, %v1713
      %v1715 = vpop.f32.mrb[0].mxu0
      %1716 = vmatprep.mubr.bf16.mxu0 0
      %1717 = vmatmul.mubr.bf16.gmra.mrb[0].mxu0 %v1543
      %v1718 = vpop.f32.mrb[0].mxu0
      %v1719 = vadd.f32 0.0, %v1718
      %v1720 = vpop.f32.mrb[0].mxu0
      %v1721 = vpop.f32.mrb[0].mxu0
      %v1722 = vadd.f32 0.0, %v1721
      %v1723 = vpop.f32.mrb[0].mxu0
      %1724 = vdwg.mxu0
      %v1725 = vadd.f32 %v1249, %v1583
      %v1726 = vadd.f32 %v1250, %v1586
      %v1727 = vadd.f32 %v1251, %v1591
      %v1728 = vadd.f32 %v1252, %v1594
      %v1729 = vadd.f32 %v1253, %v1599
      %v1730 = vadd.f32 %v1254, %v1602
      %v1731 = vadd.f32 %v1255, %v1607
      %v1732 = vadd.f32 %v1256, %v1610
      %v1733 = vadd.f32 %v1257, %v1615
      %v1734 = vadd.f32 %v1258, %v1618
      %v1735 = vadd.f32 %v1259, %v1623
      %v1736 = vadd.f32 %v1260, %v1626
      %v1737 = vadd.f32 %v1261, %v1631
      %v1738 = vadd.f32 %v1262, %v1634
      %v1739 = vadd.f32 %v1263, %v1639
      %v1740 = vadd.f32 %v1264, %v1642
      %v1741 = vadd.f32 %v1265, %v1647
      %v1742 = vadd.f32 %v1266, %v1650
      %v1743 = vadd.f32 %v1267, %v1655
      %v1744 = vadd.f32 %v1268, %v1658
      %v1745 = vadd.f32 %v1269, %v1663
      %v1746 = vadd.f32 %v1270, %v1666
      %v1747 = vadd.f32 %v1271, %v1671
      %v1748 = vadd.f32 %v1272, %v1674
      %v1749 = vadd.f32 %v1273, %v1679
      %v1750 = vadd.f32 %v1274, %v1682
      %v1751 = vadd.f32 %v1275, %v1687
      %v1752 = vadd.f32 %v1276, %v1690
      %v1753 = vadd.f32 %v1277, %v1695
      %v1754 = vadd.f32 %v1278, %v1698
      %v1755 = vadd.f32 %v1279, %v1703
      %v1756 = vadd.f32 %v1280, %v1706
      %v1757 = vadd.f32 %v1281, %v1711
      %v1758 = vadd.f32 %v1282, %v1714
      %v1759 = vadd.f32 %v1283, %v1719
      %v1760 = vadd.f32 %v1284, %v1722
      %v1761 = vld [vmem:[%s192 + $0x98] sm:$0x3]
      %v1762 = vmax.bf16 %v1761, 0
      %s1763 = scalar_lea.vmem %s1, 8
      %v1764 = vld [vmem:[%s1763] sm:$0x3]
      %v1766 = vunpack.c.l.b16 %v1762
      %v1767 = vpack.c.b16 %v1766, %v1766
      %vm1768 = vsmask.f32 6400
      %v1770 = vshrl.u32 %v1435, 16
      %v1772 = vrot.slane %v1770, 1
      %v1773 = vshll.u32 %v1435, 16
      %v1775 = vrot.slane %v1773, 2
      %v1776 = vor.u32 %v1772, %v1775
      %v1778 = vshrl.u32 %v1436, 16
      %v1780 = vrot.slane %v1778, 1
      %v1781 = vshll.u32 %v1436, 16
      %v1783 = vrot.slane %v1781, 2
      %v1784 = vor.u32 %v1780, %v1783
      %v1785 = vsel %vm1768, %v1776, %v1784
      %v1787 = vshrl.u32 %v1437, 16
      %v1789 = vrot.slane %v1787, 1
      %v1790 = vshll.u32 %v1437, 16
      %v1792 = vrot.slane %v1790, 2
      %v1793 = vor.u32 %v1789, %v1792
      %v1794 = vsel %vm1768, %v1784, %v1793
      %v1796 = vshrl.u32 %v1438, 16
      %v1798 = vrot.slane %v1796, 1
      %v1799 = vshll.u32 %v1438, 16
      %v1801 = vrot.slane %v1799, 2
      %v1802 = vor.u32 %v1798, %v1801
      %v1803 = vsel %vm1768, %v1793, %v1802
      %v1805 = vshrl.u32 %v1439, 16
      %v1807 = vrot.slane %v1805, 1
      %v1808 = vshll.u32 %v1439, 16
      %v1810 = vrot.slane %v1808, 2
      %v1811 = vor.u32 %v1807, %v1810
      %v1812 = vsel %vm1768, %v1802, %v1811
      %v1814 = vshrl.u32 %v1440, 16
      %v1816 = vrot.slane %v1814, 1
      %v1817 = vshll.u32 %v1440, 16
      %v1819 = vrot.slane %v1817, 2
      %v1820 = vor.u32 %v1816, %v1819
      %v1821 = vsel %vm1768, %v1811, %v1820
      %v1823 = vshrl.u32 %v1441, 16
      %v1825 = vrot.slane %v1823, 1
      %v1826 = vshll.u32 %v1441, 16
      %v1828 = vrot.slane %v1826, 2
      %v1829 = vor.u32 %v1825, %v1828
      %v1830 = vsel %vm1768, %v1820, %v1829
      %v1832 = vshrl.u32 %v1442, 16
      %v1834 = vrot.slane %v1832, 1
      %v1835 = vshll.u32 %v1442, 16
      %v1837 = vrot.slane %v1835, 2
      %v1838 = vor.u32 %v1834, %v1837
      %v1839 = vsel %vm1768, %v1829, %v1838
      %v1841 = vshrl.u32 %v1443, 16
      %v1843 = vrot.slane %v1841, 1
      %v1844 = vshll.u32 %v1443, 16
      %v1846 = vrot.slane %v1844, 2
      %v1847 = vor.u32 %v1843, %v1846
      %v1848 = vsel %vm1768, %v1838, %v1847
      %v1850 = vshrl.u32 %v1444, 16
      %v1852 = vrot.slane %v1850, 1
      %v1853 = vshll.u32 %v1444, 16
      %v1855 = vrot.slane %v1853, 2
      %v1856 = vor.u32 %v1852, %v1855
      %v1857 = vsel %vm1768, %v1847, %v1856
      %v1859 = vshrl.u32 %v1445, 16
      %v1861 = vrot.slane %v1859, 1
      %v1862 = vshll.u32 %v1445, 16
      %v1864 = vrot.slane %v1862, 2
      %v1865 = vor.u32 %v1861, %v1864
      %v1866 = vsel %vm1768, %v1856, %v1865
      %v1868 = vshrl.u32 %v1446, 16
      %v1870 = vrot.slane %v1868, 1
      %v1871 = vshll.u32 %v1446, 16
      %v1873 = vrot.slane %v1871, 2
      %v1874 = vor.u32 %v1870, %v1873
      %v1875 = vsel %vm1768, %v1865, %v1874
      %v1877 = vshrl.u32 %v1447, 16
      %v1879 = vrot.slane %v1877, 1
      %v1880 = vshll.u32 %v1447, 16
      %v1882 = vrot.slane %v1880, 2
      %v1883 = vor.u32 %v1879, %v1882
      %v1884 = vsel %vm1768, %v1874, %v1883
      %v1886 = vshrl.u32 %v1448, 16
      %v1888 = vrot.slane %v1886, 1
      %v1889 = vshll.u32 %v1448, 16
      %v1891 = vrot.slane %v1889, 2
      %v1892 = vor.u32 %v1888, %v1891
      %v1893 = vsel %vm1768, %v1883, %v1892
      %v1895 = vshrl.u32 %v1449, 16
      %v1897 = vrot.slane %v1895, 1
      %v1898 = vshll.u32 %v1449, 16
      %v1900 = vrot.slane %v1898, 2
      %v1901 = vor.u32 %v1897, %v1900
      %v1902 = vsel %vm1768, %v1892, %v1901
      %v1904 = vshrl.u32 %v1450, 16
      %v1906 = vrot.slane %v1904, 1
      %v1907 = vshll.u32 %v1450, 16
      %v1909 = vrot.slane %v1907, 2
      %v1910 = vor.u32 %v1906, %v1909
      %v1911 = vsel %vm1768, %v1901, %v1910
      %v1913 = vshrl.u32 %v1451, 16
      %v1915 = vrot.slane %v1913, 1
      %v1916 = vshll.u32 %v1451, 16
      %v1918 = vrot.slane %v1916, 2
      %v1919 = vor.u32 %v1915, %v1918
      %v1920 = vsel %vm1768, %v1910, %v1919
      %v1922 = vshrl.u32 %v1452, 16
      %v1924 = vrot.slane %v1922, 1
      %v1925 = vshll.u32 %v1452, 16
      %v1927 = vrot.slane %v1925, 2
      %v1928 = vor.u32 %v1924, %v1927
      %v1929 = vsel %vm1768, %v1919, %v1928
      %v1931 = vshrl.u32 %v1767, 16
      %v1933 = vrot.slane %v1931, 1
      %v1934 = vshll.u32 %v1767, 16
      %v1936 = vrot.slane %v1934, 2
      %v1937 = vor.u32 %v1933, %v1936
      %v1938 = vsel %vm1768, %v1928, %v1937
      %v1940 = vsel %vm518, %v1785, 0
      %v1943 = vsel %vm518, %v1794, 0
      %v1946 = vsel %vm518, %v1803, 0
      %v1949 = vsel %vm518, %v1812, 0
      %v1952 = vsel %vm518, %v1821, 0
      %v1955 = vsel %vm518, %v1830, 0
      %v1958 = vsel %vm518, %v1839, 0
      %v1961 = vsel %vm518, %v1848, 0
      %v1964 = vsel %vm518, %v1857, 0
      %v1967 = vsel %vm518, %v1866, 0
      %v1970 = vsel %vm518, %v1875, 0
      %v1973 = vsel %vm518, %v1884, 0
      %v1976 = vsel %vm518, %v1893, 0
      %v1979 = vsel %vm518, %v1902, 0
      %v1982 = vsel %vm518, %v1911, 0
      %v1985 = vsel %vm518, %v1920, 0
      %v1988 = vsel %vm518, %v1929, 0
      %v1991 = vsel %vm518, %v1938, 0
      %v1994 = vsel %vm573, %v1764, 0
      %1996 = vmatprep.subr.bf16.mxu0 0
      %1997 = vmatpush1.bf16.msra.mxu0 %v1994
      %1998 = vmatprep.subr.bf16.mxu0 0
      %1999 = vmatpush1.bf16.msra.mxu0 0
      %2000 = vmatprep.subr.bf16.mxu0 0
      %2001 = vmatpush1.bf16.msra.mxu0 0
      %2002 = vmatprep.subr.bf16.mxu0 0
      %2003 = vmatpush1.bf16.msra.mxu0 0
      %2004 = vmatprep.subr.bf16.mxu0 0
      %2005 = vmatpush1.bf16.msra.mxu0 0
      %2006 = vmatprep.subr.bf16.mxu0 0
      %2007 = vmatpush1.bf16.msra.mxu0 0
      %2008 = vmatprep.subr.bf16.mxu0 0
      %2009 = vmatpush1.bf16.msra.mxu0 0
      %2010 = vmatprep.subr.bf16.mxu0 0
      %2011 = vmatpush1.bf16.msra.mxu0 0
      %2012 = vmatprep.subr.bf16.mxu0 0
      %2013 = vmatpush1.bf16.msra.mxu0 0
      %2014 = vmatprep.subr.bf16.mxu0 0
      %2015 = vmatpush1.bf16.msra.mxu0 0
      %2016 = vmatprep.subr.bf16.mxu0 0
      %2017 = vmatpush1.bf16.msra.mxu0 0
      %2018 = vmatprep.subr.bf16.mxu0 0
      %2019 = vmatpush1.bf16.msra.mxu0 0
      %2020 = vmatprep.subr.bf16.mxu0 0
      %2021 = vmatpush1.bf16.msra.mxu0 0
      %2022 = vmatprep.subr.bf16.mxu0 0
      %2023 = vmatpush1.bf16.msra.mxu0 0
      %2024 = vmatprep.subr.bf16.mxu0 0
      %2025 = vmatpush1.bf16.msra.mxu0 0
      %2026 = vmatprep.subr.bf16.mxu0 0
      %2027 = vmatpush1.bf16.msra.mxu0 0
      %2028 = vmatprep.mubr.bf16.mxu0 0
      %2029 = vmatmul.mubr.bf16.gmra.mrb[0].mxu0 %v1940
      %v2030 = vpop.f32.mrb[0].mxu0
      %v2031 = vadd.f32 0.0, %v2030
      %v2032 = vpop.f32.mrb[0].mxu0
      %v2033 = vpop.f32.mrb[0].mxu0
      %v2034 = vadd.f32 0.0, %v2033
      %v2035 = vpop.f32.mrb[0].mxu0
      %2036 = vmatprep.mubr.bf16.mxu0 0
      %2037 = vmatmul.mubr.bf16.gmra.mrb[0].mxu0 %v1943
      %v2038 = vpop.f32.mrb[0].mxu0
      %v2039 = vadd.f32 0.0, %v2038
      %v2040 = vpop.f32.mrb[0].mxu0
      %v2041 = vpop.f32.mrb[0].mxu0
      %v2042 = vadd.f32 0.0, %v2041
      %v2043 = vpop.f32.mrb[0].mxu0
      %2044 = vmatprep.mubr.bf16.mxu0 0
      %2045 = vmatmul.mubr.bf16.gmra.mrb[0].mxu0 %v1946
      %v2046 = vpop.f32.mrb[0].mxu0
      %v2047 = vadd.f32 0.0, %v2046
      %v2048 = vpop.f32.mrb[0].mxu0
      %v2049 = vpop.f32.mrb[0].mxu0
      %v2050 = vadd.f32 0.0, %v2049
      %v2051 = vpop.f32.mrb[0].mxu0
      %2052 = vmatprep.mubr.bf16.mxu0 0
      %2053 = vmatmul.mubr.bf16.gmra.mrb[0].mxu0 %v1949
      %v2054 = vpop.f32.mrb[0].mxu0
      %v2055 = vadd.f32 0.0, %v2054
      %v2056 = vpop.f32.mrb[0].mxu0
      %v2057 = vpop.f32.mrb[0].mxu0
      %v2058 = vadd.f32 0.0, %v2057
      %v2059 = vpop.f32.mrb[0].mxu0
      %2060 = vmatprep.mubr.bf16.mxu0 0
      %2061 = vmatmul.mubr.bf16.gmra.mrb[0].mxu0 %v1952
      %v2062 = vpop.f32.mrb[0].mxu0
      %v2063 = vadd.f32 0.0, %v2062
      %v2064 = vpop.f32.mrb[0].mxu0
      %v2065 = vpop.f32.mrb[0].mxu0
      %v2066 = vadd.f32 0.0, %v2065
      %v2067 = vpop.f32.mrb[0].mxu0
      %2068 = vmatprep.mubr.bf16.mxu0 0
      %2069 = vmatmul.mubr.bf16.gmra.mrb[0].mxu0 %v1955
      %v2070 = vpop.f32.mrb[0].mxu0
      %v2071 = vadd.f32 0.0, %v2070
      %v2072 = vpop.f32.mrb[0].mxu0
      %v2073 = vpop.f32.mrb[0].mxu0
      %v2074 = vadd.f32 0.0, %v2073
      %v2075 = vpop.f32.mrb[0].mxu0
      %2076 = vmatprep.mubr.bf16.mxu0 0
      %2077 = vmatmul.mubr.bf16.gmra.mrb[0].mxu0 %v1958
      %v2078 = vpop.f32.mrb[0].mxu0
      %v2079 = vadd.f32 0.0, %v2078
      %v2080 = vpop.f32.mrb[0].mxu0
      %v2081 = vpop.f32.mrb[0].mxu0
      %v2082 = vadd.f32 0.0, %v2081
      %v2083 = vpop.f32.mrb[0].mxu0
      %2084 = vmatprep.mubr.bf16.mxu0 0
      %2085 = vmatmul.mubr.bf16.gmra.mrb[0].mxu0 %v1961
      %v2086 = vpop.f32.mrb[0].mxu0
      %v2087 = vadd.f32 0.0, %v2086
      %v2088 = vpop.f32.mrb[0].mxu0
      %v2089 = vpop.f32.mrb[0].mxu0
      %v2090 = vadd.f32 0.0, %v2089
      %v2091 = vpop.f32.mrb[0].mxu0
      %2092 = vmatprep.mubr.bf16.mxu0 0
      %2093 = vmatmul.mubr.bf16.gmra.mrb[0].mxu0 %v1964
      %v2094 = vpop.f32.mrb[0].mxu0
      %v2095 = vadd.f32 0.0, %v2094
      %v2096 = vpop.f32.mrb[0].mxu0
      %v2097 = vpop.f32.mrb[0].mxu0
      %v2098 = vadd.f32 0.0, %v2097
      %v2099 = vpop.f32.mrb[0].mxu0
      %2100 = vmatprep.mubr.bf16.mxu0 0
      %2101 = vmatmul.mubr.bf16.gmra.mrb[0].mxu0 %v1967
      %v2102 = vpop.f32.mrb[0].mxu0
      %v2103 = vadd.f32 0.0, %v2102
      %v2104 = vpop.f32.mrb[0].mxu0
      %v2105 = vpop.f32.mrb[0].mxu0
      %v2106 = vadd.f32 0.0, %v2105
      %v2107 = vpop.f32.mrb[0].mxu0
      %2108 = vmatprep.mubr.bf16.mxu0 0
      %2109 = vmatmul.mubr.bf16.gmra.mrb[0].mxu0 %v1970
      %v2110 = vpop.f32.mrb[0].mxu0
      %v2111 = vadd.f32 0.0, %v2110
      %v2112 = vpop.f32.mrb[0].mxu0
      %v2113 = vpop.f32.mrb[0].mxu0
      %v2114 = vadd.f32 0.0, %v2113
      %v2115 = vpop.f32.mrb[0].mxu0
      %2116 = vmatprep.mubr.bf16.mxu0 0
      %2117 = vmatmul.mubr.bf16.gmra.mrb[0].mxu0 %v1973
      %v2118 = vpop.f32.mrb[0].mxu0
      %v2119 = vadd.f32 0.0, %v2118
      %v2120 = vpop.f32.mrb[0].mxu0
      %v2121 = vpop.f32.mrb[0].mxu0
      %v2122 = vadd.f32 0.0, %v2121
      %v2123 = vpop.f32.mrb[0].mxu0
      %2124 = vmatprep.mubr.bf16.mxu0 0
      %2125 = vmatmul.mubr.bf16.gmra.mrb[0].mxu0 %v1976
      %v2126 = vpop.f32.mrb[0].mxu0
      %v2127 = vadd.f32 0.0, %v2126
      %v2128 = vpop.f32.mrb[0].mxu0
      %v2129 = vpop.f32.mrb[0].mxu0
      %v2130 = vadd.f32 0.0, %v2129
      %v2131 = vpop.f32.mrb[0].mxu0
      %2132 = vmatprep.mubr.bf16.mxu0 0
      %2133 = vmatmul.mubr.bf16.gmra.mrb[0].mxu0 %v1979
      %v2134 = vpop.f32.mrb[0].mxu0
      %v2135 = vadd.f32 0.0, %v2134
      %v2136 = vpop.f32.mrb[0].mxu0
      %v2137 = vpop.f32.mrb[0].mxu0
      %v2138 = vadd.f32 0.0, %v2137
      %v2139 = vpop.f32.mrb[0].mxu0
      %2140 = vmatprep.mubr.bf16.mxu0 0
      %2141 = vmatmul.mubr.bf16.gmra.mrb[0].mxu0 %v1982
      %v2142 = vpop.f32.mrb[0].mxu0
      %v2143 = vadd.f32 0.0, %v2142
      %v2144 = vpop.f32.mrb[0].mxu0
      %v2145 = vpop.f32.mrb[0].mxu0
      %v2146 = vadd.f32 0.0, %v2145
      %v2147 = vpop.f32.mrb[0].mxu0
      %2148 = vmatprep.mubr.bf16.mxu0 0
      %2149 = vmatmul.mubr.bf16.gmra.mrb[0].mxu0 %v1985
      %v2150 = vpop.f32.mrb[0].mxu0
      %v2151 = vadd.f32 0.0, %v2150
      %v2152 = vpop.f32.mrb[0].mxu0
      %v2153 = vpop.f32.mrb[0].mxu0
      %v2154 = vadd.f32 0.0, %v2153
      %v2155 = vpop.f32.mrb[0].mxu0
      %2156 = vmatprep.mubr.bf16.mxu0 0
      %2157 = vmatmul.mubr.bf16.gmra.mrb[0].mxu0 %v1988
      %v2158 = vpop.f32.mrb[0].mxu0
      %v2159 = vadd.f32 0.0, %v2158
      %v2160 = vpop.f32.mrb[0].mxu0
      %v2161 = vpop.f32.mrb[0].mxu0
      %v2162 = vadd.f32 0.0, %v2161
      %v2163 = vpop.f32.mrb[0].mxu0
      %2164 = vmatprep.mubr.bf16.mxu0 0
      %2165 = vmatmul.mubr.bf16.gmra.mrb[0].mxu0 %v1991
      %v2166 = vpop.f32.mrb[0].mxu0
      %v2167 = vadd.f32 0.0, %v2166
      %v2168 = vpop.f32.mrb[0].mxu0
      %v2169 = vpop.f32.mrb[0].mxu0
      %v2170 = vadd.f32 0.0, %v2169
      %v2171 = vpop.f32.mrb[0].mxu0
      %2172 = vdwg.mxu0
      %v2173 = vadd.f32 %v1725, %v2031
      %v2174 = vadd.f32 %v1726, %v2034
      %v2175 = vadd.f32 %v1727, %v2039
      %v2176 = vadd.f32 %v1728, %v2042
      %v2177 = vadd.f32 %v1729, %v2047
      %v2178 = vadd.f32 %v1730, %v2050
      %v2179 = vadd.f32 %v1731, %v2055
      %v2180 = vadd.f32 %v1732, %v2058
      %v2181 = vadd.f32 %v1733, %v2063
      %v2182 = vadd.f32 %v1734, %v2066
      %v2183 = vadd.f32 %v1735, %v2071
      %v2184 = vadd.f32 %v1736, %v2074
      %v2185 = vadd.f32 %v1737, %v2079
      %v2186 = vadd.f32 %v1738, %v2082
      %v2187 = vadd.f32 %v1739, %v2087
      %v2188 = vadd.f32 %v1740, %v2090
      %v2189 = vadd.f32 %v1741, %v2095
      %v2190 = vadd.f32 %v1742, %v2098
      %v2191 = vadd.f32 %v1743, %v2103
      %v2192 = vadd.f32 %v1744, %v2106
      %v2193 = vadd.f32 %v1745, %v2111
      %v2194 = vadd.f32 %v1746, %v2114
      %v2195 = vadd.f32 %v1747, %v2119
      %v2196 = vadd.f32 %v1748, %v2122
      %v2197 = vadd.f32 %v1749, %v2127
      %v2198 = vadd.f32 %v1750, %v2130
      %v2199 = vadd.f32 %v1751, %v2135
      %v2200 = vadd.f32 %v1752, %v2138
      %v2201 = vadd.f32 %v1753, %v2143
      %v2202 = vadd.f32 %v1754, %v2146
      %v2203 = vadd.f32 %v1755, %v2151
      %v2204 = vadd.f32 %v1756, %v2154
      %v2205 = vadd.f32 %v1757, %v2159
      %v2206 = vadd.f32 %v1758, %v2162
      %v2207 = vadd.f32 %v1759, %v2167
      %v2208 = vadd.f32 %v1760, %v2170
      %v2209 = vld [vmem:[%s192 + $0x8] sm:$0xc]
      %v2210 = vmax.bf16 %v2209, 0
      %s2211 = scalar_lea.vmem %s1, 10
      %v2212 = vld [vmem:[%s2211] sm:$0x3]
      %v2214 = vunpack.c.l.b16 %v2210
      %v2215 = vpack.c.b16 %v1399, %v2214
      %vm2216 = vcmask 1045504
      %v2217 = vrot.slane %v2215, 2
      %v2218 = vrot.slane %v1436, 2
      %v2219 = vsel %vm2216, %v2217, %v2218
      %v2220 = vrot.slane %v1437, 2
      %v2221 = vsel %vm2216, %v2218, %v2220
      %v2222 = vrot.slane %v1438, 2
      %v2223 = vsel %vm2216, %v2220, %v2222
      %v2224 = vrot.slane %v1439, 2
      %v2225 = vsel %vm2216, %v2222, %v2224
      %v2226 = vrot.slane %v1440, 2
      %v2227 = vsel %vm2216, %v2224, %v2226
      %v2228 = vrot.slane %v1441, 2
      %v2229 = vsel %vm2216, %v2226, %v2228
      %v2230 = vrot.slane %v1442, 2
      %v2231 = vsel %vm2216, %v2228, %v2230
      %v2232 = vrot.slane %v1443, 2
      %v2233 = vsel %vm2216, %v2230, %v2232
      %v2234 = vrot.slane %v1444, 2
      %v2235 = vsel %vm2216, %v2232, %v2234
      %v2236 = vrot.slane %v1445, 2
      %v2237 = vsel %vm2216, %v2234, %v2236
      %v2238 = vrot.slane %v1446, 2
      %v2239 = vsel %vm2216, %v2236, %v2238
      %v2240 = vrot.slane %v1447, 2
      %v2241 = vsel %vm2216, %v2238, %v2240
      %v2242 = vrot.slane %v1448, 2
      %v2243 = vsel %vm2216, %v2240, %v2242
      %v2244 = vrot.slane %v1449, 2
      %v2245 = vsel %vm2216, %v2242, %v2244
      %v2246 = vrot.slane %v1450, 2
      %v2247 = vsel %vm2216, %v2244, %v2246
      %v2248 = vrot.slane %v1451, 2
      %v2249 = vsel %vm2216, %v2246, %v2248
      %v2250 = vrot.slane %v1452, 2
      %v2251 = vsel %vm2216, %v2248, %v2250
      %v2252 = vrot.slane %v1767, 2
      %v2253 = vsel %vm2216, %v2250, %v2252
      %v2255 = vsel %vm518, %v2219, 0
      %v2258 = vsel %vm518, %v2221, 0
      %v2261 = vsel %vm518, %v2223, 0
      %v2264 = vsel %vm518, %v2225, 0
      %v2267 = vsel %vm518, %v2227, 0
      %v2270 = vsel %vm518, %v2229, 0
      %v2273 = vsel %vm518, %v2231, 0
      %v2276 = vsel %vm518, %v2233, 0
      %v2279 = vsel %vm518, %v2235, 0
      %v2282 = vsel %vm518, %v2237, 0
      %v2285 = vsel %vm518, %v2239, 0
      %v2288 = vsel %vm518, %v2241, 0
      %v2291 = vsel %vm518, %v2243, 0
      %v2294 = vsel %vm518, %v2245, 0
      %v2297 = vsel %vm518, %v2247, 0
      %v2300 = vsel %vm518, %v2249, 0
      %v2303 = vsel %vm518, %v2251, 0
      %v2306 = vsel %vm518, %v2253, 0
      %v2309 = vsel %vm573, %v2212, 0
      %2311 = vmatprep.subr.bf16.mxu0 0
      %2312 = vmatpush1.bf16.msra.mxu0 %v2309
      %2313 = vmatprep.subr.bf16.mxu0 0
      %2314 = vmatpush1.bf16.msra.mxu0 0
      %2315 = vmatprep.subr.bf16.mxu0 0
      %2316 = vmatpush1.bf16.msra.mxu0 0
      %2317 = vmatprep.subr.bf16.mxu0 0
      %2318 = vmatpush1.bf16.msra.mxu0 0
      %2319 = vmatprep.subr.bf16.mxu0 0
      %2320 = vmatpush1.bf16.msra.mxu0 0
      %2321 = vmatprep.subr.bf16.mxu0 0
      %2322 = vmatpush1.bf16.msra.mxu0 0
      %2323 = vmatprep.subr.bf16.mxu0 0
      %2324 = vmatpush1.bf16.msra.mxu0 0
      %2325 = vmatprep.subr.bf16.mxu0 0
      %2326 = vmatpush1.bf16.msra.mxu0 0
      %2327 = vmatprep.subr.bf16.mxu0 0
      %2328 = vmatpush1.bf16.msra.mxu0 0
      %2329 = vmatprep.subr.bf16.mxu0 0
      %2330 = vmatpush1.bf16.msra.mxu0 0
      %2331 = vmatprep.subr.bf16.mxu0 0
      %2332 = vmatpush1.bf16.msra.mxu0 0
      %2333 = vmatprep.subr.bf16.mxu0 0
      %2334 = vmatpush1.bf16.msra.mxu0 0
      %2335 = vmatprep.subr.bf16.mxu0 0
      %2336 = vmatpush1.bf16.msra.mxu0 0
      %2337 = vmatprep.subr.bf16.mxu0 0
      %2338 = vmatpush1.bf16.msra.mxu0 0
      %2339 = vmatprep.subr.bf16.mxu0 0
      %2340 = vmatpush1.bf16.msra.mxu0 0
      %2341 = vmatprep.subr.bf16.mxu0 0
      %2342 = vmatpush1.bf16.msra.mxu0 0
      %2343 = vmatprep.mubr.bf16.mxu0 0
      %2344 = vmatmul.mubr.bf16.gmra.mrb[0].mxu0 %v2255
      %v2345 = vpop.f32.mrb[0].mxu0
      %v2346 = vadd.f32 0.0, %v2345
      %v2347 = vpop.f32.mrb[0].mxu0
      %v2348 = vpop.f32.mrb[0].mxu0
      %v2349 = vadd.f32 0.0, %v2348
      %v2350 = vpop.f32.mrb[0].mxu0
      %2351 = vmatprep.mubr.bf16.mxu0 0
      %2352 = vmatmul.mubr.bf16.gmra.mrb[0].mxu0 %v2258
      %v2353 = vpop.f32.mrb[0].mxu0
      %v2354 = vadd.f32 0.0, %v2353
      %v2355 = vpop.f32.mrb[0].mxu0
      %v2356 = vpop.f32.mrb[0].mxu0
      %v2357 = vadd.f32 0.0, %v2356
      %v2358 = vpop.f32.mrb[0].mxu0
      %2359 = vmatprep.mubr.bf16.mxu0 0
      %2360 = vmatmul.mubr.bf16.gmra.mrb[0].mxu0 %v2261
      %v2361 = vpop.f32.mrb[0].mxu0
      %v2362 = vadd.f32 0.0, %v2361
      %v2363 = vpop.f32.mrb[0].mxu0
      %v2364 = vpop.f32.mrb[0].mxu0
      %v2365 = vadd.f32 0.0, %v2364
      %v2366 = vpop.f32.mrb[0].mxu0
      %2367 = vmatprep.mubr.bf16.mxu0 0
      %2368 = vmatmul.mubr.bf16.gmra.mrb[0].mxu0 %v2264
      %v2369 = vpop.f32.mrb[0].mxu0
      %v2370 = vadd.f32 0.0, %v2369
      %v2371 = vpop.f32.mrb[0].mxu0
      %v2372 = vpop.f32.mrb[0].mxu0
      %v2373 = vadd.f32 0.0, %v2372
      %v2374 = vpop.f32.mrb[0].mxu0
      %2375 = vmatprep.mubr.bf16.mxu0 0
      %2376 = vmatmul.mubr.bf16.gmra.mrb[0].mxu0 %v2267
      %v2377 = vpop.f32.mrb[0].mxu0
      %v2378 = vadd.f32 0.0, %v2377
      %v2379 = vpop.f32.mrb[0].mxu0
      %v2380 = vpop.f32.mrb[0].mxu0
      %v2381 = vadd.f32 0.0, %v2380
      %v2382 = vpop.f32.mrb[0].mxu0
      %2383 = vmatprep.mubr.bf16.mxu0 0
      %2384 = vmatmul.mubr.bf16.gmra.mrb[0].mxu0 %v2270
      %v2385 = vpop.f32.mrb[0].mxu0
      %v2386 = vadd.f32 0.0, %v2385
      %v2387 = vpop.f32.mrb[0].mxu0
      %v2388 = vpop.f32.mrb[0].mxu0
      %v2389 = vadd.f32 0.0, %v2388
      %v2390 = vpop.f32.mrb[0].mxu0
      %2391 = vmatprep.mubr.bf16.mxu0 0
      %2392 = vmatmul.mubr.bf16.gmra.mrb[0].mxu0 %v2273
      %v2393 = vpop.f32.mrb[0].mxu0
      %v2394 = vadd.f32 0.0, %v2393
      %v2395 = vpop.f32.mrb[0].mxu0
      %v2396 = vpop.f32.mrb[0].mxu0
      %v2397 = vadd.f32 0.0, %v2396
      %v2398 = vpop.f32.mrb[0].mxu0
      %2399 = vmatprep.mubr.bf16.mxu0 0
      %2400 = vmatmul.mubr.bf16.gmra.mrb[0].mxu0 %v2276
      %v2401 = vpop.f32.mrb[0].mxu0
      %v2402 = vadd.f32 0.0, %v2401
      %v2403 = vpop.f32.mrb[0].mxu0
      %v2404 = vpop.f32.mrb[0].mxu0
      %v2405 = vadd.f32 0.0, %v2404
      %v2406 = vpop.f32.mrb[0].mxu0
      %2407 = vmatprep.mubr.bf16.mxu0 0
      %2408 = vmatmul.mubr.bf16.gmra.mrb[0].mxu0 %v2279
      %v2409 = vpop.f32.mrb[0].mxu0
      %v2410 = vadd.f32 0.0, %v2409
      %v2411 = vpop.f32.mrb[0].mxu0
      %v2412 = vpop.f32.mrb[0].mxu0
      %v2413 = vadd.f32 0.0, %v2412
      %v2414 = vpop.f32.mrb[0].mxu0
      %2415 = vmatprep.mubr.bf16.mxu0 0
      %2416 = vmatmul.mubr.bf16.gmra.mrb[0].mxu0 %v2282
      %v2417 = vpop.f32.mrb[0].mxu0
      %v2418 = vadd.f32 0.0, %v2417
      %v2419 = vpop.f32.mrb[0].mxu0
      %v2420 = vpop.f32.mrb[0].mxu0
      %v2421 = vadd.f32 0.0, %v2420
      %v2422 = vpop.f32.mrb[0].mxu0
      %2423 = vmatprep.mubr.bf16.mxu0 0
      %2424 = vmatmul.mubr.bf16.gmra.mrb[0].mxu0 %v2285
      %v2425 = vpop.f32.mrb[0].mxu0
      %v2426 = vadd.f32 0.0, %v2425
      %v2427 = vpop.f32.mrb[0].mxu0
      %v2428 = vpop.f32.mrb[0].mxu0
      %v2429 = vadd.f32 0.0, %v2428
      %v2430 = vpop.f32.mrb[0].mxu0
      %2431 = vmatprep.mubr.bf16.mxu0 0
      %2432 = vmatmul.mubr.bf16.gmra.mrb[0].mxu0 %v2288
      %v2433 = vpop.f32.mrb[0].mxu0
      %v2434 = vadd.f32 0.0, %v2433
      %v2435 = vpop.f32.mrb[0].mxu0
      %v2436 = vpop.f32.mrb[0].mxu0
      %v2437 = vadd.f32 0.0, %v2436
      %v2438 = vpop.f32.mrb[0].mxu0
      %2439 = vmatprep.mubr.bf16.mxu0 0
      %2440 = vmatmul.mubr.bf16.gmra.mrb[0].mxu0 %v2291
      %v2441 = vpop.f32.mrb[0].mxu0
      %v2442 = vadd.f32 0.0, %v2441
      %v2443 = vpop.f32.mrb[0].mxu0
      %v2444 = vpop.f32.mrb[0].mxu0
      %v2445 = vadd.f32 0.0, %v2444
      %v2446 = vpop.f32.mrb[0].mxu0
      %2447 = vmatprep.mubr.bf16.mxu0 0
      %2448 = vmatmul.mubr.bf16.gmra.mrb[0].mxu0 %v2294
      %v2449 = vpop.f32.mrb[0].mxu0
      %v2450 = vadd.f32 0.0, %v2449
      %v2451 = vpop.f32.mrb[0].mxu0
      %v2452 = vpop.f32.mrb[0].mxu0
      %v2453 = vadd.f32 0.0, %v2452
      %v2454 = vpop.f32.mrb[0].mxu0
      %2455 = vmatprep.mubr.bf16.mxu0 0
      %2456 = vmatmul.mubr.bf16.gmra.mrb[0].mxu0 %v2297
      %v2457 = vpop.f32.mrb[0].mxu0
      %v2458 = vadd.f32 0.0, %v2457
      %v2459 = vpop.f32.mrb[0].mxu0
      %v2460 = vpop.f32.mrb[0].mxu0
      %v2461 = vadd.f32 0.0, %v2460
      %v2462 = vpop.f32.mrb[0].mxu0
      %2463 = vmatprep.mubr.bf16.mxu0 0
      %2464 = vmatmul.mubr.bf16.gmra.mrb[0].mxu0 %v2300
      %v2465 = vpop.f32.mrb[0].mxu0
      %v2466 = vadd.f32 0.0, %v2465
      %v2467 = vpop.f32.mrb[0].mxu0
      %v2468 = vpop.f32.mrb[0].mxu0
      %v2469 = vadd.f32 0.0, %v2468
      %v2470 = vpop.f32.mrb[0].mxu0
      %2471 = vmatprep.mubr.bf16.mxu0 0
      %2472 = vmatmul.mubr.bf16.gmra.mrb[0].mxu0 %v2303
      %v2473 = vpop.f32.mrb[0].mxu0
      %v2474 = vadd.f32 0.0, %v2473
      %v2475 = vpop.f32.mrb[0].mxu0
      %v2476 = vpop.f32.mrb[0].mxu0
      %v2477 = vadd.f32 0.0, %v2476
      %v2478 = vpop.f32.mrb[0].mxu0
      %2479 = vmatprep.mubr.bf16.mxu0 0
      %2480 = vmatmul.mubr.bf16.gmra.mrb[0].mxu0 %v2306
      %v2481 = vpop.f32.mrb[0].mxu0
      %v2482 = vadd.f32 0.0, %v2481
      %v2483 = vpop.f32.mrb[0].mxu0
      %v2484 = vpop.f32.mrb[0].mxu0
      %v2485 = vadd.f32 0.0, %v2484
      %v2486 = vpop.f32.mrb[0].mxu0
      %2487 = vdwg.mxu0
      %v2488 = vadd.f32 %v2173, %v2346
      %v2489 = vadd.f32 %v2174, %v2349
      %v2490 = vadd.f32 %v2175, %v2354
      %v2491 = vadd.f32 %v2176, %v2357
      %v2492 = vadd.f32 %v2177, %v2362
      %v2493 = vadd.f32 %v2178, %v2365
      %v2494 = vadd.f32 %v2179, %v2370
      %v2495 = vadd.f32 %v2180, %v2373
      %v2496 = vadd.f32 %v2181, %v2378
      %v2497 = vadd.f32 %v2182, %v2381
      %v2498 = vadd.f32 %v2183, %v2386
      %v2499 = vadd.f32 %v2184, %v2389
      %v2500 = vadd.f32 %v2185, %v2394
      %v2501 = vadd.f32 %v2186, %v2397
      %v2502 = vadd.f32 %v2187, %v2402
      %v2503 = vadd.f32 %v2188, %v2405
      %v2504 = vadd.f32 %v2189, %v2410
      %v2505 = vadd.f32 %v2190, %v2413
      %v2506 = vadd.f32 %v2191, %v2418
      %v2507 = vadd.f32 %v2192, %v2421
      %v2508 = vadd.f32 %v2193, %v2426
      %v2509 = vadd.f32 %v2194, %v2429
      %v2510 = vadd.f32 %v2195, %v2434
      %v2511 = vadd.f32 %v2196, %v2437
      %v2512 = vadd.f32 %v2197, %v2442
      %v2513 = vadd.f32 %v2198, %v2445
      %v2514 = vadd.f32 %v2199, %v2450
      %v2515 = vadd.f32 %v2200, %v2453
      %v2516 = vadd.f32 %v2201, %v2458
      %v2517 = vadd.f32 %v2202, %v2461
      %v2518 = vadd.f32 %v2203, %v2466
      %v2519 = vadd.f32 %v2204, %v2469
      %v2520 = vadd.f32 %v2205, %v2474
      %v2521 = vadd.f32 %v2206, %v2477
      %v2522 = vadd.f32 %v2207, %v2482
      %v2523 = vadd.f32 %v2208, %v2485
      %v2524 = vld [vmem:[%s192 + $0x10] sm:$0xc]
      %v2525 = vld [vmem:[%s192 + $0x14] sm:$0xf]
      %v2526 = vld [vmem:[%s192 + $0x18] sm:$0xf]
      %v2527 = vld [vmem:[%s192 + $0x1c] sm:$0xf]
      %v2528 = vld [vmem:[%s192 + $0x20] sm:$0xf]
      %v2529 = vld [vmem:[%s192 + $0x24] sm:$0xf]
      %v2530 = vld [vmem:[%s192 + $0x28] sm:$0xf]
      %v2531 = vld [vmem:[%s192 + $0x2c] sm:$0xf]
      %v2532 = vld [vmem:[%s192 + $0x30] sm:$0xf]
      %v2533 = vld [vmem:[%s192 + $0x34] sm:$0xf]
      %v2534 = vld [vmem:[%s192 + $0x38] sm:$0xf]
      %v2535 = vld [vmem:[%s192 + $0x3c] sm:$0xf]
      %v2536 = vld [vmem:[%s192 + $0x40] sm:$0xf]
      %v2537 = vld [vmem:[%s192 + $0x44] sm:$0xf]
      %v2538 = vld [vmem:[%s192 + $0x48] sm:$0xf]
      %v2539 = vld [vmem:[%s192 + $0x4c] sm:$0xf]
      %v2540 = vld [vmem:[%s192 + $0x50] sm:$0xf]
      %v2541 = vld [vmem:[%s192 + $0x54] sm:$0xf]
      %v2542 = vld [vmem:[%s192 + $0x58] sm:$0xf]
      %v2543 = vld [vmem:[%s192 + $0x5c] sm:$0xf]
      %v2544 = vld [vmem:[%s192 + $0x60] sm:$0xf]
      %v2545 = vld [vmem:[%s192 + $0x64] sm:$0xf]
      %v2546 = vld [vmem:[%s192 + $0x68] sm:$0xf]
      %v2547 = vld [vmem:[%s192 + $0x6c] sm:$0xf]
      %v2548 = vld [vmem:[%s192 + $0x70] sm:$0xf]
      %v2549 = vld [vmem:[%s192 + $0x74] sm:$0xf]
      %v2550 = vld [vmem:[%s192 + $0x78] sm:$0xf]
      %v2551 = vld [vmem:[%s192 + $0x7c] sm:$0xf]
      %v2552 = vld [vmem:[%s192 + $0x80] sm:$0xf]
      %v2553 = vld [vmem:[%s192 + $0x84] sm:$0xf]
      %v2554 = vld [vmem:[%s192 + $0x88] sm:$0xf]
      %v2555 = vld [vmem:[%s192 + $0x8c] sm:$0xf]
      %v2556 = vld [vmem:[%s192 + $0x90] sm:$0xf]
      %v2557 = vld [vmem:[%s192 + $0x94] sm:$0xf]
      %v2558 = vld [vmem:[%s192 + $0x98] sm:$0xf]
      %v2559 = vld [vmem:[%s192 + $0x9c] sm:$0xf]
      %v2560 = vld [vmem:[%s192 + $0xa0] sm:$0x3]
      %v2561 = vmax.bf16 %v2524, 0
      %v2562 = vmax.bf16 %v2525, 0
      %v2563 = vmax.bf16 %v2526, 0
      %v2564 = vmax.bf16 %v2527, 0
      %v2565 = vmax.bf16 %v2528, 0
      %v2566 = vmax.bf16 %v2529, 0
      %v2567 = vmax.bf16 %v2530, 0
      %v2568 = vmax.bf16 %v2531, 0
      %v2569 = vmax.bf16 %v2532, 0
      %v2570 = vmax.bf16 %v2533, 0
      %v2571 = vmax.bf16 %v2534, 0
      %v2572 = vmax.bf16 %v2535, 0
      %v2573 = vmax.bf16 %v2536, 0
      %v2574 = vmax.bf16 %v2537, 0
      %v2575 = vmax.bf16 %v2538, 0
      %v2576 = vmax.bf16 %v2539, 0
      %v2577 = vmax.bf16 %v2540, 0
      %v2578 = vmax.bf16 %v2541, 0
      %v2579 = vmax.bf16 %v2542, 0
      %v2580 = vmax.bf16 %v2543, 0
      %v2581 = vmax.bf16 %v2544, 0
      %v2582 = vmax.bf16 %v2545, 0
      %v2583 = vmax.bf16 %v2546, 0
      %v2584 = vmax.bf16 %v2547, 0
      %v2585 = vmax.bf16 %v2548, 0
      %v2586 = vmax.bf16 %v2549, 0
      %v2587 = vmax.bf16 %v2550, 0
      %v2588 = vmax.bf16 %v2551, 0
      %v2589 = vmax.bf16 %v2552, 0
      %v2590 = vmax.bf16 %v2553, 0
      %v2591 = vmax.bf16 %v2554, 0
      %v2592 = vmax.bf16 %v2555, 0
      %v2593 = vmax.bf16 %v2556, 0
      %v2594 = vmax.bf16 %v2557, 0
      %v2595 = vmax.bf16 %v2558, 0
      %v2596 = vmax.bf16 %v2559, 0
      %v2597 = vmax.bf16 %v2560, 0
      %s2598 = scalar_lea.vmem %s1, 12
      %v2599 = vld [vmem:[%s2598] sm:$0x3]
      %v2637 = vunpack.c.l.b16 %v2561
      %v2638 = vunpack.c.l.b16 %v2562
      %v2639 = vunpack.c.l.b16 %v2563
      %v2640 = vunpack.c.l.b16 %v2564
      %v2641 = vunpack.c.l.b16 %v2565
      %v2642 = vunpack.c.l.b16 %v2566
      %v2643 = vunpack.c.l.b16 %v2567
      %v2644 = vunpack.c.l.b16 %v2568
      %v2645 = vunpack.c.l.b16 %v2569
      %v2646 = vunpack.c.l.b16 %v2570
      %v2647 = vunpack.c.l.b16 %v2571
      %v2648 = vunpack.c.l.b16 %v2572
      %v2649 = vunpack.c.l.b16 %v2573
      %v2650 = vunpack.c.l.b16 %v2574
      %v2651 = vunpack.c.l.b16 %v2575
      %v2652 = vunpack.c.l.b16 %v2576
      %v2653 = vunpack.c.l.b16 %v2577
      %v2654 = vunpack.c.l.b16 %v2578
      %v2655 = vunpack.c.l.b16 %v2579
      %v2656 = vunpack.c.l.b16 %v2580
      %v2657 = vunpack.c.l.b16 %v2581
      %v2658 = vunpack.c.l.b16 %v2582
      %v2659 = vunpack.c.l.b16 %v2583
      %v2660 = vunpack.c.l.b16 %v2584
      %v2661 = vunpack.c.l.b16 %v2585
      %v2662 = vunpack.c.l.b16 %v2586
      %v2663 = vunpack.c.l.b16 %v2587
      %v2664 = vunpack.c.l.b16 %v2588
      %v2665 = vunpack.c.l.b16 %v2589
      %v2666 = vunpack.c.l.b16 %v2590
      %v2667 = vunpack.c.l.b16 %v2591
      %v2668 = vunpack.c.l.b16 %v2592
      %v2669 = vunpack.c.l.b16 %v2593
      %v2670 = vunpack.c.l.b16 %v2594
      %v2671 = vunpack.c.l.b16 %v2595
      %v2672 = vunpack.c.l.b16 %v2596
      %v2673 = vunpack.c.l.b16 %v2597
      %v2674 = vpack.c.b16 %v2638, %v2637
      %v2675 = vpack.c.b16 %v2640, %v2639
      %v2676 = vpack.c.b16 %v2642, %v2641
      %v2677 = vpack.c.b16 %v2644, %v2643
      %v2678 = vpack.c.b16 %v2646, %v2645
      %v2679 = vpack.c.b16 %v2648, %v2647
      %v2680 = vpack.c.b16 %v2650, %v2649
      %v2681 = vpack.c.b16 %v2652, %v2651
      %v2682 = vpack.c.b16 %v2654, %v2653
      %v2683 = vpack.c.b16 %v2656, %v2655
      %v2684 = vpack.c.b16 %v2658, %v2657
      %v2685 = vpack.c.b16 %v2660, %v2659
      %v2686 = vpack.c.b16 %v2662, %v2661
      %v2687 = vpack.c.b16 %v2664, %v2663
      %v2688 = vpack.c.b16 %v2666, %v2665
      %v2689 = vpack.c.b16 %v2668, %v2667
      %v2690 = vpack.c.b16 %v2670, %v2669
      %v2691 = vpack.c.b16 %v2672, %v2671
      %v2692 = vpack.c.b16 %v2673, %v2673
      %v2693 = vrot.slane %v2674, 2
      %v2694 = vrot.slane %v2675, 2
      %v2695 = vsel %vm2216, %v2693, %v2694
      %v2696 = vrot.slane %v2676, 2
      %v2697 = vsel %vm2216, %v2694, %v2696
      %v2698 = vrot.slane %v2677, 2
      %v2699 = vsel %vm2216, %v2696, %v2698
      %v2700 = vrot.slane %v2678, 2
      %v2701 = vsel %vm2216, %v2698, %v2700
      %v2702 = vrot.slane %v2679, 2
      %v2703 = vsel %vm2216, %v2700, %v2702
      %v2704 = vrot.slane %v2680, 2
      %v2705 = vsel %vm2216, %v2702, %v2704
      %v2706 = vrot.slane %v2681, 2
      %v2707 = vsel %vm2216, %v2704, %v2706
      %v2708 = vrot.slane %v2682, 2
      %v2709 = vsel %vm2216, %v2706, %v2708
      %v2710 = vrot.slane %v2683, 2
      %v2711 = vsel %vm2216, %v2708, %v2710
      %v2712 = vrot.slane %v2684, 2
      %v2713 = vsel %vm2216, %v2710, %v2712
      %v2714 = vrot.slane %v2685, 2
      %v2715 = vsel %vm2216, %v2712, %v2714
      %v2716 = vrot.slane %v2686, 2
      %v2717 = vsel %vm2216, %v2714, %v2716
      %v2718 = vrot.slane %v2687, 2
      %v2719 = vsel %vm2216, %v2716, %v2718
      %v2720 = vrot.slane %v2688, 2
      %v2721 = vsel %vm2216, %v2718, %v2720
      %v2722 = vrot.slane %v2689, 2
      %v2723 = vsel %vm2216, %v2720, %v2722
      %v2724 = vrot.slane %v2690, 2
      %v2725 = vsel %vm2216, %v2722, %v2724
      %v2726 = vrot.slane %v2691, 2
      %v2727 = vsel %vm2216, %v2724, %v2726
      %v2728 = vrot.slane %v2692, 2
      %v2729 = vsel %vm2216, %v2726, %v2728
      %v2731 = vsel %vm518, %v2695, 0
      %v2734 = vsel %vm518, %v2697, 0
      %v2737 = vsel %vm518, %v2699, 0
      %v2740 = vsel %vm518, %v2701, 0
      %v2743 = vsel %vm518, %v2703, 0
      %v2746 = vsel %vm518, %v2705, 0
      %v2749 = vsel %vm518, %v2707, 0
      %v2752 = vsel %vm518, %v2709, 0
      %v2755 = vsel %vm518, %v2711, 0
      %v2758 = vsel %vm518, %v2713, 0
      %v2761 = vsel %vm518, %v2715, 0
      %v2764 = vsel %vm518, %v2717, 0
      %v2767 = vsel %vm518, %v2719, 0
      %v2770 = vsel %vm518, %v2721, 0
      %v2773 = vsel %vm518, %v2723, 0
      %v2776 = vsel %vm518, %v2725, 0
      %v2779 = vsel %vm518, %v2727, 0
      %v2782 = vsel %vm518, %v2729, 0
      %v2785 = vsel %vm573, %v2599, 0
      %2787 = vmatprep.subr.bf16.mxu0 0
      %2788 = vmatpush1.bf16.msra.mxu0 %v2785
      %2789 = vmatprep.subr.bf16.mxu0 0
      %2790 = vmatpush1.bf16.msra.mxu0 0
      %2791 = vmatprep.subr.bf16.mxu0 0
      %2792 = vmatpush1.bf16.msra.mxu0 0
      %2793 = vmatprep.subr.bf16.mxu0 0
      %2794 = vmatpush1.bf16.msra.mxu0 0
      %2795 = vmatprep.subr.bf16.mxu0 0
      %2796 = vmatpush1.bf16.msra.mxu0 0
      %2797 = vmatprep.subr.bf16.mxu0 0
      %2798 = vmatpush1.bf16.msra.mxu0 0
      %2799 = vmatprep.subr.bf16.mxu0 0
      %2800 = vmatpush1.bf16.msra.mxu0 0
      %2801 = vmatprep.subr.bf16.mxu0 0
      %2802 = vmatpush1.bf16.msra.mxu0 0
      %2803 = vmatprep.subr.bf16.mxu0 0
      %2804 = vmatpush1.bf16.msra.mxu0 0
      %2805 = vmatprep.subr.bf16.mxu0 0
      %2806 = vmatpush1.bf16.msra.mxu0 0
      %2807 = vmatprep.subr.bf16.mxu0 0
      %2808 = vmatpush1.bf16.msra.mxu0 0
      %2809 = vmatprep.subr.bf16.mxu0 0
      %2810 = vmatpush1.bf16.msra.mxu0 0
      %2811 = vmatprep.subr.bf16.mxu0 0
      %2812 = vmatpush1.bf16.msra.mxu0 0
      %2813 = vmatprep.subr.bf16.mxu0 0
      %2814 = vmatpush1.bf16.msra.mxu0 0
      %2815 = vmatprep.subr.bf16.mxu0 0
      %2816 = vmatpush1.bf16.msra.mxu0 0
      %2817 = vmatprep.subr.bf16.mxu0 0
      %2818 = vmatpush1.bf16.msra.mxu0 0
      %2819 = vmatprep.mubr.bf16.mxu0 0
      %2820 = vmatmul.mubr.bf16.gmra.mrb[0].mxu0 %v2731
      %v2821 = vpop.f32.mrb[0].mxu0
      %v2822 = vadd.f32 0.0, %v2821
      %v2823 = vpop.f32.mrb[0].mxu0
      %v2824 = vpop.f32.mrb[0].mxu0
      %v2825 = vadd.f32 0.0, %v2824
      %v2826 = vpop.f32.mrb[0].mxu0
      %2827 = vmatprep.mubr.bf16.mxu0 0
      %2828 = vmatmul.mubr.bf16.gmra.mrb[0].mxu0 %v2734
      %v2829 = vpop.f32.mrb[0].mxu0
      %v2830 = vadd.f32 0.0, %v2829
      %v2831 = vpop.f32.mrb[0].mxu0
      %v2832 = vpop.f32.mrb[0].mxu0
      %v2833 = vadd.f32 0.0, %v2832
      %v2834 = vpop.f32.mrb[0].mxu0
      %2835 = vmatprep.mubr.bf16.mxu0 0
      %2836 = vmatmul.mubr.bf16.gmra.mrb[0].mxu0 %v2737
      %v2837 = vpop.f32.mrb[0].mxu0
      %v2838 = vadd.f32 0.0, %v2837
      %v2839 = vpop.f32.mrb[0].mxu0
      %v2840 = vpop.f32.mrb[0].mxu0
      %v2841 = vadd.f32 0.0, %v2840
      %v2842 = vpop.f32.mrb[0].mxu0
      %2843 = vmatprep.mubr.bf16.mxu0 0
      %2844 = vmatmul.mubr.bf16.gmra.mrb[0].mxu0 %v2740
      %v2845 = vpop.f32.mrb[0].mxu0
      %v2846 = vadd.f32 0.0, %v2845
      %v2847 = vpop.f32.mrb[0].mxu0
      %v2848 = vpop.f32.mrb[0].mxu0
      %v2849 = vadd.f32 0.0, %v2848
      %v2850 = vpop.f32.mrb[0].mxu0
      %2851 = vmatprep.mubr.bf16.mxu0 0
      %2852 = vmatmul.mubr.bf16.gmra.mrb[0].mxu0 %v2743
      %v2853 = vpop.f32.mrb[0].mxu0
      %v2854 = vadd.f32 0.0, %v2853
      %v2855 = vpop.f32.mrb[0].mxu0
      %v2856 = vpop.f32.mrb[0].mxu0
      %v2857 = vadd.f32 0.0, %v2856
      %v2858 = vpop.f32.mrb[0].mxu0
      %2859 = vmatprep.mubr.bf16.mxu0 0
      %2860 = vmatmul.mubr.bf16.gmra.mrb[0].mxu0 %v2746
      %v2861 = vpop.f32.mrb[0].mxu0
      %v2862 = vadd.f32 0.0, %v2861
      %v2863 = vpop.f32.mrb[0].mxu0
      %v2864 = vpop.f32.mrb[0].mxu0
      %v2865 = vadd.f32 0.0, %v2864
      %v2866 = vpop.f32.mrb[0].mxu0
      %2867 = vmatprep.mubr.bf16.mxu0 0
      %2868 = vmatmul.mubr.bf16.gmra.mrb[0].mxu0 %v2749
      %v2869 = vpop.f32.mrb[0].mxu0
      %v2870 = vadd.f32 0.0, %v2869
      %v2871 = vpop.f32.mrb[0].mxu0
      %v2872 = vpop.f32.mrb[0].mxu0
      %v2873 = vadd.f32 0.0, %v2872
      %v2874 = vpop.f32.mrb[0].mxu0
      %2875 = vmatprep.mubr.bf16.mxu0 0
      %2876 = vmatmul.mubr.bf16.gmra.mrb[0].mxu0 %v2752
      %v2877 = vpop.f32.mrb[0].mxu0
      %v2878 = vadd.f32 0.0, %v2877
      %v2879 = vpop.f32.mrb[0].mxu0
      %v2880 = vpop.f32.mrb[0].mxu0
      %v2881 = vadd.f32 0.0, %v2880
      %v2882 = vpop.f32.mrb[0].mxu0
      %2883 = vmatprep.mubr.bf16.mxu0 0
      %2884 = vmatmul.mubr.bf16.gmra.mrb[0].mxu0 %v2755
      %v2885 = vpop.f32.mrb[0].mxu0
      %v2886 = vadd.f32 0.0, %v2885
      %v2887 = vpop.f32.mrb[0].mxu0
      %v2888 = vpop.f32.mrb[0].mxu0
      %v2889 = vadd.f32 0.0, %v2888
      %v2890 = vpop.f32.mrb[0].mxu0
      %2891 = vmatprep.mubr.bf16.mxu0 0
      %2892 = vmatmul.mubr.bf16.gmra.mrb[0].mxu0 %v2758
      %v2893 = vpop.f32.mrb[0].mxu0
      %v2894 = vadd.f32 0.0, %v2893
      %v2895 = vpop.f32.mrb[0].mxu0
      %v2896 = vpop.f32.mrb[0].mxu0
      %v2897 = vadd.f32 0.0, %v2896
      %v2898 = vpop.f32.mrb[0].mxu0
      %2899 = vmatprep.mubr.bf16.mxu0 0
      %2900 = vmatmul.mubr.bf16.gmra.mrb[0].mxu0 %v2761
      %v2901 = vpop.f32.mrb[0].mxu0
      %v2902 = vadd.f32 0.0, %v2901
      %v2903 = vpop.f32.mrb[0].mxu0
      %v2904 = vpop.f32.mrb[0].mxu0
      %v2905 = vadd.f32 0.0, %v2904
      %v2906 = vpop.f32.mrb[0].mxu0
      %2907 = vmatprep.mubr.bf16.mxu0 0
      %2908 = vmatmul.mubr.bf16.gmra.mrb[0].mxu0 %v2764
      %v2909 = vpop.f32.mrb[0].mxu0
      %v2910 = vadd.f32 0.0, %v2909
      %v2911 = vpop.f32.mrb[0].mxu0
      %v2912 = vpop.f32.mrb[0].mxu0
      %v2913 = vadd.f32 0.0, %v2912
      %v2914 = vpop.f32.mrb[0].mxu0
      %2915 = vmatprep.mubr.bf16.mxu0 0
      %2916 = vmatmul.mubr.bf16.gmra.mrb[0].mxu0 %v2767
      %v2917 = vpop.f32.mrb[0].mxu0
      %v2918 = vadd.f32 0.0, %v2917
      %v2919 = vpop.f32.mrb[0].mxu0
      %v2920 = vpop.f32.mrb[0].mxu0
      %v2921 = vadd.f32 0.0, %v2920
      %v2922 = vpop.f32.mrb[0].mxu0
      %2923 = vmatprep.mubr.bf16.mxu0 0
      %2924 = vmatmul.mubr.bf16.gmra.mrb[0].mxu0 %v2770
      %v2925 = vpop.f32.mrb[0].mxu0
      %v2926 = vadd.f32 0.0, %v2925
      %v2927 = vpop.f32.mrb[0].mxu0
      %v2928 = vpop.f32.mrb[0].mxu0
      %v2929 = vadd.f32 0.0, %v2928
      %v2930 = vpop.f32.mrb[0].mxu0
      %2931 = vmatprep.mubr.bf16.mxu0 0
      %2932 = vmatmul.mubr.bf16.gmra.mrb[0].mxu0 %v2773
      %v2933 = vpop.f32.mrb[0].mxu0
      %v2934 = vadd.f32 0.0, %v2933
      %v2935 = vpop.f32.mrb[0].mxu0
      %v2936 = vpop.f32.mrb[0].mxu0
      %v2937 = vadd.f32 0.0, %v2936
      %v2938 = vpop.f32.mrb[0].mxu0
      %2939 = vmatprep.mubr.bf16.mxu0 0
      %2940 = vmatmul.mubr.bf16.gmra.mrb[0].mxu0 %v2776
      %v2941 = vpop.f32.mrb[0].mxu0
      %v2942 = vadd.f32 0.0, %v2941
      %v2943 = vpop.f32.mrb[0].mxu0
      %v2944 = vpop.f32.mrb[0].mxu0
      %v2945 = vadd.f32 0.0, %v2944
      %v2946 = vpop.f32.mrb[0].mxu0
      %2947 = vmatprep.mubr.bf16.mxu0 0
      %2948 = vmatmul.mubr.bf16.gmra.mrb[0].mxu0 %v2779
      %v2949 = vpop.f32.mrb[0].mxu0
      %v2950 = vadd.f32 0.0, %v2949
      %v2951 = vpop.f32.mrb[0].mxu0
      %v2952 = vpop.f32.mrb[0].mxu0
      %v2953 = vadd.f32 0.0, %v2952
      %v2954 = vpop.f32.mrb[0].mxu0
      %2955 = vmatprep.mubr.bf16.mxu0 0
      %2956 = vmatmul.mubr.bf16.gmra.mrb[0].mxu0 %v2782
      %v2957 = vpop.f32.mrb[0].mxu0
      %v2958 = vadd.f32 0.0, %v2957
      %v2959 = vpop.f32.mrb[0].mxu0
      %v2960 = vpop.f32.mrb[0].mxu0
      %v2961 = vadd.f32 0.0, %v2960
      %v2962 = vpop.f32.mrb[0].mxu0
      %2963 = vdwg.mxu0
      %v2964 = vadd.f32 %v2488, %v2822
      %v2965 = vadd.f32 %v2489, %v2825
      %v2966 = vadd.f32 %v2490, %v2830
      %v2967 = vadd.f32 %v2491, %v2833
      %v2968 = vadd.f32 %v2492, %v2838
      %v2969 = vadd.f32 %v2493, %v2841
      %v2970 = vadd.f32 %v2494, %v2846
      %v2971 = vadd.f32 %v2495, %v2849
      %v2972 = vadd.f32 %v2496, %v2854
      %v2973 = vadd.f32 %v2497, %v2857
      %v2974 = vadd.f32 %v2498, %v2862
      %v2975 = vadd.f32 %v2499, %v2865
      %v2976 = vadd.f32 %v2500, %v2870
      %v2977 = vadd.f32 %v2501, %v2873
      %v2978 = vadd.f32 %v2502, %v2878
      %v2979 = vadd.f32 %v2503, %v2881
      %v2980 = vadd.f32 %v2504, %v2886
      %v2981 = vadd.f32 %v2505, %v2889
      %v2982 = vadd.f32 %v2506, %v2894
      %v2983 = vadd.f32 %v2507, %v2897
      %v2984 = vadd.f32 %v2508, %v2902
      %v2985 = vadd.f32 %v2509, %v2905
      %v2986 = vadd.f32 %v2510, %v2910
      %v2987 = vadd.f32 %v2511, %v2913
      %v2988 = vadd.f32 %v2512, %v2918
      %v2989 = vadd.f32 %v2513, %v2921
      %v2990 = vadd.f32 %v2514, %v2926
      %v2991 = vadd.f32 %v2515, %v2929
      %v2992 = vadd.f32 %v2516, %v2934
      %v2993 = vadd.f32 %v2517, %v2937
      %v2994 = vadd.f32 %v2518, %v2942
      %v2995 = vadd.f32 %v2519, %v2945
      %v2996 = vadd.f32 %v2520, %v2950
      %v2997 = vadd.f32 %v2521, %v2953
      %v2998 = vadd.f32 %v2522, %v2958
      %v2999 = vadd.f32 %v2523, %v2961
      %v3000 = vld [vmem:[%s192 + $0xa0] sm:$0x7]
      %v3001 = vmax.bf16 %v3000, 0
      %s3002 = scalar_lea.vmem %s1, 14
      %v3003 = vld [vmem:[%s3002] sm:$0x3]
      %v3005 = vunpack.c.l.b16 %v3001
      %v3006 = vpack.c.b16 %v3005, %v3005
      %vm3007 = vsmask.f32 5376
      %v3009 = vshrl.u32 %v2674, 16
      %v3011 = vrot.slane %v3009, 2
      %v3012 = vshll.u32 %v2674, 16
      %v3014 = vrot.slane %v3012, 3
      %v3015 = vor.u32 %v3011, %v3014
      %v3017 = vshrl.u32 %v2675, 16
      %v3019 = vrot.slane %v3017, 2
      %v3020 = vshll.u32 %v2675, 16
      %v3022 = vrot.slane %v3020, 3
      %v3023 = vor.u32 %v3019, %v3022
      %v3024 = vsel %vm3007, %v3015, %v3023
      %v3026 = vshrl.u32 %v2676, 16
      %v3028 = vrot.slane %v3026, 2
      %v3029 = vshll.u32 %v2676, 16
      %v3031 = vrot.slane %v3029, 3
      %v3032 = vor.u32 %v3028, %v3031
      %v3033 = vsel %vm3007, %v3023, %v3032
      %v3035 = vshrl.u32 %v2677, 16
      %v3037 = vrot.slane %v3035, 2
      %v3038 = vshll.u32 %v2677, 16
      %v3040 = vrot.slane %v3038, 3
      %v3041 = vor.u32 %v3037, %v3040
      %v3042 = vsel %vm3007, %v3032, %v3041
      %v3044 = vshrl.u32 %v2678, 16
      %v3046 = vrot.slane %v3044, 2
      %v3047 = vshll.u32 %v2678, 16
      %v3049 = vrot.slane %v3047, 3
      %v3050 = vor.u32 %v3046, %v3049
      %v3051 = vsel %vm3007, %v3041, %v3050
      %v3053 = vshrl.u32 %v2679, 16
      %v3055 = vrot.slane %v3053, 2
      %v3056 = vshll.u32 %v2679, 16
      %v3058 = vrot.slane %v3056, 3
      %v3059 = vor.u32 %v3055, %v3058
      %v3060 = vsel %vm3007, %v3050, %v3059
      %v3062 = vshrl.u32 %v2680, 16
      %v3064 = vrot.slane %v3062, 2
      %v3065 = vshll.u32 %v2680, 16
      %v3067 = vrot.slane %v3065, 3
      %v3068 = vor.u32 %v3064, %v3067
      %v3069 = vsel %vm3007, %v3059, %v3068
      %v3071 = vshrl.u32 %v2681, 16
      %v3073 = vrot.slane %v3071, 2
      %v3074 = vshll.u32 %v2681, 16
      %v3076 = vrot.slane %v3074, 3
      %v3077 = vor.u32 %v3073, %v3076
      %v3078 = vsel %vm3007, %v3068, %v3077
      %v3080 = vshrl.u32 %v2682, 16
      %v3082 = vrot.slane %v3080, 2
      %v3083 = vshll.u32 %v2682, 16
      %v3085 = vrot.slane %v3083, 3
      %v3086 = vor.u32 %v3082, %v3085
      %v3087 = vsel %vm3007, %v3077, %v3086
      %v3089 = vshrl.u32 %v2683, 16
      %v3091 = vrot.slane %v3089, 2
      %v3092 = vshll.u32 %v2683, 16
      %v3094 = vrot.slane %v3092, 3
      %v3095 = vor.u32 %v3091, %v3094
      %v3096 = vsel %vm3007, %v3086, %v3095
      %v3098 = vshrl.u32 %v2684, 16
      %v3100 = vrot.slane %v3098, 2
      %v3101 = vshll.u32 %v2684, 16
      %v3103 = vrot.slane %v3101, 3
      %v3104 = vor.u32 %v3100, %v3103
      %v3105 = vsel %vm3007, %v3095, %v3104
      %v3107 = vshrl.u32 %v2685, 16
      %v3109 = vrot.slane %v3107, 2
      %v3110 = vshll.u32 %v2685, 16
      %v3112 = vrot.slane %v3110, 3
      %v3113 = vor.u32 %v3109, %v3112
      %v3114 = vsel %vm3007, %v3104, %v3113
      %v3116 = vshrl.u32 %v2686, 16
      %v3118 = vrot.slane %v3116, 2
      %v3119 = vshll.u32 %v2686, 16
      %v3121 = vrot.slane %v3119, 3
      %v3122 = vor.u32 %v3118, %v3121
      %v3123 = vsel %vm3007, %v3113, %v3122
      %v3125 = vshrl.u32 %v2687, 16
      %v3127 = vrot.slane %v3125, 2
      %v3128 = vshll.u32 %v2687, 16
      %v3130 = vrot.slane %v3128, 3
      %v3131 = vor.u32 %v3127, %v3130
      %v3132 = vsel %vm3007, %v3122, %v3131
      %v3134 = vshrl.u32 %v2688, 16
      %v3136 = vrot.slane %v3134, 2
      %v3137 = vshll.u32 %v2688, 16
      %v3139 = vrot.slane %v3137, 3
      %v3140 = vor.u32 %v3136, %v3139
      %v3141 = vsel %vm3007, %v3131, %v3140
      %v3143 = vshrl.u32 %v2689, 16
      %v3145 = vrot.slane %v3143, 2
      %v3146 = vshll.u32 %v2689, 16
      %v3148 = vrot.slane %v3146, 3
      %v3149 = vor.u32 %v3145, %v3148
      %v3150 = vsel %vm3007, %v3140, %v3149
      %v3152 = vshrl.u32 %v2690, 16
      %v3154 = vrot.slane %v3152, 2
      %v3155 = vshll.u32 %v2690, 16
      %v3157 = vrot.slane %v3155, 3
      %v3158 = vor.u32 %v3154, %v3157
      %v3159 = vsel %vm3007, %v3149, %v3158
      %v3161 = vshrl.u32 %v2691, 16
      %v3163 = vrot.slane %v3161, 2
      %v3164 = vshll.u32 %v2691, 16
      %v3166 = vrot.slane %v3164, 3
      %v3167 = vor.u32 %v3163, %v3166
      %v3168 = vsel %vm3007, %v3158, %v3167
      %v3170 = vshrl.u32 %v3006, 16
      %v3172 = vrot.slane %v3170, 2
      %v3173 = vshll.u32 %v3006, 16
      %v3175 = vrot.slane %v3173, 3
      %v3176 = vor.u32 %v3172, %v3175
      %v3177 = vsel %vm3007, %v3167, %v3176
      %v3179 = vsel %vm518, %v3024, 0
      %v3182 = vsel %vm518, %v3033, 0
      %v3185 = vsel %vm518, %v3042, 0
      %v3188 = vsel %vm518, %v3051, 0
      %v3191 = vsel %vm518, %v3060, 0
      %v3194 = vsel %vm518, %v3069, 0
      %v3197 = vsel %vm518, %v3078, 0
      %v3200 = vsel %vm518, %v3087, 0
      %v3203 = vsel %vm518, %v3096, 0
      %v3206 = vsel %vm518, %v3105, 0
      %v3209 = vsel %vm518, %v3114, 0
      %v3212 = vsel %vm518, %v3123, 0
      %v3215 = vsel %vm518, %v3132, 0
      %v3218 = vsel %vm518, %v3141, 0
      %v3221 = vsel %vm518, %v3150, 0
      %v3224 = vsel %vm518, %v3159, 0
      %v3227 = vsel %vm518, %v3168, 0
      %v3230 = vsel %vm518, %v3177, 0
      %v3233 = vsel %vm573, %v3003, 0
      %3235 = vmatprep.subr.bf16.mxu0 0
      %3236 = vmatpush1.bf16.msra.mxu0 %v3233
      %3237 = vmatprep.subr.bf16.mxu0 0
      %3238 = vmatpush1.bf16.msra.mxu0 0
      %3239 = vmatprep.subr.bf16.mxu0 0
      %3240 = vmatpush1.bf16.msra.mxu0 0
      %3241 = vmatprep.subr.bf16.mxu0 0
      %3242 = vmatpush1.bf16.msra.mxu0 0
      %3243 = vmatprep.subr.bf16.mxu0 0
      %3244 = vmatpush1.bf16.msra.mxu0 0
      %3245 = vmatprep.subr.bf16.mxu0 0
      %3246 = vmatpush1.bf16.msra.mxu0 0
      %3247 = vmatprep.subr.bf16.mxu0 0
      %3248 = vmatpush1.bf16.msra.mxu0 0
      %3249 = vmatprep.subr.bf16.mxu0 0
      %3250 = vmatpush1.bf16.msra.mxu0 0
      %3251 = vmatprep.subr.bf16.mxu0 0
      %3252 = vmatpush1.bf16.msra.mxu0 0
      %3253 = vmatprep.subr.bf16.mxu0 0
      %3254 = vmatpush1.bf16.msra.mxu0 0
      %3255 = vmatprep.subr.bf16.mxu0 0
      %3256 = vmatpush1.bf16.msra.mxu0 0
      %3257 = vmatprep.subr.bf16.mxu0 0
      %3258 = vmatpush1.bf16.msra.mxu0 0
      %3259 = vmatprep.subr.bf16.mxu0 0
      %3260 = vmatpush1.bf16.msra.mxu0 0
      %3261 = vmatprep.subr.bf16.mxu0 0
      %3262 = vmatpush1.bf16.msra.mxu0 0
      %3263 = vmatprep.subr.bf16.mxu0 0
      %3264 = vmatpush1.bf16.msra.mxu0 0
      %3265 = vmatprep.subr.bf16.mxu0 0
      %3266 = vmatpush1.bf16.msra.mxu0 0
      %3267 = vmatprep.mubr.bf16.mxu0 0
      %3268 = vmatmul.mubr.bf16.gmra.mrb[0].mxu0 %v3179
      %v3269 = vpop.f32.mrb[0].mxu0
      %v3270 = vadd.f32 0.0, %v3269
      %v3271 = vpop.f32.mrb[0].mxu0
      %v3272 = vpop.f32.mrb[0].mxu0
      %v3273 = vadd.f32 0.0, %v3272
      %v3274 = vpop.f32.mrb[0].mxu0
      %3275 = vmatprep.mubr.bf16.mxu0 0
      %3276 = vmatmul.mubr.bf16.gmra.mrb[0].mxu0 %v3182
      %v3277 = vpop.f32.mrb[0].mxu0
      %v3278 = vadd.f32 0.0, %v3277
      %v3279 = vpop.f32.mrb[0].mxu0
      %v3280 = vpop.f32.mrb[0].mxu0
      %v3281 = vadd.f32 0.0, %v3280
      %v3282 = vpop.f32.mrb[0].mxu0
      %3283 = vmatprep.mubr.bf16.mxu0 0
      %3284 = vmatmul.mubr.bf16.gmra.mrb[0].mxu0 %v3185
      %v3285 = vpop.f32.mrb[0].mxu0
      %v3286 = vadd.f32 0.0, %v3285
      %v3287 = vpop.f32.mrb[0].mxu0
      %v3288 = vpop.f32.mrb[0].mxu0
      %v3289 = vadd.f32 0.0, %v3288
      %v3290 = vpop.f32.mrb[0].mxu0
      %3291 = vmatprep.mubr.bf16.mxu0 0
      %3292 = vmatmul.mubr.bf16.gmra.mrb[0].mxu0 %v3188
      %v3293 = vpop.f32.mrb[0].mxu0
      %v3294 = vadd.f32 0.0, %v3293
      %v3295 = vpop.f32.mrb[0].mxu0
      %v3296 = vpop.f32.mrb[0].mxu0
      %v3297 = vadd.f32 0.0, %v3296
      %v3298 = vpop.f32.mrb[0].mxu0
      %3299 = vmatprep.mubr.bf16.mxu0 0
      %3300 = vmatmul.mubr.bf16.gmra.mrb[0].mxu0 %v3191
      %v3301 = vpop.f32.mrb[0].mxu0
      %v3302 = vadd.f32 0.0, %v3301
      %v3303 = vpop.f32.mrb[0].mxu0
      %v3304 = vpop.f32.mrb[0].mxu0
      %v3305 = vadd.f32 0.0, %v3304
      %v3306 = vpop.f32.mrb[0].mxu0
      %3307 = vmatprep.mubr.bf16.mxu0 0
      %3308 = vmatmul.mubr.bf16.gmra.mrb[0].mxu0 %v3194
      %v3309 = vpop.f32.mrb[0].mxu0
      %v3310 = vadd.f32 0.0, %v3309
      %v3311 = vpop.f32.mrb[0].mxu0
      %v3312 = vpop.f32.mrb[0].mxu0
      %v3313 = vadd.f32 0.0, %v3312
      %v3314 = vpop.f32.mrb[0].mxu0
      %3315 = vmatprep.mubr.bf16.mxu0 0
      %3316 = vmatmul.mubr.bf16.gmra.mrb[0].mxu0 %v3197
      %v3317 = vpop.f32.mrb[0].mxu0
      %v3318 = vadd.f32 0.0, %v3317
      %v3319 = vpop.f32.mrb[0].mxu0
      %v3320 = vpop.f32.mrb[0].mxu0
      %v3321 = vadd.f32 0.0, %v3320
      %v3322 = vpop.f32.mrb[0].mxu0
      %3323 = vmatprep.mubr.bf16.mxu0 0
      %3324 = vmatmul.mubr.bf16.gmra.mrb[0].mxu0 %v3200
      %v3325 = vpop.f32.mrb[0].mxu0
      %v3326 = vadd.f32 0.0, %v3325
      %v3327 = vpop.f32.mrb[0].mxu0
      %v3328 = vpop.f32.mrb[0].mxu0
      %v3329 = vadd.f32 0.0, %v3328
      %v3330 = vpop.f32.mrb[0].mxu0
      %3331 = vmatprep.mubr.bf16.mxu0 0
      %3332 = vmatmul.mubr.bf16.gmra.mrb[0].mxu0 %v3203
      %v3333 = vpop.f32.mrb[0].mxu0
      %v3334 = vadd.f32 0.0, %v3333
      %v3335 = vpop.f32.mrb[0].mxu0
      %v3336 = vpop.f32.mrb[0].mxu0
      %v3337 = vadd.f32 0.0, %v3336
      %v3338 = vpop.f32.mrb[0].mxu0
      %3339 = vmatprep.mubr.bf16.mxu0 0
      %3340 = vmatmul.mubr.bf16.gmra.mrb[0].mxu0 %v3206
      %v3341 = vpop.f32.mrb[0].mxu0
      %v3342 = vadd.f32 0.0, %v3341
      %v3343 = vpop.f32.mrb[0].mxu0
      %v3344 = vpop.f32.mrb[0].mxu0
      %v3345 = vadd.f32 0.0, %v3344
      %v3346 = vpop.f32.mrb[0].mxu0
      %3347 = vmatprep.mubr.bf16.mxu0 0
      %3348 = vmatmul.mubr.bf16.gmra.mrb[0].mxu0 %v3209
      %v3349 = vpop.f32.mrb[0].mxu0
      %v3350 = vadd.f32 0.0, %v3349
      %v3351 = vpop.f32.mrb[0].mxu0
      %v3352 = vpop.f32.mrb[0].mxu0
      %v3353 = vadd.f32 0.0, %v3352
      %v3354 = vpop.f32.mrb[0].mxu0
      %3355 = vmatprep.mubr.bf16.mxu0 0
      %3356 = vmatmul.mubr.bf16.gmra.mrb[0].mxu0 %v3212
      %v3357 = vpop.f32.mrb[0].mxu0
      %v3358 = vadd.f32 0.0, %v3357
      %v3359 = vpop.f32.mrb[0].mxu0
      %v3360 = vpop.f32.mrb[0].mxu0
      %v3361 = vadd.f32 0.0, %v3360
      %v3362 = vpop.f32.mrb[0].mxu0
      %3363 = vmatprep.mubr.bf16.mxu0 0
      %3364 = vmatmul.mubr.bf16.gmra.mrb[0].mxu0 %v3215
      %v3365 = vpop.f32.mrb[0].mxu0
      %v3366 = vadd.f32 0.0, %v3365
      %v3367 = vpop.f32.mrb[0].mxu0
      %v3368 = vpop.f32.mrb[0].mxu0
      %v3369 = vadd.f32 0.0, %v3368
      %v3370 = vpop.f32.mrb[0].mxu0
      %3371 = vmatprep.mubr.bf16.mxu0 0
      %3372 = vmatmul.mubr.bf16.gmra.mrb[0].mxu0 %v3218
      %v3373 = vpop.f32.mrb[0].mxu0
      %v3374 = vadd.f32 0.0, %v3373
      %v3375 = vpop.f32.mrb[0].mxu0
      %v3376 = vpop.f32.mrb[0].mxu0
      %v3377 = vadd.f32 0.0, %v3376
      %v3378 = vpop.f32.mrb[0].mxu0
      %3379 = vmatprep.mubr.bf16.mxu0 0
      %3380 = vmatmul.mubr.bf16.gmra.mrb[0].mxu0 %v3221
      %v3381 = vpop.f32.mrb[0].mxu0
      %v3382 = vadd.f32 0.0, %v3381
      %v3383 = vpop.f32.mrb[0].mxu0
      %v3384 = vpop.f32.mrb[0].mxu0
      %v3385 = vadd.f32 0.0, %v3384
      %v3386 = vpop.f32.mrb[0].mxu0
      %3387 = vmatprep.mubr.bf16.mxu0 0
      %3388 = vmatmul.mubr.bf16.gmra.mrb[0].mxu0 %v3224
      %v3389 = vpop.f32.mrb[0].mxu0
      %v3390 = vadd.f32 0.0, %v3389
      %v3391 = vpop.f32.mrb[0].mxu0
      %v3392 = vpop.f32.mrb[0].mxu0
      %v3393 = vadd.f32 0.0, %v3392
      %v3394 = vpop.f32.mrb[0].mxu0
      %3395 = vmatprep.mubr.bf16.mxu0 0
      %3396 = vmatmul.mubr.bf16.gmra.mrb[0].mxu0 %v3227
      %v3397 = vpop.f32.mrb[0].mxu0
      %v3398 = vadd.f32 0.0, %v3397
      %v3399 = vpop.f32.mrb[0].mxu0
      %v3400 = vpop.f32.mrb[0].mxu0
      %v3401 = vadd.f32 0.0, %v3400
      %v3402 = vpop.f32.mrb[0].mxu0
      %3403 = vmatprep.mubr.bf16.mxu0 0
      %3404 = vmatmul.mubr.bf16.gmra.mrb[0].mxu0 %v3230
      %v3405 = vpop.f32.mrb[0].mxu0
      %v3406 = vadd.f32 0.0, %v3405
      %v3407 = vpop.f32.mrb[0].mxu0
      %v3408 = vpop.f32.mrb[0].mxu0
      %v3409 = vadd.f32 0.0, %v3408
      %v3410 = vpop.f32.mrb[0].mxu0
      %3411 = vdwg.mxu0
      %v3412 = vadd.f32 %v2964, %v3270
      %v3413 = vadd.f32 %v2965, %v3273
      %v3414 = vadd.f32 %v2966, %v3278
      %v3415 = vadd.f32 %v2967, %v3281
      %v3416 = vadd.f32 %v2968, %v3286
      %v3417 = vadd.f32 %v2969, %v3289
      %v3418 = vadd.f32 %v2970, %v3294
      %v3419 = vadd.f32 %v2971, %v3297
      %v3420 = vadd.f32 %v2972, %v3302
      %v3421 = vadd.f32 %v2973, %v3305
      %v3422 = vadd.f32 %v2974, %v3310
      %v3423 = vadd.f32 %v2975, %v3313
      %v3424 = vadd.f32 %v2976, %v3318
      %v3425 = vadd.f32 %v2977, %v3321
      %v3426 = vadd.f32 %v2978, %v3326
      %v3427 = vadd.f32 %v2979, %v3329
      %v3428 = vadd.f32 %v2980, %v3334
      %v3429 = vadd.f32 %v2981, %v3337
      %v3430 = vadd.f32 %v2982, %v3342
      %v3431 = vadd.f32 %v2983, %v3345
      %v3432 = vadd.f32 %v2984, %v3350
      %v3433 = vadd.f32 %v2985, %v3353
      %v3434 = vadd.f32 %v2986, %v3358
      %v3435 = vadd.f32 %v2987, %v3361
      %v3436 = vadd.f32 %v2988, %v3366
      %v3437 = vadd.f32 %v2989, %v3369
      %v3438 = vadd.f32 %v2990, %v3374
      %v3439 = vadd.f32 %v2991, %v3377
      %v3440 = vadd.f32 %v2992, %v3382
      %v3441 = vadd.f32 %v2993, %v3385
      %v3442 = vadd.f32 %v2994, %v3390
      %v3443 = vadd.f32 %v2995, %v3393
      %v3444 = vadd.f32 %v2996, %v3398
      %v3445 = vadd.f32 %v2997, %v3401
      %v3446 = vadd.f32 %v2998, %v3406
      %v3447 = vadd.f32 %v2999, %v3409
      %v3448 = vld [vmem:[%s192 + $0x10] sm:$0x8]
      %v3449 = vmax.bf16 %v3448, 0
      %s3450 = scalar_lea.vmem %s1, 16
      %v3451 = vld [vmem:[%s3450] sm:$0x3]
      %v3453 = vunpack.c.l.b16 %v3449
      %v3454 = vpack.c.b16 %v2638, %v3453
      %vm3455 = vcmask 1044480
      %v3456 = vrot.slane %v3454, 3
      %v3457 = vrot.slane %v2675, 3
      %v3458 = vsel %vm3455, %v3456, %v3457
      %v3459 = vrot.slane %v2676, 3
      %v3460 = vsel %vm3455, %v3457, %v3459
      %v3461 = vrot.slane %v2677, 3
      %v3462 = vsel %vm3455, %v3459, %v3461
      %v3463 = vrot.slane %v2678, 3
      %v3464 = vsel %vm3455, %v3461, %v3463
      %v3465 = vrot.slane %v2679, 3
      %v3466 = vsel %vm3455, %v3463, %v3465
      %v3467 = vrot.slane %v2680, 3
      %v3468 = vsel %vm3455, %v3465, %v3467
      %v3469 = vrot.slane %v2681, 3
      %v3470 = vsel %vm3455, %v3467, %v3469
      %v3471 = vrot.slane %v2682, 3
      %v3472 = vsel %vm3455, %v3469, %v3471
      %v3473 = vrot.slane %v2683, 3
      %v3474 = vsel %vm3455, %v3471, %v3473
      %v3475 = vrot.slane %v2684, 3
      %v3476 = vsel %vm3455, %v3473, %v3475
      %v3477 = vrot.slane %v2685, 3
      %v3478 = vsel %vm3455, %v3475, %v3477
      %v3479 = vrot.slane %v2686, 3
      %v3480 = vsel %vm3455, %v3477, %v3479
      %v3481 = vrot.slane %v2687, 3
      %v3482 = vsel %vm3455, %v3479, %v3481
      %v3483 = vrot.slane %v2688, 3
      %v3484 = vsel %vm3455, %v3481, %v3483
      %v3485 = vrot.slane %v2689, 3
      %v3486 = vsel %vm3455, %v3483, %v3485
      %v3487 = vrot.slane %v2690, 3
      %v3488 = vsel %vm3455, %v3485, %v3487
      %v3489 = vrot.slane %v2691, 3
      %v3490 = vsel %vm3455, %v3487, %v3489
      %v3491 = vrot.slane %v3006, 3
      %v3492 = vsel %vm3455, %v3489, %v3491
      %v3494 = vsel %vm518, %v3458, 0
      %v3497 = vsel %vm518, %v3460, 0
      %v3500 = vsel %vm518, %v3462, 0
      %v3503 = vsel %vm518, %v3464, 0
      %v3506 = vsel %vm518, %v3466, 0
      %v3509 = vsel %vm518, %v3468, 0
      %v3512 = vsel %vm518, %v3470, 0
      %v3515 = vsel %vm518, %v3472, 0
      %v3518 = vsel %vm518, %v3474, 0
      %v3521 = vsel %vm518, %v3476, 0
      %v3524 = vsel %vm518, %v3478, 0
      %v3527 = vsel %vm518, %v3480, 0
      %v3530 = vsel %vm518, %v3482, 0
      %v3533 = vsel %vm518, %v3484, 0
      %v3536 = vsel %vm518, %v3486, 0
      %v3539 = vsel %vm518, %v3488, 0
      %v3542 = vsel %vm518, %v3490, 0
      %v3545 = vsel %vm518, %v3492, 0
      %v3548 = vsel %vm573, %v3451, 0
      %3550 = vmatprep.subr.bf16.mxu0 0
      %3551 = vmatpush1.bf16.msra.mxu0 %v3548
      %3552 = vmatprep.subr.bf16.mxu0 0
      %3553 = vmatpush1.bf16.msra.mxu0 0
      %3554 = vmatprep.subr.bf16.mxu0 0
      %3555 = vmatpush1.bf16.msra.mxu0 0
      %3556 = vmatprep.subr.bf16.mxu0 0
      %3557 = vmatpush1.bf16.msra.mxu0 0
      %3558 = vmatprep.subr.bf16.mxu0 0
      %3559 = vmatpush1.bf16.msra.mxu0 0
      %3560 = vmatprep.subr.bf16.mxu0 0
      %3561 = vmatpush1.bf16.msra.mxu0 0
      %3562 = vmatprep.subr.bf16.mxu0 0
      %3563 = vmatpush1.bf16.msra.mxu0 0
      %3564 = vmatprep.subr.bf16.mxu0 0
      %3565 = vmatpush1.bf16.msra.mxu0 0
      %3566 = vmatprep.subr.bf16.mxu0 0
      %3567 = vmatpush1.bf16.msra.mxu0 0
      %3568 = vmatprep.subr.bf16.mxu0 0
      %3569 = vmatpush1.bf16.msra.mxu0 0
      %3570 = vmatprep.subr.bf16.mxu0 0
      %3571 = vmatpush1.bf16.msra.mxu0 0
      %3572 = vmatprep.subr.bf16.mxu0 0
      %3573 = vmatpush1.bf16.msra.mxu0 0
      %3574 = vmatprep.subr.bf16.mxu0 0
      %3575 = vmatpush1.bf16.msra.mxu0 0
      %3576 = vmatprep.subr.bf16.mxu0 0
      %3577 = vmatpush1.bf16.msra.mxu0 0
      %3578 = vmatprep.subr.bf16.mxu0 0
      %3579 = vmatpush1.bf16.msra.mxu0 0
      %3580 = vmatprep.subr.bf16.mxu0 0
      %3581 = vmatpush1.bf16.msra.mxu0 0
      %3582 = vmatprep.mubr.bf16.mxu0 0
      %3583 = vmatmul.mubr.bf16.gmra.mrb[0].mxu0 %v3494
      %v3584 = vpop.f32.mrb[0].mxu0
      %v3585 = vadd.f32 0.0, %v3584
      %v3586 = vpop.f32.mrb[0].mxu0
      %v3587 = vpop.f32.mrb[0].mxu0
      %v3588 = vadd.f32 0.0, %v3587
      %v3589 = vpop.f32.mrb[0].mxu0
      %3590 = vmatprep.mubr.bf16.mxu0 0
      %3591 = vmatmul.mubr.bf16.gmra.mrb[0].mxu0 %v3497
      %v3592 = vpop.f32.mrb[0].mxu0
      %v3593 = vadd.f32 0.0, %v3592
      %v3594 = vpop.f32.mrb[0].mxu0
      %v3595 = vpop.f32.mrb[0].mxu0
      %v3596 = vadd.f32 0.0, %v3595
      %v3597 = vpop.f32.mrb[0].mxu0
      %3598 = vmatprep.mubr.bf16.mxu0 0
      %3599 = vmatmul.mubr.bf16.gmra.mrb[0].mxu0 %v3500
      %v3600 = vpop.f32.mrb[0].mxu0
      %v3601 = vadd.f32 0.0, %v3600
      %v3602 = vpop.f32.mrb[0].mxu0
      %v3603 = vpop.f32.mrb[0].mxu0
      %v3604 = vadd.f32 0.0, %v3603
      %v3605 = vpop.f32.mrb[0].mxu0
      %3606 = vmatprep.mubr.bf16.mxu0 0
      %3607 = vmatmul.mubr.bf16.gmra.mrb[0].mxu0 %v3503
      %v3608 = vpop.f32.mrb[0].mxu0
      %v3609 = vadd.f32 0.0, %v3608
      %v3610 = vpop.f32.mrb[0].mxu0
      %v3611 = vpop.f32.mrb[0].mxu0
      %v3612 = vadd.f32 0.0, %v3611
      %v3613 = vpop.f32.mrb[0].mxu0
      %3614 = vmatprep.mubr.bf16.mxu0 0
      %3615 = vmatmul.mubr.bf16.gmra.mrb[0].mxu0 %v3506
      %v3616 = vpop.f32.mrb[0].mxu0
      %v3617 = vadd.f32 0.0, %v3616
      %v3618 = vpop.f32.mrb[0].mxu0
      %v3619 = vpop.f32.mrb[0].mxu0
      %v3620 = vadd.f32 0.0, %v3619
      %v3621 = vpop.f32.mrb[0].mxu0
      %3622 = vmatprep.mubr.bf16.mxu0 0
      %3623 = vmatmul.mubr.bf16.gmra.mrb[0].mxu0 %v3509
      %v3624 = vpop.f32.mrb[0].mxu0
      %v3625 = vadd.f32 0.0, %v3624
      %v3626 = vpop.f32.mrb[0].mxu0
      %v3627 = vpop.f32.mrb[0].mxu0
      %v3628 = vadd.f32 0.0, %v3627
      %v3629 = vpop.f32.mrb[0].mxu0
      %3630 = vmatprep.mubr.bf16.mxu0 0
      %3631 = vmatmul.mubr.bf16.gmra.mrb[0].mxu0 %v3512
      %v3632 = vpop.f32.mrb[0].mxu0
      %v3633 = vadd.f32 0.0, %v3632
      %v3634 = vpop.f32.mrb[0].mxu0
      %v3635 = vpop.f32.mrb[0].mxu0
      %v3636 = vadd.f32 0.0, %v3635
      %v3637 = vpop.f32.mrb[0].mxu0
      %3638 = vmatprep.mubr.bf16.mxu0 0
      %3639 = vmatmul.mubr.bf16.gmra.mrb[0].mxu0 %v3515
      %v3640 = vpop.f32.mrb[0].mxu0
      %v3641 = vadd.f32 0.0, %v3640
      %v3642 = vpop.f32.mrb[0].mxu0
      %v3643 = vpop.f32.mrb[0].mxu0
      %v3644 = vadd.f32 0.0, %v3643
      %v3645 = vpop.f32.mrb[0].mxu0
      %3646 = vmatprep.mubr.bf16.mxu0 0
      %3647 = vmatmul.mubr.bf16.gmra.mrb[0].mxu0 %v3518
      %v3648 = vpop.f32.mrb[0].mxu0
      %v3649 = vadd.f32 0.0, %v3648
      %v3650 = vpop.f32.mrb[0].mxu0
      %v3651 = vpop.f32.mrb[0].mxu0
      %v3652 = vadd.f32 0.0, %v3651
      %v3653 = vpop.f32.mrb[0].mxu0
      %3654 = vmatprep.mubr.bf16.mxu0 0
      %3655 = vmatmul.mubr.bf16.gmra.mrb[0].mxu0 %v3521
      %v3656 = vpop.f32.mrb[0].mxu0
      %v3657 = vadd.f32 0.0, %v3656
      %v3658 = vpop.f32.mrb[0].mxu0
      %v3659 = vpop.f32.mrb[0].mxu0
      %v3660 = vadd.f32 0.0, %v3659
      %v3661 = vpop.f32.mrb[0].mxu0
      %3662 = vmatprep.mubr.bf16.mxu0 0
      %3663 = vmatmul.mubr.bf16.gmra.mrb[0].mxu0 %v3524
      %v3664 = vpop.f32.mrb[0].mxu0
      %v3665 = vadd.f32 0.0, %v3664
      %v3666 = vpop.f32.mrb[0].mxu0
      %v3667 = vpop.f32.mrb[0].mxu0
      %v3668 = vadd.f32 0.0, %v3667
      %v3669 = vpop.f32.mrb[0].mxu0
      %3670 = vmatprep.mubr.bf16.mxu0 0
      %3671 = vmatmul.mubr.bf16.gmra.mrb[0].mxu0 %v3527
      %v3672 = vpop.f32.mrb[0].mxu0
      %v3673 = vadd.f32 0.0, %v3672
      %v3674 = vpop.f32.mrb[0].mxu0
      %v3675 = vpop.f32.mrb[0].mxu0
      %v3676 = vadd.f32 0.0, %v3675
      %v3677 = vpop.f32.mrb[0].mxu0
      %3678 = vmatprep.mubr.bf16.mxu0 0
      %3679 = vmatmul.mubr.bf16.gmra.mrb[0].mxu0 %v3530
      %v3680 = vpop.f32.mrb[0].mxu0
      %v3681 = vadd.f32 0.0, %v3680
      %v3682 = vpop.f32.mrb[0].mxu0
      %v3683 = vpop.f32.mrb[0].mxu0
      %v3684 = vadd.f32 0.0, %v3683
      %v3685 = vpop.f32.mrb[0].mxu0
      %3686 = vmatprep.mubr.bf16.mxu0 0
      %3687 = vmatmul.mubr.bf16.gmra.mrb[0].mxu0 %v3533
      %v3688 = vpop.f32.mrb[0].mxu0
      %v3689 = vadd.f32 0.0, %v3688
      %v3690 = vpop.f32.mrb[0].mxu0
      %v3691 = vpop.f32.mrb[0].mxu0
      %v3692 = vadd.f32 0.0, %v3691
      %v3693 = vpop.f32.mrb[0].mxu0
      %3694 = vmatprep.mubr.bf16.mxu0 0
      %3695 = vmatmul.mubr.bf16.gmra.mrb[0].mxu0 %v3536
      %v3696 = vpop.f32.mrb[0].mxu0
      %v3697 = vadd.f32 0.0, %v3696
      %v3698 = vpop.f32.mrb[0].mxu0
      %v3699 = vpop.f32.mrb[0].mxu0
      %v3700 = vadd.f32 0.0, %v3699
      %v3701 = vpop.f32.mrb[0].mxu0
      %3702 = vmatprep.mubr.bf16.mxu0 0
      %3703 = vmatmul.mubr.bf16.gmra.mrb[0].mxu0 %v3539
      %v3704 = vpop.f32.mrb[0].mxu0
      %v3705 = vadd.f32 0.0, %v3704
      %v3706 = vpop.f32.mrb[0].mxu0
      %v3707 = vpop.f32.mrb[0].mxu0
      %v3708 = vadd.f32 0.0, %v3707
      %v3709 = vpop.f32.mrb[0].mxu0
      %3710 = vmatprep.mubr.bf16.mxu0 0
      %3711 = vmatmul.mubr.bf16.gmra.mrb[0].mxu0 %v3542
      %v3712 = vpop.f32.mrb[0].mxu0
      %v3713 = vadd.f32 0.0, %v3712
      %v3714 = vpop.f32.mrb[0].mxu0
      %v3715 = vpop.f32.mrb[0].mxu0
      %v3716 = vadd.f32 0.0, %v3715
      %v3717 = vpop.f32.mrb[0].mxu0
      %3718 = vmatprep.mubr.bf16.mxu0 0
      %3719 = vmatmul.mubr.bf16.gmra.mrb[0].mxu0 %v3545
      %v3720 = vpop.f32.mrb[0].mxu0
      %v3721 = vadd.f32 0.0, %v3720
      %v3722 = vpop.f32.mrb[0].mxu0
      %v3723 = vpop.f32.mrb[0].mxu0
      %v3724 = vadd.f32 0.0, %v3723
      %v3725 = vpop.f32.mrb[0].mxu0
      %3726 = vdwg.mxu0
      %v3727 = vadd.f32 %v3412, %v3585
      %v3728 = vadd.f32 %v3413, %v3588
      %v3729 = vadd.f32 %v3414, %v3593
      %v3730 = vadd.f32 %v3415, %v3596
      %v3731 = vadd.f32 %v3416, %v3601
      %v3732 = vadd.f32 %v3417, %v3604
      %v3733 = vadd.f32 %v3418, %v3609
      %v3734 = vadd.f32 %v3419, %v3612
      %v3735 = vadd.f32 %v3420, %v3617
      %v3736 = vadd.f32 %v3421, %v3620
      %v3737 = vadd.f32 %v3422, %v3625
      %v3738 = vadd.f32 %v3423, %v3628
      %v3739 = vadd.f32 %v3424, %v3633
      %v3740 = vadd.f32 %v3425, %v3636
      %v3741 = vadd.f32 %v3426, %v3641
      %v3742 = vadd.f32 %v3427, %v3644
      %v3743 = vadd.f32 %v3428, %v3649
      %v3744 = vadd.f32 %v3429, %v3652
      %v3745 = vadd.f32 %v3430, %v3657
      %v3746 = vadd.f32 %v3431, %v3660
      %v3747 = vadd.f32 %v3432, %v3665
      %v3748 = vadd.f32 %v3433, %v3668
      %v3749 = vadd.f32 %v3434, %v3673
      %v3750 = vadd.f32 %v3435, %v3676
      %v3751 = vadd.f32 %v3436, %v3681
      %v3752 = vadd.f32 %v3437, %v3684
      %v3753 = vadd.f32 %v3438, %v3689
      %v3754 = vadd.f32 %v3439, %v3692
      %v3755 = vadd.f32 %v3440, %v3697
      %v3756 = vadd.f32 %v3441, %v3700
      %v3757 = vadd.f32 %v3442, %v3705
      %v3758 = vadd.f32 %v3443, %v3708
      %v3759 = vadd.f32 %v3444, %v3713
      %v3760 = vadd.f32 %v3445, %v3716
      %v3761 = vadd.f32 %v3446, %v3721
      %v3762 = vadd.f32 %v3447, %v3724
      %v3763 = vld [vmem:[%s2] sm:$0x1]
      %v3765 = vlaneseq
      %v3766 = vshrl.u32 %v3765, 7
      %v3767 = vsub.s32 0, %v3766
      %v3768 = vrot.slane %v3763, %v3767
      %v3770 = vmul.f32 %v3727, %v3768
      %v3771 = vmul.f32 %v3728, %v3768
      %v3772 = vmul.f32 %v3729, %v3768
      %v3773 = vmul.f32 %v3730, %v3768
      %v3774 = vmul.f32 %v3731, %v3768
      %v3775 = vmul.f32 %v3732, %v3768
      %v3776 = vmul.f32 %v3733, %v3768
      %v3777 = vmul.f32 %v3734, %v3768
      %v3778 = vmul.f32 %v3735, %v3768
      %v3779 = vmul.f32 %v3736, %v3768
      %v3780 = vmul.f32 %v3737, %v3768
      %v3781 = vmul.f32 %v3738, %v3768
      %v3782 = vmul.f32 %v3739, %v3768
      %v3783 = vmul.f32 %v3740, %v3768
      %v3784 = vmul.f32 %v3741, %v3768
      %v3785 = vmul.f32 %v3742, %v3768
      %v3786 = vmul.f32 %v3743, %v3768
      %v3787 = vmul.f32 %v3744, %v3768
      %v3788 = vmul.f32 %v3745, %v3768
      %v3789 = vmul.f32 %v3746, %v3768
      %v3790 = vmul.f32 %v3747, %v3768
      %v3791 = vmul.f32 %v3748, %v3768
      %v3792 = vmul.f32 %v3749, %v3768
      %v3793 = vmul.f32 %v3750, %v3768
      %v3794 = vmul.f32 %v3751, %v3768
      %v3795 = vmul.f32 %v3752, %v3768
      %v3796 = vmul.f32 %v3753, %v3768
      %v3797 = vmul.f32 %v3754, %v3768
      %v3798 = vmul.f32 %v3755, %v3768
      %v3799 = vmul.f32 %v3756, %v3768
      %v3800 = vmul.f32 %v3757, %v3768
      %v3801 = vmul.f32 %v3758, %v3768
      %v3802 = vmul.f32 %v3759, %v3768
      %v3803 = vmul.f32 %v3760, %v3768
      %v3804 = vmul.f32 %v3761, %v3768
      %v3805 = vmul.f32 %v3762, %v3768
      %v3806 = vld [vmem:[%s3] sm:$0x1]
      %v3808 = vlaneseq
      %v3809 = vshrl.u32 %v3808, 7
      %v3810 = vsub.s32 0, %v3809
      %v3811 = vrot.slane %v3806, %v3810
      %v3813 = vadd.f32 %v3770, %v3811
      %v3814 = vadd.f32 %v3771, %v3811
      %v3815 = vadd.f32 %v3772, %v3811
      %v3816 = vadd.f32 %v3773, %v3811
      %v3817 = vadd.f32 %v3774, %v3811
      %v3818 = vadd.f32 %v3775, %v3811
      %v3819 = vadd.f32 %v3776, %v3811
      %v3820 = vadd.f32 %v3777, %v3811
      %v3821 = vadd.f32 %v3778, %v3811
      %v3822 = vadd.f32 %v3779, %v3811
      %v3823 = vadd.f32 %v3780, %v3811
      %v3824 = vadd.f32 %v3781, %v3811
      %v3825 = vadd.f32 %v3782, %v3811
      %v3826 = vadd.f32 %v3783, %v3811
      %v3827 = vadd.f32 %v3784, %v3811
      %v3828 = vadd.f32 %v3785, %v3811
      %v3829 = vadd.f32 %v3786, %v3811
      %v3830 = vadd.f32 %v3787, %v3811
      %v3831 = vadd.f32 %v3788, %v3811
      %v3832 = vadd.f32 %v3789, %v3811
      %v3833 = vadd.f32 %v3790, %v3811
      %v3834 = vadd.f32 %v3791, %v3811
      %v3835 = vadd.f32 %v3792, %v3811
      %v3836 = vadd.f32 %v3793, %v3811
      %v3837 = vadd.f32 %v3794, %v3811
      %v3838 = vadd.f32 %v3795, %v3811
      %v3839 = vadd.f32 %v3796, %v3811
      %v3840 = vadd.f32 %v3797, %v3811
      %v3841 = vadd.f32 %v3798, %v3811
      %v3842 = vadd.f32 %v3799, %v3811
      %v3843 = vadd.f32 %v3800, %v3811
      %v3844 = vadd.f32 %v3801, %v3811
      %v3845 = vadd.f32 %v3802, %v3811
      %v3846 = vadd.f32 %v3803, %v3811
      %v3847 = vadd.f32 %v3804, %v3811
      %v3848 = vadd.f32 %v3805, %v3811
      %vm3849 = vcmask 64512
      %3850 = vst.msk [vmem:[%s197] sm:$0xff] %vm3849, %v3813
      %3851 = vst.msk [vmem:[%s197 + $0x8] sm:$0xff] %vm3849, %v3814
      %3852 = vst.msk [vmem:[%s197 + $0x10] sm:$0xff] %vm3849, %v3815
      %3853 = vst.msk [vmem:[%s197 + $0x18] sm:$0xff] %vm3849, %v3816
      %3854 = vst.msk [vmem:[%s197 + $0x20] sm:$0xff] %vm3849, %v3817
      %3855 = vst.msk [vmem:[%s197 + $0x28] sm:$0xff] %vm3849, %v3818
      %3856 = vst.msk [vmem:[%s197 + $0x30] sm:$0xff] %vm3849, %v3819
      %3857 = vst.msk [vmem:[%s197 + $0x38] sm:$0xff] %vm3849, %v3820
      %3858 = vst.msk [vmem:[%s197 + $0x40] sm:$0xff] %vm3849, %v3821
      %3859 = vst.msk [vmem:[%s197 + $0x48] sm:$0xff] %vm3849, %v3822
      %3860 = vst.msk [vmem:[%s197 + $0x50] sm:$0xff] %vm3849, %v3823
      %3861 = vst.msk [vmem:[%s197 + $0x58] sm:$0xff] %vm3849, %v3824
      %3862 = vst.msk [vmem:[%s197 + $0x60] sm:$0xff] %vm3849, %v3825
      %3863 = vst.msk [vmem:[%s197 + $0x68] sm:$0xff] %vm3849, %v3826
      %3864 = vst.msk [vmem:[%s197 + $0x70] sm:$0xff] %vm3849, %v3827
      %3865 = vst.msk [vmem:[%s197 + $0x78] sm:$0xff] %vm3849, %v3828
      %3866 = vst.msk [vmem:[%s197 + $0x80] sm:$0xff] %vm3849, %v3829
      %3867 = vst.msk [vmem:[%s197 + $0x88] sm:$0xff] %vm3849, %v3830
      %3868 = vst.msk [vmem:[%s197 + $0x90] sm:$0xff] %vm3849, %v3831
      %3869 = vst.msk [vmem:[%s197 + $0x98] sm:$0xff] %vm3849, %v3832
      %3870 = vst.msk [vmem:[%s197 + $0xa0] sm:$0xff] %vm3849, %v3833
      %3871 = vst.msk [vmem:[%s197 + $0xa8] sm:$0xff] %vm3849, %v3834
      %3872 = vst.msk [vmem:[%s197 + $0xb0] sm:$0xff] %vm3849, %v3835
      %3873 = vst.msk [vmem:[%s197 + $0xb8] sm:$0xff] %vm3849, %v3836
      %3874 = vst.msk [vmem:[%s197 + $0xc0] sm:$0xff] %vm3849, %v3837
      %3875 = vst.msk [vmem:[%s197 + $0xc8] sm:$0xff] %vm3849, %v3838
      %3876 = vst.msk [vmem:[%s197 + $0xd0] sm:$0xff] %vm3849, %v3839
      %3877 = vst.msk [vmem:[%s197 + $0xd8] sm:$0xff] %vm3849, %v3840
      %3878 = vst.msk [vmem:[%s197 + $0xe0] sm:$0xff] %vm3849, %v3841
      %3879 = vst.msk [vmem:[%s197 + $0xe8] sm:$0xff] %vm3849, %v3842
      %3880 = vst.msk [vmem:[%s197 + $0xf0] sm:$0xff] %vm3849, %v3843
      %3881 = vst.msk [vmem:[%s197 + $0xf8] sm:$0xff] %vm3849, %v3844
      %3882 = vst.msk [vmem:[%s197 + $0x100] sm:$0xff] %vm3849, %v3845
      %3883 = vst.msk [vmem:[%s197 + $0x108] sm:$0xff] %vm3849, %v3846
      %3884 = vst.msk [vmem:[%s197 + $0x110] sm:$0xff] %vm3849, %v3847
      %3885 = vst.msk [vmem:[%s197 + $0x118] sm:$0xff] %vm3849, %v3848
      %p3886 = scmp.lt.s32.totalorder %s15, 1
      %s3887 = scalar_select %p3886, %s15, 1
      %s3888 = smul.addr %s3887, 36
      %s3889 = smul.addr %s3888, 8
      %s3890 = scalar_lea.vmem %s4, %s3889
      // Predicated region
      $region37: #{conv_double_pallas.3} parent=35 // pred_check
        %p3891 = pneg %p122
      $region38: #{conv_double_pallas.3} parent=35 // pred_check_branch
        %3893 = sbr.rel (%p3891) target = $region40
      $region39: #{conv_double_pallas.3} parent=35 // pred_region
        _
      $region40: #{conv_double_pallas.3} parent=35 // pred_fallthru
        _
    $region36: #{conv_double_pallas.3} parent=5 // pred_fallthru
      _
    %p3894 = scmp.le.s32.totalorder 2, %s10
    // Predicated region
    $region41: #{conv_double_pallas.3} parent=5 // pred_check
      %p3895 = pneg %p3894
    $region42: #{conv_double_pallas.3} parent=5 // pred_check_branch
      %3897 = sbr.rel (%p3895) target = $region44
    $region43: #{conv_double_pallas.3} parent=5 // pred_region
      %s3898 = ssub.s32 %s10, 2
      // Predicated region
      $region45: #{conv_double_pallas.3} parent=43 // pred_check
        %p3899 = pneg %p128
      $region46: #{conv_double_pallas.3} parent=43 // pred_check_branch
        %3901 = sbr.rel (%p3899) target = $region48
      $region47: #{conv_double_pallas.3} parent=43 // pred_region
        %p3902 = scmp.lt.s32.totalorder %s16, 1
        %s3903 = scalar_select %p3902, %s16, 1
        %s3904 = smul.addr %s3903, 36
        %s3905 = smul.addr %s3904, 8
        %s3906 = scalar_lea.vmem %s4, %s3905
      $region48: #{conv_double_pallas.3} parent=43 // pred_fallthru
        _
    $region44: #{conv_double_pallas.3} parent=5 // pred_fallthru
      _
  $region6: #{conv_double_pallas.3} parent=0 // loop_footer
    %s14 = sadd.s32 1, %s10
  $region7: #{conv_double_pallas.3} parent=0 // loop_footer_branch
    %9 = sbr.rel target = $region3
  $region8: #{conv_double_pallas.3} parent=0 // loop_exit
    _

</llo_original>
